<compile_context>
chip_gen: v7x
topology: tpu7x:2x2x1
jax: 0.10.0
libtpu: 0.0.40
codegen_flags: <defaults>
</compile_context>

<pallas_src>
import functools
import math

import jax
import jax.numpy as jnp
from jax import lax
from jax.experimental import pallas as pl
from jax.experimental.pallas import tpu as pltpu


# --------------------------------------------------------------------------- #
# Kernel 1: fused PatchTransformerEncoder + regressor head (grid over batch)   #
# --------------------------------------------------------------------------- #
def _encoder_kernel(patches_ref, pos_ref,
                    pw_ref, pb_ref, wqkv_ref, bqkv_ref, wo_ref, bo_ref,
                    ln1g_ref, ln1b_ref, w1_ref, b1_ref, w2_ref, b2_ref,
                    ln2g_ref, ln2b_ref,
                    r1w_ref, r1b_ref, r2w_ref, r2b_ref, r3w_ref, r3b_ref,
                    y_ref, q_out_ref, *, S, E, nh, L, nq, eps):
    hd = E // nh
    scale = 1.0 / math.sqrt(hd)
    bf16 = jnp.bfloat16

    def mm(a, w):                       # bf16 MXU operands, f32 accumulation
        return jnp.dot(a.astype(bf16), w, preferred_element_type=jnp.float32)

    def layer_norm(h, g, b):            # elementwise path stays f32
        mu = jnp.mean(h, axis=-1, keepdims=True)
        var = jnp.mean(jnp.square(h - mu), axis=-1, keepdims=True)
        return (h - mu) * lax.rsqrt(var + eps) * g + b

    def split_heads(t):                 # (S, nh*hd) -> (nh, S, hd); lane slices only
        return jnp.stack([t[:, h * hd:(h + 1) * hd] for h in range(nh)], axis=0)

    # Patch-embedding conv (kernel = stride = P) == matmul over flattened patches,
    # plus the learned per-position encoding.
    x = mm(patches_ref[0], pw_ref[...]) + pb_ref[...] + pos_ref[...]        # (S, E)

    # TODO(synk): at production shapes (E=128, S~1e3) convert this unrolled loop to
    # lax.fori_loop with dynamic ref[l] indexing to bound vreg live ranges.
    for l in range(L):                              # 4 post-norm encoder layers
        # ---- self-attention: ONE fused QKV matmul, heads batched ----
        qkv = mm(x, wqkv_ref[l]) + bqkv_ref[l]                              # (S, 3E)
        qkv16 = qkv.astype(bf16)
        q = split_heads(qkv16[:, :E])                                       # (nh,S,hd)
        k = split_heads(qkv16[:, E:2 * E])
        v = split_heads(qkv16[:, 2 * E:])
        s = jnp.einsum('hqd,hkd->hqk', q, k,
                       preferred_element_type=jnp.float32) * scale          # (nh,S,S)
        s = s - jnp.max(s, axis=-1, keepdims=True)
        p = jnp.exp(s)
        p = p / jnp.sum(p, axis=-1, keepdims=True)          # exact softmax (f32)
        o = jnp.einsum('hqk,hkd->hqd', p.astype(bf16), v,
                       preferred_element_type=jnp.float32)                  # (nh,S,hd)
        o = jnp.concatenate([o[h] for h in range(nh)], axis=1)              # (S, E)
        attn = mm(o, wo_ref[l]) + bo_ref[l]                 # ONE fused out-projection
        h1 = layer_norm(x + attn, ln1g_ref[l], ln1b_ref[l])

        # ---- feed-forward ----
        f = jnp.maximum(mm(h1, w1_ref[l]) + b1_ref[l], 0.0)
        f = mm(f, w2_ref[l]) + b2_ref[l]
        x = layer_norm(h1 + f, ln2g_ref[l], ln2b_ref[l])

    # Only the tokens consumed downstream leave the kernel (no full tgt writeback).
    q_out_ref[0] = x[1:nq + 1, :]                           # queries (tokens 1..nq)

    # ---- fused regressor on token 0 + 'linear' norm head ----
    y = mm(x[0:1, :], r1w_ref[...]) + r1b_ref[...]
    y = jnp.where(y >= 0.0, y, 0.01 * y)                    # LeakyReLU(0.01)
    y = mm(y, r2w_ref[...]) + r2b_ref[...]
    y = jnp.where(y >= 0.0, y, 0.01 * y)
    y = mm(y, r3w_ref[...]) + r3b_ref[...]
    y = jnp.maximum(y, 0.0) + 0.1                           # norm == 'linear'
    y_ref[0] = y / jnp.sum(y, axis=-1, keepdims=True)


def patch_transformer_regressor(patches, pos, params, *, N, S, E, nh, L, nq, dim_out):
    def full_spec(arr):                 # whole-array block, constant index map
        idx = (0,) * arr.ndim
        return pl.BlockSpec(arr.shape, lambda n, _idx=idx: _idx)

    weight_names = ("patch_w", "patch_b", "wqkv", "bqkv", "wo", "bo",
                    "ln1_g", "ln1_b", "ff1_w", "ff1_b", "ff2_w", "ff2_b",
                    "ln2_g", "ln2_b",
                    "reg1_w", "reg1_b", "reg2_w", "reg2_b", "reg3_w", "reg3_b")
    weights = [params[k] for k in weight_names]

    kern = functools.partial(_encoder_kernel, S=S, E=E, nh=nh, L=L, nq=nq, eps=1e-5)
    y3, queries = pl.pallas_call(
        kern,
        grid=(N,),
        in_specs=[pl.BlockSpec((1, S, patches.shape[-1]), lambda n: (n, 0, 0)),
                  full_spec(pos)] + [full_spec(w) for w in weights],
        out_specs=(pl.BlockSpec((1, 1, dim_out), lambda n: (n, 0, 0)),
                   pl.BlockSpec((1, nq, E), lambda n: (n, 0, 0))),
        out_shape=(jax.ShapeDtypeStruct((N, 1, dim_out), jnp.float32),
                   jax.ShapeDtypeStruct((N, nq, E), jnp.float32)),
        compiler_params=pltpu.CompilerParams(dimension_semantics=("parallel",)),
    )(patches, pos, *weights)
    return y3.reshape(N, dim_out), queries


# --------------------------------------------------------------------------- #
# Kernel 2: fused conv3x3 + PixelWiseDotProduct (single K=9*Cin matmul)        #
# --------------------------------------------------------------------------- #
def _conv_dot_kernel(xflat_ref, w9_ref, b_ref, q_ref, out_ref, *, H, W):
    bf16 = jnp.bfloat16
    Wp2 = W + 2
    Lout = H * Wp2
    q = q_ref[0]                                                     # (nq, E) f32
    # hoisted query x conv-weight projection: ONE MXU op with K = E
    A = lax.dot_general(q.astype(bf16), w9_ref[...],
                        (((1,), (1,)), ((), ())),
                        preferred_element_type=jnp.float32)          # (nq, 9*Cin)
    # stack the 9 shifted tap views of the flattened zero-padded image in VMEM
    taps = []
    for k in range(9):
        dy, dx = divmod(k, 3)
        shift = dy * Wp2 + dx
        taps.append(xflat_ref[0, :, shift:shift + Lout])             # (Cin, Lout)
    X = jnp.concatenate(taps, axis=0).astype(bf16)                   # (9*Cin, Lout)
    # whole conv + pixel-wise dot product == one matmul (K = 9*Cin)
    wide = jnp.dot(A.astype(bf16), X,
                   preferred_element_type=jnp.float32)               # (nq, Lout)
    wide = wide + jnp.sum(q * b_ref[...], axis=-1, keepdims=True)    # queries . bias
    # trim the 2 padded columns of every image row inside the kernel:
    # store is the lane-dense (nq, H*W) slab, no post-kernel strided slice.
    out_ref[0] = jnp.concatenate(
        [wide[:, r * Wp2: r * Wp2 + W] for r in range(H)], axis=1)   # (nq, H*W)


def conv3x3_dot_product(x, w9, b, queries):
    # TODO(synk): at production resolutions (Cin=128, ~240x320) add an H-row-tile
    # grid axis and an explicit vmem_limit_bytes so the per-step block fits v7x VMEM.
    N, Cin, H, W = x.shape
    _, nq, E = queries.shape
    Wp2 = W + 2
    Lpad = (H + 3) * Wp2      # one extra bottom row keeps every tap slice in-bounds
    # single cheap pad + contiguous flatten -- no 9x im2col expansion in HBM
    xflat = jnp.pad(x, ((0, 0), (0, 0), (1, 2), (1, 1))).reshape(N, Cin, Lpad)
    out_flat = pl.pallas_call(
        functools.partial(_conv_dot_kernel, H=H, W=W),
        grid=(N,),
        in_specs=[pl.BlockSpec((1, Cin, Lpad), lambda n: (n, 0, 0)),
                  pl.BlockSpec((9 * Cin, E), lambda n: (0, 0)),
                  pl.BlockSpec((1, E), lambda n: (0, 0)),
                  pl.BlockSpec((1, nq, E), lambda n: (n, 0, 0))],
        out_specs=pl.BlockSpec((1, nq, H * W), lambda n: (n, 0, 0)),
        out_shape=jax.ShapeDtypeStruct((N, nq, H * W), jnp.float32),
        compiler_params=pltpu.CompilerParams(dimension_semantics=("parallel",)),
    )(xflat, w9, b, queries)
    return out_flat.reshape(N, nq, H, W)          # free reshape (trailing dim split)


# --------------------------------------------------------------------------- #
# Parameters                                                                   #
# --------------------------------------------------------------------------- #
def init_params(key, cfg):
    keys = iter(jax.random.split(key, 32))
    f32 = jnp.float32

    def w(shape, scale=0.02, dtype=jnp.bfloat16):   # matmul weights stored bf16
        return (scale * jax.random.normal(next(keys), shape, f32)).astype(dtype)

    E = cfg["embedding_dim"]; Cin = cfg["in_channels"]; P = cfg["patch_size"]
    dff = cfg["dim_feedforward"]; dim_out = cfg["dim_out"]; L = cfg["num_layers"]

    return dict(
        # PxP patch-embed conv as a matmul over flattened (c, i, j) patches:
        # patch_w[(c*P+i)*P+j, e] == torch embedding_convPxP.weight[e, c, i, j]
        patch_w=w((Cin * P * P, E), 0.05),
        patch_b=w((1, E), 0.05, f32),
        pos=jax.random.uniform(next(keys), (500, E), dtype=f32),
        # fused per-layer QKV: wqkv[l] == in_proj_weight.T  (columns q|k|v, heads contiguous)
        wqkv=w((L, E, 3 * E)),
        bqkv=w((L, 1, 3 * E), 0.02, f32),
        wo=w((L, E, E)),                             # out_proj.weight.T
        bo=w((L, 1, E), 0.02, f32),
        ln1_g=jnp.ones((L, 1, E), f32), ln1_b=jnp.zeros((L, 1, E), f32),
        ff1_w=w((L, E, dff)), ff1_b=w((L, 1, dff), 0.02, f32),
        ff2_w=w((L, dff, E)), ff2_b=w((L, 1, E), 0.02, f32),
        ln2_g=jnp.ones((L, 1, E), f32), ln2_b=jnp.zeros((L, 1, E), f32),
        # 3x3 conv stored tap-major: conv3_w[k*Cin + c, e] == conv3x3.weight[e, c, k//3, k%3]
        conv3_w=w((9 * Cin, E), 0.05),
        conv3_b=w((1, E), 0.05, f32),
        # regressor: Linear(E,256) LeakyReLU Linear(256,256) LeakyReLU Linear(256,dim_out)
        reg1_w=w((E, 256)),       reg1_b=w((1, 256), 0.02, f32),
        reg2_w=w((256, 256)),     reg2_b=w((1, 256), 0.02, f32),
        reg3_w=w((256, dim_out)), reg3_b=w((1, dim_out), 0.02, f32),
    )


# --------------------------------------------------------------------------- #
# Forward                                                                      #
# --------------------------------------------------------------------------- #
def mvit_forward(params, x, cfg):
    N, Cin, H, W = x.shape
    P = cfg["patch_size"]; E = cfg["embedding_dim"]
    nh = cfg["num_heads"]; nq = cfg["n_query_channels"]; L = cfg["num_layers"]
    dim_out = cfg["dim_out"]
    Hp, Wp = H // P, W // P
    S = Hp * Wp

    # non-overlapping PxP patches, sequence order s = hp*Wp + wp (single XLA relayout)
    patches = (x.reshape(N, Cin, Hp, P, Wp, P)
                 .transpose(0, 2, 4, 1, 3, 5)
                 .reshape(N, S, Cin * P * P))

    # y == normalized regressor(tgt[0]); queries == tgt[1:nq+1].permute(1, 0, 2)
    y, queries = patch_transformer_regressor(
        patches, params["pos"][:S], params,
        N=N, S=S, E=E, nh=nh, L=L, nq=nq, dim_out=dim_out)

    range_attention_maps = conv3x3_dot_product(
        x, params["conv3_w"], params["conv3_b"], queries)             # (N, nq, H, W)
    return y, range_attention_maps


# --------------------------------------------------------------------------- #
if __name__ == "__main__":
    cfg = dict(
        in_channels=4,
        n_query_channels=8,
        patch_size=4,
        dim_out=16,
        embedding_dim=32,
        num_heads=4,
        num_layers=4,
        dim_feedforward=64,
    )
    key = jax.random.PRNGKey(0)
    kp, kx = jax.random.split(key)
    params = init_params(kp, cfg)
    x = jax.random.normal(kx, (2, cfg["in_channels"], 16, 16), jnp.float32)

    fwd = jax.jit(functools.partial(mvit_forward, cfg=cfg))
    y, ram = fwd(params, x)
    jax.block_until_ready((y, ram))

    assert y.shape == (2, cfg["dim_out"])
    assert ram.shape == (2, cfg["n_query_channels"], 16, 16)
    assert bool(jnp.all(jnp.isfinite(y))) and bool(jnp.all(jnp.isfinite(ram)))
    # rows of y sum to 1 after the 'linear' normalization
    assert bool(jnp.allclose(jnp.sum(y, axis=1), 1.0, atol=1e-5))
    print("KERNEL_OK")
</pallas_src>

<mosaic_0001>
module attributes {stable_mosaic.version = 11 : i64} {
  func.func @_conv_dot_kernel(%arg0: i32, %arg1: memref<1x4x342xf32, #tpu.memory_space<vmem>>, %arg2: memref<36x32xbf16, #tpu.memory_space<vmem>>, %arg3: memref<1x32xf32, #tpu.memory_space<vmem>>, %arg4: memref<1x8x32xf32, #tpu.memory_space<vmem>>, %arg5: memref<1x8x256xf32, #tpu.memory_space<vmem>>) attributes {dimension_semantics = [#tpu.dimension_semantics<parallel>], iteration_bounds = array<i64: 2>, scalar_prefetch = 0 : i64, scratch_operands = 0 : i64, tpu.core_type = #tpu.core_type<tc>, window_params = [{transform_indices = @transform_0, window_bounds = array<i64: 1, 4, 342>}, {pipeline_mode = #tpu.pipeline_mode<synchronous>, transform_indices = @transform_1, window_bounds = array<i64: 36, 32>}, {pipeline_mode = #tpu.pipeline_mode<synchronous>, transform_indices = @transform_2, window_bounds = array<i64: 1, 32>}, {transform_indices = @transform_3, window_bounds = array<i64: 1, 8, 32>}, {transform_indices = @transform_4, window_bounds = array<i64: 1, 8, 256>}]} {
    %c0 = arith.constant 0 : index
    %c0_0 = arith.constant 0 : index
    %c0_1 = arith.constant 0 : index
    %0 = vector.load %arg4[%c0, %c0_0, %c0_1] : memref<1x8x32xf32, #tpu.memory_space<vmem>>, vector<1x8x32xf32>
    %1 = vector.shape_cast %0 : vector<1x8x32xf32> to vector<8x32xf32>
    %2 = arith.truncf %1 : vector<8x32xf32> to vector<8x32xbf16>
    %c0_2 = arith.constant 0 : index
    %c0_3 = arith.constant 0 : index
    %3 = vector.load %arg2[%c0_2, %c0_3] : memref<36x32xbf16, #tpu.memory_space<vmem>>, vector<36x32xbf16>
    %cst = arith.constant dense<0.000000e+00> : vector<8x36xf32>
    %4 = tpu.matmul %2, %3, %cst {dimension_numbers = #tpu.dot_dimension_numbers<[1], [1], [0], [0], [0, 0, 1, 0], [], []>} : vector<8x32xbf16>, vector<36x32xbf16>, vector<8x36xf32> -> vector<8x36xf32>
    %c0_4 = arith.constant 0 : index
    %c0_5 = arith.constant 0 : index
    %c0_6 = arith.constant 0 : index
    %5 = vector.load %arg1[%c0_4, %c0_5, %c0_6] : memref<1x4x342xf32, #tpu.memory_space<vmem>>, vector<1x4x288xf32>
    %6 = vector.shape_cast %5 : vector<1x4x288xf32> to vector<4x288xf32>
    %c0_7 = arith.constant 0 : index
    %c0_8 = arith.constant 0 : index
    %c1 = arith.constant 1 : index
    %7 = vector.load %arg1[%c0_7, %c0_8, %c1] : memref<1x4x342xf32, #tpu.memory_space<vmem>>, vector<1x4x288xf32>
    %8 = vector.shape_cast %7 : vector<1x4x288xf32> to vector<4x288xf32>
    %c0_9 = arith.constant 0 : index
    %c0_10 = arith.constant 0 : index
    %c2 = arith.constant 2 : index
    %9 = vector.load %arg1[%c0_9, %c0_10, %c2] : memref<1x4x342xf32, #tpu.memory_space<vmem>>, vector<1x4x288xf32>
    %10 = vector.shape_cast %9 : vector<1x4x288xf32> to vector<4x288xf32>
    %c0_11 = arith.constant 0 : index
    %c0_12 = arith.constant 0 : index
    %c18 = arith.constant 18 : index
    %11 = vector.load %arg1[%c0_11, %c0_12, %c18] : memref<1x4x342xf32, #tpu.memory_space<vmem>>, vector<1x4x288xf32>
    %12 = vector.shape_cast %11 : vector<1x4x288xf32> to vector<4x288xf32>
    %c0_13 = arith.constant 0 : index
    %c0_14 = arith.constant 0 : index
    %c19 = arith.constant 19 : index
    %13 = vector.load %arg1[%c0_13, %c0_14, %c19] : memref<1x4x342xf32, #tpu.memory_space<vmem>>, vector<1x4x288xf32>
    %14 = vector.shape_cast %13 : vector<1x4x288xf32> to vector<4x288xf32>
    %c0_15 = arith.constant 0 : index
    %c0_16 = arith.constant 0 : index
    %c20 = arith.constant 20 : index
    %15 = vector.load %arg1[%c0_15, %c0_16, %c20] : memref<1x4x342xf32, #tpu.memory_space<vmem>>, vector<1x4x288xf32>
    %16 = vector.shape_cast %15 : vector<1x4x288xf32> to vector<4x288xf32>
    %c0_17 = arith.constant 0 : index
    %c0_18 = arith.constant 0 : index
    %c36 = arith.constant 36 : index
    %17 = vector.load %arg1[%c0_17, %c0_18, %c36] : memref<1x4x342xf32, #tpu.memory_space<vmem>>, vector<1x4x288xf32>
    %18 = vector.shape_cast %17 : vector<1x4x288xf32> to vector<4x288xf32>
    %c0_19 = arith.constant 0 : index
    %c0_20 = arith.constant 0 : index
    %c37 = arith.constant 37 : index
    %19 = vector.load %arg1[%c0_19, %c0_20, %c37] : memref<1x4x342xf32, #tpu.memory_space<vmem>>, vector<1x4x288xf32>
    %20 = vector.shape_cast %19 : vector<1x4x288xf32> to vector<4x288xf32>
    %c0_21 = arith.constant 0 : index
    %c0_22 = arith.constant 0 : index
    %c38 = arith.constant 38 : index
    %21 = vector.load %arg1[%c0_21, %c0_22, %c38] : memref<1x4x342xf32, #tpu.memory_space<vmem>>, vector<1x4x288xf32>
    %22 = vector.shape_cast %21 : vector<1x4x288xf32> to vector<4x288xf32>
    %23 = tpu.concatenate %6, %8, %10, %12, %14, %16, %18, %20, %22 in 0 : vector<4x288xf32>, vector<4x288xf32>, vector<4x288xf32>, vector<4x288xf32>, vector<4x288xf32>, vector<4x288xf32>, vector<4x288xf32>, vector<4x288xf32>, vector<4x288xf32> -> vector<36x288xf32>
    %24 = arith.truncf %23 : vector<36x288xf32> to vector<36x288xbf16>
    %25 = arith.truncf %4 : vector<8x36xf32> to vector<8x36xbf16>
    %cst_23 = arith.constant dense<0.000000e+00> : vector<8x288xf32>
    %26 = tpu.matmul %25, %24, %cst_23 {dimension_numbers = #tpu.dot_dimension_numbers<[1], [0], [0], [1], [0, 0, 1, 1], [], []>} : vector<8x36xbf16>, vector<36x288xbf16>, vector<8x288xf32> -> vector<8x288xf32>
    %c0_24 = arith.constant 0 : index
    %c0_25 = arith.constant 0 : index
    %27 = vector.load %arg3[%c0_24, %c0_25] : memref<1x32xf32, #tpu.memory_space<vmem>>, vector<1x32xf32>
    %28 = vector.broadcast %27 : vector<1x32xf32> to vector<8x32xf32>
    %29 = arith.mulf %1, %28 : vector<8x32xf32>
    %cst_26 = arith.constant dense<0.000000e+00> : vector<8xf32>
    %30 = vector.multi_reduction <add>, %29, %cst_26 [1] : vector<8x32xf32> to vector<8xf32>
    %31 = vector.shape_cast %30 : vector<8xf32> to vector<8x1xf32>
    %32 = vector.broadcast %31 : vector<8x1xf32> to vector<8x288xf32>
    %33 = arith.addf %26, %32 : vector<8x288xf32>
    %34 = vector.extract_strided_slice %33 {offsets = [0, 0], sizes = [8, 16], strides = [1, 1]} : vector<8x288xf32> to vector<8x16xf32>
    %35 = vector.extract_strided_slice %33 {offsets = [0, 18], sizes = [8, 16], strides = [1, 1]} : vector<8x288xf32> to vector<8x16xf32>
    %36 = vector.extract_strided_slice %33 {offsets = [0, 36], sizes = [8, 16], strides = [1, 1]} : vector<8x288xf32> to vector<8x16xf32>
    %37 = vector.extract_strided_slice %33 {offsets = [0, 54], sizes = [8, 16], strides = [1, 1]} : vector<8x288xf32> to vector<8x16xf32>
    %38 = vector.extract_strided_slice %33 {offsets = [0, 72], sizes = [8, 16], strides = [1, 1]} : vector<8x288xf32> to vector<8x16xf32>
    %39 = vector.extract_strided_slice %33 {offsets = [0, 90], sizes = [8, 16], strides = [1, 1]} : vector<8x288xf32> to vector<8x16xf32>
    %40 = vector.extract_strided_slice %33 {offsets = [0, 108], sizes = [8, 16], strides = [1, 1]} : vector<8x288xf32> to vector<8x16xf32>
    %41 = vector.extract_strided_slice %33 {offsets = [0, 126], sizes = [8, 16], strides = [1, 1]} : vector<8x288xf32> to vector<8x16xf32>
    %42 = vector.extract_strided_slice %33 {offsets = [0, 144], sizes = [8, 16], strides = [1, 1]} : vector<8x288xf32> to vector<8x16xf32>
    %43 = vector.extract_strided_slice %33 {offsets = [0, 162], sizes = [8, 16], strides = [1, 1]} : vector<8x288xf32> to vector<8x16xf32>
    %44 = vector.extract_strided_slice %33 {offsets = [0, 180], sizes = [8, 16], strides = [1, 1]} : vector<8x288xf32> to vector<8x16xf32>
    %45 = vector.extract_strided_slice %33 {offsets = [0, 198], sizes = [8, 16], strides = [1, 1]} : vector<8x288xf32> to vector<8x16xf32>
    %46 = vector.extract_strided_slice %33 {offsets = [0, 216], sizes = [8, 16], strides = [1, 1]} : vector<8x288xf32> to vector<8x16xf32>
    %47 = vector.extract_strided_slice %33 {offsets = [0, 234], sizes = [8, 16], strides = [1, 1]} : vector<8x288xf32> to vector<8x16xf32>
    %48 = vector.extract_strided_slice %33 {offsets = [0, 252], sizes = [8, 16], strides = [1, 1]} : vector<8x288xf32> to vector<8x16xf32>
    %49 = vector.extract_strided_slice %33 {offsets = [0, 270], sizes = [8, 16], strides = [1, 1]} : vector<8x288xf32> to vector<8x16xf32>
    %50 = tpu.concatenate %34, %35, %36, %37, %38, %39, %40, %41, %42, %43, %44, %45, %46, %47, %48, %49 in 1 : vector<8x16xf32>, vector<8x16xf32>, vector<8x16xf32>, vector<8x16xf32>, vector<8x16xf32>, vector<8x16xf32>, vector<8x16xf32>, vector<8x16xf32>, vector<8x16xf32>, vector<8x16xf32>, vector<8x16xf32>, vector<8x16xf32>, vector<8x16xf32>, vector<8x16xf32>, vector<8x16xf32>, vector<8x16xf32> -> vector<8x256xf32>
    %c0_27 = arith.constant 0 : index
    %c0_28 = arith.constant 0 : index
    %c0_29 = arith.constant 0 : index
    %51 = vector.load %arg5[%c0_27, %c0_28, %c0_29] : memref<1x8x256xf32, #tpu.memory_space<vmem>>, vector<1x8x256xf32>
    %52 = vector.shape_cast %51 : vector<1x8x256xf32> to vector<8x256xf32>
    %53 = vector.shape_cast %50 : vector<8x256xf32> to vector<1x8x256xf32>
    tpu.vector_store %arg5[%c0_27, %c0_28, %c0_29], %53 {strides = array<i32>} : memref<1x8x256xf32, #tpu.memory_space<vmem>>, vector<1x8x256xf32>,
    return
  }
  func.func @transform_0(%arg0: i32) -> (i32, i32, i32) {
    %c0_i32 = arith.constant 0 : i32
    %c0_i32_0 = arith.constant 0 : i32
    %c0_i32_1 = arith.constant 0 : i32
    return %arg0, %c0_i32, %c0_i32_0 : i32, i32, i32
  }
  func.func @transform_1(%arg0: i32) -> (i32, i32) {
    %c0_i32 = arith.constant 0 : i32
    %c0_i32_0 = arith.constant 0 : i32
    %c0_i32_1 = arith.constant 0 : i32
    return %c0_i32, %c0_i32_0 : i32, i32
  }
  func.func @transform_2(%arg0: i32) -> (i32, i32) {
    %c0_i32 = arith.constant 0 : i32
    %c0_i32_0 = arith.constant 0 : i32
    %c0_i32_1 = arith.constant 0 : i32
    return %c0_i32, %c0_i32_0 : i32, i32
  }
  func.func @transform_3(%arg0: i32) -> (i32, i32, i32) {
    %c0_i32 = arith.constant 0 : i32
    %c0_i32_0 = arith.constant 0 : i32
    %c0_i32_1 = arith.constant 0 : i32
    return %arg0, %c0_i32, %c0_i32_0 : i32, i32, i32
  }
  func.func @transform_4(%arg0: i32) -> (i32, i32, i32) {
    %c0_i32 = arith.constant 0 : i32
    %c0_i32_0 = arith.constant 0 : i32
    %c0_i32_1 = arith.constant 0 : i32
    return %arg0, %c0_i32, %c0_i32_0 : i32, i32, i32
  }
}

module attributes {stable_mosaic.version = 11 : i64} {
  func.func @_encoder_kernel(%arg0: i32, %arg1: memref<1x16x64xf32, #tpu.memory_space<vmem>>, %arg2: memref<16x32xf32, #tpu.memory_space<vmem>>, %arg3: memref<64x32xbf16, #tpu.memory_space<vmem>>, %arg4: memref<1x32xf32, #tpu.memory_space<vmem>>, %arg5: memref<4x32x96xbf16, #tpu.memory_space<vmem>>, %arg6: memref<4x1x96xf32, #tpu.memory_space<vmem>>, %arg7: memref<4x32x32xbf16, #tpu.memory_space<vmem>>, %arg8: memref<4x1x32xf32, #tpu.memory_space<vmem>>, %arg9: memref<4x1x32xf32, #tpu.memory_space<vmem>>, %arg10: memref<4x1x32xf32, #tpu.memory_space<vmem>>, %arg11: memref<4x32x64xbf16, #tpu.memory_space<vmem>>, %arg12: memref<4x1x64xf32, #tpu.memory_space<vmem>>, %arg13: memref<4x64x32xbf16, #tpu.memory_space<vmem>>, %arg14: memref<4x1x32xf32, #tpu.memory_space<vmem>>, %arg15: memref<4x1x32xf32, #tpu.memory_space<vmem>>, %arg16: memref<4x1x32xf32, #tpu.memory_space<vmem>>, %arg17: memref<32x256xbf16, #tpu.memory_space<vmem>>, %arg18: memref<1x256xf32, #tpu.memory_space<vmem>>, %arg19: memref<256x256xbf16, #tpu.memory_space<vmem>>, %arg20: memref<1x256xf32, #tpu.memory_space<vmem>>, %arg21: memref<256x16xbf16, #tpu.memory_space<vmem>>, %arg22: memref<1x16xf32, #tpu.memory_space<vmem>>, %arg23: memref<1x1x16xf32, #tpu.memory_space<vmem>>, %arg24: memref<1x8x32xf32, #tpu.memory_space<vmem>>) attributes {dimension_semantics = [#tpu.dimension_semantics<parallel>], iteration_bounds = array<i64: 2>, scalar_prefetch = 0 : i64, scratch_operands = 0 : i64, tpu.core_type = #tpu.core_type<tc>, window_params = [{transform_indices = @transform_0, window_bounds = array<i64: 1, 16, 64>}, {pipeline_mode = #tpu.pipeline_mode<synchronous>, transform_indices = @transform_1, window_bounds = array<i64: 16, 32>}, {pipeline_mode = #tpu.pipeline_mode<synchronous>, transform_indices = @transform_2, window_bounds = array<i64: 64, 32>}, {pipeline_mode = #tpu.pipeline_mode<synchronous>, transform_indices = @transform_3, window_bounds = array<i64: 1, 32>}, {pipeline_mode = #tpu.pipeline_mode<synchronous>, transform_indices = @transform_4, window_bounds = array<i64: 4, 32, 96>}, {pipeline_mode = #tpu.pipeline_mode<synchronous>, transform_indices = @transform_5, window_bounds = array<i64: 4, 1, 96>}, {pipeline_mode = #tpu.pipeline_mode<synchronous>, transform_indices = @transform_6, window_bounds = array<i64: 4, 32, 32>}, {pipeline_mode = #tpu.pipeline_mode<synchronous>, transform_indices = @transform_7, window_bounds = array<i64: 4, 1, 32>}, {pipeline_mode = #tpu.pipeline_mode<synchronous>, transform_indices = @transform_8, window_bounds = array<i64: 4, 1, 32>}, {pipeline_mode = #tpu.pipeline_mode<synchronous>, transform_indices = @transform_9, window_bounds = array<i64: 4, 1, 32>}, {pipeline_mode = #tpu.pipeline_mode<synchronous>, transform_indices = @transform_10, window_bounds = array<i64: 4, 32, 64>}, {pipeline_mode = #tpu.pipeline_mode<synchronous>, transform_indices = @transform_11, window_bounds = array<i64: 4, 1, 64>}, {pipeline_mode = #tpu.pipeline_mode<synchronous>, transform_indices = @transform_12, window_bounds = array<i64: 4, 64, 32>}, {pipeline_mode = #tpu.pipeline_mode<synchronous>, transform_indices = @transform_13, window_bounds = array<i64: 4, 1, 32>}, {pipeline_mode = #tpu.pipeline_mode<synchronous>, transform_indices = @transform_14, window_bounds = array<i64: 4, 1, 32>}, {pipeline_mode = #tpu.pipeline_mode<synchronous>, transform_indices = @transform_15, window_bounds = array<i64: 4, 1, 32>}, {pipeline_mode = #tpu.pipeline_mode<synchronous>, transform_indices = @transform_16, window_bounds = array<i64: 32, 256>}, {pipeline_mode = #tpu.pipeline_mode<synchronous>, transform_indices = @transform_17, window_bounds = array<i64: 1, 256>}, {pipeline_mode = #tpu.pipeline_mode<synchronous>, transform_indices = @transform_18, window_bounds = array<i64: 256, 256>}, {pipeline_mode = #tpu.pipeline_mode<synchronous>, transform_indices = @transform_19, window_bounds = array<i64: 1, 256>}, {pipeline_mode = #tpu.pipeline_mode<synchronous>, transform_indices = @transform_20, window_bounds = array<i64: 256, 16>}, {pipeline_mode = #tpu.pipeline_mode<synchronous>, transform_indices = @transform_21, window_bounds = array<i64: 1, 16>}, {transform_indices = @transform_22, window_bounds = array<i64: 1, 1, 16>}, {transform_indices = @transform_23, window_bounds = array<i64: 1, 8, 32>}]} {
    %c0 = arith.constant 0 : index
    %c0_0 = arith.constant 0 : index
    %c0_1 = arith.constant 0 : index
    %0 = vector.load %arg1[%c0, %c0_0, %c0_1] : memref<1x16x64xf32, #tpu.memory_space<vmem>>, vector<1x16x64xf32>
    %1 = vector.shape_cast %0 : vector<1x16x64xf32> to vector<16x64xf32>
    %c0_2 = arith.constant 0 : index
    %c0_3 = arith.constant 0 : index
    %2 = vector.load %arg3[%c0_2, %c0_3] : memref<64x32xbf16, #tpu.memory_space<vmem>>, vector<64x32xbf16>
    %3 = arith.truncf %1 : vector<16x64xf32> to vector<16x64xbf16>
    %cst = arith.constant dense<0.000000e+00> : vector<16x32xf32>
    %4 = tpu.matmul %3, %2, %cst {dimension_numbers = #tpu.dot_dimension_numbers<[1], [0], [0], [1], [0, 0, 1, 1], [], []>} : vector<16x64xbf16>, vector<64x32xbf16>, vector<16x32xf32> -> vector<16x32xf32>
    %c0_4 = arith.constant 0 : index
    %c0_5 = arith.constant 0 : index
    %5 = vector.load %arg4[%c0_4, %c0_5] : memref<1x32xf32, #tpu.memory_space<vmem>>, vector<1x32xf32>
    %6 = vector.broadcast %5 : vector<1x32xf32> to vector<16x32xf32>
    %7 = arith.addf %4, %6 : vector<16x32xf32>
    %c0_6 = arith.constant 0 : index
    %c0_7 = arith.constant 0 : index
    %8 = vector.load %arg2[%c0_6, %c0_7] : memref<16x32xf32, #tpu.memory_space<vmem>>, vector<16x32xf32>
    %9 = arith.addf %7, %8 : vector<16x32xf32>
    %c0_8 = arith.constant 0 : index
    %c0_9 = arith.constant 0 : index
    %c0_10 = arith.constant 0 : index
    %10 = vector.load %arg5[%c0_8, %c0_9, %c0_10] : memref<4x32x96xbf16, #tpu.memory_space<vmem>>, vector<1x32x96xbf16>
    %11 = vector.shape_cast %10 : vector<1x32x96xbf16> to vector<32x96xbf16>
    %12 = arith.truncf %9 : vector<16x32xf32> to vector<16x32xbf16>
    %cst_11 = arith.constant dense<0.000000e+00> : vector<16x96xf32>
    %13 = tpu.matmul %12, %11, %cst_11 {dimension_numbers = #tpu.dot_dimension_numbers<[1], [0], [0], [1], [0, 0, 1, 1], [], []>} : vector<16x32xbf16>, vector<32x96xbf16>, vector<16x96xf32> -> vector<16x96xf32>
    %c0_12 = arith.constant 0 : index
    %c0_13 = arith.constant 0 : index
    %c0_14 = arith.constant 0 : index
    %14 = vector.load %arg6[%c0_12, %c0_13, %c0_14] : memref<4x1x96xf32, #tpu.memory_space<vmem>>, vector<1x1x96xf32>
    %15 = vector.shape_cast %14 : vector<1x1x96xf32> to vector<1x96xf32>
    %16 = vector.broadcast %15 : vector<1x96xf32> to vector<16x96xf32>
    %17 = arith.addf %13, %16 : vector<16x96xf32>
    %18 = arith.truncf %17 : vector<16x96xf32> to vector<16x96xbf16>
    %19 = vector.extract_strided_slice %18 {offsets = [0, 0], sizes = [16, 32], strides = [1, 1]} : vector<16x96xbf16> to vector<16x32xbf16>
    %20 = vector.extract_strided_slice %19 {offsets = [0, 0], sizes = [16, 8], strides = [1, 1]} : vector<16x32xbf16> to vector<16x8xbf16>
    %21 = vector.extract_strided_slice %19 {offsets = [0, 8], sizes = [16, 8], strides = [1, 1]} : vector<16x32xbf16> to vector<16x8xbf16>
    %22 = vector.extract_strided_slice %19 {offsets = [0, 16], sizes = [16, 8], strides = [1, 1]} : vector<16x32xbf16> to vector<16x8xbf16>
    %23 = vector.extract_strided_slice %19 {offsets = [0, 24], sizes = [16, 8], strides = [1, 1]} : vector<16x32xbf16> to vector<16x8xbf16>
    %24 = vector.shape_cast %20 : vector<16x8xbf16> to vector<1x16x8xbf16>
    %25 = vector.shape_cast %21 : vector<16x8xbf16> to vector<1x16x8xbf16>
    %26 = vector.shape_cast %22 : vector<16x8xbf16> to vector<1x16x8xbf16>
    %27 = vector.shape_cast %23 : vector<16x8xbf16> to vector<1x16x8xbf16>
    %28 = tpu.concatenate %24, %25, %26, %27 in 0 : vector<1x16x8xbf16>, vector<1x16x8xbf16>, vector<1x16x8xbf16>, vector<1x16x8xbf16> -> vector<4x16x8xbf16>
    %29 = vector.extract_strided_slice %18 {offsets = [0, 32], sizes = [16, 32], strides = [1, 1]} : vector<16x96xbf16> to vector<16x32xbf16>
    %30 = vector.extract_strided_slice %29 {offsets = [0, 0], sizes = [16, 8], strides = [1, 1]} : vector<16x32xbf16> to vector<16x8xbf16>
    %31 = vector.extract_strided_slice %29 {offsets = [0, 8], sizes = [16, 8], strides = [1, 1]} : vector<16x32xbf16> to vector<16x8xbf16>
    %32 = vector.extract_strided_slice %29 {offsets = [0, 16], sizes = [16, 8], strides = [1, 1]} : vector<16x32xbf16> to vector<16x8xbf16>
    %33 = vector.extract_strided_slice %29 {offsets = [0, 24], sizes = [16, 8], strides = [1, 1]} : vector<16x32xbf16> to vector<16x8xbf16>
    %34 = vector.shape_cast %30 : vector<16x8xbf16> to vector<1x16x8xbf16>
    %35 = vector.shape_cast %31 : vector<16x8xbf16> to vector<1x16x8xbf16>
    %36 = vector.shape_cast %32 : vector<16x8xbf16> to vector<1x16x8xbf16>
    %37 = vector.shape_cast %33 : vector<16x8xbf16> to vector<1x16x8xbf16>
    %38 = tpu.concatenate %34, %35, %36, %37 in 0 : vector<1x16x8xbf16>, vector<1x16x8xbf16>, vector<1x16x8xbf16>, vector<1x16x8xbf16> -> vector<4x16x8xbf16>
    %39 = vector.extract_strided_slice %18 {offsets = [0, 64], sizes = [16, 32], strides = [1, 1]} : vector<16x96xbf16> to vector<16x32xbf16>
    %40 = vector.extract_strided_slice %39 {offsets = [0, 0], sizes = [16, 8], strides = [1, 1]} : vector<16x32xbf16> to vector<16x8xbf16>
    %41 = vector.extract_strided_slice %39 {offsets = [0, 8], sizes = [16, 8], strides = [1, 1]} : vector<16x32xbf16> to vector<16x8xbf16>
    %42 = vector.extract_strided_slice %39 {offsets = [0, 16], sizes = [16, 8], strides = [1, 1]} : vector<16x32xbf16> to vector<16x8xbf16>
    %43 = vector.extract_strided_slice %39 {offsets = [0, 24], sizes = [16, 8], strides = [1, 1]} : vector<16x32xbf16> to vector<16x8xbf16>
    %44 = vector.shape_cast %40 : vector<16x8xbf16> to vector<1x16x8xbf16>
    %45 = vector.shape_cast %41 : vector<16x8xbf16> to vector<1x16x8xbf16>
    %46 = vector.shape_cast %42 : vector<16x8xbf16> to vector<1x16x8xbf16>
    %47 = vector.shape_cast %43 : vector<16x8xbf16> to vector<1x16x8xbf16>
    %48 = tpu.concatenate %44, %45, %46, %47 in 0 : vector<1x16x8xbf16>, vector<1x16x8xbf16>, vector<1x16x8xbf16>, vector<1x16x8xbf16> -> vector<4x16x8xbf16>
    "tpu.trace_start"() <{level = 10 : i32, message = "hqd,hkd->hqk"}> : () -> ()
    %cst_15 = arith.constant dense<0.000000e+00> : vector<4x16x16xf32>
    %49 = tpu.matmul %28, %38, %cst_15 {dimension_numbers = #tpu.dot_dimension_numbers<[2], [2], [1], [1], [0, 0, 0, 1, 1, 1], [0], [0]>} : vector<4x16x8xbf16>, vector<4x16x8xbf16>, vector<4x16x16xf32> -> vector<4x16x16xf32>
    "tpu.trace_stop"() : () -> ()
    %cst_16 = arith.constant 0.353553385 : f32
    %50 = vector.broadcast %cst_16 : f32 to vector<4x16x16xf32>
    %51 = arith.mulf %49, %50 : vector<4x16x16xf32>
    %cst_17 = arith.constant dense<0xFF800000> : vector<4x16xf32>
    %52 = vector.multi_reduction <maximumf>, %51, %cst_17 [2] : vector<4x16x16xf32> to vector<4x16xf32>
    %53 = vector.shape_cast %52 : vector<4x16xf32> to vector<4x16x1xf32>
    %54 = vector.broadcast %53 : vector<4x16x1xf32> to vector<4x16x16xf32>
    %55 = arith.subf %51, %54 : vector<4x16x16xf32>
    %56 = math.exp %55 : vector<4x16x16xf32>
    %cst_18 = arith.constant dense<0.000000e+00> : vector<4x16xf32>
    %57 = vector.multi_reduction <add>, %56, %cst_18 [2] : vector<4x16x16xf32> to vector<4x16xf32>
    %58 = vector.shape_cast %57 : vector<4x16xf32> to vector<4x16x1xf32>
    %59 = vector.broadcast %58 : vector<4x16x1xf32> to vector<4x16x16xf32>
    %60 = arith.divf %56, %59 : vector<4x16x16xf32>
    %61 = arith.truncf %60 : vector<4x16x16xf32> to vector<4x16x16xbf16>
    "tpu.trace_start"() <{level = 10 : i32, message = "hqk,hkd->hqd"}> : () -> ()
    %cst_19 = arith.constant dense<0.000000e+00> : vector<4x16x8xf32>
    %62 = tpu.matmul %61, %48, %cst_19 {dimension_numbers = #tpu.dot_dimension_numbers<[2], [1], [1], [2], [0, 0, 0, 1, 1, 2], [0], [0]>} : vector<4x16x16xbf16>, vector<4x16x8xbf16>, vector<4x16x8xf32> -> vector<4x16x8xf32>
    "tpu.trace_stop"() : () -> ()
    %63 = vector.extract_strided_slice %62 {offsets = [0, 0, 0], sizes = [1, 16, 8], strides = [1, 1, 1]} : vector<4x16x8xf32> to vector<1x16x8xf32>
    %64 = vector.shape_cast %63 : vector<1x16x8xf32> to vector<16x8xf32>
    %65 = vector.extract_strided_slice %62 {offsets = [1, 0, 0], sizes = [1, 16, 8], strides = [1, 1, 1]} : vector<4x16x8xf32> to vector<1x16x8xf32>
    %66 = vector.shape_cast %65 : vector<1x16x8xf32> to vector<16x8xf32>
    %67 = vector.extract_strided_slice %62 {offsets = [2, 0, 0], sizes = [1, 16, 8], strides = [1, 1, 1]} : vector<4x16x8xf32> to vector<1x16x8xf32>
    %68 = vector.shape_cast %67 : vector<1x16x8xf32> to vector<16x8xf32>
    %69 = vector.extract_strided_slice %62 {offsets = [3, 0, 0], sizes = [1, 16, 8], strides = [1, 1, 1]} : vector<4x16x8xf32> to vector<1x16x8xf32>
    %70 = vector.shape_cast %69 : vector<1x16x8xf32> to vector<16x8xf32>
    %71 = tpu.concatenate %64, %66, %68, %70 in 1 : vector<16x8xf32>, vector<16x8xf32>, vector<16x8xf32>, vector<16x8xf32> -> vector<16x32xf32>
    %c0_20 = arith.constant 0 : index
    %c0_21 = arith.constant 0 : index
    %c0_22 = arith.constant 0 : index
    %72 = vector.load %arg7[%c0_20, %c0_21, %c0_22] : memref<4x32x32xbf16, #tpu.memory_space<vmem>>, vector<1x32x32xbf16>
    %73 = vector.shape_cast %72 : vector<1x32x32xbf16> to vector<32x32xbf16>
    %74 = arith.truncf %71 : vector<16x32xf32> to vector<16x32xbf16>
    %cst_23 = arith.constant dense<0.000000e+00> : vector<16x32xf32>
    %75 = tpu.matmul %74, %73, %cst_23 {dimension_numbers = #tpu.dot_dimension_numbers<[1], [0], [0], [1], [0, 0, 1, 1], [], []>} : vector<16x32xbf16>, vector<32x32xbf16>, vector<16x32xf32> -> vector<16x32xf32>
    %c0_24 = arith.constant 0 : index
    %c0_25 = arith.constant 0 : index
    %c0_26 = arith.constant 0 : index
    %76 = vector.load %arg8[%c0_24, %c0_25, %c0_26] : memref<4x1x32xf32, #tpu.memory_space<vmem>>, vector<1x1x32xf32>
    %77 = vector.shape_cast %76 : vector<1x1x32xf32> to vector<1x32xf32>
    %78 = vector.broadcast %77 : vector<1x32xf32> to vector<16x32xf32>
    %79 = arith.addf %75, %78 : vector<16x32xf32>
    %80 = arith.addf %9, %79 : vector<16x32xf32>
    %c0_27 = arith.constant 0 : index
    %c0_28 = arith.constant 0 : index
    %c0_29 = arith.constant 0 : index
    %81 = vector.load %arg9[%c0_27, %c0_28, %c0_29] : memref<4x1x32xf32, #tpu.memory_space<vmem>>, vector<1x1x32xf32>
    %82 = vector.shape_cast %81 : vector<1x1x32xf32> to vector<1x32xf32>
    %c0_30 = arith.constant 0 : index
    %c0_31 = arith.constant 0 : index
    %c0_32 = arith.constant 0 : index
    %83 = vector.load %arg10[%c0_30, %c0_31, %c0_32] : memref<4x1x32xf32, #tpu.memory_space<vmem>>, vector<1x1x32xf32>
    %84 = vector.shape_cast %83 : vector<1x1x32xf32> to vector<1x32xf32>
    %cst_33 = arith.constant dense<0.000000e+00> : vector<16xf32>
    %85 = vector.multi_reduction <add>, %80, %cst_33 [1] : vector<16x32xf32> to vector<16xf32>
    %86 = vector.shape_cast %85 : vector<16xf32> to vector<16x1xf32>
    %cst_34 = arith.constant 3.200000e+01 : f32
    %87 = vector.broadcast %cst_34 : f32 to vector<16x1xf32>
    %88 = arith.divf %86, %87 : vector<16x1xf32>
    %89 = vector.broadcast %88 : vector<16x1xf32> to vector<16x32xf32>
    %90 = arith.subf %80, %89 : vector<16x32xf32>
    %91 = arith.mulf %90, %90 : vector<16x32xf32>
    %cst_35 = arith.constant dense<0.000000e+00> : vector<16xf32>
    %92 = vector.multi_reduction <add>, %91, %cst_35 [1] : vector<16x32xf32> to vector<16xf32>
    %93 = vector.shape_cast %92 : vector<16xf32> to vector<16x1xf32>
    %cst_36 = arith.constant 3.200000e+01 : f32
    %94 = vector.broadcast %cst_36 : f32 to vector<16x1xf32>
    %95 = arith.divf %93, %94 : vector<16x1xf32>
    %96 = vector.broadcast %88 : vector<16x1xf32> to vector<16x32xf32>
    %97 = arith.subf %80, %96 : vector<16x32xf32>
    %cst_37 = arith.constant 9.99999974E-6 : f32
    %98 = vector.broadcast %cst_37 : f32 to vector<16x1xf32>
    %99 = arith.addf %95, %98 : vector<16x1xf32>
    %100 = math.rsqrt %99 : vector<16x1xf32>
    %101 = vector.broadcast %100 : vector<16x1xf32> to vector<16x32xf32>
    %102 = arith.mulf %97, %101 : vector<16x32xf32>
    %103 = vector.broadcast %82 : vector<1x32xf32> to vector<16x32xf32>
    %104 = arith.mulf %102, %103 : vector<16x32xf32>
    %105 = vector.broadcast %84 : vector<1x32xf32> to vector<16x32xf32>
    %106 = arith.addf %104, %105 : vector<16x32xf32>
    %c0_38 = arith.constant 0 : index
    %c0_39 = arith.constant 0 : index
    %c0_40 = arith.constant 0 : index
    %107 = vector.load %arg11[%c0_38, %c0_39, %c0_40] : memref<4x32x64xbf16, #tpu.memory_space<vmem>>, vector<1x32x64xbf16>
    %108 = vector.shape_cast %107 : vector<1x32x64xbf16> to vector<32x64xbf16>
    %109 = arith.truncf %106 : vector<16x32xf32> to vector<16x32xbf16>
    %cst_41 = arith.constant dense<0.000000e+00> : vector<16x64xf32>
    %110 = tpu.matmul %109, %108, %cst_41 {dimension_numbers = #tpu.dot_dimension_numbers<[1], [0], [0], [1], [0, 0, 1, 1], [], []>} : vector<16x32xbf16>, vector<32x64xbf16>, vector<16x64xf32> -> vector<16x64xf32>
    %c0_42 = arith.constant 0 : index
    %c0_43 = arith.constant 0 : index
    %c0_44 = arith.constant 0 : index
    %111 = vector.load %arg12[%c0_42, %c0_43, %c0_44] : memref<4x1x64xf32, #tpu.memory_space<vmem>>, vector<1x1x64xf32>
    %112 = vector.shape_cast %111 : vector<1x1x64xf32> to vector<1x64xf32>
    %113 = vector.broadcast %112 : vector<1x64xf32> to vector<16x64xf32>
    %114 = arith.addf %110, %113 : vector<16x64xf32>
    %cst_45 = arith.constant 0.000000e+00 : f32
    %115 = vector.broadcast %cst_45 : f32 to vector<16x64xf32>
    %116 = arith.maximumf %114, %115 : vector<16x64xf32>
    %c0_46 = arith.constant 0 : index
    %c0_47 = arith.constant 0 : index
    %c0_48 = arith.constant 0 : index
    %117 = vector.load %arg13[%c0_46, %c0_47, %c0_48] : memref<4x64x32xbf16, #tpu.memory_space<vmem>>, vector<1x64x32xbf16>
    %118 = vector.shape_cast %117 : vector<1x64x32xbf16> to vector<64x32xbf16>
    %119 = arith.truncf %116 : vector<16x64xf32> to vector<16x64xbf16>
    %cst_49 = arith.constant dense<0.000000e+00> : vector<16x32xf32>
    %120 = tpu.matmul %119, %118, %cst_49 {dimension_numbers = #tpu.dot_dimension_numbers<[1], [0], [0], [1], [0, 0, 1, 1], [], []>} : vector<16x64xbf16>, vector<64x32xbf16>, vector<16x32xf32> -> vector<16x32xf32>
    %c0_50 = arith.constant 0 : index
    %c0_51 = arith.constant 0 : index
    %c0_52 = arith.constant 0 : index
    %121 = vector.load %arg14[%c0_50, %c0_51, %c0_52] : memref<4x1x32xf32, #tpu.memory_space<vmem>>, vector<1x1x32xf32>
    %122 = vector.shape_cast %121 : vector<1x1x32xf32> to vector<1x32xf32>
    %123 = vector.broadcast %122 : vector<1x32xf32> to vector<16x32xf32>
    %124 = arith.addf %120, %123 : vector<16x32xf32>
    %125 = arith.addf %106, %124 : vector<16x32xf32>
    %c0_53 = arith.constant 0 : index
    %c0_54 = arith.constant 0 : index
    %c0_55 = arith.constant 0 : index
    %126 = vector.load %arg15[%c0_53, %c0_54, %c0_55] : memref<4x1x32xf32, #tpu.memory_space<vmem>>, vector<1x1x32xf32>
    %127 = vector.shape_cast %126 : vector<1x1x32xf32> to vector<1x32xf32>
    %c0_56 = arith.constant 0 : index
    %c0_57 = arith.constant 0 : index
    %c0_58 = arith.constant 0 : index
    %128 = vector.load %arg16[%c0_56, %c0_57, %c0_58] : memref<4x1x32xf32, #tpu.memory_space<vmem>>, vector<1x1x32xf32>
    %129 = vector.shape_cast %128 : vector<1x1x32xf32> to vector<1x32xf32>
    %cst_59 = arith.constant dense<0.000000e+00> : vector<16xf32>
    %130 = vector.multi_reduction <add>, %125, %cst_59 [1] : vector<16x32xf32> to vector<16xf32>
    %131 = vector.shape_cast %130 : vector<16xf32> to vector<16x1xf32>
    %cst_60 = arith.constant 3.200000e+01 : f32
    %132 = vector.broadcast %cst_60 : f32 to vector<16x1xf32>
    %133 = arith.divf %131, %132 : vector<16x1xf32>
    %134 = vector.broadcast %133 : vector<16x1xf32> to vector<16x32xf32>
    %135 = arith.subf %125, %134 : vector<16x32xf32>
    %136 = arith.mulf %135, %135 : vector<16x32xf32>
    %cst_61 = arith.constant dense<0.000000e+00> : vector<16xf32>
    %137 = vector.multi_reduction <add>, %136, %cst_61 [1] : vector<16x32xf32> to vector<16xf32>
    %138 = vector.shape_cast %137 : vector<16xf32> to vector<16x1xf32>
    %cst_62 = arith.constant 3.200000e+01 : f32
    %139 = vector.broadcast %cst_62 : f32 to vector<16x1xf32>
    %140 = arith.divf %138, %139 : vector<16x1xf32>
    %141 = vector.broadcast %133 : vector<16x1xf32> to vector<16x32xf32>
    %142 = arith.subf %125, %141 : vector<16x32xf32>
    %cst_63 = arith.constant 9.99999974E-6 : f32
    %143 = vector.broadcast %cst_63 : f32 to vector<16x1xf32>
    %144 = arith.addf %140, %143 : vector<16x1xf32>
    %145 = math.rsqrt %144 : vector<16x1xf32>
    %146 = vector.broadcast %145 : vector<16x1xf32> to vector<16x32xf32>
    %147 = arith.mulf %142, %146 : vector<16x32xf32>
    %148 = vector.broadcast %127 : vector<1x32xf32> to vector<16x32xf32>
    %149 = arith.mulf %147, %148 : vector<16x32xf32>
    %150 = vector.broadcast %129 : vector<1x32xf32> to vector<16x32xf32>
    %151 = arith.addf %149, %150 : vector<16x32xf32>
    %c1 = arith.constant 1 : index
    %c0_64 = arith.constant 0 : index
    %c0_65 = arith.constant 0 : index
    %152 = vector.load %arg5[%c1, %c0_64, %c0_65] : memref<4x32x96xbf16, #tpu.memory_space<vmem>>, vector<1x32x96xbf16>
    %153 = vector.shape_cast %152 : vector<1x32x96xbf16> to vector<32x96xbf16>
    %154 = arith.truncf %151 : vector<16x32xf32> to vector<16x32xbf16>
    %cst_66 = arith.constant dense<0.000000e+00> : vector<16x96xf32>
    %155 = tpu.matmul %154, %153, %cst_66 {dimension_numbers = #tpu.dot_dimension_numbers<[1], [0], [0], [1], [0, 0, 1, 1], [], []>} : vector<16x32xbf16>, vector<32x96xbf16>, vector<16x96xf32> -> vector<16x96xf32>
    %c1_67 = arith.constant 1 : index
    %c0_68 = arith.constant 0 : index
    %c0_69 = arith.constant 0 : index
    %156 = vector.load %arg6[%c1_67, %c0_68, %c0_69] : memref<4x1x96xf32, #tpu.memory_space<vmem>>, vector<1x1x96xf32>
    %157 = vector.shape_cast %156 : vector<1x1x96xf32> to vector<1x96xf32>
    %158 = vector.broadcast %157 : vector<1x96xf32> to vector<16x96xf32>
    %159 = arith.addf %155, %158 : vector<16x96xf32>
    %160 = arith.truncf %159 : vector<16x96xf32> to vector<16x96xbf16>
    %161 = vector.extract_strided_slice %160 {offsets = [0, 0], sizes = [16, 32], strides = [1, 1]} : vector<16x96xbf16> to vector<16x32xbf16>
    %162 = vector.extract_strided_slice %161 {offsets = [0, 0], sizes = [16, 8], strides = [1, 1]} : vector<16x32xbf16> to vector<16x8xbf16>
    %163 = vector.extract_strided_slice %161 {offsets = [0, 8], sizes = [16, 8], strides = [1, 1]} : vector<16x32xbf16> to vector<16x8xbf16>
    %164 = vector.extract_strided_slice %161 {offsets = [0, 16], sizes = [16, 8], strides = [1, 1]} : vector<16x32xbf16> to vector<16x8xbf16>
    %165 = vector.extract_strided_slice %161 {offsets = [0, 24], sizes = [16, 8], strides = [1, 1]} : vector<16x32xbf16> to vector<16x8xbf16>
    %166 = vector.shape_cast %162 : vector<16x8xbf16> to vector<1x16x8xbf16>
    %167 = vector.shape_cast %163 : vector<16x8xbf16> to vector<1x16x8xbf16>
    %168 = vector.shape_cast %164 : vector<16x8xbf16> to vector<1x16x8xbf16>
    %169 = vector.shape_cast %165 : vector<16x8xbf16> to vector<1x16x8xbf16>
    %170 = tpu.concatenate %166, %167, %168, %169 in 0 : vector<1x16x8xbf16>, vector<1x16x8xbf16>, vector<1x16x8xbf16>, vector<1x16x8xbf16> -> vector<4x16x8xbf16>
    %171 = vector.extract_strided_slice %160 {offsets = [0, 32], sizes = [16, 32], strides = [1, 1]} : vector<16x96xbf16> to vector<16x32xbf16>
    %172 = vector.extract_strided_slice %171 {offsets = [0, 0], sizes = [16, 8], strides = [1, 1]} : vector<16x32xbf16> to vector<16x8xbf16>
    %173 = vector.extract_strided_slice %171 {offsets = [0, 8], sizes = [16, 8], strides = [1, 1]} : vector<16x32xbf16> to vector<16x8xbf16>
    %174 = vector.extract_strided_slice %171 {offsets = [0, 16], sizes = [16, 8], strides = [1, 1]} : vector<16x32xbf16> to vector<16x8xbf16>
    %175 = vector.extract_strided_slice %171 {offsets = [0, 24], sizes = [16, 8], strides = [1, 1]} : vector<16x32xbf16> to vector<16x8xbf16>
    %176 = vector.shape_cast %172 : vector<16x8xbf16> to vector<1x16x8xbf16>
    %177 = vector.shape_cast %173 : vector<16x8xbf16> to vector<1x16x8xbf16>
    %178 = vector.shape_cast %174 : vector<16x8xbf16> to vector<1x16x8xbf16>
    %179 = vector.shape_cast %175 : vector<16x8xbf16> to vector<1x16x8xbf16>
    %180 = tpu.concatenate %176, %177, %178, %179 in 0 : vector<1x16x8xbf16>, vector<1x16x8xbf16>, vector<1x16x8xbf16>, vector<1x16x8xbf16> -> vector<4x16x8xbf16>
    %181 = vector.extract_strided_slice %160 {offsets = [0, 64], sizes = [16, 32], strides = [1, 1]} : vector<16x96xbf16> to vector<16x32xbf16>
    %182 = vector.extract_strided_slice %181 {offsets = [0, 0], sizes = [16, 8], strides = [1, 1]} : vector<16x32xbf16> to vector<16x8xbf16>
    %183 = vector.extract_strided_slice %181 {offsets = [0, 8], sizes = [16, 8], strides = [1, 1]} : vector<16x32xbf16> to vector<16x8xbf16>
    %184 = vector.extract_strided_slice %181 {offsets = [0, 16], sizes = [16, 8], strides = [1, 1]} : vector<16x32xbf16> to vector<16x8xbf16>
    %185 = vector.extract_strided_slice %181 {offsets = [0, 24], sizes = [16, 8], strides = [1, 1]} : vector<16x32xbf16> to vector<16x8xbf16>
    %186 = vector.shape_cast %182 : vector<16x8xbf16> to vector<1x16x8xbf16>
    %187 = vector.shape_cast %183 : vector<16x8xbf16> to vector<1x16x8xbf16>
    %188 = vector.shape_cast %184 : vector<16x8xbf16> to vector<1x16x8xbf16>
    %189 = vector.shape_cast %185 : vector<16x8xbf16> to vector<1x16x8xbf16>
    %190 = tpu.concatenate %186, %187, %188, %189 in 0 : vector<1x16x8xbf16>, vector<1x16x8xbf16>, vector<1x16x8xbf16>, vector<1x16x8xbf16> -> vector<4x16x8xbf16>
    "tpu.trace_start"() <{level = 10 : i32, message = "hqd,hkd->hqk"}> : () -> ()
    %cst_70 = arith.constant dense<0.000000e+00> : vector<4x16x16xf32>
    %191 = tpu.matmul %170, %180, %cst_70 {dimension_numbers = #tpu.dot_dimension_numbers<[2], [2], [1], [1], [0, 0, 0, 1, 1, 1], [0], [0]>} : vector<4x16x8xbf16>, vector<4x16x8xbf16>, vector<4x16x16xf32> -> vector<4x16x16xf32>
    "tpu.trace_stop"() : () -> ()
    %cst_71 = arith.constant 0.353553385 : f32
    %192 = vector.broadcast %cst_71 : f32 to vector<4x16x16xf32>
    %193 = arith.mulf %191, %192 : vector<4x16x16xf32>
    %cst_72 = arith.constant dense<0xFF800000> : vector<4x16xf32>
    %194 = vector.multi_reduction <maximumf>, %193, %cst_72 [2] : vector<4x16x16xf32> to vector<4x16xf32>
    %195 = vector.shape_cast %194 : vector<4x16xf32> to vector<4x16x1xf32>
    %196 = vector.broadcast %195 : vector<4x16x1xf32> to vector<4x16x16xf32>
    %197 = arith.subf %193, %196 : vector<4x16x16xf32>
    %198 = math.exp %197 : vector<4x16x16xf32>
    %cst_73 = arith.constant dense<0.000000e+00> : vector<4x16xf32>
    %199 = vector.multi_reduction <add>, %198, %cst_73 [2] : vector<4x16x16xf32> to vector<4x16xf32>
    %200 = vector.shape_cast %199 : vector<4x16xf32> to vector<4x16x1xf32>
    %201 = vector.broadcast %200 : vector<4x16x1xf32> to vector<4x16x16xf32>
    %202 = arith.divf %198, %201 : vector<4x16x16xf32>
    %203 = arith.truncf %202 : vector<4x16x16xf32> to vector<4x16x16xbf16>
    "tpu.trace_start"() <{level = 10 : i32, message = "hqk,hkd->hqd"}> : () -> ()
    %cst_74 = arith.constant dense<0.000000e+00> : vector<4x16x8xf32>
    %204 = tpu.matmul %203, %190, %cst_74 {dimension_numbers = #tpu.dot_dimension_numbers<[2], [1], [1], [2], [0, 0, 0, 1, 1, 2], [0], [0]>} : vector<4x16x16xbf16>, vector<4x16x8xbf16>, vector<4x16x8xf32> -> vector<4x16x8xf32>
    "tpu.trace_stop"() : () -> ()
    %205 = vector.extract_strided_slice %204 {offsets = [0, 0, 0], sizes = [1, 16, 8], strides = [1, 1, 1]} : vector<4x16x8xf32> to vector<1x16x8xf32>
    %206 = vector.shape_cast %205 : vector<1x16x8xf32> to vector<16x8xf32>
    %207 = vector.extract_strided_slice %204 {offsets = [1, 0, 0], sizes = [1, 16, 8], strides = [1, 1, 1]} : vector<4x16x8xf32> to vector<1x16x8xf32>
    %208 = vector.shape_cast %207 : vector<1x16x8xf32> to vector<16x8xf32>
    %209 = vector.extract_strided_slice %204 {offsets = [2, 0, 0], sizes = [1, 16, 8], strides = [1, 1, 1]} : vector<4x16x8xf32> to vector<1x16x8xf32>
    %210 = vector.shape_cast %209 : vector<1x16x8xf32> to vector<16x8xf32>
    %211 = vector.extract_strided_slice %204 {offsets = [3, 0, 0], sizes = [1, 16, 8], strides = [1, 1, 1]} : vector<4x16x8xf32> to vector<1x16x8xf32>
    %212 = vector.shape_cast %211 : vector<1x16x8xf32> to vector<16x8xf32>
    %213 = tpu.concatenate %206, %208, %210, %212 in 1 : vector<16x8xf32>, vector<16x8xf32>, vector<16x8xf32>, vector<16x8xf32> -> vector<16x32xf32>
    %c1_75 = arith.constant 1 : index
    %c0_76 = arith.constant 0 : index
    %c0_77 = arith.constant 0 : index
    %214 = vector.load %arg7[%c1_75, %c0_76, %c0_77] : memref<4x32x32xbf16, #tpu.memory_space<vmem>>, vector<1x32x32xbf16>
    %215 = vector.shape_cast %214 : vector<1x32x32xbf16> to vector<32x32xbf16>
    %216 = arith.truncf %213 : vector<16x32xf32> to vector<16x32xbf16>
    %cst_78 = arith.constant dense<0.000000e+00> : vector<16x32xf32>
    %217 = tpu.matmul %216, %215, %cst_78 {dimension_numbers = #tpu.dot_dimension_numbers<[1], [0], [0], [1], [0, 0, 1, 1], [], []>} : vector<16x32xbf16>, vector<32x32xbf16>, vector<16x32xf32> -> vector<16x32xf32>
    %c1_79 = arith.constant 1 : index
    %c0_80 = arith.constant 0 : index
    %c0_81 = arith.constant 0 : index
    %218 = vector.load %arg8[%c1_79, %c0_80, %c0_81] : memref<4x1x32xf32, #tpu.memory_space<vmem>>, vector<1x1x32xf32>
    %219 = vector.shape_cast %218 : vector<1x1x32xf32> to vector<1x32xf32>
    %220 = vector.broadcast %219 : vector<1x32xf32> to vector<16x32xf32>
    %221 = arith.addf %217, %220 : vector<16x32xf32>
    %222 = arith.addf %151, %221 : vector<16x32xf32>
    %c1_82 = arith.constant 1 : index
    %c0_83 = arith.constant 0 : index
    %c0_84 = arith.constant 0 : index
    %223 = vector.load %arg9[%c1_82, %c0_83, %c0_84] : memref<4x1x32xf32, #tpu.memory_space<vmem>>, vector<1x1x32xf32>
    %224 = vector.shape_cast %223 : vector<1x1x32xf32> to vector<1x32xf32>
    %c1_85 = arith.constant 1 : index
    %c0_86 = arith.constant 0 : index
    %c0_87 = arith.constant 0 : index
    %225 = vector.load %arg10[%c1_85, %c0_86, %c0_87] : memref<4x1x32xf32, #tpu.memory_space<vmem>>, vector<1x1x32xf32>
    %226 = vector.shape_cast %225 : vector<1x1x32xf32> to vector<1x32xf32>
    %cst_88 = arith.constant dense<0.000000e+00> : vector<16xf32>
    %227 = vector.multi_reduction <add>, %222, %cst_88 [1] : vector<16x32xf32> to vector<16xf32>
    %228 = vector.shape_cast %227 : vector<16xf32> to vector<16x1xf32>
    %cst_89 = arith.constant 3.200000e+01 : f32
    %229 = vector.broadcast %cst_89 : f32 to vector<16x1xf32>
    %230 = arith.divf %228, %229 : vector<16x1xf32>
    %231 = vector.broadcast %230 : vector<16x1xf32> to vector<16x32xf32>
    %232 = arith.subf %222, %231 : vector<16x32xf32>
    %233 = arith.mulf %232, %232 : vector<16x32xf32>
    %cst_90 = arith.constant dense<0.000000e+00> : vector<16xf32>
    %234 = vector.multi_reduction <add>, %233, %cst_90 [1] : vector<16x32xf32> to vector<16xf32>
    %235 = vector.shape_cast %234 : vector<16xf32> to vector<16x1xf32>
    %cst_91 = arith.constant 3.200000e+01 : f32
    %236 = vector.broadcast %cst_91 : f32 to vector<16x1xf32>
    %237 = arith.divf %235, %236 : vector<16x1xf32>
    %238 = vector.broadcast %230 : vector<16x1xf32> to vector<16x32xf32>
    %239 = arith.subf %222, %238 : vector<16x32xf32>
    %cst_92 = arith.constant 9.99999974E-6 : f32
    %240 = vector.broadcast %cst_92 : f32 to vector<16x1xf32>
    %241 = arith.addf %237, %240 : vector<16x1xf32>
    %242 = math.rsqrt %241 : vector<16x1xf32>
    %243 = vector.broadcast %242 : vector<16x1xf32> to vector<16x32xf32>
    %244 = arith.mulf %239, %243 : vector<16x32xf32>
    %245 = vector.broadcast %224 : vector<1x32xf32> to vector<16x32xf32>
    %246 = arith.mulf %244, %245 : vector<16x32xf32>
    %247 = vector.broadcast %226 : vector<1x32xf32> to vector<16x32xf32>
    %248 = arith.addf %246, %247 : vector<16x32xf32>
    %c1_93 = arith.constant 1 : index
    %c0_94 = arith.constant 0 : index
    %c0_95 = arith.constant 0 : index
    %249 = vector.load %arg11[%c1_93, %c0_94, %c0_95] : memref<4x32x64xbf16, #tpu.memory_space<vmem>>, vector<1x32x64xbf16>
    %250 = vector.shape_cast %249 : vector<1x32x64xbf16> to vector<32x64xbf16>
    %251 = arith.truncf %248 : vector<16x32xf32> to vector<16x32xbf16>
    %cst_96 = arith.constant dense<0.000000e+00> : vector<16x64xf32>
    %252 = tpu.matmul %251, %250, %cst_96 {dimension_numbers = #tpu.dot_dimension_numbers<[1], [0], [0], [1], [0, 0, 1, 1], [], []>} : vector<16x32xbf16>, vector<32x64xbf16>, vector<16x64xf32> -> vector<16x64xf32>
    %c1_97 = arith.constant 1 : index
    %c0_98 = arith.constant 0 : index
    %c0_99 = arith.constant 0 : index
    %253 = vector.load %arg12[%c1_97, %c0_98, %c0_99] : memref<4x1x64xf32, #tpu.memory_space<vmem>>, vector<1x1x64xf32>
    %254 = vector.shape_cast %253 : vector<1x1x64xf32> to vector<1x64xf32>
    %255 = vector.broadcast %254 : vector<1x64xf32> to vector<16x64xf32>
    %256 = arith.addf %252, %255 : vector<16x64xf32>
    %cst_100 = arith.constant 0.000000e+00 : f32
    %257 = vector.broadcast %cst_100 : f32 to vector<16x64xf32>
    %258 = arith.maximumf %256, %257 : vector<16x64xf32>
    %c1_101 = arith.constant 1 : index
    %c0_102 = arith.constant 0 : index
    %c0_103 = arith.constant 0 : index
    %259 = vector.load %arg13[%c1_101, %c0_102, %c0_103] : memref<4x64x32xbf16, #tpu.memory_space<vmem>>, vector<1x64x32xbf16>
    %260 = vector.shape_cast %259 : vector<1x64x32xbf16> to vector<64x32xbf16>
    %261 = arith.truncf %258 : vector<16x64xf32> to vector<16x64xbf16>
    %cst_104 = arith.constant dense<0.000000e+00> : vector<16x32xf32>
    %262 = tpu.matmul %261, %260, %cst_104 {dimension_numbers = #tpu.dot_dimension_numbers<[1], [0], [0], [1], [0, 0, 1, 1], [], []>} : vector<16x64xbf16>, vector<64x32xbf16>, vector<16x32xf32> -> vector<16x32xf32>
    %c1_105 = arith.constant 1 : index
    %c0_106 = arith.constant 0 : index
    %c0_107 = arith.constant 0 : index
    %263 = vector.load %arg14[%c1_105, %c0_106, %c0_107] : memref<4x1x32xf32, #tpu.memory_space<vmem>>, vector<1x1x32xf32>
    %264 = vector.shape_cast %263 : vector<1x1x32xf32> to vector<1x32xf32>
    %265 = vector.broadcast %264 : vector<1x32xf32> to vector<16x32xf32>
    %266 = arith.addf %262, %265 : vector<16x32xf32>
    %267 = arith.addf %248, %266 : vector<16x32xf32>
    %c1_108 = arith.constant 1 : index
    %c0_109 = arith.constant 0 : index
    %c0_110 = arith.constant 0 : index
    %268 = vector.load %arg15[%c1_108, %c0_109, %c0_110] : memref<4x1x32xf32, #tpu.memory_space<vmem>>, vector<1x1x32xf32>
    %269 = vector.shape_cast %268 : vector<1x1x32xf32> to vector<1x32xf32>
    %c1_111 = arith.constant 1 : index
    %c0_112 = arith.constant 0 : index
    %c0_113 = arith.constant 0 : index
    %270 = vector.load %arg16[%c1_111, %c0_112, %c0_113] : memref<4x1x32xf32, #tpu.memory_space<vmem>>, vector<1x1x32xf32>
    %271 = vector.shape_cast %270 : vector<1x1x32xf32> to vector<1x32xf32>
    %cst_114 = arith.constant dense<0.000000e+00> : vector<16xf32>
    %272 = vector.multi_reduction <add>, %267, %cst_114 [1] : vector<16x32xf32> to vector<16xf32>
    %273 = vector.shape_cast %272 : vector<16xf32> to vector<16x1xf32>
    %cst_115 = arith.constant 3.200000e+01 : f32
    %274 = vector.broadcast %cst_115 : f32 to vector<16x1xf32>
    %275 = arith.divf %273, %274 : vector<16x1xf32>
    %276 = vector.broadcast %275 : vector<16x1xf32> to vector<16x32xf32>
    %277 = arith.subf %267, %276 : vector<16x32xf32>
    %278 = arith.mulf %277, %277 : vector<16x32xf32>
    %cst_116 = arith.constant dense<0.000000e+00> : vector<16xf32>
    %279 = vector.multi_reduction <add>, %278, %cst_116 [1] : vector<16x32xf32> to vector<16xf32>
    %280 = vector.shape_cast %279 : vector<16xf32> to vector<16x1xf32>
    %cst_117 = arith.constant 3.200000e+01 : f32
    %281 = vector.broadcast %cst_117 : f32 to vector<16x1xf32>
    %282 = arith.divf %280, %281 : vector<16x1xf32>
    %283 = vector.broadcast %275 : vector<16x1xf32> to vector<16x32xf32>
    %284 = arith.subf %267, %283 : vector<16x32xf32>
    %cst_118 = arith.constant 9.99999974E-6 : f32
    %285 = vector.broadcast %cst_118 : f32 to vector<16x1xf32>
    %286 = arith.addf %282, %285 : vector<16x1xf32>
    %287 = math.rsqrt %286 : vector<16x1xf32>
    %288 = vector.broadcast %287 : vector<16x1xf32> to vector<16x32xf32>
    %289 = arith.mulf %284, %288 : vector<16x32xf32>
    %290 = vector.broadcast %269 : vector<1x32xf32> to vector<16x32xf32>
    %291 = arith.mulf %289, %290 : vector<16x32xf32>
    %292 = vector.broadcast %271 : vector<1x32xf32> to vector<16x32xf32>
    %293 = arith.addf %291, %292 : vector<16x32xf32>
    %c2 = arith.constant 2 : index
    %c0_119 = arith.constant 0 : index
    %c0_120 = arith.constant 0 : index
    %294 = vector.load %arg5[%c2, %c0_119, %c0_120] : memref<4x32x96xbf16, #tpu.memory_space<vmem>>, vector<1x32x96xbf16>
    %295 = vector.shape_cast %294 : vector<1x32x96xbf16> to vector<32x96xbf16>
    %296 = arith.truncf %293 : vector<16x32xf32> to vector<16x32xbf16>
    %cst_121 = arith.constant dense<0.000000e+00> : vector<16x96xf32>
    %297 = tpu.matmul %296, %295, %cst_121 {dimension_numbers = #tpu.dot_dimension_numbers<[1], [0], [0], [1], [0, 0, 1, 1], [], []>} : vector<16x32xbf16>, vector<32x96xbf16>, vector<16x96xf32> -> vector<16x96xf32>
    %c2_122 = arith.constant 2 : index
    %c0_123 = arith.constant 0 : index
    %c0_124 = arith.constant 0 : index
    %298 = vector.load %arg6[%c2_122, %c0_123, %c0_124] : memref<4x1x96xf32, #tpu.memory_space<vmem>>, vector<1x1x96xf32>
    %299 = vector.shape_cast %298 : vector<1x1x96xf32> to vector<1x96xf32>
    %300 = vector.broadcast %299 : vector<1x96xf32> to vector<16x96xf32>
    %301 = arith.addf %297, %300 : vector<16x96xf32>
    %302 = arith.truncf %301 : vector<16x96xf32> to vector<16x96xbf16>
    %303 = vector.extract_strided_slice %302 {offsets = [0, 0], sizes = [16, 32], strides = [1, 1]} : vector<16x96xbf16> to vector<16x32xbf16>
    %304 = vector.extract_strided_slice %303 {offsets = [0, 0], sizes = [16, 8], strides = [1, 1]} : vector<16x32xbf16> to vector<16x8xbf16>
    %305 = vector.extract_strided_slice %303 {offsets = [0, 8], sizes = [16, 8], strides = [1, 1]} : vector<16x32xbf16> to vector<16x8xbf16>
    %306 = vector.extract_strided_slice %303 {offsets = [0, 16], sizes = [16, 8], strides = [1, 1]} : vector<16x32xbf16> to vector<16x8xbf16>
    %307 = vector.extract_strided_slice %303 {offsets = [0, 24], sizes = [16, 8], strides = [1, 1]} : vector<16x32xbf16> to vector<16x8xbf16>
    %308 = vector.shape_cast %304 : vector<16x8xbf16> to vector<1x16x8xbf16>
    %309 = vector.shape_cast %305 : vector<16x8xbf16> to vector<1x16x8xbf16>
    %310 = vector.shape_cast %306 : vector<16x8xbf16> to vector<1x16x8xbf16>
    %311 = vector.shape_cast %307 : vector<16x8xbf16> to vector<1x16x8xbf16>
    %312 = tpu.concatenate %308, %309, %310, %311 in 0 : vector<1x16x8xbf16>, vector<1x16x8xbf16>, vector<1x16x8xbf16>, vector<1x16x8xbf16> -> vector<4x16x8xbf16>
    %313 = vector.extract_strided_slice %302 {offsets = [0, 32], sizes = [16, 32], strides = [1, 1]} : vector<16x96xbf16> to vector<16x32xbf16>
    %314 = vector.extract_strided_slice %313 {offsets = [0, 0], sizes = [16, 8], strides = [1, 1]} : vector<16x32xbf16> to vector<16x8xbf16>
    %315 = vector.extract_strided_slice %313 {offsets = [0, 8], sizes = [16, 8], strides = [1, 1]} : vector<16x32xbf16> to vector<16x8xbf16>
    %316 = vector.extract_strided_slice %313 {offsets = [0, 16], sizes = [16, 8], strides = [1, 1]} : vector<16x32xbf16> to vector<16x8xbf16>
    %317 = vector.extract_strided_slice %313 {offsets = [0, 24], sizes = [16, 8], strides = [1, 1]} : vector<16x32xbf16> to vector<16x8xbf16>
    %318 = vector.shape_cast %314 : vector<16x8xbf16> to vector<1x16x8xbf16>
    %319 = vector.shape_cast %315 : vector<16x8xbf16> to vector<1x16x8xbf16>
    %320 = vector.shape_cast %316 : vector<16x8xbf16> to vector<1x16x8xbf16>
    %321 = vector.shape_cast %317 : vector<16x8xbf16> to vector<1x16x8xbf16>
    %322 = tpu.concatenate %318, %319, %320, %321 in 0 : vector<1x16x8xbf16>, vector<1x16x8xbf16>, vector<1x16x8xbf16>, vector<1x16x8xbf16> -> vector<4x16x8xbf16>
    %323 = vector.extract_strided_slice %302 {offsets = [0, 64], sizes = [16, 32], strides = [1, 1]} : vector<16x96xbf16> to vector<16x32xbf16>
    %324 = vector.extract_strided_slice %323 {offsets = [0, 0], sizes = [16, 8], strides = [1, 1]} : vector<16x32xbf16> to vector<16x8xbf16>
    %325 = vector.extract_strided_slice %323 {offsets = [0, 8], sizes = [16, 8], strides = [1, 1]} : vector<16x32xbf16> to vector<16x8xbf16>
    %326 = vector.extract_strided_slice %323 {offsets = [0, 16], sizes = [16, 8], strides = [1, 1]} : vector<16x32xbf16> to vector<16x8xbf16>
    %327 = vector.extract_strided_slice %323 {offsets = [0, 24], sizes = [16, 8], strides = [1, 1]} : vector<16x32xbf16> to vector<16x8xbf16>
    %328 = vector.shape_cast %324 : vector<16x8xbf16> to vector<1x16x8xbf16>
    %329 = vector.shape_cast %325 : vector<16x8xbf16> to vector<1x16x8xbf16>
    %330 = vector.shape_cast %326 : vector<16x8xbf16> to vector<1x16x8xbf16>
    %331 = vector.shape_cast %327 : vector<16x8xbf16> to vector<1x16x8xbf16>
    %332 = tpu.concatenate %328, %329, %330, %331 in 0 : vector<1x16x8xbf16>, vector<1x16x8xbf16>, vector<1x16x8xbf16>, vector<1x16x8xbf16> -> vector<4x16x8xbf16>
    "tpu.trace_start"() <{level = 10 : i32, message = "hqd,hkd->hqk"}> : () -> ()
    %cst_125 = arith.constant dense<0.000000e+00> : vector<4x16x16xf32>
    %333 = tpu.matmul %312, %322, %cst_125 {dimension_numbers = #tpu.dot_dimension_numbers<[2], [2], [1], [1], [0, 0, 0, 1, 1, 1], [0], [0]>} : vector<4x16x8xbf16>, vector<4x16x8xbf16>, vector<4x16x16xf32> -> vector<4x16x16xf32>
    "tpu.trace_stop"() : () -> ()
    %cst_126 = arith.constant 0.353553385 : f32
    %334 = vector.broadcast %cst_126 : f32 to vector<4x16x16xf32>
    %335 = arith.mulf %333, %334 : vector<4x16x16xf32>
    %cst_127 = arith.constant dense<0xFF800000> : vector<4x16xf32>
    %336 = vector.multi_reduction <maximumf>, %335, %cst_127 [2] : vector<4x16x16xf32> to vector<4x16xf32>
    %337 = vector.shape_cast %336 : vector<4x16xf32> to vector<4x16x1xf32>
    %338 = vector.broadcast %337 : vector<4x16x1xf32> to vector<4x16x16xf32>
    %339 = arith.subf %335, %338 : vector<4x16x16xf32>
    %340 = math.exp %339 : vector<4x16x16xf32>
    %cst_128 = arith.constant dense<0.000000e+00> : vector<4x16xf32>
    %341 = vector.multi_reduction <add>, %340, %cst_128 [2] : vector<4x16x16xf32> to vector<4x16xf32>
    %342 = vector.shape_cast %341 : vector<4x16xf32> to vector<4x16x1xf32>
    %343 = vector.broadcast %342 : vector<4x16x1xf32> to vector<4x16x16xf32>
    %344 = arith.divf %340, %343 : vector<4x16x16xf32>
    %345 = arith.truncf %344 : vector<4x16x16xf32> to vector<4x16x16xbf16>
    "tpu.trace_start"() <{level = 10 : i32, message = "hqk,hkd->hqd"}> : () -> ()
    %cst_129 = arith.constant dense<0.000000e+00> : vector<4x16x8xf32>
    %346 = tpu.matmul %345, %332, %cst_129 {dimension_numbers = #tpu.dot_dimension_numbers<[2], [1], [1], [2], [0, 0, 0, 1, 1, 2], [0], [0]>} : vector<4x16x16xbf16>, vector<4x16x8xbf16>, vector<4x16x8xf32> -> vector<4x16x8xf32>
    "tpu.trace_stop"() : () -> ()
    %347 = vector.extract_strided_slice %346 {offsets = [0, 0, 0], sizes = [1, 16, 8], strides = [1, 1, 1]} : vector<4x16x8xf32> to vector<1x16x8xf32>
    %348 = vector.shape_cast %347 : vector<1x16x8xf32> to vector<16x8xf32>
    %349 = vector.extract_strided_slice %346 {offsets = [1, 0, 0], sizes = [1, 16, 8], strides = [1, 1, 1]} : vector<4x16x8xf32> to vector<1x16x8xf32>
    %350 = vector.shape_cast %349 : vector<1x16x8xf32> to vector<16x8xf32>
    %351 = vector.extract_strided_slice %346 {offsets = [2, 0, 0], sizes = [1, 16, 8], strides = [1, 1, 1]} : vector<4x16x8xf32> to vector<1x16x8xf32>
    %352 = vector.shape_cast %351 : vector<1x16x8xf32> to vector<16x8xf32>
    %353 = vector.extract_strided_slice %346 {offsets = [3, 0, 0], sizes = [1, 16, 8], strides = [1, 1, 1]} : vector<4x16x8xf32> to vector<1x16x8xf32>
    %354 = vector.shape_cast %353 : vector<1x16x8xf32> to vector<16x8xf32>
    %355 = tpu.concatenate %348, %350, %352, %354 in 1 : vector<16x8xf32>, vector<16x8xf32>, vector<16x8xf32>, vector<16x8xf32> -> vector<16x32xf32>
    %c2_130 = arith.constant 2 : index
    %c0_131 = arith.constant 0 : index
    %c0_132 = arith.constant 0 : index
    %356 = vector.load %arg7[%c2_130, %c0_131, %c0_132] : memref<4x32x32xbf16, #tpu.memory_space<vmem>>, vector<1x32x32xbf16>
    %357 = vector.shape_cast %356 : vector<1x32x32xbf16> to vector<32x32xbf16>
    %358 = arith.truncf %355 : vector<16x32xf32> to vector<16x32xbf16>
    %cst_133 = arith.constant dense<0.000000e+00> : vector<16x32xf32>
    %359 = tpu.matmul %358, %357, %cst_133 {dimension_numbers = #tpu.dot_dimension_numbers<[1], [0], [0], [1], [0, 0, 1, 1], [], []>} : vector<16x32xbf16>, vector<32x32xbf16>, vector<16x32xf32> -> vector<16x32xf32>
    %c2_134 = arith.constant 2 : index
    %c0_135 = arith.constant 0 : index
    %c0_136 = arith.constant 0 : index
    %360 = vector.load %arg8[%c2_134, %c0_135, %c0_136] : memref<4x1x32xf32, #tpu.memory_space<vmem>>, vector<1x1x32xf32>
    %361 = vector.shape_cast %360 : vector<1x1x32xf32> to vector<1x32xf32>
    %362 = vector.broadcast %361 : vector<1x32xf32> to vector<16x32xf32>
    %363 = arith.addf %359, %362 : vector<16x32xf32>
    %364 = arith.addf %293, %363 : vector<16x32xf32>
    %c2_137 = arith.constant 2 : index
    %c0_138 = arith.constant 0 : index
    %c0_139 = arith.constant 0 : index
    %365 = vector.load %arg9[%c2_137, %c0_138, %c0_139] : memref<4x1x32xf32, #tpu.memory_space<vmem>>, vector<1x1x32xf32>
    %366 = vector.shape_cast %365 : vector<1x1x32xf32> to vector<1x32xf32>
    %c2_140 = arith.constant 2 : index
    %c0_141 = arith.constant 0 : index
    %c0_142 = arith.constant 0 : index
    %367 = vector.load %arg10[%c2_140, %c0_141, %c0_142] : memref<4x1x32xf32, #tpu.memory_space<vmem>>, vector<1x1x32xf32>
    %368 = vector.shape_cast %367 : vector<1x1x32xf32> to vector<1x32xf32>
    %cst_143 = arith.constant dense<0.000000e+00> : vector<16xf32>
    %369 = vector.multi_reduction <add>, %364, %cst_143 [1] : vector<16x32xf32> to vector<16xf32>
    %370 = vector.shape_cast %369 : vector<16xf32> to vector<16x1xf32>
    %cst_144 = arith.constant 3.200000e+01 : f32
    %371 = vector.broadcast %cst_144 : f32 to vector<16x1xf32>
    %372 = arith.divf %370, %371 : vector<16x1xf32>
    %373 = vector.broadcast %372 : vector<16x1xf32> to vector<16x32xf32>
    %374 = arith.subf %364, %373 : vector<16x32xf32>
    %375 = arith.mulf %374, %374 : vector<16x32xf32>
    %cst_145 = arith.constant dense<0.000000e+00> : vector<16xf32>
    %376 = vector.multi_reduction <add>, %375, %cst_145 [1] : vector<16x32xf32> to vector<16xf32>
    %377 = vector.shape_cast %376 : vector<16xf32> to vector<16x1xf32>
    %cst_146 = arith.constant 3.200000e+01 : f32
    %378 = vector.broadcast %cst_146 : f32 to vector<16x1xf32>
    %379 = arith.divf %377, %378 : vector<16x1xf32>
    %380 = vector.broadcast %372 : vector<16x1xf32> to vector<16x32xf32>
    %381 = arith.subf %364, %380 : vector<16x32xf32>
    %cst_147 = arith.constant 9.99999974E-6 : f32
    %382 = vector.broadcast %cst_147 : f32 to vector<16x1xf32>
    %383 = arith.addf %379, %382 : vector<16x1xf32>
    %384 = math.rsqrt %383 : vector<16x1xf32>
    %385 = vector.broadcast %384 : vector<16x1xf32> to vector<16x32xf32>
    %386 = arith.mulf %381, %385 : vector<16x32xf32>
    %387 = vector.broadcast %366 : vector<1x32xf32> to vector<16x32xf32>
    %388 = arith.mulf %386, %387 : vector<16x32xf32>
    %389 = vector.broadcast %368 : vector<1x32xf32> to vector<16x32xf32>
    %390 = arith.addf %388, %389 : vector<16x32xf32>
    %c2_148 = arith.constant 2 : index
    %c0_149 = arith.constant 0 : index
    %c0_150 = arith.constant 0 : index
    %391 = vector.load %arg11[%c2_148, %c0_149, %c0_150] : memref<4x32x64xbf16, #tpu.memory_space<vmem>>, vector<1x32x64xbf16>
    %392 = vector.shape_cast %391 : vector<1x32x64xbf16> to vector<32x64xbf16>
    %393 = arith.truncf %390 : vector<16x32xf32> to vector<16x32xbf16>
    %cst_151 = arith.constant dense<0.000000e+00> : vector<16x64xf32>
    %394 = tpu.matmul %393, %392, %cst_151 {dimension_numbers = #tpu.dot_dimension_numbers<[1], [0], [0], [1], [0, 0, 1, 1], [], []>} : vector<16x32xbf16>, vector<32x64xbf16>, vector<16x64xf32> -> vector<16x64xf32>
    %c2_152 = arith.constant 2 : index
    %c0_153 = arith.constant 0 : index
    %c0_154 = arith.constant 0 : index
    %395 = vector.load %arg12[%c2_152, %c0_153, %c0_154] : memref<4x1x64xf32, #tpu.memory_space<vmem>>, vector<1x1x64xf32>
    %396 = vector.shape_cast %395 : vector<1x1x64xf32> to vector<1x64xf32>
    %397 = vector.broadcast %396 : vector<1x64xf32> to vector<16x64xf32>
    %398 = arith.addf %394, %397 : vector<16x64xf32>
    %cst_155 = arith.constant 0.000000e+00 : f32
    %399 = vector.broadcast %cst_155 : f32 to vector<16x64xf32>
    %400 = arith.maximumf %398, %399 : vector<16x64xf32>
    %c2_156 = arith.constant 2 : index
    %c0_157 = arith.constant 0 : index
    %c0_158 = arith.constant 0 : index
    %401 = vector.load %arg13[%c2_156, %c0_157, %c0_158] : memref<4x64x32xbf16, #tpu.memory_space<vmem>>, vector<1x64x32xbf16>
    %402 = vector.shape_cast %401 : vector<1x64x32xbf16> to vector<64x32xbf16>
    %403 = arith.truncf %400 : vector<16x64xf32> to vector<16x64xbf16>
    %cst_159 = arith.constant dense<0.000000e+00> : vector<16x32xf32>
    %404 = tpu.matmul %403, %402, %cst_159 {dimension_numbers = #tpu.dot_dimension_numbers<[1], [0], [0], [1], [0, 0, 1, 1], [], []>} : vector<16x64xbf16>, vector<64x32xbf16>, vector<16x32xf32> -> vector<16x32xf32>
    %c2_160 = arith.constant 2 : index
    %c0_161 = arith.constant 0 : index
    %c0_162 = arith.constant 0 : index
    %405 = vector.load %arg14[%c2_160, %c0_161, %c0_162] : memref<4x1x32xf32, #tpu.memory_space<vmem>>, vector<1x1x32xf32>
    %406 = vector.shape_cast %405 : vector<1x1x32xf32> to vector<1x32xf32>
    %407 = vector.broadcast %406 : vector<1x32xf32> to vector<16x32xf32>
    %408 = arith.addf %404, %407 : vector<16x32xf32>
    %409 = arith.addf %390, %408 : vector<16x32xf32>
    %c2_163 = arith.constant 2 : index
    %c0_164 = arith.constant 0 : index
    %c0_165 = arith.constant 0 : index
    %410 = vector.load %arg15[%c2_163, %c0_164, %c0_165] : memref<4x1x32xf32, #tpu.memory_space<vmem>>, vector<1x1x32xf32>
    %411 = vector.shape_cast %410 : vector<1x1x32xf32> to vector<1x32xf32>
    %c2_166 = arith.constant 2 : index
    %c0_167 = arith.constant 0 : index
    %c0_168 = arith.constant 0 : index
    %412 = vector.load %arg16[%c2_166, %c0_167, %c0_168] : memref<4x1x32xf32, #tpu.memory_space<vmem>>, vector<1x1x32xf32>
    %413 = vector.shape_cast %412 : vector<1x1x32xf32> to vector<1x32xf32>
    %cst_169 = arith.constant dense<0.000000e+00> : vector<16xf32>
    %414 = vector.multi_reduction <add>, %409, %cst_169 [1] : vector<16x32xf32> to vector<16xf32>
    %415 = vector.shape_cast %414 : vector<16xf32> to vector<16x1xf32>
    %cst_170 = arith.constant 3.200000e+01 : f32
    %416 = vector.broadcast %cst_170 : f32 to vector<16x1xf32>
    %417 = arith.divf %415, %416 : vector<16x1xf32>
    %418 = vector.broadcast %417 : vector<16x1xf32> to vector<16x32xf32>
    %419 = arith.subf %409, %418 : vector<16x32xf32>
    %420 = arith.mulf %419, %419 : vector<16x32xf32>
    %cst_171 = arith.constant dense<0.000000e+00> : vector<16xf32>
    %421 = vector.multi_reduction <add>, %420, %cst_171 [1] : vector<16x32xf32> to vector<16xf32>
    %422 = vector.shape_cast %421 : vector<16xf32> to vector<16x1xf32>
    %cst_172 = arith.constant 3.200000e+01 : f32
    %423 = vector.broadcast %cst_172 : f32 to vector<16x1xf32>
    %424 = arith.divf %422, %423 : vector<16x1xf32>
    %425 = vector.broadcast %417 : vector<16x1xf32> to vector<16x32xf32>
    %426 = arith.subf %409, %425 : vector<16x32xf32>
    %cst_173 = arith.constant 9.99999974E-6 : f32
    %427 = vector.broadcast %cst_173 : f32 to vector<16x1xf32>
    %428 = arith.addf %424, %427 : vector<16x1xf32>
    %429 = math.rsqrt %428 : vector<16x1xf32>
    %430 = vector.broadcast %429 : vector<16x1xf32> to vector<16x32xf32>
    %431 = arith.mulf %426, %430 : vector<16x32xf32>
    %432 = vector.broadcast %411 : vector<1x32xf32> to vector<16x32xf32>
    %433 = arith.mulf %431, %432 : vector<16x32xf32>
    %434 = vector.broadcast %413 : vector<1x32xf32> to vector<16x32xf32>
    %435 = arith.addf %433, %434 : vector<16x32xf32>
    %c3 = arith.constant 3 : index
    %c0_174 = arith.constant 0 : index
    %c0_175 = arith.constant 0 : index
    %436 = vector.load %arg5[%c3, %c0_174, %c0_175] : memref<4x32x96xbf16, #tpu.memory_space<vmem>>, vector<1x32x96xbf16>
    %437 = vector.shape_cast %436 : vector<1x32x96xbf16> to vector<32x96xbf16>
    %438 = arith.truncf %435 : vector<16x32xf32> to vector<16x32xbf16>
    %cst_176 = arith.constant dense<0.000000e+00> : vector<16x96xf32>
    %439 = tpu.matmul %438, %437, %cst_176 {dimension_numbers = #tpu.dot_dimension_numbers<[1], [0], [0], [1], [0, 0, 1, 1], [], []>} : vector<16x32xbf16>, vector<32x96xbf16>, vector<16x96xf32> -> vector<16x96xf32>
    %c3_177 = arith.constant 3 : index
    %c0_178 = arith.constant 0 : index
    %c0_179 = arith.constant 0 : index
    %440 = vector.load %arg6[%c3_177, %c0_178, %c0_179] : memref<4x1x96xf32, #tpu.memory_space<vmem>>, vector<1x1x96xf32>
    %441 = vector.shape_cast %440 : vector<1x1x96xf32> to vector<1x96xf32>
    %442 = vector.broadcast %441 : vector<1x96xf32> to vector<16x96xf32>
    %443 = arith.addf %439, %442 : vector<16x96xf32>
    %444 = arith.truncf %443 : vector<16x96xf32> to vector<16x96xbf16>
    %445 = vector.extract_strided_slice %444 {offsets = [0, 0], sizes = [16, 32], strides = [1, 1]} : vector<16x96xbf16> to vector<16x32xbf16>
    %446 = vector.extract_strided_slice %445 {offsets = [0, 0], sizes = [16, 8], strides = [1, 1]} : vector<16x32xbf16> to vector<16x8xbf16>
    %447 = vector.extract_strided_slice %445 {offsets = [0, 8], sizes = [16, 8], strides = [1, 1]} : vector<16x32xbf16> to vector<16x8xbf16>
    %448 = vector.extract_strided_slice %445 {offsets = [0, 16], sizes = [16, 8], strides = [1, 1]} : vector<16x32xbf16> to vector<16x8xbf16>
    %449 = vector.extract_strided_slice %445 {offsets = [0, 24], sizes = [16, 8], strides = [1, 1]} : vector<16x32xbf16> to vector<16x8xbf16>
    %450 = vector.shape_cast %446 : vector<16x8xbf16> to vector<1x16x8xbf16>
    %451 = vector.shape_cast %447 : vector<16x8xbf16> to vector<1x16x8xbf16>
    %452 = vector.shape_cast %448 : vector<16x8xbf16> to vector<1x16x8xbf16>
    %453 = vector.shape_cast %449 : vector<16x8xbf16> to vector<1x16x8xbf16>
    %454 = tpu.concatenate %450, %451, %452, %453 in 0 : vector<1x16x8xbf16>, vector<1x16x8xbf16>, vector<1x16x8xbf16>, vector<1x16x8xbf16> -> vector<4x16x8xbf16>
    %455 = vector.extract_strided_slice %444 {offsets = [0, 32], sizes = [16, 32], strides = [1, 1]} : vector<16x96xbf16> to vector<16x32xbf16>
    %456 = vector.extract_strided_slice %455 {offsets = [0, 0], sizes = [16, 8], strides = [1, 1]} : vector<16x32xbf16> to vector<16x8xbf16>
    %457 = vector.extract_strided_slice %455 {offsets = [0, 8], sizes = [16, 8], strides = [1, 1]} : vector<16x32xbf16> to vector<16x8xbf16>
    %458 = vector.extract_strided_slice %455 {offsets = [0, 16], sizes = [16, 8], strides = [1, 1]} : vector<16x32xbf16> to vector<16x8xbf16>
    %459 = vector.extract_strided_slice %455 {offsets = [0, 24], sizes = [16, 8], strides = [1, 1]} : vector<16x32xbf16> to vector<16x8xbf16>
    %460 = vector.shape_cast %456 : vector<16x8xbf16> to vector<1x16x8xbf16>
    %461 = vector.shape_cast %457 : vector<16x8xbf16> to vector<1x16x8xbf16>
    %462 = vector.shape_cast %458 : vector<16x8xbf16> to vector<1x16x8xbf16>
    %463 = vector.shape_cast %459 : vector<16x8xbf16> to vector<1x16x8xbf16>
    %464 = tpu.concatenate %460, %461, %462, %463 in 0 : vector<1x16x8xbf16>, vector<1x16x8xbf16>, vector<1x16x8xbf16>, vector<1x16x8xbf16> -> vector<4x16x8xbf16>
    %465 = vector.extract_strided_slice %444 {offsets = [0, 64], sizes = [16, 32], strides = [1, 1]} : vector<16x96xbf16> to vector<16x32xbf16>
    %466 = vector.extract_strided_slice %465 {offsets = [0, 0], sizes = [16, 8], strides = [1, 1]} : vector<16x32xbf16> to vector<16x8xbf16>
    %467 = vector.extract_strided_slice %465 {offsets = [0, 8], sizes = [16, 8], strides = [1, 1]} : vector<16x32xbf16> to vector<16x8xbf16>
    %468 = vector.extract_strided_slice %465 {offsets = [0, 16], sizes = [16, 8], strides = [1, 1]} : vector<16x32xbf16> to vector<16x8xbf16>
    %469 = vector.extract_strided_slice %465 {offsets = [0, 24], sizes = [16, 8], strides = [1, 1]} : vector<16x32xbf16> to vector<16x8xbf16>
    %470 = vector.shape_cast %466 : vector<16x8xbf16> to vector<1x16x8xbf16>
    %471 = vector.shape_cast %467 : vector<16x8xbf16> to vector<1x16x8xbf16>
    %472 = vector.shape_cast %468 : vector<16x8xbf16> to vector<1x16x8xbf16>
    %473 = vector.shape_cast %469 : vector<16x8xbf16> to vector<1x16x8xbf16>
    %474 = tpu.concatenate %470, %471, %472, %473 in 0 : vector<1x16x8xbf16>, vector<1x16x8xbf16>, vector<1x16x8xbf16>, vector<1x16x8xbf16> -> vector<4x16x8xbf16>
    "tpu.trace_start"() <{level = 10 : i32, message = "hqd,hkd->hqk"}> : () -> ()
    %cst_180 = arith.constant dense<0.000000e+00> : vector<4x16x16xf32>
    %475 = tpu.matmul %454, %464, %cst_180 {dimension_numbers = #tpu.dot_dimension_numbers<[2], [2], [1], [1], [0, 0, 0, 1, 1, 1], [0], [0]>} : vector<4x16x8xbf16>, vector<4x16x8xbf16>, vector<4x16x16xf32> -> vector<4x16x16xf32>
    "tpu.trace_stop"() : () -> ()
    %cst_181 = arith.constant 0.353553385 : f32
    %476 = vector.broadcast %cst_181 : f32 to vector<4x16x16xf32>
    %477 = arith.mulf %475, %476 : vector<4x16x16xf32>
    %cst_182 = arith.constant dense<0xFF800000> : vector<4x16xf32>
    %478 = vector.multi_reduction <maximumf>, %477, %cst_182 [2] : vector<4x16x16xf32> to vector<4x16xf32>
    %479 = vector.shape_cast %478 : vector<4x16xf32> to vector<4x16x1xf32>
    %480 = vector.broadcast %479 : vector<4x16x1xf32> to vector<4x16x16xf32>
    %481 = arith.subf %477, %480 : vector<4x16x16xf32>
    %482 = math.exp %481 : vector<4x16x16xf32>
    %cst_183 = arith.constant dense<0.000000e+00> : vector<4x16xf32>
    %483 = vector.multi_reduction <add>, %482, %cst_183 [2] : vector<4x16x16xf32> to vector<4x16xf32>
    %484 = vector.shape_cast %483 : vector<4x16xf32> to vector<4x16x1xf32>
    %485 = vector.broadcast %484 : vector<4x16x1xf32> to vector<4x16x16xf32>
    %486 = arith.divf %482, %485 : vector<4x16x16xf32>
    %487 = arith.truncf %486 : vector<4x16x16xf32> to vector<4x16x16xbf16>
    "tpu.trace_start"() <{level = 10 : i32, message = "hqk,hkd->hqd"}> : () -> ()
    %cst_184 = arith.constant dense<0.000000e+00> : vector<4x16x8xf32>
    %488 = tpu.matmul %487, %474, %cst_184 {dimension_numbers = #tpu.dot_dimension_numbers<[2], [1], [1], [2], [0, 0, 0, 1, 1, 2], [0], [0]>} : vector<4x16x16xbf16>, vector<4x16x8xbf16>, vector<4x16x8xf32> -> vector<4x16x8xf32>
    "tpu.trace_stop"() : () -> ()
    %489 = vector.extract_strided_slice %488 {offsets = [0, 0, 0], sizes = [1, 16, 8], strides = [1, 1, 1]} : vector<4x16x8xf32> to vector<1x16x8xf32>
    %490 = vector.shape_cast %489 : vector<1x16x8xf32> to vector<16x8xf32>
    %491 = vector.extract_strided_slice %488 {offsets = [1, 0, 0], sizes = [1, 16, 8], strides = [1, 1, 1]} : vector<4x16x8xf32> to vector<1x16x8xf32>
    %492 = vector.shape_cast %491 : vector<1x16x8xf32> to vector<16x8xf32>
    %493 = vector.extract_strided_slice %488 {offsets = [2, 0, 0], sizes = [1, 16, 8], strides = [1, 1, 1]} : vector<4x16x8xf32> to vector<1x16x8xf32>
    %494 = vector.shape_cast %493 : vector<1x16x8xf32> to vector<16x8xf32>
    %495 = vector.extract_strided_slice %488 {offsets = [3, 0, 0], sizes = [1, 16, 8], strides = [1, 1, 1]} : vector<4x16x8xf32> to vector<1x16x8xf32>
    %496 = vector.shape_cast %495 : vector<1x16x8xf32> to vector<16x8xf32>
    %497 = tpu.concatenate %490, %492, %494, %496 in 1 : vector<16x8xf32>, vector<16x8xf32>, vector<16x8xf32>, vector<16x8xf32> -> vector<16x32xf32>
    %c3_185 = arith.constant 3 : index
    %c0_186 = arith.constant 0 : index
    %c0_187 = arith.constant 0 : index
    %498 = vector.load %arg7[%c3_185, %c0_186, %c0_187] : memref<4x32x32xbf16, #tpu.memory_space<vmem>>, vector<1x32x32xbf16>
    %499 = vector.shape_cast %498 : vector<1x32x32xbf16> to vector<32x32xbf16>
    %500 = arith.truncf %497 : vector<16x32xf32> to vector<16x32xbf16>
    %cst_188 = arith.constant dense<0.000000e+00> : vector<16x32xf32>
    %501 = tpu.matmul %500, %499, %cst_188 {dimension_numbers = #tpu.dot_dimension_numbers<[1], [0], [0], [1], [0, 0, 1, 1], [], []>} : vector<16x32xbf16>, vector<32x32xbf16>, vector<16x32xf32> -> vector<16x32xf32>
    %c3_189 = arith.constant 3 : index
    %c0_190 = arith.constant 0 : index
    %c0_191 = arith.constant 0 : index
    %502 = vector.load %arg8[%c3_189, %c0_190, %c0_191] : memref<4x1x32xf32, #tpu.memory_space<vmem>>, vector<1x1x32xf32>
    %503 = vector.shape_cast %502 : vector<1x1x32xf32> to vector<1x32xf32>
    %504 = vector.broadcast %503 : vector<1x32xf32> to vector<16x32xf32>
    %505 = arith.addf %501, %504 : vector<16x32xf32>
    %506 = arith.addf %435, %505 : vector<16x32xf32>
    %c3_192 = arith.constant 3 : index
    %c0_193 = arith.constant 0 : index
    %c0_194 = arith.constant 0 : index
    %507 = vector.load %arg9[%c3_192, %c0_193, %c0_194] : memref<4x1x32xf32, #tpu.memory_space<vmem>>, vector<1x1x32xf32>
    %508 = vector.shape_cast %507 : vector<1x1x32xf32> to vector<1x32xf32>
    %c3_195 = arith.constant 3 : index
    %c0_196 = arith.constant 0 : index
    %c0_197 = arith.constant 0 : index
    %509 = vector.load %arg10[%c3_195, %c0_196, %c0_197] : memref<4x1x32xf32, #tpu.memory_space<vmem>>, vector<1x1x32xf32>
    %510 = vector.shape_cast %509 : vector<1x1x32xf32> to vector<1x32xf32>
    %cst_198 = arith.constant dense<0.000000e+00> : vector<16xf32>
    %511 = vector.multi_reduction <add>, %506, %cst_198 [1] : vector<16x32xf32> to vector<16xf32>
    %512 = vector.shape_cast %511 : vector<16xf32> to vector<16x1xf32>
    %cst_199 = arith.constant 3.200000e+01 : f32
    %513 = vector.broadcast %cst_199 : f32 to vector<16x1xf32>
    %514 = arith.divf %512, %513 : vector<16x1xf32>
    %515 = vector.broadcast %514 : vector<16x1xf32> to vector<16x32xf32>
    %516 = arith.subf %506, %515 : vector<16x32xf32>
    %517 = arith.mulf %516, %516 : vector<16x32xf32>
    %cst_200 = arith.constant dense<0.000000e+00> : vector<16xf32>
    %518 = vector.multi_reduction <add>, %517, %cst_200 [1] : vector<16x32xf32> to vector<16xf32>
    %519 = vector.shape_cast %518 : vector<16xf32> to vector<16x1xf32>
    %cst_201 = arith.constant 3.200000e+01 : f32
    %520 = vector.broadcast %cst_201 : f32 to vector<16x1xf32>
    %521 = arith.divf %519, %520 : vector<16x1xf32>
    %522 = vector.broadcast %514 : vector<16x1xf32> to vector<16x32xf32>
    %523 = arith.subf %506, %522 : vector<16x32xf32>
    %cst_202 = arith.constant 9.99999974E-6 : f32
    %524 = vector.broadcast %cst_202 : f32 to vector<16x1xf32>
    %525 = arith.addf %521, %524 : vector<16x1xf32>
    %526 = math.rsqrt %525 : vector<16x1xf32>
    %527 = vector.broadcast %526 : vector<16x1xf32> to vector<16x32xf32>
    %528 = arith.mulf %523, %527 : vector<16x32xf32>
    %529 = vector.broadcast %508 : vector<1x32xf32> to vector<16x32xf32>
    %530 = arith.mulf %528, %529 : vector<16x32xf32>
    %531 = vector.broadcast %510 : vector<1x32xf32> to vector<16x32xf32>
    %532 = arith.addf %530, %531 : vector<16x32xf32>
    %c3_203 = arith.constant 3 : index
    %c0_204 = arith.constant 0 : index
    %c0_205 = arith.constant 0 : index
    %533 = vector.load %arg11[%c3_203, %c0_204, %c0_205] : memref<4x32x64xbf16, #tpu.memory_space<vmem>>, vector<1x32x64xbf16>
    %534 = vector.shape_cast %533 : vector<1x32x64xbf16> to vector<32x64xbf16>
    %535 = arith.truncf %532 : vector<16x32xf32> to vector<16x32xbf16>
    %cst_206 = arith.constant dense<0.000000e+00> : vector<16x64xf32>
    %536 = tpu.matmul %535, %534, %cst_206 {dimension_numbers = #tpu.dot_dimension_numbers<[1], [0], [0], [1], [0, 0, 1, 1], [], []>} : vector<16x32xbf16>, vector<32x64xbf16>, vector<16x64xf32> -> vector<16x64xf32>
    %c3_207 = arith.constant 3 : index
    %c0_208 = arith.constant 0 : index
    %c0_209 = arith.constant 0 : index
    %537 = vector.load %arg12[%c3_207, %c0_208, %c0_209] : memref<4x1x64xf32, #tpu.memory_space<vmem>>, vector<1x1x64xf32>
    %538 = vector.shape_cast %537 : vector<1x1x64xf32> to vector<1x64xf32>
    %539 = vector.broadcast %538 : vector<1x64xf32> to vector<16x64xf32>
    %540 = arith.addf %536, %539 : vector<16x64xf32>
    %cst_210 = arith.constant 0.000000e+00 : f32
    %541 = vector.broadcast %cst_210 : f32 to vector<16x64xf32>
    %542 = arith.maximumf %540, %541 : vector<16x64xf32>
    %c3_211 = arith.constant 3 : index
    %c0_212 = arith.constant 0 : index
    %c0_213 = arith.constant 0 : index
    %543 = vector.load %arg13[%c3_211, %c0_212, %c0_213] : memref<4x64x32xbf16, #tpu.memory_space<vmem>>, vector<1x64x32xbf16>
    %544 = vector.shape_cast %543 : vector<1x64x32xbf16> to vector<64x32xbf16>
    %545 = arith.truncf %542 : vector<16x64xf32> to vector<16x64xbf16>
    %cst_214 = arith.constant dense<0.000000e+00> : vector<16x32xf32>
    %546 = tpu.matmul %545, %544, %cst_214 {dimension_numbers = #tpu.dot_dimension_numbers<[1], [0], [0], [1], [0, 0, 1, 1], [], []>} : vector<16x64xbf16>, vector<64x32xbf16>, vector<16x32xf32> -> vector<16x32xf32>
    %c3_215 = arith.constant 3 : index
    %c0_216 = arith.constant 0 : index
    %c0_217 = arith.constant 0 : index
    %547 = vector.load %arg14[%c3_215, %c0_216, %c0_217] : memref<4x1x32xf32, #tpu.memory_space<vmem>>, vector<1x1x32xf32>
    %548 = vector.shape_cast %547 : vector<1x1x32xf32> to vector<1x32xf32>
    %549 = vector.broadcast %548 : vector<1x32xf32> to vector<16x32xf32>
    %550 = arith.addf %546, %549 : vector<16x32xf32>
    %551 = arith.addf %532, %550 : vector<16x32xf32>
    %c3_218 = arith.constant 3 : index
    %c0_219 = arith.constant 0 : index
    %c0_220 = arith.constant 0 : index
    %552 = vector.load %arg15[%c3_218, %c0_219, %c0_220] : memref<4x1x32xf32, #tpu.memory_space<vmem>>, vector<1x1x32xf32>
    %553 = vector.shape_cast %552 : vector<1x1x32xf32> to vector<1x32xf32>
    %c3_221 = arith.constant 3 : index
    %c0_222 = arith.constant 0 : index
    %c0_223 = arith.constant 0 : index
    %554 = vector.load %arg16[%c3_221, %c0_222, %c0_223] : memref<4x1x32xf32, #tpu.memory_space<vmem>>, vector<1x1x32xf32>
    %555 = vector.shape_cast %554 : vector<1x1x32xf32> to vector<1x32xf32>
    %cst_224 = arith.constant dense<0.000000e+00> : vector<16xf32>
    %556 = vector.multi_reduction <add>, %551, %cst_224 [1] : vector<16x32xf32> to vector<16xf32>
    %557 = vector.shape_cast %556 : vector<16xf32> to vector<16x1xf32>
    %cst_225 = arith.constant 3.200000e+01 : f32
    %558 = vector.broadcast %cst_225 : f32 to vector<16x1xf32>
    %559 = arith.divf %557, %558 : vector<16x1xf32>
    %560 = vector.broadcast %559 : vector<16x1xf32> to vector<16x32xf32>
    %561 = arith.subf %551, %560 : vector<16x32xf32>
    %562 = arith.mulf %561, %561 : vector<16x32xf32>
    %cst_226 = arith.constant dense<0.000000e+00> : vector<16xf32>
    %563 = vector.multi_reduction <add>, %562, %cst_226 [1] : vector<16x32xf32> to vector<16xf32>
    %564 = vector.shape_cast %563 : vector<16xf32> to vector<16x1xf32>
    %cst_227 = arith.constant 3.200000e+01 : f32
    %565 = vector.broadcast %cst_227 : f32 to vector<16x1xf32>
    %566 = arith.divf %564, %565 : vector<16x1xf32>
    %567 = vector.broadcast %559 : vector<16x1xf32> to vector<16x32xf32>
    %568 = arith.subf %551, %567 : vector<16x32xf32>
    %cst_228 = arith.constant 9.99999974E-6 : f32
    %569 = vector.broadcast %cst_228 : f32 to vector<16x1xf32>
    %570 = arith.addf %566, %569 : vector<16x1xf32>
    %571 = math.rsqrt %570 : vector<16x1xf32>
    %572 = vector.broadcast %571 : vector<16x1xf32> to vector<16x32xf32>
    %573 = arith.mulf %568, %572 : vector<16x32xf32>
    %574 = vector.broadcast %553 : vector<1x32xf32> to vector<16x32xf32>
    %575 = arith.mulf %573, %574 : vector<16x32xf32>
    %576 = vector.broadcast %555 : vector<1x32xf32> to vector<16x32xf32>
    %577 = arith.addf %575, %576 : vector<16x32xf32>
    %578 = vector.extract_strided_slice %577 {offsets = [1, 0], sizes = [8, 32], strides = [1, 1]} : vector<16x32xf32> to vector<8x32xf32>
    %c0_229 = arith.constant 0 : index
    %c0_230 = arith.constant 0 : index
    %c0_231 = arith.constant 0 : index
    %579 = vector.load %arg24[%c0_229, %c0_230, %c0_231] : memref<1x8x32xf32, #tpu.memory_space<vmem>>, vector<1x8x32xf32>
    %580 = vector.shape_cast %579 : vector<1x8x32xf32> to vector<8x32xf32>
    %581 = vector.shape_cast %578 : vector<8x32xf32> to vector<1x8x32xf32>
    tpu.vector_store %arg24[%c0_229, %c0_230, %c0_231], %581 {strides = array<i32>} : memref<1x8x32xf32, #tpu.memory_space<vmem>>, vector<1x8x32xf32>,
    %582 = vector.extract_strided_slice %577 {offsets = [0, 0], sizes = [1, 32], strides = [1, 1]} : vector<16x32xf32> to vector<1x32xf32>
    %c0_232 = arith.constant 0 : index
    %c0_233 = arith.constant 0 : index
    %583 = vector.load %arg17[%c0_232, %c0_233] : memref<32x256xbf16, #tpu.memory_space<vmem>>, vector<32x256xbf16>
    %584 = arith.truncf %582 : vector<1x32xf32> to vector<1x32xbf16>
    %cst_234 = arith.constant dense<0.000000e+00> : vector<1x256xf32>
    %585 = tpu.matmul %584, %583, %cst_234 {dimension_numbers = #tpu.dot_dimension_numbers<[1], [0], [0], [1], [0, 0, 1, 1], [], []>} : vector<1x32xbf16>, vector<32x256xbf16>, vector<1x256xf32> -> vector<1x256xf32>
    %c0_235 = arith.constant 0 : index
    %c0_236 = arith.constant 0 : index
    %586 = vector.load %arg18[%c0_235, %c0_236] : memref<1x256xf32, #tpu.memory_space<vmem>>, vector<1x256xf32>
    %587 = arith.addf %585, %586 : vector<1x256xf32>
    %cst_237 = arith.constant 0.000000e+00 : f32
    %588 = vector.broadcast %cst_237 : f32 to vector<1x256xf32>
    %589 = arith.cmpf oge, %587, %588 : vector<1x256xf32>
    %cst_238 = arith.constant 0.00999999977 : f32
    %590 = vector.broadcast %cst_238 : f32 to vector<1x256xf32>
    %591 = arith.mulf %590, %587 : vector<1x256xf32>
    %592 = arith.select %589, %587, %591 : vector<1x256xi1>, vector<1x256xf32>
    %c0_239 = arith.constant 0 : index
    %c0_240 = arith.constant 0 : index
    %593 = vector.load %arg19[%c0_239, %c0_240] : memref<256x256xbf16, #tpu.memory_space<vmem>>, vector<256x256xbf16>
    %594 = arith.truncf %592 : vector<1x256xf32> to vector<1x256xbf16>
    %cst_241 = arith.constant dense<0.000000e+00> : vector<1x256xf32>
    %595 = tpu.matmul %594, %593, %cst_241 {dimension_numbers = #tpu.dot_dimension_numbers<[1], [0], [0], [1], [0, 0, 1, 1], [], []>} : vector<1x256xbf16>, vector<256x256xbf16>, vector<1x256xf32> -> vector<1x256xf32>
    %c0_242 = arith.constant 0 : index
    %c0_243 = arith.constant 0 : index
    %596 = vector.load %arg20[%c0_242, %c0_243] : memref<1x256xf32, #tpu.memory_space<vmem>>, vector<1x256xf32>
    %597 = arith.addf %595, %596 : vector<1x256xf32>
    %cst_244 = arith.constant 0.000000e+00 : f32
    %598 = vector.broadcast %cst_244 : f32 to vector<1x256xf32>
    %599 = arith.cmpf oge, %597, %598 : vector<1x256xf32>
    %cst_245 = arith.constant 0.00999999977 : f32
    %600 = vector.broadcast %cst_245 : f32 to vector<1x256xf32>
    %601 = arith.mulf %600, %597 : vector<1x256xf32>
    %602 = arith.select %599, %597, %601 : vector<1x256xi1>, vector<1x256xf32>
    %c0_246 = arith.constant 0 : index
    %c0_247 = arith.constant 0 : index
    %603 = vector.load %arg21[%c0_246, %c0_247] : memref<256x16xbf16, #tpu.memory_space<vmem>>, vector<256x16xbf16>
    %604 = arith.truncf %602 : vector<1x256xf32> to vector<1x256xbf16>
    %cst_248 = arith.constant dense<0.000000e+00> : vector<1x16xf32>
    %605 = tpu.matmul %604, %603, %cst_248 {dimension_numbers = #tpu.dot_dimension_numbers<[1], [0], [0], [1], [0, 0, 1, 1], [], []>} : vector<1x256xbf16>, vector<256x16xbf16>, vector<1x16xf32> -> vector<1x16xf32>
    %c0_249 = arith.constant 0 : index
    %c0_250 = arith.constant 0 : index
    %606 = vector.load %arg22[%c0_249, %c0_250] : memref<1x16xf32, #tpu.memory_space<vmem>>, vector<1x16xf32>
    %607 = arith.addf %605, %606 : vector<1x16xf32>
    %cst_251 = arith.constant 0.000000e+00 : f32
    %608 = vector.broadcast %cst_251 : f32 to vector<1x16xf32>
    %609 = arith.maximumf %607, %608 : vector<1x16xf32>
    %cst_252 = arith.constant 1.000000e-01 : f32
    %610 = vector.broadcast %cst_252 : f32 to vector<1x16xf32>
    %611 = arith.addf %609, %610 : vector<1x16xf32>
    %cst_253 = arith.constant dense<0.000000e+00> : vector<1xf32>
    %612 = vector.multi_reduction <add>, %611, %cst_253 [1] : vector<1x16xf32> to vector<1xf32>
    %613 = vector.shape_cast %612 : vector<1xf32> to vector<1x1xf32>
    %614 = vector.broadcast %613 : vector<1x1xf32> to vector<1x16xf32>
    %615 = arith.divf %611, %614 : vector<1x16xf32>
    %c0_254 = arith.constant 0 : index
    %c0_255 = arith.constant 0 : index
    %c0_256 = arith.constant 0 : index
    %616 = vector.load %arg23[%c0_254, %c0_255, %c0_256] : memref<1x1x16xf32, #tpu.memory_space<vmem>>, vector<1x1x16xf32>
    %617 = vector.shape_cast %616 : vector<1x1x16xf32> to vector<1x16xf32>
    %618 = vector.shape_cast %615 : vector<1x16xf32> to vector<1x1x16xf32>
    tpu.vector_store %arg23[%c0_254, %c0_255, %c0_256], %618 {strides = array<i32>} : memref<1x1x16xf32, #tpu.memory_space<vmem>>, vector<1x1x16xf32>,
    return
  }
  func.func @transform_0(%arg0: i32) -> (i32, i32, i32) {
    %c0_i32 = arith.constant 0 : i32
    %c0_i32_0 = arith.constant 0 : i32
    %c0_i32_1 = arith.constant 0 : i32
    return %arg0, %c0_i32, %c0_i32_0 : i32, i32, i32
  }
  func.func @transform_1(%arg0: i32) -> (i32, i32) {
    %c0_i32 = arith.constant 0 : i32
    %c0_i32_0 = arith.constant 0 : i32
    %c0_i32_1 = arith.constant 0 : i32
    return %c0_i32, %c0_i32_0 : i32, i32
  }
  func.func @transform_2(%arg0: i32) -> (i32, i32) {
    %c0_i32 = arith.constant 0 : i32
    %c0_i32_0 = arith.constant 0 : i32
    %c0_i32_1 = arith.constant 0 : i32
    return %c0_i32, %c0_i32_0 : i32, i32
  }
  func.func @transform_3(%arg0: i32) -> (i32, i32) {
    %c0_i32 = arith.constant 0 : i32
    %c0_i32_0 = arith.constant 0 : i32
    %c0_i32_1 = arith.constant 0 : i32
    return %c0_i32, %c0_i32_0 : i32, i32
  }
  func.func @transform_4(%arg0: i32) -> (i32, i32, i32) {
    %c0_i32 = arith.constant 0 : i32
    %c0_i32_0 = arith.constant 0 : i32
    %c0_i32_1 = arith.constant 0 : i32
    %c0_i32_2 = arith.constant 0 : i32
    return %c0_i32, %c0_i32_0, %c0_i32_1 : i32, i32, i32
  }
  func.func @transform_5(%arg0: i32) -> (i32, i32, i32) {
    %c0_i32 = arith.constant 0 : i32
    %c0_i32_0 = arith.constant 0 : i32
    %c0_i32_1 = arith.constant 0 : i32
    %c0_i32_2 = arith.constant 0 : i32
    return %c0_i32, %c0_i32_0, %c0_i32_1 : i32, i32, i32
  }
  func.func @transform_6(%arg0: i32) -> (i32, i32, i32) {
    %c0_i32 = arith.constant 0 : i32
    %c0_i32_0 = arith.constant 0 : i32
    %c0_i32_1 = arith.constant 0 : i32
    %c0_i32_2 = arith.constant 0 : i32
    return %c0_i32, %c0_i32_0, %c0_i32_1 : i32, i32, i32
  }
  func.func @transform_7(%arg0: i32) -> (i32, i32, i32) {
    %c0_i32 = arith.constant 0 : i32
    %c0_i32_0 = arith.constant 0 : i32
    %c0_i32_1 = arith.constant 0 : i32
    %c0_i32_2 = arith.constant 0 : i32
    return %c0_i32, %c0_i32_0, %c0_i32_1 : i32, i32, i32
  }
  func.func @transform_8(%arg0: i32) -> (i32, i32, i32) {
    %c0_i32 = arith.constant 0 : i32
    %c0_i32_0 = arith.constant 0 : i32
    %c0_i32_1 = arith.constant 0 : i32
    %c0_i32_2 = arith.constant 0 : i32
    return %c0_i32, %c0_i32_0, %c0_i32_1 : i32, i32, i32
  }
  func.func @transform_9(%arg0: i32) -> (i32, i32, i32) {
    %c0_i32 = arith.constant 0 : i32
    %c0_i32_0 = arith.constant 0 : i32
    %c0_i32_1 = arith.constant 0 : i32
    %c0_i32_2 = arith.constant 0 : i32
    return %c0_i32, %c0_i32_0, %c0_i32_1 : i32, i32, i32
  }
  func.func @transform_10(%arg0: i32) -> (i32, i32, i32) {
    %c0_i32 = arith.constant 0 : i32
    %c0_i32_0 = arith.constant 0 : i32
    %c0_i32_1 = arith.constant 0 : i32
    %c0_i32_2 = arith.constant 0 : i32
    return %c0_i32, %c0_i32_0, %c0_i32_1 : i32, i32, i32
  }
  func.func @transform_11(%arg0: i32) -> (i32, i32, i32) {
    %c0_i32 = arith.constant 0 : i32
    %c0_i32_0 = arith.constant 0 : i32
    %c0_i32_1 = arith.constant 0 : i32
    %c0_i32_2 = arith.constant 0 : i32
    return %c0_i32, %c0_i32_0, %c0_i32_1 : i32, i32, i32
  }
  func.func @transform_12(%arg0: i32) -> (i32, i32, i32) {
    %c0_i32 = arith.constant 0 : i32
    %c0_i32_0 = arith.constant 0 : i32
    %c0_i32_1 = arith.constant 0 : i32
    %c0_i32_2 = arith.constant 0 : i32
    return %c0_i32, %c0_i32_0, %c0_i32_1 : i32, i32, i32
  }
  func.func @transform_13(%arg0: i32) -> (i32, i32, i32) {
    %c0_i32 = arith.constant 0 : i32
    %c0_i32_0 = arith.constant 0 : i32
    %c0_i32_1 = arith.constant 0 : i32
    %c0_i32_2 = arith.constant 0 : i32
    return %c0_i32, %c0_i32_0, %c0_i32_1 : i32, i32, i32
  }
  func.func @transform_14(%arg0: i32) -> (i32, i32, i32) {
    %c0_i32 = arith.constant 0 : i32
    %c0_i32_0 = arith.constant 0 : i32
    %c0_i32_1 = arith.constant 0 : i32
    %c0_i32_2 = arith.constant 0 : i32
    return %c0_i32, %c0_i32_0, %c0_i32_1 : i32, i32, i32
  }
  func.func @transform_15(%arg0: i32) -> (i32, i32, i32) {
    %c0_i32 = arith.constant 0 : i32
    %c0_i32_0 = arith.constant 0 : i32
    %c0_i32_1 = arith.constant 0 : i32
    %c0_i32_2 = arith.constant 0 : i32
    return %c0_i32, %c0_i32_0, %c0_i32_1 : i32, i32, i32
  }
  func.func @transform_16(%arg0: i32) -> (i32, i32) {
    %c0_i32 = arith.constant 0 : i32
    %c0_i32_0 = arith.constant 0 : i32
    %c0_i32_1 = arith.constant 0 : i32
    return %c0_i32, %c0_i32_0 : i32, i32
  }
  func.func @transform_17(%arg0: i32) -> (i32, i32) {
    %c0_i32 = arith.constant 0 : i32
    %c0_i32_0 = arith.constant 0 : i32
    %c0_i32_1 = arith.constant 0 : i32
    return %c0_i32, %c0_i32_0 : i32, i32
  }
  func.func @transform_18(%arg0: i32) -> (i32, i32) {
    %c0_i32 = arith.constant 0 : i32
    %c0_i32_0 = arith.constant 0 : i32
    %c0_i32_1 = arith.constant 0 : i32
    return %c0_i32, %c0_i32_0 : i32, i32
  }
  func.func @transform_19(%arg0: i32) -> (i32, i32) {
    %c0_i32 = arith.constant 0 : i32
    %c0_i32_0 = arith.constant 0 : i32
    %c0_i32_1 = arith.constant 0 : i32
    return %c0_i32, %c0_i32_0 : i32, i32
  }
  func.func @transform_20(%arg0: i32) -> (i32, i32) {
    %c0_i32 = arith.constant 0 : i32
    %c0_i32_0 = arith.constant 0 : i32
    %c0_i32_1 = arith.constant 0 : i32
    return %c0_i32, %c0_i32_0 : i32, i32
  }
  func.func @transform_21(%arg0: i32) -> (i32, i32) {
    %c0_i32 = arith.constant 0 : i32
    %c0_i32_0 = arith.constant 0 : i32
    %c0_i32_1 = arith.constant 0 : i32
    return %c0_i32, %c0_i32_0 : i32, i32
  }
  func.func @transform_22(%arg0: i32) -> (i32, i32, i32) {
    %c0_i32 = arith.constant 0 : i32
    %c0_i32_0 = arith.constant 0 : i32
    %c0_i32_1 = arith.constant 0 : i32
    return %arg0, %c0_i32, %c0_i32_0 : i32, i32, i32
  }
  func.func @transform_23(%arg0: i32) -> (i32, i32, i32) {
    %c0_i32 = arith.constant 0 : i32
    %c0_i32_0 = arith.constant 0 : i32
    %c0_i32_1 = arith.constant 0 : i32
    return %arg0, %c0_i32, %c0_i32_0 : i32, i32, i32
  }
}

</mosaic_0001>

<llo_original>
// kernel: mvit_forward.3
$region0: #{mvit_forward.3}
  #allocation0 [shape = 'u32[]', space=smem, size = 0x4, offset = 0x4, fixed_abs, tag = 'smem constant byte address 0x4 - core index']
  #allocation1 [shape = 'u32[144,128]{1,0:T(1,128)}', space=vmem, size = 0x12000, scoped, tag = 'internal scratch']
  %s0 = inlined_call_operand.vmem [shape: f32[2,4,342], index: 0, kind: input, shape index: {}]
  %s1 = inlined_call_operand.vmem [shape: bf16[36,32], index: 1, kind: input, shape index: {}]
  %s2 = inlined_call_operand.vmem [shape: f32[1,32], index: 2, kind: input, shape index: {}]
  %s3 = inlined_call_operand.vmem [shape: f32[2,8,32], index: 3, kind: input, shape index: {}]
  %s4 = inlined_call_operand.vmem [shape: f32[2,8,256], index: 4, kind: output, shape index: {}]
  %s5 = sld [smem:[#allocation0]]
  $region49: #{mvit_forward.3} parent=0
    _
  %s7 = ssub.s32 1, %s5
  %s8 = scalar_select 0, %s7, %s5
  loop: start=0, step=1, limit=4
  $region2: #{mvit_forward.3} parent=0 // loop_pre_header
    _
  $region3: #{mvit_forward.3} parent=0 // loop_header
    %s10 = sphi 0, %s14
    %p11 = scmp.ge.s32.totalorder %s10, 4
    %s20 = sphi 0, %s22
    %s23 = sphi 0, %s20
    %s24 = sphi 0, %s23
    %s40 = sphi 0, %s24
    %s44 = sphi 0, %s44
    %s46 = sphi 0, %s44
    %s47 = sphi 0, %s46
    %s61 = sphi 0, %s47
    %s65 = sphi 0, %s65
    %s67 = sphi 0, %s65
    %s68 = sphi 0, %s67
    %s82 = sphi 0, %s68
    %s88 = sphi 0, %s90
    %s91 = sphi 0, %s88
    %s92 = sphi 0, %s91
    %s108 = sphi 0, %s92
    %s114 = sphi 0, %s116
    %s117 = sphi 0, %s114
    %s118 = sphi 0, %s117
    %s134 = sphi 0, %s118
  $region4: #{mvit_forward.3} parent=0 // loop_header_branch
    %13 = sbr.rel (%p11) target = $region8
  $region5: #{mvit_forward.3} parent=0 // loop_body
    %s15 = ssub.s32 %s10, 1
    %s16 = ssub.s32 %s10, 2
    %s17 = sadd.s32 %s10, 1
    %s18 = ssub.s32 %s10, %s17
    %p19 = scmp.eq.s32.totalorder %s18, 0
    %s21 = sadd.s32 %s20, 1
    %s22 = scalar_select %p19, %s20, %s21
    %p25 = pneg %p19
    %p26 = scmp.eq.s32.totalorder %s10, 1
    %p27 = por %p25, %p26
    %p28 = scmp.ne.s32.totalorder %s20, %s23
    %p29 = scmp.eq.s32.totalorder %s10, 0
    %p30 = por %p28, %p29
    %p31 = scmp.ne.s32.totalorder %s20, %s23
    %p32 = scmp.eq.s32.totalorder %s15, 1
    %p33 = por %p31, %p32
    %p34 = scmp.ne.s32.totalorder %s23, %s24
    %p35 = scmp.eq.s32.totalorder %s15, 0
    %p36 = por %p34, %p35
    %p37 = scmp.ne.s32.totalorder %s23, %s24
    %p38 = scmp.eq.s32.totalorder %s16, 1
    %p39 = por %p37, %p38
    %p41 = scmp.ne.s32.totalorder %s24, %s40
    %p42 = scmp.eq.s32.totalorder %s16, 0
    %p43 = por %p41, %p42
    %s45 = sadd.s32 %s44, 1
    %p48 = scmp.eq.s32.totalorder %s10, 1
    %p49 = scmp.ne.s32.totalorder %s44, %s46
    %p50 = scmp.eq.s32.totalorder %s10, 0
    %p51 = por %p49, %p50
    %p52 = scmp.ne.s32.totalorder %s44, %s46
    %p53 = scmp.eq.s32.totalorder %s15, 1
    %p54 = por %p52, %p53
    %p55 = scmp.ne.s32.totalorder %s46, %s47
    %p56 = scmp.eq.s32.totalorder %s15, 0
    %p57 = por %p55, %p56
    %p58 = scmp.ne.s32.totalorder %s46, %s47
    %p59 = scmp.eq.s32.totalorder %s16, 1
    %p60 = por %p58, %p59
    %p62 = scmp.ne.s32.totalorder %s47, %s61
    %p63 = scmp.eq.s32.totalorder %s16, 0
    %p64 = por %p62, %p63
    %s66 = sadd.s32 %s65, 1
    %p69 = scmp.eq.s32.totalorder %s10, 1
    %p70 = scmp.ne.s32.totalorder %s65, %s67
    %p71 = scmp.eq.s32.totalorder %s10, 0
    %p72 = por %p70, %p71
    %p73 = scmp.ne.s32.totalorder %s65, %s67
    %p74 = scmp.eq.s32.totalorder %s15, 1
    %p75 = por %p73, %p74
    %p76 = scmp.ne.s32.totalorder %s67, %s68
    %p77 = scmp.eq.s32.totalorder %s15, 0
    %p78 = por %p76, %p77
    %p79 = scmp.ne.s32.totalorder %s67, %s68
    %p80 = scmp.eq.s32.totalorder %s16, 1
    %p81 = por %p79, %p80
    %p83 = scmp.ne.s32.totalorder %s68, %s82
    %p84 = scmp.eq.s32.totalorder %s16, 0
    %p85 = por %p83, %p84
    %s86 = ssub.s32 %s10, %s17
    %p87 = scmp.eq.s32.totalorder %s86, 0
    %s89 = sadd.s32 %s88, 1
    %s90 = scalar_select %p87, %s88, %s89
    %p93 = pneg %p87
    %p94 = scmp.eq.s32.totalorder %s10, 1
    %p95 = por %p93, %p94
    %p96 = scmp.ne.s32.totalorder %s88, %s91
    %p97 = scmp.eq.s32.totalorder %s10, 0
    %p98 = por %p96, %p97
    %p99 = scmp.ne.s32.totalorder %s88, %s91
    %p100 = scmp.eq.s32.totalorder %s15, 1
    %p101 = por %p99, %p100
    %p102 = scmp.ne.s32.totalorder %s91, %s92
    %p103 = scmp.eq.s32.totalorder %s15, 0
    %p104 = por %p102, %p103
    %p105 = scmp.ne.s32.totalorder %s91, %s92
    %p106 = scmp.eq.s32.totalorder %s16, 1
    %p107 = por %p105, %p106
    %p109 = scmp.ne.s32.totalorder %s92, %s108
    %p110 = scmp.eq.s32.totalorder %s16, 0
    %p111 = por %p109, %p110
    %s112 = ssub.s32 %s10, %s17
    %p113 = scmp.eq.s32.totalorder %s112, 0
    %s115 = sadd.s32 %s114, 1
    %s116 = scalar_select %p113, %s114, %s115
    %p119 = pneg %p113
    %p120 = scmp.eq.s32.totalorder %s10, 1
    %p121 = por %p119, %p120
    %p122 = scmp.ne.s32.totalorder %s114, %s117
    %p123 = scmp.eq.s32.totalorder %s10, 0
    %p124 = por %p122, %p123
    %p125 = scmp.ne.s32.totalorder %s114, %s117
    %p126 = scmp.eq.s32.totalorder %s15, 1
    %p127 = por %p125, %p126
    %p128 = scmp.ne.s32.totalorder %s117, %s118
    %p129 = scmp.eq.s32.totalorder %s15, 0
    %p130 = por %p128, %p129
    %p131 = scmp.ne.s32.totalorder %s117, %s118
    %p132 = scmp.eq.s32.totalorder %s16, 1
    %p133 = por %p131, %p132
    %p135 = scmp.ne.s32.totalorder %s118, %s134
    %p136 = scmp.eq.s32.totalorder %s16, 0
    %p137 = por %p135, %p136
    %p138 = scmp.le.s32.totalorder 1, %s10
    %p139 = scmp.lt.s32.totalorder %s10, 3
    %p140 = pnand %p138, %p139
    %p141 = pneg %p140
    // Predicated region
    $region9: #{mvit_forward.3} parent=5 // pred_check
      _
    $region10: #{mvit_forward.3} parent=5 // pred_check_branch
      %143 = sbr.rel (%p140) target = $region12
    $region11: #{mvit_forward.3} parent=5 // pred_region
      %s144 = ssub.s32 %s10, 1
      // Predicated region
      $region13: #{mvit_forward.3} parent=11 // pred_check
        %p145 = pneg %p57
      $region14: #{mvit_forward.3} parent=11 // pred_check_branch
        %147 = sbr.rel (%p145) target = $region16
      $region15: #{mvit_forward.3} parent=11 // pred_region
        _
      $region16: #{mvit_forward.3} parent=11 // pred_fallthru
        _
      // Predicated region
      $region17: #{mvit_forward.3} parent=11 // pred_check
        %p148 = pneg %p78
      $region18: #{mvit_forward.3} parent=11 // pred_check_branch
        %150 = sbr.rel (%p148) target = $region20
      $region19: #{mvit_forward.3} parent=11 // pred_region
        _
      $region20: #{mvit_forward.3} parent=11 // pred_fallthru
        _
    $region12: #{mvit_forward.3} parent=5 // pred_fallthru
      _
    %p151 = scmp.lt.s32.totalorder %s10, 2
    // Predicated region
    $region21: #{mvit_forward.3} parent=5 // pred_check
      %p152 = pneg %p151
    $region22: #{mvit_forward.3} parent=5 // pred_check_branch
      %154 = sbr.rel (%p152) target = $region24
    $region23: #{mvit_forward.3} parent=5 // pred_region
      // Predicated region
      $region25: #{mvit_forward.3} parent=23 // pred_check
        %p155 = pneg %p30
      $region26: #{mvit_forward.3} parent=23 // pred_check_branch
        %157 = sbr.rel (%p155) target = $region28
      $region27: #{mvit_forward.3} parent=23 // pred_region
        %p158 = scmp.lt.s32.totalorder %s10, 1
        %s159 = scalar_select %p158, %s10, 1
        %s160 = smul.addr %s159, 3
        %s161 = smul.addr %s160, 4
        %s162 = scalar_lea.vmem %s0, %s161
      $region28: #{mvit_forward.3} parent=23 // pred_fallthru
        _
      // Predicated region
      $region29: #{mvit_forward.3} parent=23 // pred_check
        %p163 = pneg %p98
      $region30: #{mvit_forward.3} parent=23 // pred_check_branch
        %165 = sbr.rel (%p163) target = $region32
      $region31: #{mvit_forward.3} parent=23 // pred_region
        %p166 = scmp.lt.s32.totalorder %s10, 1
        %s167 = scalar_select %p166, %s10, 1
        %s168 = smul.addr %s167, 8
        %s169 = scalar_lea.vmem %s3, %s168
      $region32: #{mvit_forward.3} parent=23 // pred_fallthru
        _
    $region24: #{mvit_forward.3} parent=5 // pred_fallthru
      _
    %p170 = scmp.le.s32.totalorder 1, %s10
    %p171 = scmp.lt.s32.totalorder %s10, 3
    %p172 = pnand %p170, %p171
    %p173 = pneg %p172
    // Predicated region
    $region33: #{mvit_forward.3} parent=5 // pred_check
      _
    $region34: #{mvit_forward.3} parent=5 // pred_check_branch
      %175 = sbr.rel (%p172) target = $region36
    $region35: #{mvit_forward.3} parent=5 // pred_region
      %s176 = ssub.s32 %s10, 1
      %p177 = scmp.lt.s32.totalorder %s15, 1
      %s178 = scalar_select %p177, %s15, 1
      %s179 = smul.addr %s178, 3
      %s180 = smul.addr %s179, 4
      %s181 = scalar_lea.vmem %s0, %s180
      %p182 = pneg %p36
      %p183 = pneg %p33
      %p184 = pneg %p57
      %p185 = pneg %p54
      %p186 = pneg %p78
      %p187 = pneg %p75
      %p188 = scmp.lt.s32.totalorder %s15, 1
      %s189 = scalar_select %p188, %s15, 1
      %s190 = smul.addr %s189, 8
      %s191 = scalar_lea.vmem %s3, %s190
      %p192 = pneg %p104
      %p193 = pneg %p101
      %p194 = pneg %p130
      %p195 = pneg %p127
      %p196 = scmp.lt.s32.totalorder %s15, 1
      %s197 = scalar_select %p196, %s15, 1
      %s198 = smul.addr %s197, 2
      %s199 = smul.addr %s198, 8
      %s200 = scalar_lea.vmem %s4, %s199
      %p201 = scmp.lt.s32.totalorder %s15, 1
      %s202 = scalar_select %p201, %s15, 1
      %s203 = smul.addr %s202, 3
      %s204 = smul.addr %s203, 4
      %s205 = scalar_lea.vmem %s0, %s204
      %p206 = scmp.lt.s32.totalorder %s15, 1
      %s207 = scalar_select %p206, %s15, 1
      %s208 = smul.addr %s207, 8
      %s209 = scalar_lea.vmem %s3, %s208
      %p210 = scmp.lt.s32.totalorder %s15, 1
      %s211 = scalar_select %p210, %s15, 1
      %s212 = smul.addr %s211, 2
      %s213 = smul.addr %s212, 8
      %s214 = scalar_lea.vmem %s4, %s213
      %v216 = vld [vmem:[%s209] sm:$0xff]
      %v217 = vpack.c.bf16 %v216, %v216
      %v218 = vld [vmem:[%s1] sm:$0xf]
      %v219 = vld [vmem:[%s1 + $0x4] sm:$0xf]
      %v220 = vld [vmem:[%s1 + $0x8] sm:$0xf]
      %v221 = vld [vmem:[%s1 + $0xc] sm:$0xf]
      %v222 = vld [vmem:[%s1 + $0x10] sm:$0x3]
      %v228 = vunpack.c.l.b16 %v218
      %v229 = vunpack.c.l.b16 %v219
      %v230 = vunpack.c.l.b16 %v220
      %v231 = vunpack.c.l.b16 %v221
      %v232 = vunpack.c.l.b16 %v222
      %v233 = vpack.c.b16 %v229, %v228
      %v234 = vpack.c.b16 %v231, %v230
      %v235 = vpack.c.b16 %v232, %v232
      %vm236 = vcmask 261120
      %v238 = vsel %vm236, %v217, 0
      %v241 = vsel %vm236, %v233, 0
      %v244 = vsel %vm236, %v234, 0
      %v247 = vsel %vm236, %v235, 0
      %249 = vmatprep.subr.bf16.mxu0 0
      %250 = vmatpush1.bf16.xpose.msra.mxu0 %v241
      %251 = vmatprep.subr.bf16.mxu0 0
      %252 = vmatpush1.bf16.xpose.msra.mxu0 %v244
      %253 = vmatprep.subr.bf16.mxu0 0
      %254 = vmatpush1.bf16.xpose.msra.mxu0 %v247
      %255 = vmatprep.subr.bf16.mxu0 0
      %256 = vmatpush1.bf16.xpose.msra.mxu0 0
      %257 = vmatprep.subr.bf16.mxu0 0
      %258 = vmatpush1.bf16.xpose.msra.mxu0 0
      %259 = vmatprep.subr.bf16.mxu0 0
      %260 = vmatpush1.bf16.xpose.msra.mxu0 0
      %261 = vmatprep.subr.bf16.mxu0 0
      %262 = vmatpush1.bf16.xpose.msra.mxu0 0
      %263 = vmatprep.subr.bf16.mxu0 0
      %264 = vmatpush1.bf16.xpose.msra.mxu0 0
      %265 = vmatprep.subr.bf16.mxu0 0
      %266 = vmatpush1.bf16.xpose.msra.mxu0 0
      %267 = vmatprep.subr.bf16.mxu0 0
      %268 = vmatpush1.bf16.xpose.msra.mxu0 0
      %269 = vmatprep.subr.bf16.mxu0 0
      %270 = vmatpush1.bf16.xpose.msra.mxu0 0
      %271 = vmatprep.subr.bf16.mxu0 0
      %272 = vmatpush1.bf16.xpose.msra.mxu0 0
      %273 = vmatprep.subr.bf16.mxu0 0
      %274 = vmatpush1.bf16.xpose.msra.mxu0 0
      %275 = vmatprep.subr.bf16.mxu0 0
      %276 = vmatpush1.bf16.xpose.msra.mxu0 0
      %277 = vmatprep.subr.bf16.mxu0 0
      %278 = vmatpush1.bf16.xpose.msra.mxu0 0
      %279 = vmatprep.subr.bf16.mxu0 0
      %280 = vmatpush1.bf16.xpose.msra.mxu0 0
      %281 = vmatprep.mubr.bf16.mxu0 0
      %282 = vmatmul.mubr.bf16.gmra.mrb[0].mxu0 %v238
      %v283 = vpop.f32.mrb[0].mxu0
      %v284 = vadd.f32 0.0, %v283
      %v285 = vpop.f32.mrb[0].mxu0
      %v286 = vpop.f32.mrb[0].mxu0
      %v287 = vpop.f32.mrb[0].mxu0
      %288 = vdwg.mxu0
      %v289 = vld [vmem:[%s205] sm:$0xff]
      %v290 = vld [vmem:[%s205 + $0x8] sm:$0xf]
      %v293 = vcombine.high %v289, %v289
      %v295 = vcombine.low %v289, %v289
      %v296 = vcombine.low %v290, %v290
      %297 = vrot.lane.b32.xlu0 %v295, 127
      %v298 = vpop.permute.xlu0 %297
      %299 = vrot.lane.b32.xlu0 %v289, 127
      %v300 = vpop.permute.xlu0 %299
      %301 = vrot.lane.b32.xlu0 %v296, 127
      %v302 = vpop.permute.xlu0 %301
      %vm303 = vcmask 1039360
      %v304 = vsel %vm303, %v298, %v300
      %v305 = vsel %vm303, %v300, %v302
      %309 = vrot.lane.b32.xlu0 %v289, 126
      %v310 = vpop.permute.xlu0 %309
      %311 = vrot.lane.b32.xlu0 %v293, 126
      %v312 = vpop.permute.xlu0 %311
      %313 = vrot.lane.b32.xlu0 %v290, 126
      %v314 = vpop.permute.xlu0 %313
      %vm315 = vcmask 1031168
      %v316 = vsel %vm315, %v310, %v312
      %v317 = vsel %vm315, %v312, %v314
      %321 = vrot.lane.b32.xlu0 %v295, 110
      %v322 = vpop.permute.xlu0 %321
      %323 = vrot.lane.b32.xlu0 %v289, 110
      %v324 = vpop.permute.xlu0 %323
      %325 = vrot.lane.b32.xlu0 %v296, 110
      %v326 = vpop.permute.xlu0 %325
      %vm327 = vcmask 900096
      %v328 = vsel %vm327, %v322, %v324
      %v329 = vsel %vm327, %v324, %v326
      %333 = vrot.lane.b32.xlu0 %v289, 109
      %v334 = vpop.permute.xlu0 %333
      %335 = vrot.lane.b32.xlu0 %v293, 109
      %v336 = vpop.permute.xlu0 %335
      %337 = vrot.lane.b32.xlu0 %v290, 109
      %v338 = vpop.permute.xlu0 %337
      %vm339 = vcmask 891904
      %v340 = vsel %vm339, %v334, %v336
      %v341 = vsel %vm339, %v336, %v338
      %345 = vrot.lane.b32.xlu0 %v295, 108
      %v346 = vpop.permute.xlu0 %345
      %347 = vrot.lane.b32.xlu0 %v289, 108
      %v348 = vpop.permute.xlu0 %347
      %349 = vrot.lane.b32.xlu0 %v296, 108
      %v350 = vpop.permute.xlu0 %349
      %vm351 = vcmask 883712
      %v352 = vsel %vm351, %v346, %v348
      %v353 = vsel %vm351, %v348, %v350
      %357 = vrot.lane.b32.xlu0 %v289, 92
      %v358 = vpop.permute.xlu0 %357
      %359 = vrot.lane.b32.xlu0 %v293, 92
      %v360 = vpop.permute.xlu0 %359
      %361 = vrot.lane.b32.xlu0 %v290, 92
      %v362 = vpop.permute.xlu0 %361
      %vm363 = vcmask 752640
      %v364 = vsel %vm363, %v358, %v360
      %v365 = vsel %vm363, %v360, %v362
      %369 = vrot.lane.b32.xlu0 %v295, 91
      %v370 = vpop.permute.xlu0 %369
      %371 = vrot.lane.b32.xlu0 %v289, 91
      %v372 = vpop.permute.xlu0 %371
      %373 = vrot.lane.b32.xlu0 %v296, 91
      %v374 = vpop.permute.xlu0 %373
      %vm375 = vcmask 744448
      %v376 = vsel %vm375, %v370, %v372
      %v377 = vsel %vm375, %v372, %v374
      %381 = vrot.lane.b32.xlu0 %v289, 90
      %v382 = vpop.permute.xlu0 %381
      %383 = vrot.lane.b32.xlu0 %v293, 90
      %v384 = vpop.permute.xlu0 %383
      %385 = vrot.lane.b32.xlu0 %v290, 90
      %v386 = vpop.permute.xlu0 %385
      %vm387 = vcmask 736256
      %v388 = vsel %vm387, %v382, %v384
      %v389 = vsel %vm387, %v384, %v386
      %vm393 = vcmask 1043456
      %v394 = vsel %vm393, %v289, %v304
      %v395 = vsel %vm393, %v293, %v305
      %v396 = vsel %vm393, %v290, %v302
      %v397 = vsel %vm393, %v316, %v328
      %v398 = vsel %vm393, %v317, %v329
      %v399 = vsel %vm393, %v314, %v326
      %v400 = vsel %vm393, %v340, %v352
      %v401 = vsel %vm393, %v341, %v353
      %v402 = vsel %vm393, %v338, %v350
      %v403 = vsel %vm393, %v364, %v376
      %v404 = vsel %vm393, %v365, %v377
      %v405 = vsel %vm393, %v362, %v374
      %v406 = vpack.c.bf16 %v397, %v394
      %v407 = vpack.c.bf16 %v398, %v395
      %v408 = vpack.c.bf16 %v399, %v396
      %v409 = vpack.c.bf16 %v403, %v400
      %v410 = vpack.c.bf16 %v404, %v401
      %v411 = vpack.c.bf16 %v405, %v402
      %v412 = vpack.c.bf16 %v388, %v388
      %v413 = vpack.c.bf16 %v389, %v389
      %v414 = vpack.c.bf16 %v386, %v386
      %v415 = vpack.c.bf16 %v284, %v284
      %v416 = vld [vmem:[%s2] sm:$0x1]
      %v418 = vlaneseq
      %v419 = vshrl.u32 %v418, 7
      %v420 = vsub.s32 0, %v419
      %v421 = vrot.slane %v416, %v420
      %v423 = vmul.f32 %v216, %v421
      %v424 = vsel %vm236, %v423, 0.0
      %425 = vadd.xlane.f32.xlu0 %v424
      %v426 = vpop.xlane.xlu0 %425
      %vm427 = vcmask 293888
      %v429 = vsel %vm427, %v415, 0
      %vm431 = vcmask 1041408
      %v433 = vsel %vm431, %v412, 0
      %v436 = vsel %vm431, %v413, 0
      %v439 = vsel %vm431, %v414, 0
      %441 = vmatprep.subr.bf16.mxu0 %v407
      %442 = vmatpush1.bf16.msra.mxu0 %v406
      %443 = vmatprep.subr.bf16.mxu0 %v410
      %444 = vmatpush1.bf16.msra.mxu0 %v409
      %445 = vmatprep.subr.bf16.mxu0 %v436
      %446 = vmatpush1.bf16.msra.mxu0 %v433
      %447 = vmatprep.subr.bf16.mxu0 0
      %448 = vmatpush1.bf16.msra.mxu0 0
      %449 = vmatprep.subr.bf16.mxu0 0
      %450 = vmatpush1.bf16.msra.mxu0 0
      %451 = vmatprep.subr.bf16.mxu0 0
      %452 = vmatpush1.bf16.msra.mxu0 0
      %453 = vmatprep.subr.bf16.mxu0 0
      %454 = vmatpush1.bf16.msra.mxu0 0
      %455 = vmatprep.subr.bf16.mxu0 0
      %456 = vmatpush1.bf16.msra.mxu0 0
      %457 = vmatprep.subr.bf16.mxu0 0
      %458 = vmatpush1.bf16.msra.mxu0 0
      %459 = vmatprep.subr.bf16.mxu0 0
      %460 = vmatpush1.bf16.msra.mxu0 0
      %461 = vmatprep.subr.bf16.mxu0 0
      %462 = vmatpush1.bf16.msra.mxu0 0
      %463 = vmatprep.subr.bf16.mxu0 0
      %464 = vmatpush1.bf16.msra.mxu0 0
      %465 = vmatprep.subr.bf16.mxu0 0
      %466 = vmatpush1.bf16.msra.mxu0 0
      %467 = vmatprep.subr.bf16.mxu0 0
      %468 = vmatpush1.bf16.msra.mxu0 0
      %469 = vmatprep.subr.bf16.mxu0 0
      %470 = vmatpush1.bf16.msra.mxu0 0
      %471 = vmatprep.subr.bf16.mxu0 0
      %472 = vmatpush1.bf16.msra.mxu0 0
      %473 = vmatprep.mubr.bf16.mxu0 0
      %474 = vmatmul.mubr.bf16.gmra.mrb[0].mxu0 %v429
      %v475 = vpop.f32.mrb[0].mxu0
      %v476 = vadd.f32 %v426, %v475
      %v477 = vpop.f32.mrb[0].mxu0
      %v478 = vadd.f32 %v426, %v477
      %v479 = vpop.f32.mrb[0].mxu0
      %v480 = vpop.f32.mrb[0].mxu0
      %481 = vdwg.mxu0
      %482 = vmatprep.subr.bf16.mxu0 0
      %483 = vmatpush1.bf16.msra.mxu0 %v408
      %484 = vmatprep.subr.bf16.mxu0 0
      %485 = vmatpush1.bf16.msra.mxu0 %v411
      %486 = vmatprep.subr.bf16.mxu0 0
      %487 = vmatpush1.bf16.msra.mxu0 %v439
      %488 = vmatprep.subr.bf16.mxu0 0
      %489 = vmatpush1.bf16.msra.mxu0 0
      %490 = vmatprep.subr.bf16.mxu0 0
      %491 = vmatpush1.bf16.msra.mxu0 0
      %492 = vmatprep.subr.bf16.mxu0 0
      %493 = vmatpush1.bf16.msra.mxu0 0
      %494 = vmatprep.subr.bf16.mxu0 0
      %495 = vmatpush1.bf16.msra.mxu0 0
      %496 = vmatprep.subr.bf16.mxu0 0
      %497 = vmatpush1.bf16.msra.mxu0 0
      %498 = vmatprep.subr.bf16.mxu0 0
      %499 = vmatpush1.bf16.msra.mxu0 0
      %500 = vmatprep.subr.bf16.mxu0 0
      %501 = vmatpush1.bf16.msra.mxu0 0
      %502 = vmatprep.subr.bf16.mxu0 0
      %503 = vmatpush1.bf16.msra.mxu0 0
      %504 = vmatprep.subr.bf16.mxu0 0
      %505 = vmatpush1.bf16.msra.mxu0 0
      %506 = vmatprep.subr.bf16.mxu0 0
      %507 = vmatpush1.bf16.msra.mxu0 0
      %508 = vmatprep.subr.bf16.mxu0 0
      %509 = vmatpush1.bf16.msra.mxu0 0
      %510 = vmatprep.subr.bf16.mxu0 0
      %511 = vmatpush1.bf16.msra.mxu0 0
      %512 = vmatprep.subr.bf16.mxu0 0
      %513 = vmatpush1.bf16.msra.mxu0 0
      %514 = vmatprep.mubr.bf16.mxu0 0
      %515 = vmatmul.mubr.bf16.gmra.mrb[0].mxu0 %v429
      %v516 = vpop.f32.mrb[0].mxu0
      %v517 = vadd.f32 %v426, %v516
      %v518 = vpop.f32.mrb[0].mxu0
      %v519 = vpop.f32.mrb[0].mxu0
      %v520 = vpop.f32.mrb[0].mxu0
      %521 = vdwg.mxu0
      %523 = vrot.lane.b32.xlu0 %v476, 126
      %v524 = vpop.permute.xlu0 %523
      %526 = vrot.lane.b32.xlu0 %v476, 124
      %v527 = vpop.permute.xlu0 %526
      %529 = vrot.lane.b32.xlu0 %v476, 122
      %v530 = vpop.permute.xlu0 %529
      %532 = vrot.lane.b32.xlu0 %v476, 120
      %v533 = vpop.permute.xlu0 %532
      %535 = vrot.lane.b32.xlu0 %v476, 118
      %v536 = vpop.permute.xlu0 %535
      %538 = vrot.lane.b32.xlu0 %v476, 116
      %v539 = vpop.permute.xlu0 %538
      %542 = vrot.lane.b32.xlu0 %v476, 114
      %v543 = vpop.permute.xlu0 %542
      %544 = vrot.lane.b32.xlu0 %v478, 114
      %v545 = vpop.permute.xlu0 %544
      %vm546 = vcmask 932864
      %v547 = vsel %vm546, %v543, %v545
      %549 = vrot.lane.b32.xlu0 %v478, 112
      %v550 = vpop.permute.xlu0 %549
      %552 = vrot.lane.b32.xlu0 %v478, 110
      %v553 = vpop.permute.xlu0 %552
      %555 = vrot.lane.b32.xlu0 %v478, 108
      %v556 = vpop.permute.xlu0 %555
      %558 = vrot.lane.b32.xlu0 %v478, 106
      %v559 = vpop.permute.xlu0 %558
      %561 = vrot.lane.b32.xlu0 %v478, 104
      %v562 = vpop.permute.xlu0 %561
      %564 = vrot.lane.b32.xlu0 %v478, 102
      %v565 = vpop.permute.xlu0 %564
      %568 = vrot.lane.b32.xlu0 %v478, 100
      %v569 = vpop.permute.xlu0 %568
      %570 = vrot.lane.b32.xlu0 %v517, 100
      %v571 = vpop.permute.xlu0 %570
      %vm572 = vcmask 818176
      %v573 = vsel %vm572, %v569, %v571
      %575 = vrot.lane.b32.xlu0 %v517, 98
      %v576 = vpop.permute.xlu0 %575
      %vm578 = vcmask 130048
      %v579 = vsel %vm578, %v476, %v524
      %v580 = vsel %vm236, %v579, %v527
      %vm581 = vcmask 392192
      %v582 = vsel %vm581, %v580, %v530
      %vm583 = vcmask 523264
      %v584 = vsel %vm583, %v582, %v533
      %vm585 = vcmask 654336
      %v586 = vsel %vm585, %v584, %v536
      %vm587 = vcmask 785408
      %v588 = vsel %vm587, %v586, %v539
      %vm589 = vcmask 916480
      %v590 = vsel %vm589, %v588, %v547
      %v591 = vsel %vm578, %v550, %v553
      %v592 = vsel %vm236, %v591, %v556
      %v593 = vsel %vm581, %v592, %v559
      %v594 = vsel %vm583, %v593, %v562
      %v595 = vsel %vm585, %v594, %v565
      %v596 = vsel %vm587, %v595, %v573
      %v597 = vsel %vm589, %v596, %v576
      %598 = vst [vmem:[%s214] sm:$0xff] %v590
      %599 = vst [vmem:[%s214 + $0x8] sm:$0xff] %v597
      %p600 = scmp.lt.s32.totalorder %s15, 1
      %s601 = scalar_select %p600, %s15, 1
      %s602 = smul.addr %s601, 2
      %s603 = smul.addr %s602, 8
      %s604 = scalar_lea.vmem %s4, %s603
      // Predicated region
      $region37: #{mvit_forward.3} parent=35 // pred_check
        %p605 = pneg %p127
      $region38: #{mvit_forward.3} parent=35 // pred_check_branch
        %607 = sbr.rel (%p605) target = $region40
      $region39: #{mvit_forward.3} parent=35 // pred_region
        _
      $region40: #{mvit_forward.3} parent=35 // pred_fallthru
        _
    $region36: #{mvit_forward.3} parent=5 // pred_fallthru
      _
    %p608 = scmp.le.s32.totalorder 2, %s10
    // Predicated region
    $region41: #{mvit_forward.3} parent=5 // pred_check
      %p609 = pneg %p608
    $region42: #{mvit_forward.3} parent=5 // pred_check_branch
      %611 = sbr.rel (%p609) target = $region44
    $region43: #{mvit_forward.3} parent=5 // pred_region
      %s612 = ssub.s32 %s10, 2
      // Predicated region
      $region45: #{mvit_forward.3} parent=43 // pred_check
        %p613 = pneg %p133
      $region46: #{mvit_forward.3} parent=43 // pred_check_branch
        %615 = sbr.rel (%p613) target = $region48
      $region47: #{mvit_forward.3} parent=43 // pred_region
        %p616 = scmp.lt.s32.totalorder %s16, 1
        %s617 = scalar_select %p616, %s16, 1
        %s618 = smul.addr %s617, 2
        %s619 = smul.addr %s618, 8
        %s620 = scalar_lea.vmem %s4, %s619
      $region48: #{mvit_forward.3} parent=43 // pred_fallthru
        _
    $region44: #{mvit_forward.3} parent=5 // pred_fallthru
      _
  $region6: #{mvit_forward.3} parent=0 // loop_footer
    %s14 = sadd.s32 1, %s10
  $region7: #{mvit_forward.3} parent=0 // loop_footer_branch
    %9 = sbr.rel target = $region3
  $region8: #{mvit_forward.3} parent=0 // loop_exit
    _

// kernel: mvit_forward.2
$region0: #{mvit_forward.2}
  #allocation0 [shape = 'u32[]', space=smem, size = 0x4, offset = 0x4, fixed_abs, tag = 'smem constant byte address 0x4 - core index']
  #allocation1 [shape = 'u32[144,128]{1,0:T(1,128)}', space=vmem, size = 0x12000, scoped, tag = 'internal scratch']
  %s0 = inlined_call_operand.vmem [shape: f32[2,16,64], index: 0, kind: input, shape index: {}]
  %s1 = inlined_call_operand.vmem [shape: f32[16,32], index: 1, kind: input, shape index: {}]
  %s2 = inlined_call_operand.vmem [shape: bf16[64,32], index: 2, kind: input, shape index: {}]
  %s3 = inlined_call_operand.vmem [shape: f32[1,32], index: 3, kind: input, shape index: {}]
  %s4 = inlined_call_operand.vmem [shape: bf16[4,32,96], index: 4, kind: input, shape index: {}]
  %s5 = inlined_call_operand.vmem [shape: f32[4,1,96], index: 5, kind: input, shape index: {}]
  %s6 = inlined_call_operand.vmem [shape: bf16[4,32,32], index: 6, kind: input, shape index: {}]
  %s7 = inlined_call_operand.vmem [shape: f32[4,1,32], index: 7, kind: input, shape index: {}]
  %s8 = inlined_call_operand.vmem [shape: f32[4,1,32], index: 8, kind: input, shape index: {}]
  %s9 = inlined_call_operand.vmem [shape: f32[4,1,32], index: 9, kind: input, shape index: {}]
  %s10 = inlined_call_operand.vmem [shape: bf16[4,32,64], index: 10, kind: input, shape index: {}]
  %s11 = inlined_call_operand.vmem [shape: f32[4,1,64], index: 11, kind: input, shape index: {}]
  %s12 = inlined_call_operand.vmem [shape: bf16[4,64,32], index: 12, kind: input, shape index: {}]
  %s13 = inlined_call_operand.vmem [shape: f32[4,1,32], index: 13, kind: input, shape index: {}]
  %s14 = inlined_call_operand.vmem [shape: f32[4,1,32], index: 14, kind: input, shape index: {}]
  %s15 = inlined_call_operand.vmem [shape: f32[4,1,32], index: 15, kind: input, shape index: {}]
  %s16 = inlined_call_operand.vmem [shape: bf16[32,256], index: 16, kind: input, shape index: {}]
  %s17 = inlined_call_operand.vmem [shape: f32[1,256], index: 17, kind: input, shape index: {}]
  %s18 = inlined_call_operand.vmem [shape: bf16[256,256], index: 18, kind: input, shape index: {}]
  %s19 = inlined_call_operand.vmem [shape: f32[1,256], index: 19, kind: input, shape index: {}]
  %s20 = inlined_call_operand.vmem [shape: bf16[256,16], index: 20, kind: input, shape index: {}]
  %s21 = inlined_call_operand.vmem [shape: f32[1,16], index: 21, kind: input, shape index: {}]
  %s22 = inlined_call_operand.hbm [shape: f32[2,1,16], index: 22, kind: output, shape index: {0}]
  %s23 = inlined_call_operand.vmem [shape: f32[2,8,32], index: 23, kind: output, shape index: {1}]
  %24 = xla_tuple %s22, %s23
  %s25 = sld [smem:[#allocation0]]
  $region129: #{mvit_forward.2} parent=0
    _
  %s27 = ssub.s32 1, %s25
  %s28 = scalar_select 0, %s27, %s25
  $region1: #{mvit_forward.2} parent=0
    #allocation2 [shape = 'u8[1024]{0}', space=vmem, size = 0x400, scoped, tag = 'output window, operand 0']
    #allocation3 [shape = 's32[2]{0}', space=sflag, size = 0x8, scoped, tag = 'scoped memory for mvit_forward.2']
    %29 = vsyncpa [#allocation3], 0
    %s30 = scalar_lea.sflag [#allocation3], 1
    %31 = vsyncpa %s30, 0
    loop: start=0, step=1, limit=4
    $region2: #{mvit_forward.2} parent=1 // loop_pre_header
      _
    $region3: #{mvit_forward.2} parent=1 // loop_header
      %s33 = sphi 0, %s37
      %p34 = scmp.ge.s32.totalorder %s33, 4
      %s43 = sphi 0, %s45
      %s46 = sphi 0, %s43
      %s47 = sphi 0, %s46
      %s63 = sphi 0, %s47
      %s67 = sphi 0, %s67
      %s69 = sphi 0, %s67
      %s70 = sphi 0, %s69
      %s84 = sphi 0, %s70
      %s88 = sphi 0, %s88
      %s90 = sphi 0, %s88
      %s91 = sphi 0, %s90
      %s105 = sphi 0, %s91
      %s109 = sphi 0, %s109
      %s111 = sphi 0, %s109
      %s112 = sphi 0, %s111
      %s126 = sphi 0, %s112
      %s130 = sphi 0, %s130
      %s132 = sphi 0, %s130
      %s133 = sphi 0, %s132
      %s147 = sphi 0, %s133
      %s151 = sphi 0, %s151
      %s153 = sphi 0, %s151
      %s154 = sphi 0, %s153
      %s168 = sphi 0, %s154
      %s172 = sphi 0, %s172
      %s174 = sphi 0, %s172
      %s175 = sphi 0, %s174
      %s189 = sphi 0, %s175
      %s193 = sphi 0, %s193
      %s195 = sphi 0, %s193
      %s196 = sphi 0, %s195
      %s210 = sphi 0, %s196
      %s214 = sphi 0, %s214
      %s216 = sphi 0, %s214
      %s217 = sphi 0, %s216
      %s231 = sphi 0, %s217
      %s235 = sphi 0, %s235
      %s237 = sphi 0, %s235
      %s238 = sphi 0, %s237
      %s252 = sphi 0, %s238
      %s256 = sphi 0, %s256
      %s258 = sphi 0, %s256
      %s259 = sphi 0, %s258
      %s273 = sphi 0, %s259
      %s277 = sphi 0, %s277
      %s279 = sphi 0, %s277
      %s280 = sphi 0, %s279
      %s294 = sphi 0, %s280
      %s298 = sphi 0, %s298
      %s300 = sphi 0, %s298
      %s301 = sphi 0, %s300
      %s315 = sphi 0, %s301
      %s319 = sphi 0, %s319
      %s321 = sphi 0, %s319
      %s322 = sphi 0, %s321
      %s336 = sphi 0, %s322
      %s340 = sphi 0, %s340
      %s342 = sphi 0, %s340
      %s343 = sphi 0, %s342
      %s357 = sphi 0, %s343
      %s361 = sphi 0, %s361
      %s363 = sphi 0, %s361
      %s364 = sphi 0, %s363
      %s378 = sphi 0, %s364
      %s382 = sphi 0, %s382
      %s384 = sphi 0, %s382
      %s385 = sphi 0, %s384
      %s399 = sphi 0, %s385
      %s403 = sphi 0, %s403
      %s405 = sphi 0, %s403
      %s406 = sphi 0, %s405
      %s420 = sphi 0, %s406
      %s424 = sphi 0, %s424
      %s426 = sphi 0, %s424
      %s427 = sphi 0, %s426
      %s441 = sphi 0, %s427
      %s445 = sphi 0, %s445
      %s447 = sphi 0, %s445
      %s448 = sphi 0, %s447
      %s462 = sphi 0, %s448
      %s466 = sphi 0, %s466
      %s468 = sphi 0, %s466
      %s469 = sphi 0, %s468
      %s483 = sphi 0, %s469
      %s487 = sphi 0, %s487
      %s489 = sphi 0, %s487
      %s490 = sphi 0, %s489
      %s504 = sphi 0, %s490
      %s510 = sphi 0, %s512
      %s513 = sphi 0, %s510
      %s514 = sphi 0, %s513
      %s530 = sphi 0, %s514
      %s536 = sphi 0, %s538
      %s539 = sphi 0, %s536
      %s540 = sphi 0, %s539
      %s556 = sphi 0, %s540
    $region4: #{mvit_forward.2} parent=1 // loop_header_branch
      %36 = sbr.rel (%p34) target = $region8
    $region5: #{mvit_forward.2} parent=1 // loop_body
      %s38 = ssub.s32 %s33, 1
      %s39 = ssub.s32 %s33, 2
      %s40 = sadd.s32 %s33, 1
      %s41 = ssub.s32 %s33, %s40
      %p42 = scmp.eq.s32.totalorder %s41, 0
      %s44 = sadd.s32 %s43, 1
      %s45 = scalar_select %p42, %s43, %s44
      %p48 = pneg %p42
      %p49 = scmp.eq.s32.totalorder %s33, 1
      %p50 = por %p48, %p49
      %p51 = scmp.ne.s32.totalorder %s43, %s46
      %p52 = scmp.eq.s32.totalorder %s33, 0
      %p53 = por %p51, %p52
      %p54 = scmp.ne.s32.totalorder %s43, %s46
      %p55 = scmp.eq.s32.totalorder %s38, 1
      %p56 = por %p54, %p55
      %p57 = scmp.ne.s32.totalorder %s46, %s47
      %p58 = scmp.eq.s32.totalorder %s38, 0
      %p59 = por %p57, %p58
      %p60 = scmp.ne.s32.totalorder %s46, %s47
      %p61 = scmp.eq.s32.totalorder %s39, 1
      %p62 = por %p60, %p61
      %p64 = scmp.ne.s32.totalorder %s47, %s63
      %p65 = scmp.eq.s32.totalorder %s39, 0
      %p66 = por %p64, %p65
      %s68 = sadd.s32 %s67, 1
      %p71 = scmp.eq.s32.totalorder %s33, 1
      %p72 = scmp.ne.s32.totalorder %s67, %s69
      %p73 = scmp.eq.s32.totalorder %s33, 0
      %p74 = por %p72, %p73
      %p75 = scmp.ne.s32.totalorder %s67, %s69
      %p76 = scmp.eq.s32.totalorder %s38, 1
      %p77 = por %p75, %p76
      %p78 = scmp.ne.s32.totalorder %s69, %s70
      %p79 = scmp.eq.s32.totalorder %s38, 0
      %p80 = por %p78, %p79
      %p81 = scmp.ne.s32.totalorder %s69, %s70
      %p82 = scmp.eq.s32.totalorder %s39, 1
      %p83 = por %p81, %p82
      %p85 = scmp.ne.s32.totalorder %s70, %s84
      %p86 = scmp.eq.s32.totalorder %s39, 0
      %p87 = por %p85, %p86
      %s89 = sadd.s32 %s88, 1
      %p92 = scmp.eq.s32.totalorder %s33, 1
      %p93 = scmp.ne.s32.totalorder %s88, %s90
      %p94 = scmp.eq.s32.totalorder %s33, 0
      %p95 = por %p93, %p94
      %p96 = scmp.ne.s32.totalorder %s88, %s90
      %p97 = scmp.eq.s32.totalorder %s38, 1
      %p98 = por %p96, %p97
      %p99 = scmp.ne.s32.totalorder %s90, %s91
      %p100 = scmp.eq.s32.totalorder %s38, 0
      %p101 = por %p99, %p100
      %p102 = scmp.ne.s32.totalorder %s90, %s91
      %p103 = scmp.eq.s32.totalorder %s39, 1
      %p104 = por %p102, %p103
      %p106 = scmp.ne.s32.totalorder %s91, %s105
      %p107 = scmp.eq.s32.totalorder %s39, 0
      %p108 = por %p106, %p107
      %s110 = sadd.s32 %s109, 1
      %p113 = scmp.eq.s32.totalorder %s33, 1
      %p114 = scmp.ne.s32.totalorder %s109, %s111
      %p115 = scmp.eq.s32.totalorder %s33, 0
      %p116 = por %p114, %p115
      %p117 = scmp.ne.s32.totalorder %s109, %s111
      %p118 = scmp.eq.s32.totalorder %s38, 1
      %p119 = por %p117, %p118
      %p120 = scmp.ne.s32.totalorder %s111, %s112
      %p121 = scmp.eq.s32.totalorder %s38, 0
      %p122 = por %p120, %p121
      %p123 = scmp.ne.s32.totalorder %s111, %s112
      %p124 = scmp.eq.s32.totalorder %s39, 1
      %p125 = por %p123, %p124
      %p127 = scmp.ne.s32.totalorder %s112, %s126
      %p128 = scmp.eq.s32.totalorder %s39, 0
      %p129 = por %p127, %p128
      %s131 = sadd.s32 %s130, 1
      %p134 = scmp.eq.s32.totalorder %s33, 1
      %p135 = scmp.ne.s32.totalorder %s130, %s132
      %p136 = scmp.eq.s32.totalorder %s33, 0
      %p137 = por %p135, %p136
      %p138 = scmp.ne.s32.totalorder %s130, %s132
      %p139 = scmp.eq.s32.totalorder %s38, 1
      %p140 = por %p138, %p139
      %p141 = scmp.ne.s32.totalorder %s132, %s133
      %p142 = scmp.eq.s32.totalorder %s38, 0
      %p143 = por %p141, %p142
      %p144 = scmp.ne.s32.totalorder %s132, %s133
      %p145 = scmp.eq.s32.totalorder %s39, 1
      %p146 = por %p144, %p145
      %p148 = scmp.ne.s32.totalorder %s133, %s147
      %p149 = scmp.eq.s32.totalorder %s39, 0
      %p150 = por %p148, %p149
      %s152 = sadd.s32 %s151, 1
      %p155 = scmp.eq.s32.totalorder %s33, 1
      %p156 = scmp.ne.s32.totalorder %s151, %s153
      %p157 = scmp.eq.s32.totalorder %s33, 0
      %p158 = por %p156, %p157
      %p159 = scmp.ne.s32.totalorder %s151, %s153
      %p160 = scmp.eq.s32.totalorder %s38, 1
      %p161 = por %p159, %p160
      %p162 = scmp.ne.s32.totalorder %s153, %s154
      %p163 = scmp.eq.s32.totalorder %s38, 0
      %p164 = por %p162, %p163
      %p165 = scmp.ne.s32.totalorder %s153, %s154
      %p166 = scmp.eq.s32.totalorder %s39, 1
      %p167 = por %p165, %p166
      %p169 = scmp.ne.s32.totalorder %s154, %s168
      %p170 = scmp.eq.s32.totalorder %s39, 0
      %p171 = por %p169, %p170
      %s173 = sadd.s32 %s172, 1
      %p176 = scmp.eq.s32.totalorder %s33, 1
      %p177 = scmp.ne.s32.totalorder %s172, %s174
      %p178 = scmp.eq.s32.totalorder %s33, 0
      %p179 = por %p177, %p178
      %p180 = scmp.ne.s32.totalorder %s172, %s174
      %p181 = scmp.eq.s32.totalorder %s38, 1
      %p182 = por %p180, %p181
      %p183 = scmp.ne.s32.totalorder %s174, %s175
      %p184 = scmp.eq.s32.totalorder %s38, 0
      %p185 = por %p183, %p184
      %p186 = scmp.ne.s32.totalorder %s174, %s175
      %p187 = scmp.eq.s32.totalorder %s39, 1
      %p188 = por %p186, %p187
      %p190 = scmp.ne.s32.totalorder %s175, %s189
      %p191 = scmp.eq.s32.totalorder %s39, 0
      %p192 = por %p190, %p191
      %s194 = sadd.s32 %s193, 1
      %p197 = scmp.eq.s32.totalorder %s33, 1
      %p198 = scmp.ne.s32.totalorder %s193, %s195
      %p199 = scmp.eq.s32.totalorder %s33, 0
      %p200 = por %p198, %p199
      %p201 = scmp.ne.s32.totalorder %s193, %s195
      %p202 = scmp.eq.s32.totalorder %s38, 1
      %p203 = por %p201, %p202
      %p204 = scmp.ne.s32.totalorder %s195, %s196
      %p205 = scmp.eq.s32.totalorder %s38, 0
      %p206 = por %p204, %p205
      %p207 = scmp.ne.s32.totalorder %s195, %s196
      %p208 = scmp.eq.s32.totalorder %s39, 1
      %p209 = por %p207, %p208
      %p211 = scmp.ne.s32.totalorder %s196, %s210
      %p212 = scmp.eq.s32.totalorder %s39, 0
      %p213 = por %p211, %p212
      %s215 = sadd.s32 %s214, 1
      %p218 = scmp.eq.s32.totalorder %s33, 1
      %p219 = scmp.ne.s32.totalorder %s214, %s216
      %p220 = scmp.eq.s32.totalorder %s33, 0
      %p221 = por %p219, %p220
      %p222 = scmp.ne.s32.totalorder %s214, %s216
      %p223 = scmp.eq.s32.totalorder %s38, 1
      %p224 = por %p222, %p223
      %p225 = scmp.ne.s32.totalorder %s216, %s217
      %p226 = scmp.eq.s32.totalorder %s38, 0
      %p227 = por %p225, %p226
      %p228 = scmp.ne.s32.totalorder %s216, %s217
      %p229 = scmp.eq.s32.totalorder %s39, 1
      %p230 = por %p228, %p229
      %p232 = scmp.ne.s32.totalorder %s217, %s231
      %p233 = scmp.eq.s32.totalorder %s39, 0
      %p234 = por %p232, %p233
      %s236 = sadd.s32 %s235, 1
      %p239 = scmp.eq.s32.totalorder %s33, 1
      %p240 = scmp.ne.s32.totalorder %s235, %s237
      %p241 = scmp.eq.s32.totalorder %s33, 0
      %p242 = por %p240, %p241
      %p243 = scmp.ne.s32.totalorder %s235, %s237
      %p244 = scmp.eq.s32.totalorder %s38, 1
      %p245 = por %p243, %p244
      %p246 = scmp.ne.s32.totalorder %s237, %s238
      %p247 = scmp.eq.s32.totalorder %s38, 0
      %p248 = por %p246, %p247
      %p249 = scmp.ne.s32.totalorder %s237, %s238
      %p250 = scmp.eq.s32.totalorder %s39, 1
      %p251 = por %p249, %p250
      %p253 = scmp.ne.s32.totalorder %s238, %s252
      %p254 = scmp.eq.s32.totalorder %s39, 0
      %p255 = por %p253, %p254
      %s257 = sadd.s32 %s256, 1
      %p260 = scmp.eq.s32.totalorder %s33, 1
      %p261 = scmp.ne.s32.totalorder %s256, %s258
      %p262 = scmp.eq.s32.totalorder %s33, 0
      %p263 = por %p261, %p262
      %p264 = scmp.ne.s32.totalorder %s256, %s258
      %p265 = scmp.eq.s32.totalorder %s38, 1
      %p266 = por %p264, %p265
      %p267 = scmp.ne.s32.totalorder %s258, %s259
      %p268 = scmp.eq.s32.totalorder %s38, 0
      %p269 = por %p267, %p268
      %p270 = scmp.ne.s32.totalorder %s258, %s259
      %p271 = scmp.eq.s32.totalorder %s39, 1
      %p272 = por %p270, %p271
      %p274 = scmp.ne.s32.totalorder %s259, %s273
      %p275 = scmp.eq.s32.totalorder %s39, 0
      %p276 = por %p274, %p275
      %s278 = sadd.s32 %s277, 1
      %p281 = scmp.eq.s32.totalorder %s33, 1
      %p282 = scmp.ne.s32.totalorder %s277, %s279
      %p283 = scmp.eq.s32.totalorder %s33, 0
      %p284 = por %p282, %p283
      %p285 = scmp.ne.s32.totalorder %s277, %s279
      %p286 = scmp.eq.s32.totalorder %s38, 1
      %p287 = por %p285, %p286
      %p288 = scmp.ne.s32.totalorder %s279, %s280
      %p289 = scmp.eq.s32.totalorder %s38, 0
      %p290 = por %p288, %p289
      %p291 = scmp.ne.s32.totalorder %s279, %s280
      %p292 = scmp.eq.s32.totalorder %s39, 1
      %p293 = por %p291, %p292
      %p295 = scmp.ne.s32.totalorder %s280, %s294
      %p296 = scmp.eq.s32.totalorder %s39, 0
      %p297 = por %p295, %p296
      %s299 = sadd.s32 %s298, 1
      %p302 = scmp.eq.s32.totalorder %s33, 1
      %p303 = scmp.ne.s32.totalorder %s298, %s300
      %p304 = scmp.eq.s32.totalorder %s33, 0
      %p305 = por %p303, %p304
      %p306 = scmp.ne.s32.totalorder %s298, %s300
      %p307 = scmp.eq.s32.totalorder %s38, 1
      %p308 = por %p306, %p307
      %p309 = scmp.ne.s32.totalorder %s300, %s301
      %p310 = scmp.eq.s32.totalorder %s38, 0
      %p311 = por %p309, %p310
      %p312 = scmp.ne.s32.totalorder %s300, %s301
      %p313 = scmp.eq.s32.totalorder %s39, 1
      %p314 = por %p312, %p313
      %p316 = scmp.ne.s32.totalorder %s301, %s315
      %p317 = scmp.eq.s32.totalorder %s39, 0
      %p318 = por %p316, %p317
      %s320 = sadd.s32 %s319, 1
      %p323 = scmp.eq.s32.totalorder %s33, 1
      %p324 = scmp.ne.s32.totalorder %s319, %s321
      %p325 = scmp.eq.s32.totalorder %s33, 0
      %p326 = por %p324, %p325
      %p327 = scmp.ne.s32.totalorder %s319, %s321
      %p328 = scmp.eq.s32.totalorder %s38, 1
      %p329 = por %p327, %p328
      %p330 = scmp.ne.s32.totalorder %s321, %s322
      %p331 = scmp.eq.s32.totalorder %s38, 0
      %p332 = por %p330, %p331
      %p333 = scmp.ne.s32.totalorder %s321, %s322
      %p334 = scmp.eq.s32.totalorder %s39, 1
      %p335 = por %p333, %p334
      %p337 = scmp.ne.s32.totalorder %s322, %s336
      %p338 = scmp.eq.s32.totalorder %s39, 0
      %p339 = por %p337, %p338
      %s341 = sadd.s32 %s340, 1
      %p344 = scmp.eq.s32.totalorder %s33, 1
      %p345 = scmp.ne.s32.totalorder %s340, %s342
      %p346 = scmp.eq.s32.totalorder %s33, 0
      %p347 = por %p345, %p346
      %p348 = scmp.ne.s32.totalorder %s340, %s342
      %p349 = scmp.eq.s32.totalorder %s38, 1
      %p350 = por %p348, %p349
      %p351 = scmp.ne.s32.totalorder %s342, %s343
      %p352 = scmp.eq.s32.totalorder %s38, 0
      %p353 = por %p351, %p352
      %p354 = scmp.ne.s32.totalorder %s342, %s343
      %p355 = scmp.eq.s32.totalorder %s39, 1
      %p356 = por %p354, %p355
      %p358 = scmp.ne.s32.totalorder %s343, %s357
      %p359 = scmp.eq.s32.totalorder %s39, 0
      %p360 = por %p358, %p359
      %s362 = sadd.s32 %s361, 1
      %p365 = scmp.eq.s32.totalorder %s33, 1
      %p366 = scmp.ne.s32.totalorder %s361, %s363
      %p367 = scmp.eq.s32.totalorder %s33, 0
      %p368 = por %p366, %p367
      %p369 = scmp.ne.s32.totalorder %s361, %s363
      %p370 = scmp.eq.s32.totalorder %s38, 1
      %p371 = por %p369, %p370
      %p372 = scmp.ne.s32.totalorder %s363, %s364
      %p373 = scmp.eq.s32.totalorder %s38, 0
      %p374 = por %p372, %p373
      %p375 = scmp.ne.s32.totalorder %s363, %s364
      %p376 = scmp.eq.s32.totalorder %s39, 1
      %p377 = por %p375, %p376
      %p379 = scmp.ne.s32.totalorder %s364, %s378
      %p380 = scmp.eq.s32.totalorder %s39, 0
      %p381 = por %p379, %p380
      %s383 = sadd.s32 %s382, 1
      %p386 = scmp.eq.s32.totalorder %s33, 1
      %p387 = scmp.ne.s32.totalorder %s382, %s384
      %p388 = scmp.eq.s32.totalorder %s33, 0
      %p389 = por %p387, %p388
      %p390 = scmp.ne.s32.totalorder %s382, %s384
      %p391 = scmp.eq.s32.totalorder %s38, 1
      %p392 = por %p390, %p391
      %p393 = scmp.ne.s32.totalorder %s384, %s385
      %p394 = scmp.eq.s32.totalorder %s38, 0
      %p395 = por %p393, %p394
      %p396 = scmp.ne.s32.totalorder %s384, %s385
      %p397 = scmp.eq.s32.totalorder %s39, 1
      %p398 = por %p396, %p397
      %p400 = scmp.ne.s32.totalorder %s385, %s399
      %p401 = scmp.eq.s32.totalorder %s39, 0
      %p402 = por %p400, %p401
      %s404 = sadd.s32 %s403, 1
      %p407 = scmp.eq.s32.totalorder %s33, 1
      %p408 = scmp.ne.s32.totalorder %s403, %s405
      %p409 = scmp.eq.s32.totalorder %s33, 0
      %p410 = por %p408, %p409
      %p411 = scmp.ne.s32.totalorder %s403, %s405
      %p412 = scmp.eq.s32.totalorder %s38, 1
      %p413 = por %p411, %p412
      %p414 = scmp.ne.s32.totalorder %s405, %s406
      %p415 = scmp.eq.s32.totalorder %s38, 0
      %p416 = por %p414, %p415
      %p417 = scmp.ne.s32.totalorder %s405, %s406
      %p418 = scmp.eq.s32.totalorder %s39, 1
      %p419 = por %p417, %p418
      %p421 = scmp.ne.s32.totalorder %s406, %s420
      %p422 = scmp.eq.s32.totalorder %s39, 0
      %p423 = por %p421, %p422
      %s425 = sadd.s32 %s424, 1
      %p428 = scmp.eq.s32.totalorder %s33, 1
      %p429 = scmp.ne.s32.totalorder %s424, %s426
      %p430 = scmp.eq.s32.totalorder %s33, 0
      %p431 = por %p429, %p430
      %p432 = scmp.ne.s32.totalorder %s424, %s426
      %p433 = scmp.eq.s32.totalorder %s38, 1
      %p434 = por %p432, %p433
      %p435 = scmp.ne.s32.totalorder %s426, %s427
      %p436 = scmp.eq.s32.totalorder %s38, 0
      %p437 = por %p435, %p436
      %p438 = scmp.ne.s32.totalorder %s426, %s427
      %p439 = scmp.eq.s32.totalorder %s39, 1
      %p440 = por %p438, %p439
      %p442 = scmp.ne.s32.totalorder %s427, %s441
      %p443 = scmp.eq.s32.totalorder %s39, 0
      %p444 = por %p442, %p443
      %s446 = sadd.s32 %s445, 1
      %p449 = scmp.eq.s32.totalorder %s33, 1
      %p450 = scmp.ne.s32.totalorder %s445, %s447
      %p451 = scmp.eq.s32.totalorder %s33, 0
      %p452 = por %p450, %p451
      %p453 = scmp.ne.s32.totalorder %s445, %s447
      %p454 = scmp.eq.s32.totalorder %s38, 1
      %p455 = por %p453, %p454
      %p456 = scmp.ne.s32.totalorder %s447, %s448
      %p457 = scmp.eq.s32.totalorder %s38, 0
      %p458 = por %p456, %p457
      %p459 = scmp.ne.s32.totalorder %s447, %s448
      %p460 = scmp.eq.s32.totalorder %s39, 1
      %p461 = por %p459, %p460
      %p463 = scmp.ne.s32.totalorder %s448, %s462
      %p464 = scmp.eq.s32.totalorder %s39, 0
      %p465 = por %p463, %p464
      %s467 = sadd.s32 %s466, 1
      %p470 = scmp.eq.s32.totalorder %s33, 1
      %p471 = scmp.ne.s32.totalorder %s466, %s468
      %p472 = scmp.eq.s32.totalorder %s33, 0
      %p473 = por %p471, %p472
      %p474 = scmp.ne.s32.totalorder %s466, %s468
      %p475 = scmp.eq.s32.totalorder %s38, 1
      %p476 = por %p474, %p475
      %p477 = scmp.ne.s32.totalorder %s468, %s469
      %p478 = scmp.eq.s32.totalorder %s38, 0
      %p479 = por %p477, %p478
      %p480 = scmp.ne.s32.totalorder %s468, %s469
      %p481 = scmp.eq.s32.totalorder %s39, 1
      %p482 = por %p480, %p481
      %p484 = scmp.ne.s32.totalorder %s469, %s483
      %p485 = scmp.eq.s32.totalorder %s39, 0
      %p486 = por %p484, %p485
      %s488 = sadd.s32 %s487, 1
      %p491 = scmp.eq.s32.totalorder %s33, 1
      %p492 = scmp.ne.s32.totalorder %s487, %s489
      %p493 = scmp.eq.s32.totalorder %s33, 0
      %p494 = por %p492, %p493
      %p495 = scmp.ne.s32.totalorder %s487, %s489
      %p496 = scmp.eq.s32.totalorder %s38, 1
      %p497 = por %p495, %p496
      %p498 = scmp.ne.s32.totalorder %s489, %s490
      %p499 = scmp.eq.s32.totalorder %s38, 0
      %p500 = por %p498, %p499
      %p501 = scmp.ne.s32.totalorder %s489, %s490
      %p502 = scmp.eq.s32.totalorder %s39, 1
      %p503 = por %p501, %p502
      %p505 = scmp.ne.s32.totalorder %s490, %s504
      %p506 = scmp.eq.s32.totalorder %s39, 0
      %p507 = por %p505, %p506
      %s508 = ssub.s32 %s33, %s40
      %p509 = scmp.eq.s32.totalorder %s508, 0
      %s511 = sadd.s32 %s510, 1
      %s512 = scalar_select %p509, %s510, %s511
      %p515 = pneg %p509
      %p516 = scmp.eq.s32.totalorder %s33, 1
      %p517 = por %p515, %p516
      %p518 = scmp.ne.s32.totalorder %s510, %s513
      %p519 = scmp.eq.s32.totalorder %s33, 0
      %p520 = por %p518, %p519
      %p521 = scmp.ne.s32.totalorder %s510, %s513
      %p522 = scmp.eq.s32.totalorder %s38, 1
      %p523 = por %p521, %p522
      %p524 = scmp.ne.s32.totalorder %s513, %s514
      %p525 = scmp.eq.s32.totalorder %s38, 0
      %p526 = por %p524, %p525
      %p527 = scmp.ne.s32.totalorder %s513, %s514
      %p528 = scmp.eq.s32.totalorder %s39, 1
      %p529 = por %p527, %p528
      %p531 = scmp.ne.s32.totalorder %s514, %s530
      %p532 = scmp.eq.s32.totalorder %s39, 0
      %p533 = por %p531, %p532
      %s534 = ssub.s32 %s33, %s40
      %p535 = scmp.eq.s32.totalorder %s534, 0
      %s537 = sadd.s32 %s536, 1
      %s538 = scalar_select %p535, %s536, %s537
      %p541 = pneg %p535
      %p542 = scmp.eq.s32.totalorder %s33, 1
      %p543 = por %p541, %p542
      %p544 = scmp.ne.s32.totalorder %s536, %s539
      %p545 = scmp.eq.s32.totalorder %s33, 0
      %p546 = por %p544, %p545
      %p547 = scmp.ne.s32.totalorder %s536, %s539
      %p548 = scmp.eq.s32.totalorder %s38, 1
      %p549 = por %p547, %p548
      %p550 = scmp.ne.s32.totalorder %s539, %s540
      %p551 = scmp.eq.s32.totalorder %s38, 0
      %p552 = por %p550, %p551
      %p553 = scmp.ne.s32.totalorder %s539, %s540
      %p554 = scmp.eq.s32.totalorder %s39, 1
      %p555 = por %p553, %p554
      %p557 = scmp.ne.s32.totalorder %s540, %s556
      %p558 = scmp.eq.s32.totalorder %s39, 0
      %p559 = por %p557, %p558
      %p560 = scmp.le.s32.totalorder 1, %s33
      %p561 = scmp.lt.s32.totalorder %s33, 3
      %p562 = pnand %p560, %p561
      %p563 = pneg %p562
      // Predicated region
      $region9: #{mvit_forward.2} parent=5 // pred_check
        _
      $region10: #{mvit_forward.2} parent=5 // pred_check_branch
        %565 = sbr.rel (%p562) target = $region12
      $region11: #{mvit_forward.2} parent=5 // pred_region
        %s566 = ssub.s32 %s33, 1
        // Predicated region
        $region13: #{mvit_forward.2} parent=11 // pred_check
          %p567 = pneg %p80
        $region14: #{mvit_forward.2} parent=11 // pred_check_branch
          %569 = sbr.rel (%p567) target = $region16
        $region15: #{mvit_forward.2} parent=11 // pred_region
          _
        $region16: #{mvit_forward.2} parent=11 // pred_fallthru
          _
        // Predicated region
        $region17: #{mvit_forward.2} parent=11 // pred_check
          %p570 = pneg %p101
        $region18: #{mvit_forward.2} parent=11 // pred_check_branch
          %572 = sbr.rel (%p570) target = $region20
        $region19: #{mvit_forward.2} parent=11 // pred_region
          _
        $region20: #{mvit_forward.2} parent=11 // pred_fallthru
          _
        // Predicated region
        $region21: #{mvit_forward.2} parent=11 // pred_check
          %p573 = pneg %p122
        $region22: #{mvit_forward.2} parent=11 // pred_check_branch
          %575 = sbr.rel (%p573) target = $region24
        $region23: #{mvit_forward.2} parent=11 // pred_region
          _
        $region24: #{mvit_forward.2} parent=11 // pred_fallthru
          _
        // Predicated region
        $region25: #{mvit_forward.2} parent=11 // pred_check
          %p576 = pneg %p143
        $region26: #{mvit_forward.2} parent=11 // pred_check_branch
          %578 = sbr.rel (%p576) target = $region28
        $region27: #{mvit_forward.2} parent=11 // pred_region
          _
        $region28: #{mvit_forward.2} parent=11 // pred_fallthru
          _
        // Predicated region
        $region29: #{mvit_forward.2} parent=11 // pred_check
          %p579 = pneg %p164
        $region30: #{mvit_forward.2} parent=11 // pred_check_branch
          %581 = sbr.rel (%p579) target = $region32
        $region31: #{mvit_forward.2} parent=11 // pred_region
          _
        $region32: #{mvit_forward.2} parent=11 // pred_fallthru
          _
        // Predicated region
        $region33: #{mvit_forward.2} parent=11 // pred_check
          %p582 = pneg %p185
        $region34: #{mvit_forward.2} parent=11 // pred_check_branch
          %584 = sbr.rel (%p582) target = $region36
        $region35: #{mvit_forward.2} parent=11 // pred_region
          _
        $region36: #{mvit_forward.2} parent=11 // pred_fallthru
          _
        // Predicated region
        $region37: #{mvit_forward.2} parent=11 // pred_check
          %p585 = pneg %p206
        $region38: #{mvit_forward.2} parent=11 // pred_check_branch
          %587 = sbr.rel (%p585) target = $region40
        $region39: #{mvit_forward.2} parent=11 // pred_region
          _
        $region40: #{mvit_forward.2} parent=11 // pred_fallthru
          _
        // Predicated region
        $region41: #{mvit_forward.2} parent=11 // pred_check
          %p588 = pneg %p227
        $region42: #{mvit_forward.2} parent=11 // pred_check_branch
          %590 = sbr.rel (%p588) target = $region44
        $region43: #{mvit_forward.2} parent=11 // pred_region
          _
        $region44: #{mvit_forward.2} parent=11 // pred_fallthru
          _
        // Predicated region
        $region45: #{mvit_forward.2} parent=11 // pred_check
          %p591 = pneg %p248
        $region46: #{mvit_forward.2} parent=11 // pred_check_branch
          %593 = sbr.rel (%p591) target = $region48
        $region47: #{mvit_forward.2} parent=11 // pred_region
          _
        $region48: #{mvit_forward.2} parent=11 // pred_fallthru
          _
        // Predicated region
        $region49: #{mvit_forward.2} parent=11 // pred_check
          %p594 = pneg %p269
        $region50: #{mvit_forward.2} parent=11 // pred_check_branch
          %596 = sbr.rel (%p594) target = $region52
        $region51: #{mvit_forward.2} parent=11 // pred_region
          _
        $region52: #{mvit_forward.2} parent=11 // pred_fallthru
          _
        // Predicated region
        $region53: #{mvit_forward.2} parent=11 // pred_check
          %p597 = pneg %p290
        $region54: #{mvit_forward.2} parent=11 // pred_check_branch
          %599 = sbr.rel (%p597) target = $region56
        $region55: #{mvit_forward.2} parent=11 // pred_region
          _
        $region56: #{mvit_forward.2} parent=11 // pred_fallthru
          _
        // Predicated region
        $region57: #{mvit_forward.2} parent=11 // pred_check
          %p600 = pneg %p311
        $region58: #{mvit_forward.2} parent=11 // pred_check_branch
          %602 = sbr.rel (%p600) target = $region60
        $region59: #{mvit_forward.2} parent=11 // pred_region
          _
        $region60: #{mvit_forward.2} parent=11 // pred_fallthru
          _
        // Predicated region
        $region61: #{mvit_forward.2} parent=11 // pred_check
          %p603 = pneg %p332
        $region62: #{mvit_forward.2} parent=11 // pred_check_branch
          %605 = sbr.rel (%p603) target = $region64
        $region63: #{mvit_forward.2} parent=11 // pred_region
          _
        $region64: #{mvit_forward.2} parent=11 // pred_fallthru
          _
        // Predicated region
        $region65: #{mvit_forward.2} parent=11 // pred_check
          %p606 = pneg %p353
        $region66: #{mvit_forward.2} parent=11 // pred_check_branch
          %608 = sbr.rel (%p606) target = $region68
        $region67: #{mvit_forward.2} parent=11 // pred_region
          _
        $region68: #{mvit_forward.2} parent=11 // pred_fallthru
          _
        // Predicated region
        $region69: #{mvit_forward.2} parent=11 // pred_check
          %p609 = pneg %p374
        $region70: #{mvit_forward.2} parent=11 // pred_check_branch
          %611 = sbr.rel (%p609) target = $region72
        $region71: #{mvit_forward.2} parent=11 // pred_region
          _
        $region72: #{mvit_forward.2} parent=11 // pred_fallthru
          _
        // Predicated region
        $region73: #{mvit_forward.2} parent=11 // pred_check
          %p612 = pneg %p395
        $region74: #{mvit_forward.2} parent=11 // pred_check_branch
          %614 = sbr.rel (%p612) target = $region76
        $region75: #{mvit_forward.2} parent=11 // pred_region
          _
        $region76: #{mvit_forward.2} parent=11 // pred_fallthru
          _
        // Predicated region
        $region77: #{mvit_forward.2} parent=11 // pred_check
          %p615 = pneg %p416
        $region78: #{mvit_forward.2} parent=11 // pred_check_branch
          %617 = sbr.rel (%p615) target = $region80
        $region79: #{mvit_forward.2} parent=11 // pred_region
          _
        $region80: #{mvit_forward.2} parent=11 // pred_fallthru
          _
        // Predicated region
        $region81: #{mvit_forward.2} parent=11 // pred_check
          %p618 = pneg %p437
        $region82: #{mvit_forward.2} parent=11 // pred_check_branch
          %620 = sbr.rel (%p618) target = $region84
        $region83: #{mvit_forward.2} parent=11 // pred_region
          _
        $region84: #{mvit_forward.2} parent=11 // pred_fallthru
          _
        // Predicated region
        $region85: #{mvit_forward.2} parent=11 // pred_check
          %p621 = pneg %p458
        $region86: #{mvit_forward.2} parent=11 // pred_check_branch
          %623 = sbr.rel (%p621) target = $region88
        $region87: #{mvit_forward.2} parent=11 // pred_region
          _
        $region88: #{mvit_forward.2} parent=11 // pred_fallthru
          _
        // Predicated region
        $region89: #{mvit_forward.2} parent=11 // pred_check
          %p624 = pneg %p479
        $region90: #{mvit_forward.2} parent=11 // pred_check_branch
          %626 = sbr.rel (%p624) target = $region92
        $region91: #{mvit_forward.2} parent=11 // pred_region
          _
        $region92: #{mvit_forward.2} parent=11 // pred_fallthru
          _
        // Predicated region
        $region93: #{mvit_forward.2} parent=11 // pred_check
          %p627 = pneg %p500
        $region94: #{mvit_forward.2} parent=11 // pred_check_branch
          %629 = sbr.rel (%p627) target = $region96
        $region95: #{mvit_forward.2} parent=11 // pred_region
          _
        $region96: #{mvit_forward.2} parent=11 // pred_fallthru
          _
      $region12: #{mvit_forward.2} parent=5 // pred_fallthru
        _
      %p630 = scmp.lt.s32.totalorder %s33, 2
      // Predicated region
      $region97: #{mvit_forward.2} parent=5 // pred_check
        %p631 = pneg %p630
      $region98: #{mvit_forward.2} parent=5 // pred_check_branch
        %633 = sbr.rel (%p631) target = $region100
      $region99: #{mvit_forward.2} parent=5 // pred_region
        // Predicated region
        $region101: #{mvit_forward.2} parent=99 // pred_check
          %p634 = pneg %p53
        $region102: #{mvit_forward.2} parent=99 // pred_check_branch
          %636 = sbr.rel (%p634) target = $region104
        $region103: #{mvit_forward.2} parent=99 // pred_region
          %p637 = scmp.lt.s32.totalorder %s33, 1
          %s638 = scalar_select %p637, %s33, 1
          %s639 = smul.addr %s638, 2
          %s640 = smul.addr %s639, 8
          %s641 = scalar_lea.vmem %s0, %s640
        $region104: #{mvit_forward.2} parent=99 // pred_fallthru
          _
      $region100: #{mvit_forward.2} parent=5 // pred_fallthru
        _
      %p642 = scmp.le.s32.totalorder 1, %s33
      %p643 = scmp.lt.s32.totalorder %s33, 3
      %p644 = pnand %p642, %p643
      %p645 = pneg %p644
      // Predicated region
      $region105: #{mvit_forward.2} parent=5 // pred_check
        _
      $region106: #{mvit_forward.2} parent=5 // pred_check_branch
        %647 = sbr.rel (%p644) target = $region108
      $region107: #{mvit_forward.2} parent=5 // pred_region
        %s648 = ssub.s32 %s33, 1
        %p649 = scmp.lt.s32.totalorder %s38, 1
        %s650 = scalar_select %p649, %s38, 1
        %s651 = smul.addr %s650, 2
        %s652 = smul.addr %s651, 8
        %s653 = scalar_lea.vmem %s0, %s652
        %p654 = pneg %p59
        %p655 = pneg %p56
        %p656 = pneg %p80
        %p657 = pneg %p77
        %p658 = pneg %p101
        %p659 = pneg %p98
        %p660 = pneg %p122
        %p661 = pneg %p119
        %p662 = pneg %p143
        %p663 = pneg %p140
        %p664 = pneg %p164
        %p665 = pneg %p161
        %p666 = pneg %p185
        %p667 = pneg %p182
        %p668 = pneg %p206
        %p669 = pneg %p203
        %p670 = pneg %p227
        %p671 = pneg %p224
        %p672 = pneg %p248
        %p673 = pneg %p245
        %p674 = pneg %p269
        %p675 = pneg %p266
        %p676 = pneg %p290
        %p677 = pneg %p287
        %p678 = pneg %p311
        %p679 = pneg %p308
        %p680 = pneg %p332
        %p681 = pneg %p329
        %p682 = pneg %p353
        %p683 = pneg %p350
        %p684 = pneg %p374
        %p685 = pneg %p371
        %p686 = pneg %p395
        %p687 = pneg %p392
        %p688 = pneg %p416
        %p689 = pneg %p413
        %p690 = pneg %p437
        %p691 = pneg %p434
        %p692 = pneg %p458
        %p693 = pneg %p455
        %p694 = pneg %p479
        %p695 = pneg %p476
        %p696 = pneg %p500
        %p697 = pneg %p497
        %p698 = pneg %p526
        %p699 = pneg %p523
        %s700 = sand.u32 %s513, 1
        %s701 = scalar_lea.sflag [#allocation3], %s700
        %s702 = sand.u32 %s513, 1
        %s703 = scalar_lea.vmem [#allocation2], %s702
        %p704 = pneg %p552
        %p705 = pneg %p549
        %p706 = scmp.lt.s32.totalorder %s38, 1
        %s707 = scalar_select %p706, %s38, 1
        %s708 = smul.addr %s707, 8
        %s709 = scalar_lea.vmem %s23, %s708
        %p710 = scmp.lt.s32.totalorder %s38, 1
        %s711 = scalar_select %p710, %s38, 1
        %s712 = smul.addr %s711, 2
        %s713 = smul.addr %s712, 8
        %s714 = scalar_lea.vmem %s0, %s713
        %p715 = scmp.lt.s32.totalorder %s38, 1
        %s716 = scalar_select %p715, %s38, 1
        %s717 = smul.addr %s716, 8
        %s718 = scalar_lea.vmem %s23, %s717
        %v720 = vld [vmem:[%s714] sm:$0xff]
        %v721 = vld [vmem:[%s714 + $0x8] sm:$0xff]
        %v722 = vld [vmem:[%s2] sm:$0xf]
        %v723 = vld [vmem:[%s2 + $0x4] sm:$0xf]
        %v724 = vld [vmem:[%s2 + $0x8] sm:$0xf]
        %v725 = vld [vmem:[%s2 + $0xc] sm:$0xf]
        %v726 = vld [vmem:[%s2 + $0x10] sm:$0xf]
        %v727 = vld [vmem:[%s2 + $0x14] sm:$0xf]
        %v728 = vld [vmem:[%s2 + $0x18] sm:$0xf]
        %v729 = vld [vmem:[%s2 + $0x1c] sm:$0xf]
        %v730 = vpack.c.bf16 %v721, %v720
        %v731 = vld [vmem:[%s3] sm:$0x1]
        %v733 = vlaneseq
        %v734 = vshrl.u32 %v733, 7
        %v735 = vsub.s32 0, %v734
        %v736 = vrot.slane %v731, %v735
        %v746 = vunpack.c.l.b16 %v722
        %v747 = vunpack.c.l.b16 %v723
        %v748 = vunpack.c.l.b16 %v724
        %v749 = vunpack.c.l.b16 %v725
        %v750 = vunpack.c.l.b16 %v726
        %v751 = vunpack.c.l.b16 %v727
        %v752 = vunpack.c.l.b16 %v728
        %v753 = vunpack.c.l.b16 %v729
        %v754 = vpack.c.b16 %v747, %v746
        %v755 = vpack.c.b16 %v749, %v748
        %v756 = vpack.c.b16 %v751, %v750
        %v757 = vpack.c.b16 %v753, %v752
        %vm762 = vcmask 523264
        %v764 = vsel %vm762, %v730, 0
        %766 = vmatprep.subr.bf16.mxu0 0
        %767 = vmatpush1.bf16.msra.mxu0 %v754
        %768 = vmatprep.subr.bf16.mxu0 0
        %769 = vmatpush1.bf16.msra.mxu0 %v755
        %770 = vmatprep.subr.bf16.mxu0 0
        %771 = vmatpush1.bf16.msra.mxu0 %v756
        %772 = vmatprep.subr.bf16.mxu0 0
        %773 = vmatpush1.bf16.msra.mxu0 %v757
        %774 = vmatprep.subr.bf16.mxu0 0
        %775 = vmatpush1.bf16.msra.mxu0 0
        %776 = vmatprep.subr.bf16.mxu0 0
        %777 = vmatpush1.bf16.msra.mxu0 0
        %778 = vmatprep.subr.bf16.mxu0 0
        %779 = vmatpush1.bf16.msra.mxu0 0
        %780 = vmatprep.subr.bf16.mxu0 0
        %781 = vmatpush1.bf16.msra.mxu0 0
        %782 = vmatprep.subr.bf16.mxu0 0
        %783 = vmatpush1.bf16.msra.mxu0 0
        %784 = vmatprep.subr.bf16.mxu0 0
        %785 = vmatpush1.bf16.msra.mxu0 0
        %786 = vmatprep.subr.bf16.mxu0 0
        %787 = vmatpush1.bf16.msra.mxu0 0
        %788 = vmatprep.subr.bf16.mxu0 0
        %789 = vmatpush1.bf16.msra.mxu0 0
        %790 = vmatprep.subr.bf16.mxu0 0
        %791 = vmatpush1.bf16.msra.mxu0 0
        %792 = vmatprep.subr.bf16.mxu0 0
        %793 = vmatpush1.bf16.msra.mxu0 0
        %794 = vmatprep.subr.bf16.mxu0 0
        %795 = vmatpush1.bf16.msra.mxu0 0
        %796 = vmatprep.subr.bf16.mxu0 0
        %797 = vmatpush1.bf16.msra.mxu0 0
        %798 = vmatprep.mubr.bf16.mxu0 0
        %799 = vmatmul.mubr.bf16.gmra.mrb[0].mxu0 %v764
        %v800 = vpop.f32.mrb[0].mxu0
        %v801 = vadd.f32 %v736, %v800
        %v802 = vpop.f32.mrb[0].mxu0
        %v803 = vpop.f32.mrb[0].mxu0
        %v804 = vadd.f32 %v736, %v803
        %v805 = vpop.f32.mrb[0].mxu0
        %806 = vdwg.mxu0
        %v807 = vld [vmem:[%s1] sm:$0xff]
        %v808 = vld [vmem:[%s1 + $0x8] sm:$0xff]
        %v809 = vadd.f32 %v801, %v807
        %v810 = vadd.f32 %v804, %v808
        %v811 = vld [vmem:[%s4] sm:$0xf]
        %v812 = vld [vmem:[%s4 + $0x4] sm:$0xf]
        %v813 = vld [vmem:[%s4 + $0x8] sm:$0xf]
        %v814 = vld [vmem:[%s4 + $0xc] sm:$0xf]
        %v815 = vpack.c.bf16 %v810, %v809
        %v816 = vld [vmem:[%s5] sm:$0x1]
        %v818 = vlaneseq
        %v819 = vshrl.u32 %v818, 7
        %v820 = vsub.s32 0, %v819
        %v821 = vrot.slane %v816, %v820
        %v827 = vunpack.c.l.b16 %v811
        %v828 = vunpack.c.l.b16 %v812
        %v829 = vunpack.c.l.b16 %v813
        %v830 = vunpack.c.l.b16 %v814
        %v831 = vpack.c.b16 %v828, %v827
        %v832 = vpack.c.b16 %v830, %v829
        %vm835 = vcmask 261120
        %v837 = vsel %vm835, %v815, 0
        %839 = vmatprep.subr.bf16.mxu0 0
        %840 = vmatpush1.bf16.msra.mxu0 %v831
        %841 = vmatprep.subr.bf16.mxu0 0
        %842 = vmatpush1.bf16.msra.mxu0 %v832
        %843 = vmatprep.subr.bf16.mxu0 0
        %844 = vmatpush1.bf16.msra.mxu0 0
        %845 = vmatprep.subr.bf16.mxu0 0
        %846 = vmatpush1.bf16.msra.mxu0 0
        %847 = vmatprep.subr.bf16.mxu0 0
        %848 = vmatpush1.bf16.msra.mxu0 0
        %849 = vmatprep.subr.bf16.mxu0 0
        %850 = vmatpush1.bf16.msra.mxu0 0
        %851 = vmatprep.subr.bf16.mxu0 0
        %852 = vmatpush1.bf16.msra.mxu0 0
        %853 = vmatprep.subr.bf16.mxu0 0
        %854 = vmatpush1.bf16.msra.mxu0 0
        %855 = vmatprep.subr.bf16.mxu0 0
        %856 = vmatpush1.bf16.msra.mxu0 0
        %857 = vmatprep.subr.bf16.mxu0 0
        %858 = vmatpush1.bf16.msra.mxu0 0
        %859 = vmatprep.subr.bf16.mxu0 0
        %860 = vmatpush1.bf16.msra.mxu0 0
        %861 = vmatprep.subr.bf16.mxu0 0
        %862 = vmatpush1.bf16.msra.mxu0 0
        %863 = vmatprep.subr.bf16.mxu0 0
        %864 = vmatpush1.bf16.msra.mxu0 0
        %865 = vmatprep.subr.bf16.mxu0 0
        %866 = vmatpush1.bf16.msra.mxu0 0
        %867 = vmatprep.subr.bf16.mxu0 0
        %868 = vmatpush1.bf16.msra.mxu0 0
        %869 = vmatprep.subr.bf16.mxu0 0
        %870 = vmatpush1.bf16.msra.mxu0 0
        %871 = vmatprep.mubr.bf16.mxu0 0
        %872 = vmatmul.mubr.bf16.gmra.mrb[0].mxu0 %v837
        %v873 = vpop.f32.mrb[0].mxu0
        %v874 = vadd.f32 %v821, %v873
        %v875 = vpop.f32.mrb[0].mxu0
        %v876 = vpop.f32.mrb[0].mxu0
        %v877 = vadd.f32 %v821, %v876
        %v878 = vpop.f32.mrb[0].mxu0
        %879 = vdwg.mxu0
        %v880 = vpack.c.bf16 %v877, %v874
        %882 = vrot.lane.b32.xlu0 %v880, 120
        %v883 = vpop.permute.xlu0 %882
        %884 = vrot.lane.b32.xlu0 %v880, 112
        %v885 = vpop.permute.xlu0 %884
        %886 = vrot.lane.b32.xlu0 %v880, 104
        %v887 = vpop.permute.xlu0 %886
        %888 = vrot.lane.b32.xlu0 %v880, 96
        %v889 = vpop.permute.xlu0 %888
        %vm890 = vcmask 64512
        %v892 = vsel %vm890, %v880, 0
        %v895 = vsel %vm890, %v889, 0
        %897 = vmatprep.subr.bf16.mxu0 0
        %898 = vmatpush1.bf16.xpose.msra.mxu0 %v895
        %899 = vmatprep.subr.bf16.mxu0 0
        %900 = vmatpush1.bf16.xpose.msra.mxu0 0
        %901 = vmatprep.subr.bf16.mxu0 0
        %902 = vmatpush1.bf16.xpose.msra.mxu0 0
        %903 = vmatprep.subr.bf16.mxu0 0
        %904 = vmatpush1.bf16.xpose.msra.mxu0 0
        %905 = vmatprep.subr.bf16.mxu0 0
        %906 = vmatpush1.bf16.xpose.msra.mxu0 0
        %907 = vmatprep.subr.bf16.mxu0 0
        %908 = vmatpush1.bf16.xpose.msra.mxu0 0
        %909 = vmatprep.subr.bf16.mxu0 0
        %910 = vmatpush1.bf16.xpose.msra.mxu0 0
        %911 = vmatprep.subr.bf16.mxu0 0
        %912 = vmatpush1.bf16.xpose.msra.mxu0 0
        %913 = vmatprep.subr.bf16.mxu0 0
        %914 = vmatpush1.bf16.xpose.msra.mxu0 0
        %915 = vmatprep.subr.bf16.mxu0 0
        %916 = vmatpush1.bf16.xpose.msra.mxu0 0
        %917 = vmatprep.subr.bf16.mxu0 0
        %918 = vmatpush1.bf16.xpose.msra.mxu0 0
        %919 = vmatprep.subr.bf16.mxu0 0
        %920 = vmatpush1.bf16.xpose.msra.mxu0 0
        %921 = vmatprep.subr.bf16.mxu0 0
        %922 = vmatpush1.bf16.xpose.msra.mxu0 0
        %923 = vmatprep.subr.bf16.mxu0 0
        %924 = vmatpush1.bf16.xpose.msra.mxu0 0
        %925 = vmatprep.subr.bf16.mxu0 0
        %926 = vmatpush1.bf16.xpose.msra.mxu0 0
        %927 = vmatprep.subr.bf16.mxu0 0
        %928 = vmatpush1.bf16.xpose.msra.mxu0 0
        %929 = vmatprep.mubr.bf16.mxu0 0
        %930 = vmatmul.mubr.bf16.gmra.mrb[0].mxu0 %v892
        %v931 = vpop.f32.mrb[0].mxu0
        %v932 = vadd.f32 0.0, %v931
        %v933 = vpop.f32.mrb[0].mxu0
        %v934 = vpop.f32.mrb[0].mxu0
        %v935 = vadd.f32 0.0, %v934
        %v936 = vpop.f32.mrb[0].mxu0
        %937 = vdwg.mxu0
        %938 = vrot.lane.b32.xlu0 %v883, 96
        %v939 = vpop.permute.xlu0 %938
        %v941 = vsel %vm890, %v883, 0
        %v944 = vsel %vm890, %v939, 0
        %946 = vmatprep.subr.bf16.mxu0 0
        %947 = vmatpush1.bf16.xpose.msra.mxu0 %v944
        %948 = vmatprep.subr.bf16.mxu0 0
        %949 = vmatpush1.bf16.xpose.msra.mxu0 0
        %950 = vmatprep.subr.bf16.mxu0 0
        %951 = vmatpush1.bf16.xpose.msra.mxu0 0
        %952 = vmatprep.subr.bf16.mxu0 0
        %953 = vmatpush1.bf16.xpose.msra.mxu0 0
        %954 = vmatprep.subr.bf16.mxu0 0
        %955 = vmatpush1.bf16.xpose.msra.mxu0 0
        %956 = vmatprep.subr.bf16.mxu0 0
        %957 = vmatpush1.bf16.xpose.msra.mxu0 0
        %958 = vmatprep.subr.bf16.mxu0 0
        %959 = vmatpush1.bf16.xpose.msra.mxu0 0
        %960 = vmatprep.subr.bf16.mxu0 0
        %961 = vmatpush1.bf16.xpose.msra.mxu0 0
        %962 = vmatprep.subr.bf16.mxu0 0
        %963 = vmatpush1.bf16.xpose.msra.mxu0 0
        %964 = vmatprep.subr.bf16.mxu0 0
        %965 = vmatpush1.bf16.xpose.msra.mxu0 0
        %966 = vmatprep.subr.bf16.mxu0 0
        %967 = vmatpush1.bf16.xpose.msra.mxu0 0
        %968 = vmatprep.subr.bf16.mxu0 0
        %969 = vmatpush1.bf16.xpose.msra.mxu0 0
        %970 = vmatprep.subr.bf16.mxu0 0
        %971 = vmatpush1.bf16.xpose.msra.mxu0 0
        %972 = vmatprep.subr.bf16.mxu0 0
        %973 = vmatpush1.bf16.xpose.msra.mxu0 0
        %974 = vmatprep.subr.bf16.mxu0 0
        %975 = vmatpush1.bf16.xpose.msra.mxu0 0
        %976 = vmatprep.subr.bf16.mxu0 0
        %977 = vmatpush1.bf16.xpose.msra.mxu0 0
        %978 = vmatprep.mubr.bf16.mxu0 0
        %979 = vmatmul.mubr.bf16.gmra.mrb[0].mxu0 %v941
        %v980 = vpop.f32.mrb[0].mxu0
        %v981 = vadd.f32 0.0, %v980
        %v982 = vpop.f32.mrb[0].mxu0
        %v983 = vpop.f32.mrb[0].mxu0
        %v984 = vadd.f32 0.0, %v983
        %v985 = vpop.f32.mrb[0].mxu0
        %986 = vdwg.mxu0
        %987 = vrot.lane.b32.xlu0 %v885, 96
        %v988 = vpop.permute.xlu0 %987
        %v990 = vsel %vm890, %v885, 0
        %v993 = vsel %vm890, %v988, 0
        %995 = vmatprep.subr.bf16.mxu0 0
        %996 = vmatpush1.bf16.xpose.msra.mxu0 %v993
        %997 = vmatprep.subr.bf16.mxu0 0
        %998 = vmatpush1.bf16.xpose.msra.mxu0 0
        %999 = vmatprep.subr.bf16.mxu0 0
        %1000 = vmatpush1.bf16.xpose.msra.mxu0 0
        %1001 = vmatprep.subr.bf16.mxu0 0
        %1002 = vmatpush1.bf16.xpose.msra.mxu0 0
        %1003 = vmatprep.subr.bf16.mxu0 0
        %1004 = vmatpush1.bf16.xpose.msra.mxu0 0
        %1005 = vmatprep.subr.bf16.mxu0 0
        %1006 = vmatpush1.bf16.xpose.msra.mxu0 0
        %1007 = vmatprep.subr.bf16.mxu0 0
        %1008 = vmatpush1.bf16.xpose.msra.mxu0 0
        %1009 = vmatprep.subr.bf16.mxu0 0
        %1010 = vmatpush1.bf16.xpose.msra.mxu0 0
        %1011 = vmatprep.subr.bf16.mxu0 0
        %1012 = vmatpush1.bf16.xpose.msra.mxu0 0
        %1013 = vmatprep.subr.bf16.mxu0 0
        %1014 = vmatpush1.bf16.xpose.msra.mxu0 0
        %1015 = vmatprep.subr.bf16.mxu0 0
        %1016 = vmatpush1.bf16.xpose.msra.mxu0 0
        %1017 = vmatprep.subr.bf16.mxu0 0
        %1018 = vmatpush1.bf16.xpose.msra.mxu0 0
        %1019 = vmatprep.subr.bf16.mxu0 0
        %1020 = vmatpush1.bf16.xpose.msra.mxu0 0
        %1021 = vmatprep.subr.bf16.mxu0 0
        %1022 = vmatpush1.bf16.xpose.msra.mxu0 0
        %1023 = vmatprep.subr.bf16.mxu0 0
        %1024 = vmatpush1.bf16.xpose.msra.mxu0 0
        %1025 = vmatprep.subr.bf16.mxu0 0
        %1026 = vmatpush1.bf16.xpose.msra.mxu0 0
        %1027 = vmatprep.mubr.bf16.mxu0 0
        %1028 = vmatmul.mubr.bf16.gmra.mrb[0].mxu0 %v990
        %v1029 = vpop.f32.mrb[0].mxu0
        %v1030 = vadd.f32 0.0, %v1029
        %v1031 = vpop.f32.mrb[0].mxu0
        %v1032 = vpop.f32.mrb[0].mxu0
        %v1033 = vadd.f32 0.0, %v1032
        %v1034 = vpop.f32.mrb[0].mxu0
        %1035 = vdwg.mxu0
        %1036 = vrot.lane.b32.xlu0 %v887, 96
        %v1037 = vpop.permute.xlu0 %1036
        %v1039 = vsel %vm890, %v887, 0
        %v1042 = vsel %vm890, %v1037, 0
        %1044 = vmatprep.subr.bf16.mxu0 0
        %1045 = vmatpush1.bf16.xpose.msra.mxu0 %v1042
        %1046 = vmatprep.subr.bf16.mxu0 0
        %1047 = vmatpush1.bf16.xpose.msra.mxu0 0
        %1048 = vmatprep.subr.bf16.mxu0 0
        %1049 = vmatpush1.bf16.xpose.msra.mxu0 0
        %1050 = vmatprep.subr.bf16.mxu0 0
        %1051 = vmatpush1.bf16.xpose.msra.mxu0 0
        %1052 = vmatprep.subr.bf16.mxu0 0
        %1053 = vmatpush1.bf16.xpose.msra.mxu0 0
        %1054 = vmatprep.subr.bf16.mxu0 0
        %1055 = vmatpush1.bf16.xpose.msra.mxu0 0
        %1056 = vmatprep.subr.bf16.mxu0 0
        %1057 = vmatpush1.bf16.xpose.msra.mxu0 0
        %1058 = vmatprep.subr.bf16.mxu0 0
        %1059 = vmatpush1.bf16.xpose.msra.mxu0 0
        %1060 = vmatprep.subr.bf16.mxu0 0
        %1061 = vmatpush1.bf16.xpose.msra.mxu0 0
        %1062 = vmatprep.subr.bf16.mxu0 0
        %1063 = vmatpush1.bf16.xpose.msra.mxu0 0
        %1064 = vmatprep.subr.bf16.mxu0 0
        %1065 = vmatpush1.bf16.xpose.msra.mxu0 0
        %1066 = vmatprep.subr.bf16.mxu0 0
        %1067 = vmatpush1.bf16.xpose.msra.mxu0 0
        %1068 = vmatprep.subr.bf16.mxu0 0
        %1069 = vmatpush1.bf16.xpose.msra.mxu0 0
        %1070 = vmatprep.subr.bf16.mxu0 0
        %1071 = vmatpush1.bf16.xpose.msra.mxu0 0
        %1072 = vmatprep.subr.bf16.mxu0 0
        %1073 = vmatpush1.bf16.xpose.msra.mxu0 0
        %1074 = vmatprep.subr.bf16.mxu0 0
        %1075 = vmatpush1.bf16.xpose.msra.mxu0 0
        %1076 = vmatprep.mubr.bf16.mxu0 0
        %1077 = vmatmul.mubr.bf16.gmra.mrb[0].mxu0 %v1039
        %v1078 = vpop.f32.mrb[0].mxu0
        %v1079 = vadd.f32 0.0, %v1078
        %v1080 = vpop.f32.mrb[0].mxu0
        %v1081 = vpop.f32.mrb[0].mxu0
        %v1082 = vadd.f32 0.0, %v1081
        %v1083 = vpop.f32.mrb[0].mxu0
        %1084 = vdwg.mxu0
        %v1085 = vmul.f32 %v932, 0.35355338
        %v1086 = vmul.f32 %v935, 0.35355338
        %v1087 = vmul.f32 %v981, 0.35355338
        %v1088 = vmul.f32 %v984, 0.35355338
        %v1089 = vmul.f32 %v1030, 0.35355338
        %v1090 = vmul.f32 %v1033, 0.35355338
        %v1091 = vmul.f32 %v1079, 0.35355338
        %v1092 = vmul.f32 %v1082, 0.35355338
        %vm1093 = vcmask 130048
        %v1094 = vsel %vm1093, %v1085, -inf
        %1095 = vmax.xlane.f32.xlu0 %v1094
        %v1096 = vpop.xlane.xlu0 %1095
        %v1097 = vsel %vm1093, %v1086, -inf
        %1098 = vmax.xlane.f32.xlu0 %v1097
        %v1099 = vpop.xlane.xlu0 %1098
        %v1100 = vsel %vm1093, %v1087, -inf
        %1101 = vmax.xlane.f32.xlu0 %v1100
        %v1102 = vpop.xlane.xlu0 %1101
        %v1103 = vsel %vm1093, %v1088, -inf
        %1104 = vmax.xlane.f32.xlu0 %v1103
        %v1105 = vpop.xlane.xlu0 %1104
        %v1106 = vsel %vm1093, %v1089, -inf
        %1107 = vmax.xlane.f32.xlu0 %v1106
        %v1108 = vpop.xlane.xlu0 %1107
        %v1109 = vsel %vm1093, %v1090, -inf
        %1110 = vmax.xlane.f32.xlu0 %v1109
        %v1111 = vpop.xlane.xlu0 %1110
        %v1112 = vsel %vm1093, %v1091, -inf
        %1113 = vmax.xlane.f32.xlu0 %v1112
        %v1114 = vpop.xlane.xlu0 %1113
        %v1115 = vsel %vm1093, %v1092, -inf
        %1116 = vmax.xlane.f32.xlu0 %v1115
        %v1117 = vpop.xlane.xlu0 %1116
        %v1118 = vsub.f32 %v1085, %v1096
        %v1119 = vsub.f32 %v1086, %v1099
        %v1120 = vsub.f32 %v1087, %v1102
        %v1121 = vsub.f32 %v1088, %v1105
        %v1122 = vsub.f32 %v1089, %v1108
        %v1123 = vsub.f32 %v1090, %v1111
        %v1124 = vsub.f32 %v1091, %v1114
        %v1125 = vsub.f32 %v1092, %v1117
        %v1126 = vmul.f32 %v1118, 1.442695
        %v1127 = vpow.pop %v1126
        %v1128 = vmul.f32 %v1119, 1.442695
        %v1129 = vpow.pop %v1128
        %v1130 = vmul.f32 %v1120, 1.442695
        %v1131 = vpow.pop %v1130
        %v1132 = vmul.f32 %v1121, 1.442695
        %v1133 = vpow.pop %v1132
        %v1134 = vmul.f32 %v1122, 1.442695
        %v1135 = vpow.pop %v1134
        %v1136 = vmul.f32 %v1123, 1.442695
        %v1137 = vpow.pop %v1136
        %v1138 = vmul.f32 %v1124, 1.442695
        %v1139 = vpow.pop %v1138
        %v1140 = vmul.f32 %v1125, 1.442695
        %v1141 = vpow.pop %v1140
        %v1142 = vsel %vm1093, %v1127, 0.0
        %1143 = vadd.xlane.f32.xlu0 %v1142
        %v1144 = vpop.xlane.xlu0 %1143
        %v1145 = vsel %vm1093, %v1129, 0.0
        %1146 = vadd.xlane.f32.xlu0 %v1145
        %v1147 = vpop.xlane.xlu0 %1146
        %v1148 = vsel %vm1093, %v1131, 0.0
        %1149 = vadd.xlane.f32.xlu0 %v1148
        %v1150 = vpop.xlane.xlu0 %1149
        %v1151 = vsel %vm1093, %v1133, 0.0
        %1152 = vadd.xlane.f32.xlu0 %v1151
        %v1153 = vpop.xlane.xlu0 %1152
        %v1154 = vsel %vm1093, %v1135, 0.0
        %1155 = vadd.xlane.f32.xlu0 %v1154
        %v1156 = vpop.xlane.xlu0 %1155
        %v1157 = vsel %vm1093, %v1137, 0.0
        %1158 = vadd.xlane.f32.xlu0 %v1157
        %v1159 = vpop.xlane.xlu0 %1158
        %v1160 = vsel %vm1093, %v1139, 0.0
        %1161 = vadd.xlane.f32.xlu0 %v1160
        %v1162 = vpop.xlane.xlu0 %1161
        %v1163 = vsel %vm1093, %v1141, 0.0
        %1164 = vadd.xlane.f32.xlu0 %v1163
        %v1165 = vpop.xlane.xlu0 %1164
        %v1166 = vrcp.pop %v1144
        %v1167 = vmul.f32 %v1127, %v1166
        %v1168 = vrcp.pop %v1147
        %v1169 = vmul.f32 %v1129, %v1168
        %v1170 = vrcp.pop %v1150
        %v1171 = vmul.f32 %v1131, %v1170
        %v1172 = vrcp.pop %v1153
        %v1173 = vmul.f32 %v1133, %v1172
        %v1174 = vrcp.pop %v1156
        %v1175 = vmul.f32 %v1135, %v1174
        %v1176 = vrcp.pop %v1159
        %v1177 = vmul.f32 %v1137, %v1176
        %v1178 = vrcp.pop %v1162
        %v1179 = vmul.f32 %v1139, %v1178
        %v1180 = vrcp.pop %v1165
        %v1181 = vmul.f32 %v1141, %v1180
        %v1182 = vpack.c.bf16 %v1169, %v1167
        %v1183 = vpack.c.bf16 %v1173, %v1171
        %v1184 = vpack.c.bf16 %v1177, %v1175
        %v1185 = vpack.c.bf16 %v1181, %v1179
        %1186 = vrot.lane.b32.xlu0 %v880, 64
        %v1187 = vpop.permute.xlu0 %1186
        %v1190 = vsel %vm1093, %v1182, 0
        %1192 = vmatprep.subr.bf16.mxu0 0
        %1193 = vmatpush1.bf16.msra.mxu0 %v1187
        %1194 = vmatprep.subr.bf16.mxu0 0
        %1195 = vmatpush1.bf16.msra.mxu0 0
        %1196 = vmatprep.subr.bf16.mxu0 0
        %1197 = vmatpush1.bf16.msra.mxu0 0
        %1198 = vmatprep.subr.bf16.mxu0 0
        %1199 = vmatpush1.bf16.msra.mxu0 0
        %1200 = vmatprep.subr.bf16.mxu0 0
        %1201 = vmatpush1.bf16.msra.mxu0 0
        %1202 = vmatprep.subr.bf16.mxu0 0
        %1203 = vmatpush1.bf16.msra.mxu0 0
        %1204 = vmatprep.subr.bf16.mxu0 0
        %1205 = vmatpush1.bf16.msra.mxu0 0
        %1206 = vmatprep.subr.bf16.mxu0 0
        %1207 = vmatpush1.bf16.msra.mxu0 0
        %1208 = vmatprep.subr.bf16.mxu0 0
        %1209 = vmatpush1.bf16.msra.mxu0 0
        %1210 = vmatprep.subr.bf16.mxu0 0
        %1211 = vmatpush1.bf16.msra.mxu0 0
        %1212 = vmatprep.subr.bf16.mxu0 0
        %1213 = vmatpush1.bf16.msra.mxu0 0
        %1214 = vmatprep.subr.bf16.mxu0 0
        %1215 = vmatpush1.bf16.msra.mxu0 0
        %1216 = vmatprep.subr.bf16.mxu0 0
        %1217 = vmatpush1.bf16.msra.mxu0 0
        %1218 = vmatprep.subr.bf16.mxu0 0
        %1219 = vmatpush1.bf16.msra.mxu0 0
        %1220 = vmatprep.subr.bf16.mxu0 0
        %1221 = vmatpush1.bf16.msra.mxu0 0
        %1222 = vmatprep.subr.bf16.mxu0 0
        %1223 = vmatpush1.bf16.msra.mxu0 0
        %1224 = vmatprep.mubr.bf16.mxu0 0
        %1225 = vmatmul.mubr.bf16.gmra.mrb[0].mxu0 %v1190
        %v1226 = vpop.f32.mrb[0].mxu0
        %v1227 = vadd.f32 0.0, %v1226
        %v1228 = vpop.f32.mrb[0].mxu0
        %v1229 = vpop.f32.mrb[0].mxu0
        %v1230 = vadd.f32 0.0, %v1229
        %v1231 = vpop.f32.mrb[0].mxu0
        %1232 = vdwg.mxu0
        %1233 = vrot.lane.b32.xlu0 %v883, 64
        %v1234 = vpop.permute.xlu0 %1233
        %v1237 = vsel %vm1093, %v1183, 0
        %1239 = vmatprep.subr.bf16.mxu0 0
        %1240 = vmatpush1.bf16.msra.mxu0 %v1234
        %1241 = vmatprep.subr.bf16.mxu0 0
        %1242 = vmatpush1.bf16.msra.mxu0 0
        %1243 = vmatprep.subr.bf16.mxu0 0
        %1244 = vmatpush1.bf16.msra.mxu0 0
        %1245 = vmatprep.subr.bf16.mxu0 0
        %1246 = vmatpush1.bf16.msra.mxu0 0
        %1247 = vmatprep.subr.bf16.mxu0 0
        %1248 = vmatpush1.bf16.msra.mxu0 0
        %1249 = vmatprep.subr.bf16.mxu0 0
        %1250 = vmatpush1.bf16.msra.mxu0 0
        %1251 = vmatprep.subr.bf16.mxu0 0
        %1252 = vmatpush1.bf16.msra.mxu0 0
        %1253 = vmatprep.subr.bf16.mxu0 0
        %1254 = vmatpush1.bf16.msra.mxu0 0
        %1255 = vmatprep.subr.bf16.mxu0 0
        %1256 = vmatpush1.bf16.msra.mxu0 0
        %1257 = vmatprep.subr.bf16.mxu0 0
        %1258 = vmatpush1.bf16.msra.mxu0 0
        %1259 = vmatprep.subr.bf16.mxu0 0
        %1260 = vmatpush1.bf16.msra.mxu0 0
        %1261 = vmatprep.subr.bf16.mxu0 0
        %1262 = vmatpush1.bf16.msra.mxu0 0
        %1263 = vmatprep.subr.bf16.mxu0 0
        %1264 = vmatpush1.bf16.msra.mxu0 0
        %1265 = vmatprep.subr.bf16.mxu0 0
        %1266 = vmatpush1.bf16.msra.mxu0 0
        %1267 = vmatprep.subr.bf16.mxu0 0
        %1268 = vmatpush1.bf16.msra.mxu0 0
        %1269 = vmatprep.subr.bf16.mxu0 0
        %1270 = vmatpush1.bf16.msra.mxu0 0
        %1271 = vmatprep.mubr.bf16.mxu0 0
        %1272 = vmatmul.mubr.bf16.gmra.mrb[0].mxu0 %v1237
        %v1273 = vpop.f32.mrb[0].mxu0
        %v1274 = vadd.f32 0.0, %v1273
        %v1275 = vpop.f32.mrb[0].mxu0
        %v1276 = vpop.f32.mrb[0].mxu0
        %v1277 = vadd.f32 0.0, %v1276
        %v1278 = vpop.f32.mrb[0].mxu0
        %1279 = vdwg.mxu0
        %1280 = vrot.lane.b32.xlu0 %v885, 64
        %v1281 = vpop.permute.xlu0 %1280
        %v1284 = vsel %vm1093, %v1184, 0
        %1286 = vmatprep.subr.bf16.mxu0 0
        %1287 = vmatpush1.bf16.msra.mxu0 %v1281
        %1288 = vmatprep.subr.bf16.mxu0 0
        %1289 = vmatpush1.bf16.msra.mxu0 0
        %1290 = vmatprep.subr.bf16.mxu0 0
        %1291 = vmatpush1.bf16.msra.mxu0 0
        %1292 = vmatprep.subr.bf16.mxu0 0
        %1293 = vmatpush1.bf16.msra.mxu0 0
        %1294 = vmatprep.subr.bf16.mxu0 0
        %1295 = vmatpush1.bf16.msra.mxu0 0
        %1296 = vmatprep.subr.bf16.mxu0 0
        %1297 = vmatpush1.bf16.msra.mxu0 0
        %1298 = vmatprep.subr.bf16.mxu0 0
        %1299 = vmatpush1.bf16.msra.mxu0 0
        %1300 = vmatprep.subr.bf16.mxu0 0
        %1301 = vmatpush1.bf16.msra.mxu0 0
        %1302 = vmatprep.subr.bf16.mxu0 0
        %1303 = vmatpush1.bf16.msra.mxu0 0
        %1304 = vmatprep.subr.bf16.mxu0 0
        %1305 = vmatpush1.bf16.msra.mxu0 0
        %1306 = vmatprep.subr.bf16.mxu0 0
        %1307 = vmatpush1.bf16.msra.mxu0 0
        %1308 = vmatprep.subr.bf16.mxu0 0
        %1309 = vmatpush1.bf16.msra.mxu0 0
        %1310 = vmatprep.subr.bf16.mxu0 0
        %1311 = vmatpush1.bf16.msra.mxu0 0
        %1312 = vmatprep.subr.bf16.mxu0 0
        %1313 = vmatpush1.bf16.msra.mxu0 0
        %1314 = vmatprep.subr.bf16.mxu0 0
        %1315 = vmatpush1.bf16.msra.mxu0 0
        %1316 = vmatprep.subr.bf16.mxu0 0
        %1317 = vmatpush1.bf16.msra.mxu0 0
        %1318 = vmatprep.mubr.bf16.mxu0 0
        %1319 = vmatmul.mubr.bf16.gmra.mrb[0].mxu0 %v1284
        %v1320 = vpop.f32.mrb[0].mxu0
        %v1321 = vadd.f32 0.0, %v1320
        %v1322 = vpop.f32.mrb[0].mxu0
        %v1323 = vpop.f32.mrb[0].mxu0
        %v1324 = vadd.f32 0.0, %v1323
        %v1325 = vpop.f32.mrb[0].mxu0
        %1326 = vdwg.mxu0
        %1327 = vrot.lane.b32.xlu0 %v887, 64
        %v1328 = vpop.permute.xlu0 %1327
        %v1331 = vsel %vm1093, %v1185, 0
        %1333 = vmatprep.subr.bf16.mxu0 0
        %1334 = vmatpush1.bf16.msra.mxu0 %v1328
        %1335 = vmatprep.subr.bf16.mxu0 0
        %1336 = vmatpush1.bf16.msra.mxu0 0
        %1337 = vmatprep.subr.bf16.mxu0 0
        %1338 = vmatpush1.bf16.msra.mxu0 0
        %1339 = vmatprep.subr.bf16.mxu0 0
        %1340 = vmatpush1.bf16.msra.mxu0 0
        %1341 = vmatprep.subr.bf16.mxu0 0
        %1342 = vmatpush1.bf16.msra.mxu0 0
        %1343 = vmatprep.subr.bf16.mxu0 0
        %1344 = vmatpush1.bf16.msra.mxu0 0
        %1345 = vmatprep.subr.bf16.mxu0 0
        %1346 = vmatpush1.bf16.msra.mxu0 0
        %1347 = vmatprep.subr.bf16.mxu0 0
        %1348 = vmatpush1.bf16.msra.mxu0 0
        %1349 = vmatprep.subr.bf16.mxu0 0
        %1350 = vmatpush1.bf16.msra.mxu0 0
        %1351 = vmatprep.subr.bf16.mxu0 0
        %1352 = vmatpush1.bf16.msra.mxu0 0
        %1353 = vmatprep.subr.bf16.mxu0 0
        %1354 = vmatpush1.bf16.msra.mxu0 0
        %1355 = vmatprep.subr.bf16.mxu0 0
        %1356 = vmatpush1.bf16.msra.mxu0 0
        %1357 = vmatprep.subr.bf16.mxu0 0
        %1358 = vmatpush1.bf16.msra.mxu0 0
        %1359 = vmatprep.subr.bf16.mxu0 0
        %1360 = vmatpush1.bf16.msra.mxu0 0
        %1361 = vmatprep.subr.bf16.mxu0 0
        %1362 = vmatpush1.bf16.msra.mxu0 0
        %1363 = vmatprep.subr.bf16.mxu0 0
        %1364 = vmatpush1.bf16.msra.mxu0 0
        %1365 = vmatprep.mubr.bf16.mxu0 0
        %1366 = vmatmul.mubr.bf16.gmra.mrb[0].mxu0 %v1331
        %v1367 = vpop.f32.mrb[0].mxu0
        %v1368 = vadd.f32 0.0, %v1367
        %v1369 = vpop.f32.mrb[0].mxu0
        %v1370 = vpop.f32.mrb[0].mxu0
        %v1371 = vadd.f32 0.0, %v1370
        %v1372 = vpop.f32.mrb[0].mxu0
        %1373 = vdwg.mxu0
        %1376 = vrot.lane.b32.xlu0 %v1274, 8
        %v1377 = vpop.permute.xlu0 %1376
        %1378 = vrot.lane.b32.xlu0 %v1277, 8
        %v1379 = vpop.permute.xlu0 %1378
        %1384 = vrot.lane.b32.xlu0 %v1321, 16
        %v1385 = vpop.permute.xlu0 %1384
        %1386 = vrot.lane.b32.xlu0 %v1324, 16
        %v1387 = vpop.permute.xlu0 %1386
        %1392 = vrot.lane.b32.xlu0 %v1368, 24
        %v1393 = vpop.permute.xlu0 %1392
        %1394 = vrot.lane.b32.xlu0 %v1371, 24
        %v1395 = vpop.permute.xlu0 %1394
        %v1398 = vsel %vm890, %v1227, %v1377
        %v1399 = vsel %vm890, %v1230, %v1379
        %v1400 = vsel %vm1093, %v1398, %v1385
        %v1401 = vsel %vm1093, %v1399, %v1387
        %vm1402 = vcmask 195584
        %v1403 = vsel %vm1402, %v1400, %v1393
        %v1404 = vsel %vm1402, %v1401, %v1395
        %v1405 = vld [vmem:[%s6] sm:$0xf]
        %v1406 = vld [vmem:[%s6 + $0x4] sm:$0xf]
        %v1407 = vld [vmem:[%s6 + $0x8] sm:$0xf]
        %v1408 = vld [vmem:[%s6 + $0xc] sm:$0xf]
        %v1409 = vpack.c.bf16 %v1404, %v1403
        %v1410 = vld [vmem:[%s7] sm:$0x1]
        %v1412 = vlaneseq
        %v1413 = vshrl.u32 %v1412, 7
        %v1414 = vsub.s32 0, %v1413
        %v1415 = vrot.slane %v1410, %v1414
        %v1421 = vunpack.c.l.b16 %v1405
        %v1422 = vunpack.c.l.b16 %v1406
        %v1423 = vunpack.c.l.b16 %v1407
        %v1424 = vunpack.c.l.b16 %v1408
        %v1425 = vpack.c.b16 %v1422, %v1421
        %v1426 = vpack.c.b16 %v1424, %v1423
        %v1430 = vsel %vm835, %v1409, 0
        %1432 = vmatprep.subr.bf16.mxu0 0
        %1433 = vmatpush1.bf16.msra.mxu0 %v1425
        %1434 = vmatprep.subr.bf16.mxu0 0
        %1435 = vmatpush1.bf16.msra.mxu0 %v1426
        %1436 = vmatprep.subr.bf16.mxu0 0
        %1437 = vmatpush1.bf16.msra.mxu0 0
        %1438 = vmatprep.subr.bf16.mxu0 0
        %1439 = vmatpush1.bf16.msra.mxu0 0
        %1440 = vmatprep.subr.bf16.mxu0 0
        %1441 = vmatpush1.bf16.msra.mxu0 0
        %1442 = vmatprep.subr.bf16.mxu0 0
        %1443 = vmatpush1.bf16.msra.mxu0 0
        %1444 = vmatprep.subr.bf16.mxu0 0
        %1445 = vmatpush1.bf16.msra.mxu0 0
        %1446 = vmatprep.subr.bf16.mxu0 0
        %1447 = vmatpush1.bf16.msra.mxu0 0
        %1448 = vmatprep.subr.bf16.mxu0 0
        %1449 = vmatpush1.bf16.msra.mxu0 0
        %1450 = vmatprep.subr.bf16.mxu0 0
        %1451 = vmatpush1.bf16.msra.mxu0 0
        %1452 = vmatprep.subr.bf16.mxu0 0
        %1453 = vmatpush1.bf16.msra.mxu0 0
        %1454 = vmatprep.subr.bf16.mxu0 0
        %1455 = vmatpush1.bf16.msra.mxu0 0
        %1456 = vmatprep.subr.bf16.mxu0 0
        %1457 = vmatpush1.bf16.msra.mxu0 0
        %1458 = vmatprep.subr.bf16.mxu0 0
        %1459 = vmatpush1.bf16.msra.mxu0 0
        %1460 = vmatprep.subr.bf16.mxu0 0
        %1461 = vmatpush1.bf16.msra.mxu0 0
        %1462 = vmatprep.subr.bf16.mxu0 0
        %1463 = vmatpush1.bf16.msra.mxu0 0
        %1464 = vmatprep.mubr.bf16.mxu0 0
        %1465 = vmatmul.mubr.bf16.gmra.mrb[0].mxu0 %v1430
        %v1466 = vpop.f32.mrb[0].mxu0
        %v1467 = vadd.f32 %v1415, %v1466
        %v1468 = vpop.f32.mrb[0].mxu0
        %v1469 = vpop.f32.mrb[0].mxu0
        %v1470 = vadd.f32 %v1415, %v1469
        %v1471 = vpop.f32.mrb[0].mxu0
        %1472 = vdwg.mxu0
        %v1473 = vadd.f32 %v809, %v1467
        %v1474 = vadd.f32 %v810, %v1470
        %v1475 = vld [vmem:[%s8] sm:$0x1]
        %v1476 = vld [vmem:[%s9] sm:$0x1]
        %v1477 = vsel %vm835, %v1473, 0.0
        %1478 = vadd.xlane.f32.xlu0 %v1477
        %v1479 = vpop.xlane.xlu0 %1478
        %v1480 = vsel %vm835, %v1474, 0.0
        %1481 = vadd.xlane.f32.xlu0 %v1480
        %v1482 = vpop.xlane.xlu0 %1481
        %v1483 = vrcp.pop 32.0
        %v1484 = vmul.f32 %v1479, %v1483
        %v1485 = vmul.f32 %v1482, %v1483
        %v1486 = vsub.f32 %v1473, %v1484
        %v1487 = vsub.f32 %v1474, %v1485
        %v1488 = vmul.f32 %v1486, %v1486
        %v1489 = vmul.f32 %v1487, %v1487
        %v1490 = vsel %vm835, %v1488, 0.0
        %1491 = vadd.xlane.f32.xlu0 %v1490
        %v1492 = vpop.xlane.xlu0 %1491
        %v1493 = vsel %vm835, %v1489, 0.0
        %1494 = vadd.xlane.f32.xlu0 %v1493
        %v1495 = vpop.xlane.xlu0 %1494
        %v1496 = vmul.f32 %v1492, %v1483
        %v1497 = vmul.f32 %v1495, %v1483
        %v1498 = vadd.f32 %v1496, 1e-05
        %v1499 = vadd.f32 %v1497, 1e-05
        %v1500 = vrsqrt.pop %v1498
        %v1501 = vrsqrt.pop %v1499
        %v1502 = vmul.f32 %v1486, %v1500
        %v1503 = vmul.f32 %v1487, %v1501
        %v1505 = vlaneseq
        %v1506 = vshrl.u32 %v1505, 7
        %v1507 = vsub.s32 0, %v1506
        %v1508 = vrot.slane %v1475, %v1507
        %v1510 = vmul.f32 %v1502, %v1508
        %v1511 = vmul.f32 %v1503, %v1508
        %v1513 = vlaneseq
        %v1514 = vshrl.u32 %v1513, 7
        %v1515 = vsub.s32 0, %v1514
        %v1516 = vrot.slane %v1476, %v1515
        %v1518 = vadd.f32 %v1510, %v1516
        %v1519 = vadd.f32 %v1511, %v1516
        %v1520 = vld [vmem:[%s10] sm:$0xf]
        %v1521 = vld [vmem:[%s10 + $0x4] sm:$0xf]
        %v1522 = vld [vmem:[%s10 + $0x8] sm:$0xf]
        %v1523 = vld [vmem:[%s10 + $0xc] sm:$0xf]
        %v1524 = vpack.c.bf16 %v1519, %v1518
        %v1525 = vld [vmem:[%s11] sm:$0x1]
        %v1527 = vlaneseq
        %v1528 = vshrl.u32 %v1527, 7
        %v1529 = vsub.s32 0, %v1528
        %v1530 = vrot.slane %v1525, %v1529
        %v1536 = vunpack.c.l.b16 %v1520
        %v1537 = vunpack.c.l.b16 %v1521
        %v1538 = vunpack.c.l.b16 %v1522
        %v1539 = vunpack.c.l.b16 %v1523
        %v1540 = vpack.c.b16 %v1537, %v1536
        %v1541 = vpack.c.b16 %v1539, %v1538
        %v1545 = vsel %vm835, %v1524, 0
        %1547 = vmatprep.subr.bf16.mxu0 0
        %1548 = vmatpush1.bf16.msra.mxu0 %v1540
        %1549 = vmatprep.subr.bf16.mxu0 0
        %1550 = vmatpush1.bf16.msra.mxu0 %v1541
        %1551 = vmatprep.subr.bf16.mxu0 0
        %1552 = vmatpush1.bf16.msra.mxu0 0
        %1553 = vmatprep.subr.bf16.mxu0 0
        %1554 = vmatpush1.bf16.msra.mxu0 0
        %1555 = vmatprep.subr.bf16.mxu0 0
        %1556 = vmatpush1.bf16.msra.mxu0 0
        %1557 = vmatprep.subr.bf16.mxu0 0
        %1558 = vmatpush1.bf16.msra.mxu0 0
        %1559 = vmatprep.subr.bf16.mxu0 0
        %1560 = vmatpush1.bf16.msra.mxu0 0
        %1561 = vmatprep.subr.bf16.mxu0 0
        %1562 = vmatpush1.bf16.msra.mxu0 0
        %1563 = vmatprep.subr.bf16.mxu0 0
        %1564 = vmatpush1.bf16.msra.mxu0 0
        %1565 = vmatprep.subr.bf16.mxu0 0
        %1566 = vmatpush1.bf16.msra.mxu0 0
        %1567 = vmatprep.subr.bf16.mxu0 0
        %1568 = vmatpush1.bf16.msra.mxu0 0
        %1569 = vmatprep.subr.bf16.mxu0 0
        %1570 = vmatpush1.bf16.msra.mxu0 0
        %1571 = vmatprep.subr.bf16.mxu0 0
        %1572 = vmatpush1.bf16.msra.mxu0 0
        %1573 = vmatprep.subr.bf16.mxu0 0
        %1574 = vmatpush1.bf16.msra.mxu0 0
        %1575 = vmatprep.subr.bf16.mxu0 0
        %1576 = vmatpush1.bf16.msra.mxu0 0
        %1577 = vmatprep.subr.bf16.mxu0 0
        %1578 = vmatpush1.bf16.msra.mxu0 0
        %1579 = vmatprep.mubr.bf16.mxu0 0
        %1580 = vmatmul.mubr.bf16.gmra.mrb[0].mxu0 %v1545
        %v1581 = vpop.f32.mrb[0].mxu0
        %v1582 = vadd.f32 %v1530, %v1581
        %v1583 = vpop.f32.mrb[0].mxu0
        %v1584 = vpop.f32.mrb[0].mxu0
        %v1585 = vadd.f32 %v1530, %v1584
        %v1586 = vpop.f32.mrb[0].mxu0
        %1587 = vdwg.mxu0
        %v1588 = vmax.f32 %v1582, 0.0
        %v1589 = vmax.f32 %v1585, 0.0
        %v1590 = vld [vmem:[%s12] sm:$0xf]
        %v1591 = vld [vmem:[%s12 + $0x4] sm:$0xf]
        %v1592 = vld [vmem:[%s12 + $0x8] sm:$0xf]
        %v1593 = vld [vmem:[%s12 + $0xc] sm:$0xf]
        %v1594 = vld [vmem:[%s12 + $0x10] sm:$0xf]
        %v1595 = vld [vmem:[%s12 + $0x14] sm:$0xf]
        %v1596 = vld [vmem:[%s12 + $0x18] sm:$0xf]
        %v1597 = vld [vmem:[%s12 + $0x1c] sm:$0xf]
        %v1598 = vpack.c.bf16 %v1589, %v1588
        %v1599 = vld [vmem:[%s13] sm:$0x1]
        %v1601 = vlaneseq
        %v1602 = vshrl.u32 %v1601, 7
        %v1603 = vsub.s32 0, %v1602
        %v1604 = vrot.slane %v1599, %v1603
        %v1614 = vunpack.c.l.b16 %v1590
        %v1615 = vunpack.c.l.b16 %v1591
        %v1616 = vunpack.c.l.b16 %v1592
        %v1617 = vunpack.c.l.b16 %v1593
        %v1618 = vunpack.c.l.b16 %v1594
        %v1619 = vunpack.c.l.b16 %v1595
        %v1620 = vunpack.c.l.b16 %v1596
        %v1621 = vunpack.c.l.b16 %v1597
        %v1622 = vpack.c.b16 %v1615, %v1614
        %v1623 = vpack.c.b16 %v1617, %v1616
        %v1624 = vpack.c.b16 %v1619, %v1618
        %v1625 = vpack.c.b16 %v1621, %v1620
        %v1631 = vsel %vm762, %v1598, 0
        %1633 = vmatprep.subr.bf16.mxu0 0
        %1634 = vmatpush1.bf16.msra.mxu0 %v1622
        %1635 = vmatprep.subr.bf16.mxu0 0
        %1636 = vmatpush1.bf16.msra.mxu0 %v1623
        %1637 = vmatprep.subr.bf16.mxu0 0
        %1638 = vmatpush1.bf16.msra.mxu0 %v1624
        %1639 = vmatprep.subr.bf16.mxu0 0
        %1640 = vmatpush1.bf16.msra.mxu0 %v1625
        %1641 = vmatprep.subr.bf16.mxu0 0
        %1642 = vmatpush1.bf16.msra.mxu0 0
        %1643 = vmatprep.subr.bf16.mxu0 0
        %1644 = vmatpush1.bf16.msra.mxu0 0
        %1645 = vmatprep.subr.bf16.mxu0 0
        %1646 = vmatpush1.bf16.msra.mxu0 0
        %1647 = vmatprep.subr.bf16.mxu0 0
        %1648 = vmatpush1.bf16.msra.mxu0 0
        %1649 = vmatprep.subr.bf16.mxu0 0
        %1650 = vmatpush1.bf16.msra.mxu0 0
        %1651 = vmatprep.subr.bf16.mxu0 0
        %1652 = vmatpush1.bf16.msra.mxu0 0
        %1653 = vmatprep.subr.bf16.mxu0 0
        %1654 = vmatpush1.bf16.msra.mxu0 0
        %1655 = vmatprep.subr.bf16.mxu0 0
        %1656 = vmatpush1.bf16.msra.mxu0 0
        %1657 = vmatprep.subr.bf16.mxu0 0
        %1658 = vmatpush1.bf16.msra.mxu0 0
        %1659 = vmatprep.subr.bf16.mxu0 0
        %1660 = vmatpush1.bf16.msra.mxu0 0
        %1661 = vmatprep.subr.bf16.mxu0 0
        %1662 = vmatpush1.bf16.msra.mxu0 0
        %1663 = vmatprep.subr.bf16.mxu0 0
        %1664 = vmatpush1.bf16.msra.mxu0 0
        %1665 = vmatprep.mubr.bf16.mxu0 0
        %1666 = vmatmul.mubr.bf16.gmra.mrb[0].mxu0 %v1631
        %v1667 = vpop.f32.mrb[0].mxu0
        %v1668 = vadd.f32 %v1604, %v1667
        %v1669 = vpop.f32.mrb[0].mxu0
        %v1670 = vpop.f32.mrb[0].mxu0
        %v1671 = vadd.f32 %v1604, %v1670
        %v1672 = vpop.f32.mrb[0].mxu0
        %1673 = vdwg.mxu0
        %v1674 = vadd.f32 %v1518, %v1668
        %v1675 = vadd.f32 %v1519, %v1671
        %v1676 = vld [vmem:[%s14] sm:$0x1]
        %v1677 = vld [vmem:[%s15] sm:$0x1]
        %v1678 = vsel %vm835, %v1674, 0.0
        %1679 = vadd.xlane.f32.xlu0 %v1678
        %v1680 = vpop.xlane.xlu0 %1679
        %v1681 = vsel %vm835, %v1675, 0.0
        %1682 = vadd.xlane.f32.xlu0 %v1681
        %v1683 = vpop.xlane.xlu0 %1682
        %v1684 = vmul.f32 %v1680, %v1483
        %v1685 = vmul.f32 %v1683, %v1483
        %v1686 = vsub.f32 %v1674, %v1684
        %v1687 = vsub.f32 %v1675, %v1685
        %v1688 = vmul.f32 %v1686, %v1686
        %v1689 = vmul.f32 %v1687, %v1687
        %v1690 = vsel %vm835, %v1688, 0.0
        %1691 = vadd.xlane.f32.xlu0 %v1690
        %v1692 = vpop.xlane.xlu0 %1691
        %v1693 = vsel %vm835, %v1689, 0.0
        %1694 = vadd.xlane.f32.xlu0 %v1693
        %v1695 = vpop.xlane.xlu0 %1694
        %v1696 = vmul.f32 %v1692, %v1483
        %v1697 = vmul.f32 %v1695, %v1483
        %v1698 = vadd.f32 %v1696, 1e-05
        %v1699 = vadd.f32 %v1697, 1e-05
        %v1700 = vrsqrt.pop %v1698
        %v1701 = vrsqrt.pop %v1699
        %v1702 = vmul.f32 %v1686, %v1700
        %v1703 = vmul.f32 %v1687, %v1701
        %v1705 = vlaneseq
        %v1706 = vshrl.u32 %v1705, 7
        %v1707 = vsub.s32 0, %v1706
        %v1708 = vrot.slane %v1676, %v1707
        %v1710 = vmul.f32 %v1702, %v1708
        %v1711 = vmul.f32 %v1703, %v1708
        %v1713 = vlaneseq
        %v1714 = vshrl.u32 %v1713, 7
        %v1715 = vsub.s32 0, %v1714
        %v1716 = vrot.slane %v1677, %v1715
        %v1718 = vadd.f32 %v1710, %v1716
        %v1719 = vadd.f32 %v1711, %v1716
        %s1720 = scalar_lea.vmem %s4, 16
        %v1721 = vld [vmem:[%s1720] sm:$0xf]
        %v1722 = vld [vmem:[%s1720 + $0x4] sm:$0xf]
        %v1723 = vld [vmem:[%s1720 + $0x8] sm:$0xf]
        %v1724 = vld [vmem:[%s1720 + $0xc] sm:$0xf]
        %v1725 = vpack.c.bf16 %v1719, %v1718
        %s1726 = scalar_lea.vmem %s5, 1
        %v1727 = vld [vmem:[%s1726] sm:$0x1]
        %v1729 = vlaneseq
        %v1730 = vshrl.u32 %v1729, 7
        %v1731 = vsub.s32 0, %v1730
        %v1732 = vrot.slane %v1727, %v1731
        %v1738 = vunpack.c.l.b16 %v1721
        %v1739 = vunpack.c.l.b16 %v1722
        %v1740 = vunpack.c.l.b16 %v1723
        %v1741 = vunpack.c.l.b16 %v1724
        %v1742 = vpack.c.b16 %v1739, %v1738
        %v1743 = vpack.c.b16 %v1741, %v1740
        %v1747 = vsel %vm835, %v1725, 0
        %1749 = vmatprep.subr.bf16.mxu0 0
        %1750 = vmatpush1.bf16.msra.mxu0 %v1742
        %1751 = vmatprep.subr.bf16.mxu0 0
        %1752 = vmatpush1.bf16.msra.mxu0 %v1743
        %1753 = vmatprep.subr.bf16.mxu0 0
        %1754 = vmatpush1.bf16.msra.mxu0 0
        %1755 = vmatprep.subr.bf16.mxu0 0
        %1756 = vmatpush1.bf16.msra.mxu0 0
        %1757 = vmatprep.subr.bf16.mxu0 0
        %1758 = vmatpush1.bf16.msra.mxu0 0
        %1759 = vmatprep.subr.bf16.mxu0 0
        %1760 = vmatpush1.bf16.msra.mxu0 0
        %1761 = vmatprep.subr.bf16.mxu0 0
        %1762 = vmatpush1.bf16.msra.mxu0 0
        %1763 = vmatprep.subr.bf16.mxu0 0
        %1764 = vmatpush1.bf16.msra.mxu0 0
        %1765 = vmatprep.subr.bf16.mxu0 0
        %1766 = vmatpush1.bf16.msra.mxu0 0
        %1767 = vmatprep.subr.bf16.mxu0 0
        %1768 = vmatpush1.bf16.msra.mxu0 0
        %1769 = vmatprep.subr.bf16.mxu0 0
        %1770 = vmatpush1.bf16.msra.mxu0 0
        %1771 = vmatprep.subr.bf16.mxu0 0
        %1772 = vmatpush1.bf16.msra.mxu0 0
        %1773 = vmatprep.subr.bf16.mxu0 0
        %1774 = vmatpush1.bf16.msra.mxu0 0
        %1775 = vmatprep.subr.bf16.mxu0 0
        %1776 = vmatpush1.bf16.msra.mxu0 0
        %1777 = vmatprep.subr.bf16.mxu0 0
        %1778 = vmatpush1.bf16.msra.mxu0 0
        %1779 = vmatprep.subr.bf16.mxu0 0
        %1780 = vmatpush1.bf16.msra.mxu0 0
        %1781 = vmatprep.mubr.bf16.mxu0 0
        %1782 = vmatmul.mubr.bf16.gmra.mrb[0].mxu0 %v1747
        %v1783 = vpop.f32.mrb[0].mxu0
        %v1784 = vadd.f32 %v1732, %v1783
        %v1785 = vpop.f32.mrb[0].mxu0
        %v1786 = vpop.f32.mrb[0].mxu0
        %v1787 = vadd.f32 %v1732, %v1786
        %v1788 = vpop.f32.mrb[0].mxu0
        %1789 = vdwg.mxu0
        %v1790 = vpack.c.bf16 %v1787, %v1784
        %1792 = vrot.lane.b32.xlu0 %v1790, 120
        %v1793 = vpop.permute.xlu0 %1792
        %1794 = vrot.lane.b32.xlu0 %v1790, 112
        %v1795 = vpop.permute.xlu0 %1794
        %1796 = vrot.lane.b32.xlu0 %v1790, 104
        %v1797 = vpop.permute.xlu0 %1796
        %1798 = vrot.lane.b32.xlu0 %v1790, 96
        %v1799 = vpop.permute.xlu0 %1798
        %v1801 = vsel %vm890, %v1790, 0
        %v1804 = vsel %vm890, %v1799, 0
        %1806 = vmatprep.subr.bf16.mxu0 0
        %1807 = vmatpush1.bf16.xpose.msra.mxu0 %v1804
        %1808 = vmatprep.subr.bf16.mxu0 0
        %1809 = vmatpush1.bf16.xpose.msra.mxu0 0
        %1810 = vmatprep.subr.bf16.mxu0 0
        %1811 = vmatpush1.bf16.xpose.msra.mxu0 0
        %1812 = vmatprep.subr.bf16.mxu0 0
        %1813 = vmatpush1.bf16.xpose.msra.mxu0 0
        %1814 = vmatprep.subr.bf16.mxu0 0
        %1815 = vmatpush1.bf16.xpose.msra.mxu0 0
        %1816 = vmatprep.subr.bf16.mxu0 0
        %1817 = vmatpush1.bf16.xpose.msra.mxu0 0
        %1818 = vmatprep.subr.bf16.mxu0 0
        %1819 = vmatpush1.bf16.xpose.msra.mxu0 0
        %1820 = vmatprep.subr.bf16.mxu0 0
        %1821 = vmatpush1.bf16.xpose.msra.mxu0 0
        %1822 = vmatprep.subr.bf16.mxu0 0
        %1823 = vmatpush1.bf16.xpose.msra.mxu0 0
        %1824 = vmatprep.subr.bf16.mxu0 0
        %1825 = vmatpush1.bf16.xpose.msra.mxu0 0
        %1826 = vmatprep.subr.bf16.mxu0 0
        %1827 = vmatpush1.bf16.xpose.msra.mxu0 0
        %1828 = vmatprep.subr.bf16.mxu0 0
        %1829 = vmatpush1.bf16.xpose.msra.mxu0 0
        %1830 = vmatprep.subr.bf16.mxu0 0
        %1831 = vmatpush1.bf16.xpose.msra.mxu0 0
        %1832 = vmatprep.subr.bf16.mxu0 0
        %1833 = vmatpush1.bf16.xpose.msra.mxu0 0
        %1834 = vmatprep.subr.bf16.mxu0 0
        %1835 = vmatpush1.bf16.xpose.msra.mxu0 0
        %1836 = vmatprep.subr.bf16.mxu0 0
        %1837 = vmatpush1.bf16.xpose.msra.mxu0 0
        %1838 = vmatprep.mubr.bf16.mxu0 0
        %1839 = vmatmul.mubr.bf16.gmra.mrb[0].mxu0 %v1801
        %v1840 = vpop.f32.mrb[0].mxu0
        %v1841 = vadd.f32 0.0, %v1840
        %v1842 = vpop.f32.mrb[0].mxu0
        %v1843 = vpop.f32.mrb[0].mxu0
        %v1844 = vadd.f32 0.0, %v1843
        %v1845 = vpop.f32.mrb[0].mxu0
        %1846 = vdwg.mxu0
        %1847 = vrot.lane.b32.xlu0 %v1793, 96
        %v1848 = vpop.permute.xlu0 %1847
        %v1850 = vsel %vm890, %v1793, 0
        %v1853 = vsel %vm890, %v1848, 0
        %1855 = vmatprep.subr.bf16.mxu0 0
        %1856 = vmatpush1.bf16.xpose.msra.mxu0 %v1853
        %1857 = vmatprep.subr.bf16.mxu0 0
        %1858 = vmatpush1.bf16.xpose.msra.mxu0 0
        %1859 = vmatprep.subr.bf16.mxu0 0
        %1860 = vmatpush1.bf16.xpose.msra.mxu0 0
        %1861 = vmatprep.subr.bf16.mxu0 0
        %1862 = vmatpush1.bf16.xpose.msra.mxu0 0
        %1863 = vmatprep.subr.bf16.mxu0 0
        %1864 = vmatpush1.bf16.xpose.msra.mxu0 0
        %1865 = vmatprep.subr.bf16.mxu0 0
        %1866 = vmatpush1.bf16.xpose.msra.mxu0 0
        %1867 = vmatprep.subr.bf16.mxu0 0
        %1868 = vmatpush1.bf16.xpose.msra.mxu0 0
        %1869 = vmatprep.subr.bf16.mxu0 0
        %1870 = vmatpush1.bf16.xpose.msra.mxu0 0
        %1871 = vmatprep.subr.bf16.mxu0 0
        %1872 = vmatpush1.bf16.xpose.msra.mxu0 0
        %1873 = vmatprep.subr.bf16.mxu0 0
        %1874 = vmatpush1.bf16.xpose.msra.mxu0 0
        %1875 = vmatprep.subr.bf16.mxu0 0
        %1876 = vmatpush1.bf16.xpose.msra.mxu0 0
        %1877 = vmatprep.subr.bf16.mxu0 0
        %1878 = vmatpush1.bf16.xpose.msra.mxu0 0
        %1879 = vmatprep.subr.bf16.mxu0 0
        %1880 = vmatpush1.bf16.xpose.msra.mxu0 0
        %1881 = vmatprep.subr.bf16.mxu0 0
        %1882 = vmatpush1.bf16.xpose.msra.mxu0 0
        %1883 = vmatprep.subr.bf16.mxu0 0
        %1884 = vmatpush1.bf16.xpose.msra.mxu0 0
        %1885 = vmatprep.subr.bf16.mxu0 0
        %1886 = vmatpush1.bf16.xpose.msra.mxu0 0
        %1887 = vmatprep.mubr.bf16.mxu0 0
        %1888 = vmatmul.mubr.bf16.gmra.mrb[0].mxu0 %v1850
        %v1889 = vpop.f32.mrb[0].mxu0
        %v1890 = vadd.f32 0.0, %v1889
        %v1891 = vpop.f32.mrb[0].mxu0
        %v1892 = vpop.f32.mrb[0].mxu0
        %v1893 = vadd.f32 0.0, %v1892
        %v1894 = vpop.f32.mrb[0].mxu0
        %1895 = vdwg.mxu0
        %1896 = vrot.lane.b32.xlu0 %v1795, 96
        %v1897 = vpop.permute.xlu0 %1896
        %v1899 = vsel %vm890, %v1795, 0
        %v1902 = vsel %vm890, %v1897, 0
        %1904 = vmatprep.subr.bf16.mxu0 0
        %1905 = vmatpush1.bf16.xpose.msra.mxu0 %v1902
        %1906 = vmatprep.subr.bf16.mxu0 0
        %1907 = vmatpush1.bf16.xpose.msra.mxu0 0
        %1908 = vmatprep.subr.bf16.mxu0 0
        %1909 = vmatpush1.bf16.xpose.msra.mxu0 0
        %1910 = vmatprep.subr.bf16.mxu0 0
        %1911 = vmatpush1.bf16.xpose.msra.mxu0 0
        %1912 = vmatprep.subr.bf16.mxu0 0
        %1913 = vmatpush1.bf16.xpose.msra.mxu0 0
        %1914 = vmatprep.subr.bf16.mxu0 0
        %1915 = vmatpush1.bf16.xpose.msra.mxu0 0
        %1916 = vmatprep.subr.bf16.mxu0 0
        %1917 = vmatpush1.bf16.xpose.msra.mxu0 0
        %1918 = vmatprep.subr.bf16.mxu0 0
        %1919 = vmatpush1.bf16.xpose.msra.mxu0 0
        %1920 = vmatprep.subr.bf16.mxu0 0
        %1921 = vmatpush1.bf16.xpose.msra.mxu0 0
        %1922 = vmatprep.subr.bf16.mxu0 0
        %1923 = vmatpush1.bf16.xpose.msra.mxu0 0
        %1924 = vmatprep.subr.bf16.mxu0 0
        %1925 = vmatpush1.bf16.xpose.msra.mxu0 0
        %1926 = vmatprep.subr.bf16.mxu0 0
        %1927 = vmatpush1.bf16.xpose.msra.mxu0 0
        %1928 = vmatprep.subr.bf16.mxu0 0
        %1929 = vmatpush1.bf16.xpose.msra.mxu0 0
        %1930 = vmatprep.subr.bf16.mxu0 0
        %1931 = vmatpush1.bf16.xpose.msra.mxu0 0
        %1932 = vmatprep.subr.bf16.mxu0 0
        %1933 = vmatpush1.bf16.xpose.msra.mxu0 0
        %1934 = vmatprep.subr.bf16.mxu0 0
        %1935 = vmatpush1.bf16.xpose.msra.mxu0 0
        %1936 = vmatprep.mubr.bf16.mxu0 0
        %1937 = vmatmul.mubr.bf16.gmra.mrb[0].mxu0 %v1899
        %v1938 = vpop.f32.mrb[0].mxu0
        %v1939 = vadd.f32 0.0, %v1938
        %v1940 = vpop.f32.mrb[0].mxu0
        %v1941 = vpop.f32.mrb[0].mxu0
        %v1942 = vadd.f32 0.0, %v1941
        %v1943 = vpop.f32.mrb[0].mxu0
        %1944 = vdwg.mxu0
        %1945 = vrot.lane.b32.xlu0 %v1797, 96
        %v1946 = vpop.permute.xlu0 %1945
        %v1948 = vsel %vm890, %v1797, 0
        %v1951 = vsel %vm890, %v1946, 0
        %1953 = vmatprep.subr.bf16.mxu0 0
        %1954 = vmatpush1.bf16.xpose.msra.mxu0 %v1951
        %1955 = vmatprep.subr.bf16.mxu0 0
        %1956 = vmatpush1.bf16.xpose.msra.mxu0 0
        %1957 = vmatprep.subr.bf16.mxu0 0
        %1958 = vmatpush1.bf16.xpose.msra.mxu0 0
        %1959 = vmatprep.subr.bf16.mxu0 0
        %1960 = vmatpush1.bf16.xpose.msra.mxu0 0
        %1961 = vmatprep.subr.bf16.mxu0 0
        %1962 = vmatpush1.bf16.xpose.msra.mxu0 0
        %1963 = vmatprep.subr.bf16.mxu0 0
        %1964 = vmatpush1.bf16.xpose.msra.mxu0 0
        %1965 = vmatprep.subr.bf16.mxu0 0
        %1966 = vmatpush1.bf16.xpose.msra.mxu0 0
        %1967 = vmatprep.subr.bf16.mxu0 0
        %1968 = vmatpush1.bf16.xpose.msra.mxu0 0
        %1969 = vmatprep.subr.bf16.mxu0 0
        %1970 = vmatpush1.bf16.xpose.msra.mxu0 0
        %1971 = vmatprep.subr.bf16.mxu0 0
        %1972 = vmatpush1.bf16.xpose.msra.mxu0 0
        %1973 = vmatprep.subr.bf16.mxu0 0
        %1974 = vmatpush1.bf16.xpose.msra.mxu0 0
        %1975 = vmatprep.subr.bf16.mxu0 0
        %1976 = vmatpush1.bf16.xpose.msra.mxu0 0
        %1977 = vmatprep.subr.bf16.mxu0 0
        %1978 = vmatpush1.bf16.xpose.msra.mxu0 0
        %1979 = vmatprep.subr.bf16.mxu0 0
        %1980 = vmatpush1.bf16.xpose.msra.mxu0 0
        %1981 = vmatprep.subr.bf16.mxu0 0
        %1982 = vmatpush1.bf16.xpose.msra.mxu0 0
        %1983 = vmatprep.subr.bf16.mxu0 0
        %1984 = vmatpush1.bf16.xpose.msra.mxu0 0
        %1985 = vmatprep.mubr.bf16.mxu0 0
        %1986 = vmatmul.mubr.bf16.gmra.mrb[0].mxu0 %v1948
        %v1987 = vpop.f32.mrb[0].mxu0
        %v1988 = vadd.f32 0.0, %v1987
        %v1989 = vpop.f32.mrb[0].mxu0
        %v1990 = vpop.f32.mrb[0].mxu0
        %v1991 = vadd.f32 0.0, %v1990
        %v1992 = vpop.f32.mrb[0].mxu0
        %1993 = vdwg.mxu0
        %v1994 = vmul.f32 %v1841, 0.35355338
        %v1995 = vmul.f32 %v1844, 0.35355338
        %v1996 = vmul.f32 %v1890, 0.35355338
        %v1997 = vmul.f32 %v1893, 0.35355338
        %v1998 = vmul.f32 %v1939, 0.35355338
        %v1999 = vmul.f32 %v1942, 0.35355338
        %v2000 = vmul.f32 %v1988, 0.35355338
        %v2001 = vmul.f32 %v1991, 0.35355338
        %v2002 = vsel %vm1093, %v1994, -inf
        %2003 = vmax.xlane.f32.xlu0 %v2002
        %v2004 = vpop.xlane.xlu0 %2003
        %v2005 = vsel %vm1093, %v1995, -inf
        %2006 = vmax.xlane.f32.xlu0 %v2005
        %v2007 = vpop.xlane.xlu0 %2006
        %v2008 = vsel %vm1093, %v1996, -inf
        %2009 = vmax.xlane.f32.xlu0 %v2008
        %v2010 = vpop.xlane.xlu0 %2009
        %v2011 = vsel %vm1093, %v1997, -inf
        %2012 = vmax.xlane.f32.xlu0 %v2011
        %v2013 = vpop.xlane.xlu0 %2012
        %v2014 = vsel %vm1093, %v1998, -inf
        %2015 = vmax.xlane.f32.xlu0 %v2014
        %v2016 = vpop.xlane.xlu0 %2015
        %v2017 = vsel %vm1093, %v1999, -inf
        %2018 = vmax.xlane.f32.xlu0 %v2017
        %v2019 = vpop.xlane.xlu0 %2018
        %v2020 = vsel %vm1093, %v2000, -inf
        %2021 = vmax.xlane.f32.xlu0 %v2020
        %v2022 = vpop.xlane.xlu0 %2021
        %v2023 = vsel %vm1093, %v2001, -inf
        %2024 = vmax.xlane.f32.xlu0 %v2023
        %v2025 = vpop.xlane.xlu0 %2024
        %v2026 = vsub.f32 %v1994, %v2004
        %v2027 = vsub.f32 %v1995, %v2007
        %v2028 = vsub.f32 %v1996, %v2010
        %v2029 = vsub.f32 %v1997, %v2013
        %v2030 = vsub.f32 %v1998, %v2016
        %v2031 = vsub.f32 %v1999, %v2019
        %v2032 = vsub.f32 %v2000, %v2022
        %v2033 = vsub.f32 %v2001, %v2025
        %v2034 = vmul.f32 %v2026, 1.442695
        %v2035 = vpow.pop %v2034
        %v2036 = vmul.f32 %v2027, 1.442695
        %v2037 = vpow.pop %v2036
        %v2038 = vmul.f32 %v2028, 1.442695
        %v2039 = vpow.pop %v2038
        %v2040 = vmul.f32 %v2029, 1.442695
        %v2041 = vpow.pop %v2040
        %v2042 = vmul.f32 %v2030, 1.442695
        %v2043 = vpow.pop %v2042
        %v2044 = vmul.f32 %v2031, 1.442695
        %v2045 = vpow.pop %v2044
        %v2046 = vmul.f32 %v2032, 1.442695
        %v2047 = vpow.pop %v2046
        %v2048 = vmul.f32 %v2033, 1.442695
        %v2049 = vpow.pop %v2048
        %v2050 = vsel %vm1093, %v2035, 0.0
        %2051 = vadd.xlane.f32.xlu0 %v2050
        %v2052 = vpop.xlane.xlu0 %2051
        %v2053 = vsel %vm1093, %v2037, 0.0
        %2054 = vadd.xlane.f32.xlu0 %v2053
        %v2055 = vpop.xlane.xlu0 %2054
        %v2056 = vsel %vm1093, %v2039, 0.0
        %2057 = vadd.xlane.f32.xlu0 %v2056
        %v2058 = vpop.xlane.xlu0 %2057
        %v2059 = vsel %vm1093, %v2041, 0.0
        %2060 = vadd.xlane.f32.xlu0 %v2059
        %v2061 = vpop.xlane.xlu0 %2060
        %v2062 = vsel %vm1093, %v2043, 0.0
        %2063 = vadd.xlane.f32.xlu0 %v2062
        %v2064 = vpop.xlane.xlu0 %2063
        %v2065 = vsel %vm1093, %v2045, 0.0
        %2066 = vadd.xlane.f32.xlu0 %v2065
        %v2067 = vpop.xlane.xlu0 %2066
        %v2068 = vsel %vm1093, %v2047, 0.0
        %2069 = vadd.xlane.f32.xlu0 %v2068
        %v2070 = vpop.xlane.xlu0 %2069
        %v2071 = vsel %vm1093, %v2049, 0.0
        %2072 = vadd.xlane.f32.xlu0 %v2071
        %v2073 = vpop.xlane.xlu0 %2072
        %v2074 = vrcp.pop %v2052
        %v2075 = vmul.f32 %v2035, %v2074
        %v2076 = vrcp.pop %v2055
        %v2077 = vmul.f32 %v2037, %v2076
        %v2078 = vrcp.pop %v2058
        %v2079 = vmul.f32 %v2039, %v2078
        %v2080 = vrcp.pop %v2061
        %v2081 = vmul.f32 %v2041, %v2080
        %v2082 = vrcp.pop %v2064
        %v2083 = vmul.f32 %v2043, %v2082
        %v2084 = vrcp.pop %v2067
        %v2085 = vmul.f32 %v2045, %v2084
        %v2086 = vrcp.pop %v2070
        %v2087 = vmul.f32 %v2047, %v2086
        %v2088 = vrcp.pop %v2073
        %v2089 = vmul.f32 %v2049, %v2088
        %v2090 = vpack.c.bf16 %v2077, %v2075
        %v2091 = vpack.c.bf16 %v2081, %v2079
        %v2092 = vpack.c.bf16 %v2085, %v2083
        %v2093 = vpack.c.bf16 %v2089, %v2087
        %2094 = vrot.lane.b32.xlu0 %v1790, 64
        %v2095 = vpop.permute.xlu0 %2094
        %v2098 = vsel %vm1093, %v2090, 0
        %2100 = vmatprep.subr.bf16.mxu0 0
        %2101 = vmatpush1.bf16.msra.mxu0 %v2095
        %2102 = vmatprep.subr.bf16.mxu0 0
        %2103 = vmatpush1.bf16.msra.mxu0 0
        %2104 = vmatprep.subr.bf16.mxu0 0
        %2105 = vmatpush1.bf16.msra.mxu0 0
        %2106 = vmatprep.subr.bf16.mxu0 0
        %2107 = vmatpush1.bf16.msra.mxu0 0
        %2108 = vmatprep.subr.bf16.mxu0 0
        %2109 = vmatpush1.bf16.msra.mxu0 0
        %2110 = vmatprep.subr.bf16.mxu0 0
        %2111 = vmatpush1.bf16.msra.mxu0 0
        %2112 = vmatprep.subr.bf16.mxu0 0
        %2113 = vmatpush1.bf16.msra.mxu0 0
        %2114 = vmatprep.subr.bf16.mxu0 0
        %2115 = vmatpush1.bf16.msra.mxu0 0
        %2116 = vmatprep.subr.bf16.mxu0 0
        %2117 = vmatpush1.bf16.msra.mxu0 0
        %2118 = vmatprep.subr.bf16.mxu0 0
        %2119 = vmatpush1.bf16.msra.mxu0 0
        %2120 = vmatprep.subr.bf16.mxu0 0
        %2121 = vmatpush1.bf16.msra.mxu0 0
        %2122 = vmatprep.subr.bf16.mxu0 0
        %2123 = vmatpush1.bf16.msra.mxu0 0
        %2124 = vmatprep.subr.bf16.mxu0 0
        %2125 = vmatpush1.bf16.msra.mxu0 0
        %2126 = vmatprep.subr.bf16.mxu0 0
        %2127 = vmatpush1.bf16.msra.mxu0 0
        %2128 = vmatprep.subr.bf16.mxu0 0
        %2129 = vmatpush1.bf16.msra.mxu0 0
        %2130 = vmatprep.subr.bf16.mxu0 0
        %2131 = vmatpush1.bf16.msra.mxu0 0
        %2132 = vmatprep.mubr.bf16.mxu0 0
        %2133 = vmatmul.mubr.bf16.gmra.mrb[0].mxu0 %v2098
        %v2134 = vpop.f32.mrb[0].mxu0
        %v2135 = vadd.f32 0.0, %v2134
        %v2136 = vpop.f32.mrb[0].mxu0
        %v2137 = vpop.f32.mrb[0].mxu0
        %v2138 = vadd.f32 0.0, %v2137
        %v2139 = vpop.f32.mrb[0].mxu0
        %2140 = vdwg.mxu0
        %2141 = vrot.lane.b32.xlu0 %v1793, 64
        %v2142 = vpop.permute.xlu0 %2141
        %v2145 = vsel %vm1093, %v2091, 0
        %2147 = vmatprep.subr.bf16.mxu0 0
        %2148 = vmatpush1.bf16.msra.mxu0 %v2142
        %2149 = vmatprep.subr.bf16.mxu0 0
        %2150 = vmatpush1.bf16.msra.mxu0 0
        %2151 = vmatprep.subr.bf16.mxu0 0
        %2152 = vmatpush1.bf16.msra.mxu0 0
        %2153 = vmatprep.subr.bf16.mxu0 0
        %2154 = vmatpush1.bf16.msra.mxu0 0
        %2155 = vmatprep.subr.bf16.mxu0 0
        %2156 = vmatpush1.bf16.msra.mxu0 0
        %2157 = vmatprep.subr.bf16.mxu0 0
        %2158 = vmatpush1.bf16.msra.mxu0 0
        %2159 = vmatprep.subr.bf16.mxu0 0
        %2160 = vmatpush1.bf16.msra.mxu0 0
        %2161 = vmatprep.subr.bf16.mxu0 0
        %2162 = vmatpush1.bf16.msra.mxu0 0
        %2163 = vmatprep.subr.bf16.mxu0 0
        %2164 = vmatpush1.bf16.msra.mxu0 0
        %2165 = vmatprep.subr.bf16.mxu0 0
        %2166 = vmatpush1.bf16.msra.mxu0 0
        %2167 = vmatprep.subr.bf16.mxu0 0
        %2168 = vmatpush1.bf16.msra.mxu0 0
        %2169 = vmatprep.subr.bf16.mxu0 0
        %2170 = vmatpush1.bf16.msra.mxu0 0
        %2171 = vmatprep.subr.bf16.mxu0 0
        %2172 = vmatpush1.bf16.msra.mxu0 0
        %2173 = vmatprep.subr.bf16.mxu0 0
        %2174 = vmatpush1.bf16.msra.mxu0 0
        %2175 = vmatprep.subr.bf16.mxu0 0
        %2176 = vmatpush1.bf16.msra.mxu0 0
        %2177 = vmatprep.subr.bf16.mxu0 0
        %2178 = vmatpush1.bf16.msra.mxu0 0
        %2179 = vmatprep.mubr.bf16.mxu0 0
        %2180 = vmatmul.mubr.bf16.gmra.mrb[0].mxu0 %v2145
        %v2181 = vpop.f32.mrb[0].mxu0
        %v2182 = vadd.f32 0.0, %v2181
        %v2183 = vpop.f32.mrb[0].mxu0
        %v2184 = vpop.f32.mrb[0].mxu0
        %v2185 = vadd.f32 0.0, %v2184
        %v2186 = vpop.f32.mrb[0].mxu0
        %2187 = vdwg.mxu0
        %2188 = vrot.lane.b32.xlu0 %v1795, 64
        %v2189 = vpop.permute.xlu0 %2188
        %v2192 = vsel %vm1093, %v2092, 0
        %2194 = vmatprep.subr.bf16.mxu0 0
        %2195 = vmatpush1.bf16.msra.mxu0 %v2189
        %2196 = vmatprep.subr.bf16.mxu0 0
        %2197 = vmatpush1.bf16.msra.mxu0 0
        %2198 = vmatprep.subr.bf16.mxu0 0
        %2199 = vmatpush1.bf16.msra.mxu0 0
        %2200 = vmatprep.subr.bf16.mxu0 0
        %2201 = vmatpush1.bf16.msra.mxu0 0
        %2202 = vmatprep.subr.bf16.mxu0 0
        %2203 = vmatpush1.bf16.msra.mxu0 0
        %2204 = vmatprep.subr.bf16.mxu0 0
        %2205 = vmatpush1.bf16.msra.mxu0 0
        %2206 = vmatprep.subr.bf16.mxu0 0
        %2207 = vmatpush1.bf16.msra.mxu0 0
        %2208 = vmatprep.subr.bf16.mxu0 0
        %2209 = vmatpush1.bf16.msra.mxu0 0
        %2210 = vmatprep.subr.bf16.mxu0 0
        %2211 = vmatpush1.bf16.msra.mxu0 0
        %2212 = vmatprep.subr.bf16.mxu0 0
        %2213 = vmatpush1.bf16.msra.mxu0 0
        %2214 = vmatprep.subr.bf16.mxu0 0
        %2215 = vmatpush1.bf16.msra.mxu0 0
        %2216 = vmatprep.subr.bf16.mxu0 0
        %2217 = vmatpush1.bf16.msra.mxu0 0
        %2218 = vmatprep.subr.bf16.mxu0 0
        %2219 = vmatpush1.bf16.msra.mxu0 0
        %2220 = vmatprep.subr.bf16.mxu0 0
        %2221 = vmatpush1.bf16.msra.mxu0 0
        %2222 = vmatprep.subr.bf16.mxu0 0
        %2223 = vmatpush1.bf16.msra.mxu0 0
        %2224 = vmatprep.subr.bf16.mxu0 0
        %2225 = vmatpush1.bf16.msra.mxu0 0
        %2226 = vmatprep.mubr.bf16.mxu0 0
        %2227 = vmatmul.mubr.bf16.gmra.mrb[0].mxu0 %v2192
        %v2228 = vpop.f32.mrb[0].mxu0
        %v2229 = vadd.f32 0.0, %v2228
        %v2230 = vpop.f32.mrb[0].mxu0
        %v2231 = vpop.f32.mrb[0].mxu0
        %v2232 = vadd.f32 0.0, %v2231
        %v2233 = vpop.f32.mrb[0].mxu0
        %2234 = vdwg.mxu0
        %2235 = vrot.lane.b32.xlu0 %v1797, 64
        %v2236 = vpop.permute.xlu0 %2235
        %v2239 = vsel %vm1093, %v2093, 0
        %2241 = vmatprep.subr.bf16.mxu0 0
        %2242 = vmatpush1.bf16.msra.mxu0 %v2236
        %2243 = vmatprep.subr.bf16.mxu0 0
        %2244 = vmatpush1.bf16.msra.mxu0 0
        %2245 = vmatprep.subr.bf16.mxu0 0
        %2246 = vmatpush1.bf16.msra.mxu0 0
        %2247 = vmatprep.subr.bf16.mxu0 0
        %2248 = vmatpush1.bf16.msra.mxu0 0
        %2249 = vmatprep.subr.bf16.mxu0 0
        %2250 = vmatpush1.bf16.msra.mxu0 0
        %2251 = vmatprep.subr.bf16.mxu0 0
        %2252 = vmatpush1.bf16.msra.mxu0 0
        %2253 = vmatprep.subr.bf16.mxu0 0
        %2254 = vmatpush1.bf16.msra.mxu0 0
        %2255 = vmatprep.subr.bf16.mxu0 0
        %2256 = vmatpush1.bf16.msra.mxu0 0
        %2257 = vmatprep.subr.bf16.mxu0 0
        %2258 = vmatpush1.bf16.msra.mxu0 0
        %2259 = vmatprep.subr.bf16.mxu0 0
        %2260 = vmatpush1.bf16.msra.mxu0 0
        %2261 = vmatprep.subr.bf16.mxu0 0
        %2262 = vmatpush1.bf16.msra.mxu0 0
        %2263 = vmatprep.subr.bf16.mxu0 0
        %2264 = vmatpush1.bf16.msra.mxu0 0
        %2265 = vmatprep.subr.bf16.mxu0 0
        %2266 = vmatpush1.bf16.msra.mxu0 0
        %2267 = vmatprep.subr.bf16.mxu0 0
        %2268 = vmatpush1.bf16.msra.mxu0 0
        %2269 = vmatprep.subr.bf16.mxu0 0
        %2270 = vmatpush1.bf16.msra.mxu0 0
        %2271 = vmatprep.subr.bf16.mxu0 0
        %2272 = vmatpush1.bf16.msra.mxu0 0
        %2273 = vmatprep.mubr.bf16.mxu0 0
        %2274 = vmatmul.mubr.bf16.gmra.mrb[0].mxu0 %v2239
        %v2275 = vpop.f32.mrb[0].mxu0
        %v2276 = vadd.f32 0.0, %v2275
        %v2277 = vpop.f32.mrb[0].mxu0
        %v2278 = vpop.f32.mrb[0].mxu0
        %v2279 = vadd.f32 0.0, %v2278
        %v2280 = vpop.f32.mrb[0].mxu0
        %2281 = vdwg.mxu0
        %2284 = vrot.lane.b32.xlu0 %v2182, 8
        %v2285 = vpop.permute.xlu0 %2284
        %2286 = vrot.lane.b32.xlu0 %v2185, 8
        %v2287 = vpop.permute.xlu0 %2286
        %2292 = vrot.lane.b32.xlu0 %v2229, 16
        %v2293 = vpop.permute.xlu0 %2292
        %2294 = vrot.lane.b32.xlu0 %v2232, 16
        %v2295 = vpop.permute.xlu0 %2294
        %2300 = vrot.lane.b32.xlu0 %v2276, 24
        %v2301 = vpop.permute.xlu0 %2300
        %2302 = vrot.lane.b32.xlu0 %v2279, 24
        %v2303 = vpop.permute.xlu0 %2302
        %v2306 = vsel %vm890, %v2135, %v2285
        %v2307 = vsel %vm890, %v2138, %v2287
        %v2308 = vsel %vm1093, %v2306, %v2293
        %v2309 = vsel %vm1093, %v2307, %v2295
        %v2310 = vsel %vm1402, %v2308, %v2301
        %v2311 = vsel %vm1402, %v2309, %v2303
        %s2312 = scalar_lea.vmem %s6, 16
        %v2313 = vld [vmem:[%s2312] sm:$0xf]
        %v2314 = vld [vmem:[%s2312 + $0x4] sm:$0xf]
        %v2315 = vld [vmem:[%s2312 + $0x8] sm:$0xf]
        %v2316 = vld [vmem:[%s2312 + $0xc] sm:$0xf]
        %v2317 = vpack.c.bf16 %v2311, %v2310
        %s2318 = scalar_lea.vmem %s7, 1
        %v2319 = vld [vmem:[%s2318] sm:$0x1]
        %v2321 = vlaneseq
        %v2322 = vshrl.u32 %v2321, 7
        %v2323 = vsub.s32 0, %v2322
        %v2324 = vrot.slane %v2319, %v2323
        %v2330 = vunpack.c.l.b16 %v2313
        %v2331 = vunpack.c.l.b16 %v2314
        %v2332 = vunpack.c.l.b16 %v2315
        %v2333 = vunpack.c.l.b16 %v2316
        %v2334 = vpack.c.b16 %v2331, %v2330
        %v2335 = vpack.c.b16 %v2333, %v2332
        %v2339 = vsel %vm835, %v2317, 0
        %2341 = vmatprep.subr.bf16.mxu0 0
        %2342 = vmatpush1.bf16.msra.mxu0 %v2334
        %2343 = vmatprep.subr.bf16.mxu0 0
        %2344 = vmatpush1.bf16.msra.mxu0 %v2335
        %2345 = vmatprep.subr.bf16.mxu0 0
        %2346 = vmatpush1.bf16.msra.mxu0 0
        %2347 = vmatprep.subr.bf16.mxu0 0
        %2348 = vmatpush1.bf16.msra.mxu0 0
        %2349 = vmatprep.subr.bf16.mxu0 0
        %2350 = vmatpush1.bf16.msra.mxu0 0
        %2351 = vmatprep.subr.bf16.mxu0 0
        %2352 = vmatpush1.bf16.msra.mxu0 0
        %2353 = vmatprep.subr.bf16.mxu0 0
        %2354 = vmatpush1.bf16.msra.mxu0 0
        %2355 = vmatprep.subr.bf16.mxu0 0
        %2356 = vmatpush1.bf16.msra.mxu0 0
        %2357 = vmatprep.subr.bf16.mxu0 0
        %2358 = vmatpush1.bf16.msra.mxu0 0
        %2359 = vmatprep.subr.bf16.mxu0 0
        %2360 = vmatpush1.bf16.msra.mxu0 0
        %2361 = vmatprep.subr.bf16.mxu0 0
        %2362 = vmatpush1.bf16.msra.mxu0 0
        %2363 = vmatprep.subr.bf16.mxu0 0
        %2364 = vmatpush1.bf16.msra.mxu0 0
        %2365 = vmatprep.subr.bf16.mxu0 0
        %2366 = vmatpush1.bf16.msra.mxu0 0
        %2367 = vmatprep.subr.bf16.mxu0 0
        %2368 = vmatpush1.bf16.msra.mxu0 0
        %2369 = vmatprep.subr.bf16.mxu0 0
        %2370 = vmatpush1.bf16.msra.mxu0 0
        %2371 = vmatprep.subr.bf16.mxu0 0
        %2372 = vmatpush1.bf16.msra.mxu0 0
        %2373 = vmatprep.mubr.bf16.mxu0 0
        %2374 = vmatmul.mubr.bf16.gmra.mrb[0].mxu0 %v2339
        %v2375 = vpop.f32.mrb[0].mxu0
        %v2376 = vadd.f32 %v2324, %v2375
        %v2377 = vpop.f32.mrb[0].mxu0
        %v2378 = vpop.f32.mrb[0].mxu0
        %v2379 = vadd.f32 %v2324, %v2378
        %v2380 = vpop.f32.mrb[0].mxu0
        %2381 = vdwg.mxu0
        %v2382 = vadd.f32 %v1718, %v2376
        %v2383 = vadd.f32 %v1719, %v2379
        %s2384 = scalar_lea.vmem %s8, 1
        %v2385 = vld [vmem:[%s2384] sm:$0x1]
        %s2386 = scalar_lea.vmem %s9, 1
        %v2387 = vld [vmem:[%s2386] sm:$0x1]
        %v2388 = vsel %vm835, %v2382, 0.0
        %2389 = vadd.xlane.f32.xlu0 %v2388
        %v2390 = vpop.xlane.xlu0 %2389
        %v2391 = vsel %vm835, %v2383, 0.0
        %2392 = vadd.xlane.f32.xlu0 %v2391
        %v2393 = vpop.xlane.xlu0 %2392
        %v2394 = vmul.f32 %v2390, %v1483
        %v2395 = vmul.f32 %v2393, %v1483
        %v2396 = vsub.f32 %v2382, %v2394
        %v2397 = vsub.f32 %v2383, %v2395
        %v2398 = vmul.f32 %v2396, %v2396
        %v2399 = vmul.f32 %v2397, %v2397
        %v2400 = vsel %vm835, %v2398, 0.0
        %2401 = vadd.xlane.f32.xlu0 %v2400
        %v2402 = vpop.xlane.xlu0 %2401
        %v2403 = vsel %vm835, %v2399, 0.0
        %2404 = vadd.xlane.f32.xlu0 %v2403
        %v2405 = vpop.xlane.xlu0 %2404
        %v2406 = vmul.f32 %v2402, %v1483
        %v2407 = vmul.f32 %v2405, %v1483
        %v2408 = vadd.f32 %v2406, 1e-05
        %v2409 = vadd.f32 %v2407, 1e-05
        %v2410 = vrsqrt.pop %v2408
        %v2411 = vrsqrt.pop %v2409
        %v2412 = vmul.f32 %v2396, %v2410
        %v2413 = vmul.f32 %v2397, %v2411
        %v2415 = vlaneseq
        %v2416 = vshrl.u32 %v2415, 7
        %v2417 = vsub.s32 0, %v2416
        %v2418 = vrot.slane %v2385, %v2417
        %v2420 = vmul.f32 %v2412, %v2418
        %v2421 = vmul.f32 %v2413, %v2418
        %v2423 = vlaneseq
        %v2424 = vshrl.u32 %v2423, 7
        %v2425 = vsub.s32 0, %v2424
        %v2426 = vrot.slane %v2387, %v2425
        %v2428 = vadd.f32 %v2420, %v2426
        %v2429 = vadd.f32 %v2421, %v2426
        %s2430 = scalar_lea.vmem %s10, 16
        %v2431 = vld [vmem:[%s2430] sm:$0xf]
        %v2432 = vld [vmem:[%s2430 + $0x4] sm:$0xf]
        %v2433 = vld [vmem:[%s2430 + $0x8] sm:$0xf]
        %v2434 = vld [vmem:[%s2430 + $0xc] sm:$0xf]
        %v2435 = vpack.c.bf16 %v2429, %v2428
        %s2436 = scalar_lea.vmem %s11, 1
        %v2437 = vld [vmem:[%s2436] sm:$0x1]
        %v2439 = vlaneseq
        %v2440 = vshrl.u32 %v2439, 7
        %v2441 = vsub.s32 0, %v2440
        %v2442 = vrot.slane %v2437, %v2441
        %v2448 = vunpack.c.l.b16 %v2431
        %v2449 = vunpack.c.l.b16 %v2432
        %v2450 = vunpack.c.l.b16 %v2433
        %v2451 = vunpack.c.l.b16 %v2434
        %v2452 = vpack.c.b16 %v2449, %v2448
        %v2453 = vpack.c.b16 %v2451, %v2450
        %v2457 = vsel %vm835, %v2435, 0
        %2459 = vmatprep.subr.bf16.mxu0 0
        %2460 = vmatpush1.bf16.msra.mxu0 %v2452
        %2461 = vmatprep.subr.bf16.mxu0 0
        %2462 = vmatpush1.bf16.msra.mxu0 %v2453
        %2463 = vmatprep.subr.bf16.mxu0 0
        %2464 = vmatpush1.bf16.msra.mxu0 0
        %2465 = vmatprep.subr.bf16.mxu0 0
        %2466 = vmatpush1.bf16.msra.mxu0 0
        %2467 = vmatprep.subr.bf16.mxu0 0
        %2468 = vmatpush1.bf16.msra.mxu0 0
        %2469 = vmatprep.subr.bf16.mxu0 0
        %2470 = vmatpush1.bf16.msra.mxu0 0
        %2471 = vmatprep.subr.bf16.mxu0 0
        %2472 = vmatpush1.bf16.msra.mxu0 0
        %2473 = vmatprep.subr.bf16.mxu0 0
        %2474 = vmatpush1.bf16.msra.mxu0 0
        %2475 = vmatprep.subr.bf16.mxu0 0
        %2476 = vmatpush1.bf16.msra.mxu0 0
        %2477 = vmatprep.subr.bf16.mxu0 0
        %2478 = vmatpush1.bf16.msra.mxu0 0
        %2479 = vmatprep.subr.bf16.mxu0 0
        %2480 = vmatpush1.bf16.msra.mxu0 0
        %2481 = vmatprep.subr.bf16.mxu0 0
        %2482 = vmatpush1.bf16.msra.mxu0 0
        %2483 = vmatprep.subr.bf16.mxu0 0
        %2484 = vmatpush1.bf16.msra.mxu0 0
        %2485 = vmatprep.subr.bf16.mxu0 0
        %2486 = vmatpush1.bf16.msra.mxu0 0
        %2487 = vmatprep.subr.bf16.mxu0 0
        %2488 = vmatpush1.bf16.msra.mxu0 0
        %2489 = vmatprep.subr.bf16.mxu0 0
        %2490 = vmatpush1.bf16.msra.mxu0 0
        %2491 = vmatprep.mubr.bf16.mxu0 0
        %2492 = vmatmul.mubr.bf16.gmra.mrb[0].mxu0 %v2457
        %v2493 = vpop.f32.mrb[0].mxu0
        %v2494 = vadd.f32 %v2442, %v2493
        %v2495 = vpop.f32.mrb[0].mxu0
        %v2496 = vpop.f32.mrb[0].mxu0
        %v2497 = vadd.f32 %v2442, %v2496
        %v2498 = vpop.f32.mrb[0].mxu0
        %2499 = vdwg.mxu0
        %v2500 = vmax.f32 %v2494, 0.0
        %v2501 = vmax.f32 %v2497, 0.0
        %s2502 = scalar_lea.vmem %s12, 32
        %v2503 = vld [vmem:[%s2502] sm:$0xf]
        %v2504 = vld [vmem:[%s2502 + $0x4] sm:$0xf]
        %v2505 = vld [vmem:[%s2502 + $0x8] sm:$0xf]
        %v2506 = vld [vmem:[%s2502 + $0xc] sm:$0xf]
        %v2507 = vld [vmem:[%s2502 + $0x10] sm:$0xf]
        %v2508 = vld [vmem:[%s2502 + $0x14] sm:$0xf]
        %v2509 = vld [vmem:[%s2502 + $0x18] sm:$0xf]
        %v2510 = vld [vmem:[%s2502 + $0x1c] sm:$0xf]
        %v2511 = vpack.c.bf16 %v2501, %v2500
        %s2512 = scalar_lea.vmem %s13, 1
        %v2513 = vld [vmem:[%s2512] sm:$0x1]
        %v2515 = vlaneseq
        %v2516 = vshrl.u32 %v2515, 7
        %v2517 = vsub.s32 0, %v2516
        %v2518 = vrot.slane %v2513, %v2517
        %v2528 = vunpack.c.l.b16 %v2503
        %v2529 = vunpack.c.l.b16 %v2504
        %v2530 = vunpack.c.l.b16 %v2505
        %v2531 = vunpack.c.l.b16 %v2506
        %v2532 = vunpack.c.l.b16 %v2507
        %v2533 = vunpack.c.l.b16 %v2508
        %v2534 = vunpack.c.l.b16 %v2509
        %v2535 = vunpack.c.l.b16 %v2510
        %v2536 = vpack.c.b16 %v2529, %v2528
        %v2537 = vpack.c.b16 %v2531, %v2530
        %v2538 = vpack.c.b16 %v2533, %v2532
        %v2539 = vpack.c.b16 %v2535, %v2534
        %v2545 = vsel %vm762, %v2511, 0
        %2547 = vmatprep.subr.bf16.mxu0 0
        %2548 = vmatpush1.bf16.msra.mxu0 %v2536
        %2549 = vmatprep.subr.bf16.mxu0 0
        %2550 = vmatpush1.bf16.msra.mxu0 %v2537
        %2551 = vmatprep.subr.bf16.mxu0 0
        %2552 = vmatpush1.bf16.msra.mxu0 %v2538
        %2553 = vmatprep.subr.bf16.mxu0 0
        %2554 = vmatpush1.bf16.msra.mxu0 %v2539
        %2555 = vmatprep.subr.bf16.mxu0 0
        %2556 = vmatpush1.bf16.msra.mxu0 0
        %2557 = vmatprep.subr.bf16.mxu0 0
        %2558 = vmatpush1.bf16.msra.mxu0 0
        %2559 = vmatprep.subr.bf16.mxu0 0
        %2560 = vmatpush1.bf16.msra.mxu0 0
        %2561 = vmatprep.subr.bf16.mxu0 0
        %2562 = vmatpush1.bf16.msra.mxu0 0
        %2563 = vmatprep.subr.bf16.mxu0 0
        %2564 = vmatpush1.bf16.msra.mxu0 0
        %2565 = vmatprep.subr.bf16.mxu0 0
        %2566 = vmatpush1.bf16.msra.mxu0 0
        %2567 = vmatprep.subr.bf16.mxu0 0
        %2568 = vmatpush1.bf16.msra.mxu0 0
        %2569 = vmatprep.subr.bf16.mxu0 0
        %2570 = vmatpush1.bf16.msra.mxu0 0
        %2571 = vmatprep.subr.bf16.mxu0 0
        %2572 = vmatpush1.bf16.msra.mxu0 0
        %2573 = vmatprep.subr.bf16.mxu0 0
        %2574 = vmatpush1.bf16.msra.mxu0 0
        %2575 = vmatprep.subr.bf16.mxu0 0
        %2576 = vmatpush1.bf16.msra.mxu0 0
        %2577 = vmatprep.subr.bf16.mxu0 0
        %2578 = vmatpush1.bf16.msra.mxu0 0
        %2579 = vmatprep.mubr.bf16.mxu0 0
        %2580 = vmatmul.mubr.bf16.gmra.mrb[0].mxu0 %v2545
        %v2581 = vpop.f32.mrb[0].mxu0
        %v2582 = vadd.f32 %v2518, %v2581
        %v2583 = vpop.f32.mrb[0].mxu0
        %v2584 = vpop.f32.mrb[0].mxu0
        %v2585 = vadd.f32 %v2518, %v2584
        %v2586 = vpop.f32.mrb[0].mxu0
        %2587 = vdwg.mxu0
        %v2588 = vadd.f32 %v2428, %v2582
        %v2589 = vadd.f32 %v2429, %v2585
        %s2590 = scalar_lea.vmem %s14, 1
        %v2591 = vld [vmem:[%s2590] sm:$0x1]
        %s2592 = scalar_lea.vmem %s15, 1
        %v2593 = vld [vmem:[%s2592] sm:$0x1]
        %v2594 = vsel %vm835, %v2588, 0.0
        %2595 = vadd.xlane.f32.xlu0 %v2594
        %v2596 = vpop.xlane.xlu0 %2595
        %v2597 = vsel %vm835, %v2589, 0.0
        %2598 = vadd.xlane.f32.xlu0 %v2597
        %v2599 = vpop.xlane.xlu0 %2598
        %v2600 = vmul.f32 %v2596, %v1483
        %v2601 = vmul.f32 %v2599, %v1483
        %v2602 = vsub.f32 %v2588, %v2600
        %v2603 = vsub.f32 %v2589, %v2601
        %v2604 = vmul.f32 %v2602, %v2602
        %v2605 = vmul.f32 %v2603, %v2603
        %v2606 = vsel %vm835, %v2604, 0.0
        %2607 = vadd.xlane.f32.xlu0 %v2606
        %v2608 = vpop.xlane.xlu0 %2607
        %v2609 = vsel %vm835, %v2605, 0.0
        %2610 = vadd.xlane.f32.xlu0 %v2609
        %v2611 = vpop.xlane.xlu0 %2610
        %v2612 = vmul.f32 %v2608, %v1483
        %v2613 = vmul.f32 %v2611, %v1483
        %v2614 = vadd.f32 %v2612, 1e-05
        %v2615 = vadd.f32 %v2613, 1e-05
        %v2616 = vrsqrt.pop %v2614
        %v2617 = vrsqrt.pop %v2615
        %v2618 = vmul.f32 %v2602, %v2616
        %v2619 = vmul.f32 %v2603, %v2617
        %v2621 = vlaneseq
        %v2622 = vshrl.u32 %v2621, 7
        %v2623 = vsub.s32 0, %v2622
        %v2624 = vrot.slane %v2591, %v2623
        %v2626 = vmul.f32 %v2618, %v2624
        %v2627 = vmul.f32 %v2619, %v2624
        %v2629 = vlaneseq
        %v2630 = vshrl.u32 %v2629, 7
        %v2631 = vsub.s32 0, %v2630
        %v2632 = vrot.slane %v2593, %v2631
        %v2634 = vadd.f32 %v2626, %v2632
        %v2635 = vadd.f32 %v2627, %v2632
        %s2636 = scalar_lea.vmem %s4, 32
        %v2637 = vld [vmem:[%s2636] sm:$0xf]
        %v2638 = vld [vmem:[%s2636 + $0x4] sm:$0xf]
        %v2639 = vld [vmem:[%s2636 + $0x8] sm:$0xf]
        %v2640 = vld [vmem:[%s2636 + $0xc] sm:$0xf]
        %v2641 = vpack.c.bf16 %v2635, %v2634
        %s2642 = scalar_lea.vmem %s5, 2
        %v2643 = vld [vmem:[%s2642] sm:$0x1]
        %v2645 = vlaneseq
        %v2646 = vshrl.u32 %v2645, 7
        %v2647 = vsub.s32 0, %v2646
        %v2648 = vrot.slane %v2643, %v2647
        %v2654 = vunpack.c.l.b16 %v2637
        %v2655 = vunpack.c.l.b16 %v2638
        %v2656 = vunpack.c.l.b16 %v2639
        %v2657 = vunpack.c.l.b16 %v2640
        %v2658 = vpack.c.b16 %v2655, %v2654
        %v2659 = vpack.c.b16 %v2657, %v2656
        %v2663 = vsel %vm835, %v2641, 0
        %2665 = vmatprep.subr.bf16.mxu0 0
        %2666 = vmatpush1.bf16.msra.mxu0 %v2658
        %2667 = vmatprep.subr.bf16.mxu0 0
        %2668 = vmatpush1.bf16.msra.mxu0 %v2659
        %2669 = vmatprep.subr.bf16.mxu0 0
        %2670 = vmatpush1.bf16.msra.mxu0 0
        %2671 = vmatprep.subr.bf16.mxu0 0
        %2672 = vmatpush1.bf16.msra.mxu0 0
        %2673 = vmatprep.subr.bf16.mxu0 0
        %2674 = vmatpush1.bf16.msra.mxu0 0
        %2675 = vmatprep.subr.bf16.mxu0 0
        %2676 = vmatpush1.bf16.msra.mxu0 0
        %2677 = vmatprep.subr.bf16.mxu0 0
        %2678 = vmatpush1.bf16.msra.mxu0 0
        %2679 = vmatprep.subr.bf16.mxu0 0
        %2680 = vmatpush1.bf16.msra.mxu0 0
        %2681 = vmatprep.subr.bf16.mxu0 0
        %2682 = vmatpush1.bf16.msra.mxu0 0
        %2683 = vmatprep.subr.bf16.mxu0 0
        %2684 = vmatpush1.bf16.msra.mxu0 0
        %2685 = vmatprep.subr.bf16.mxu0 0
        %2686 = vmatpush1.bf16.msra.mxu0 0
        %2687 = vmatprep.subr.bf16.mxu0 0
        %2688 = vmatpush1.bf16.msra.mxu0 0
        %2689 = vmatprep.subr.bf16.mxu0 0
        %2690 = vmatpush1.bf16.msra.mxu0 0
        %2691 = vmatprep.subr.bf16.mxu0 0
        %2692 = vmatpush1.bf16.msra.mxu0 0
        %2693 = vmatprep.subr.bf16.mxu0 0
        %2694 = vmatpush1.bf16.msra.mxu0 0
        %2695 = vmatprep.subr.bf16.mxu0 0
        %2696 = vmatpush1.bf16.msra.mxu0 0
        %2697 = vmatprep.mubr.bf16.mxu0 0
        %2698 = vmatmul.mubr.bf16.gmra.mrb[0].mxu0 %v2663
        %v2699 = vpop.f32.mrb[0].mxu0
        %v2700 = vadd.f32 %v2648, %v2699
        %v2701 = vpop.f32.mrb[0].mxu0
        %v2702 = vpop.f32.mrb[0].mxu0
        %v2703 = vadd.f32 %v2648, %v2702
        %v2704 = vpop.f32.mrb[0].mxu0
        %2705 = vdwg.mxu0
        %v2706 = vpack.c.bf16 %v2703, %v2700
        %2708 = vrot.lane.b32.xlu0 %v2706, 120
        %v2709 = vpop.permute.xlu0 %2708
        %2710 = vrot.lane.b32.xlu0 %v2706, 112
        %v2711 = vpop.permute.xlu0 %2710
        %2712 = vrot.lane.b32.xlu0 %v2706, 104
        %v2713 = vpop.permute.xlu0 %2712
        %2714 = vrot.lane.b32.xlu0 %v2706, 96
        %v2715 = vpop.permute.xlu0 %2714
        %v2717 = vsel %vm890, %v2706, 0
        %v2720 = vsel %vm890, %v2715, 0
        %2722 = vmatprep.subr.bf16.mxu0 0
        %2723 = vmatpush1.bf16.xpose.msra.mxu0 %v2720
        %2724 = vmatprep.subr.bf16.mxu0 0
        %2725 = vmatpush1.bf16.xpose.msra.mxu0 0
        %2726 = vmatprep.subr.bf16.mxu0 0
        %2727 = vmatpush1.bf16.xpose.msra.mxu0 0
        %2728 = vmatprep.subr.bf16.mxu0 0
        %2729 = vmatpush1.bf16.xpose.msra.mxu0 0
        %2730 = vmatprep.subr.bf16.mxu0 0
        %2731 = vmatpush1.bf16.xpose.msra.mxu0 0
        %2732 = vmatprep.subr.bf16.mxu0 0
        %2733 = vmatpush1.bf16.xpose.msra.mxu0 0
        %2734 = vmatprep.subr.bf16.mxu0 0
        %2735 = vmatpush1.bf16.xpose.msra.mxu0 0
        %2736 = vmatprep.subr.bf16.mxu0 0
        %2737 = vmatpush1.bf16.xpose.msra.mxu0 0
        %2738 = vmatprep.subr.bf16.mxu0 0
        %2739 = vmatpush1.bf16.xpose.msra.mxu0 0
        %2740 = vmatprep.subr.bf16.mxu0 0
        %2741 = vmatpush1.bf16.xpose.msra.mxu0 0
        %2742 = vmatprep.subr.bf16.mxu0 0
        %2743 = vmatpush1.bf16.xpose.msra.mxu0 0
        %2744 = vmatprep.subr.bf16.mxu0 0
        %2745 = vmatpush1.bf16.xpose.msra.mxu0 0
        %2746 = vmatprep.subr.bf16.mxu0 0
        %2747 = vmatpush1.bf16.xpose.msra.mxu0 0
        %2748 = vmatprep.subr.bf16.mxu0 0
        %2749 = vmatpush1.bf16.xpose.msra.mxu0 0
        %2750 = vmatprep.subr.bf16.mxu0 0
        %2751 = vmatpush1.bf16.xpose.msra.mxu0 0
        %2752 = vmatprep.subr.bf16.mxu0 0
        %2753 = vmatpush1.bf16.xpose.msra.mxu0 0
        %2754 = vmatprep.mubr.bf16.mxu0 0
        %2755 = vmatmul.mubr.bf16.gmra.mrb[0].mxu0 %v2717
        %v2756 = vpop.f32.mrb[0].mxu0
        %v2757 = vadd.f32 0.0, %v2756
        %v2758 = vpop.f32.mrb[0].mxu0
        %v2759 = vpop.f32.mrb[0].mxu0
        %v2760 = vadd.f32 0.0, %v2759
        %v2761 = vpop.f32.mrb[0].mxu0
        %2762 = vdwg.mxu0
        %2763 = vrot.lane.b32.xlu0 %v2709, 96
        %v2764 = vpop.permute.xlu0 %2763
        %v2766 = vsel %vm890, %v2709, 0
        %v2769 = vsel %vm890, %v2764, 0
        %2771 = vmatprep.subr.bf16.mxu0 0
        %2772 = vmatpush1.bf16.xpose.msra.mxu0 %v2769
        %2773 = vmatprep.subr.bf16.mxu0 0
        %2774 = vmatpush1.bf16.xpose.msra.mxu0 0
        %2775 = vmatprep.subr.bf16.mxu0 0
        %2776 = vmatpush1.bf16.xpose.msra.mxu0 0
        %2777 = vmatprep.subr.bf16.mxu0 0
        %2778 = vmatpush1.bf16.xpose.msra.mxu0 0
        %2779 = vmatprep.subr.bf16.mxu0 0
        %2780 = vmatpush1.bf16.xpose.msra.mxu0 0
        %2781 = vmatprep.subr.bf16.mxu0 0
        %2782 = vmatpush1.bf16.xpose.msra.mxu0 0
        %2783 = vmatprep.subr.bf16.mxu0 0
        %2784 = vmatpush1.bf16.xpose.msra.mxu0 0
        %2785 = vmatprep.subr.bf16.mxu0 0
        %2786 = vmatpush1.bf16.xpose.msra.mxu0 0
        %2787 = vmatprep.subr.bf16.mxu0 0
        %2788 = vmatpush1.bf16.xpose.msra.mxu0 0
        %2789 = vmatprep.subr.bf16.mxu0 0
        %2790 = vmatpush1.bf16.xpose.msra.mxu0 0
        %2791 = vmatprep.subr.bf16.mxu0 0
        %2792 = vmatpush1.bf16.xpose.msra.mxu0 0
        %2793 = vmatprep.subr.bf16.mxu0 0
        %2794 = vmatpush1.bf16.xpose.msra.mxu0 0
        %2795 = vmatprep.subr.bf16.mxu0 0
        %2796 = vmatpush1.bf16.xpose.msra.mxu0 0
        %2797 = vmatprep.subr.bf16.mxu0 0
        %2798 = vmatpush1.bf16.xpose.msra.mxu0 0
        %2799 = vmatprep.subr.bf16.mxu0 0
        %2800 = vmatpush1.bf16.xpose.msra.mxu0 0
        %2801 = vmatprep.subr.bf16.mxu0 0
        %2802 = vmatpush1.bf16.xpose.msra.mxu0 0
        %2803 = vmatprep.mubr.bf16.mxu0 0
        %2804 = vmatmul.mubr.bf16.gmra.mrb[0].mxu0 %v2766
        %v2805 = vpop.f32.mrb[0].mxu0
        %v2806 = vadd.f32 0.0, %v2805
        %v2807 = vpop.f32.mrb[0].mxu0
        %v2808 = vpop.f32.mrb[0].mxu0
        %v2809 = vadd.f32 0.0, %v2808
        %v2810 = vpop.f32.mrb[0].mxu0
        %2811 = vdwg.mxu0
        %2812 = vrot.lane.b32.xlu0 %v2711, 96
        %v2813 = vpop.permute.xlu0 %2812
        %v2815 = vsel %vm890, %v2711, 0
        %v2818 = vsel %vm890, %v2813, 0
        %2820 = vmatprep.subr.bf16.mxu0 0
        %2821 = vmatpush1.bf16.xpose.msra.mxu0 %v2818
        %2822 = vmatprep.subr.bf16.mxu0 0
        %2823 = vmatpush1.bf16.xpose.msra.mxu0 0
        %2824 = vmatprep.subr.bf16.mxu0 0
        %2825 = vmatpush1.bf16.xpose.msra.mxu0 0
        %2826 = vmatprep.subr.bf16.mxu0 0
        %2827 = vmatpush1.bf16.xpose.msra.mxu0 0
        %2828 = vmatprep.subr.bf16.mxu0 0
        %2829 = vmatpush1.bf16.xpose.msra.mxu0 0
        %2830 = vmatprep.subr.bf16.mxu0 0
        %2831 = vmatpush1.bf16.xpose.msra.mxu0 0
        %2832 = vmatprep.subr.bf16.mxu0 0
        %2833 = vmatpush1.bf16.xpose.msra.mxu0 0
        %2834 = vmatprep.subr.bf16.mxu0 0
        %2835 = vmatpush1.bf16.xpose.msra.mxu0 0
        %2836 = vmatprep.subr.bf16.mxu0 0
        %2837 = vmatpush1.bf16.xpose.msra.mxu0 0
        %2838 = vmatprep.subr.bf16.mxu0 0
        %2839 = vmatpush1.bf16.xpose.msra.mxu0 0
        %2840 = vmatprep.subr.bf16.mxu0 0
        %2841 = vmatpush1.bf16.xpose.msra.mxu0 0
        %2842 = vmatprep.subr.bf16.mxu0 0
        %2843 = vmatpush1.bf16.xpose.msra.mxu0 0
        %2844 = vmatprep.subr.bf16.mxu0 0
        %2845 = vmatpush1.bf16.xpose.msra.mxu0 0
        %2846 = vmatprep.subr.bf16.mxu0 0
        %2847 = vmatpush1.bf16.xpose.msra.mxu0 0
        %2848 = vmatprep.subr.bf16.mxu0 0
        %2849 = vmatpush1.bf16.xpose.msra.mxu0 0
        %2850 = vmatprep.subr.bf16.mxu0 0
        %2851 = vmatpush1.bf16.xpose.msra.mxu0 0
        %2852 = vmatprep.mubr.bf16.mxu0 0
        %2853 = vmatmul.mubr.bf16.gmra.mrb[0].mxu0 %v2815
        %v2854 = vpop.f32.mrb[0].mxu0
        %v2855 = vadd.f32 0.0, %v2854
        %v2856 = vpop.f32.mrb[0].mxu0
        %v2857 = vpop.f32.mrb[0].mxu0
        %v2858 = vadd.f32 0.0, %v2857
        %v2859 = vpop.f32.mrb[0].mxu0
        %2860 = vdwg.mxu0
        %2861 = vrot.lane.b32.xlu0 %v2713, 96
        %v2862 = vpop.permute.xlu0 %2861
        %v2864 = vsel %vm890, %v2713, 0
        %v2867 = vsel %vm890, %v2862, 0
        %2869 = vmatprep.subr.bf16.mxu0 0
        %2870 = vmatpush1.bf16.xpose.msra.mxu0 %v2867
        %2871 = vmatprep.subr.bf16.mxu0 0
        %2872 = vmatpush1.bf16.xpose.msra.mxu0 0
        %2873 = vmatprep.subr.bf16.mxu0 0
        %2874 = vmatpush1.bf16.xpose.msra.mxu0 0
        %2875 = vmatprep.subr.bf16.mxu0 0
        %2876 = vmatpush1.bf16.xpose.msra.mxu0 0
        %2877 = vmatprep.subr.bf16.mxu0 0
        %2878 = vmatpush1.bf16.xpose.msra.mxu0 0
        %2879 = vmatprep.subr.bf16.mxu0 0
        %2880 = vmatpush1.bf16.xpose.msra.mxu0 0
        %2881 = vmatprep.subr.bf16.mxu0 0
        %2882 = vmatpush1.bf16.xpose.msra.mxu0 0
        %2883 = vmatprep.subr.bf16.mxu0 0
        %2884 = vmatpush1.bf16.xpose.msra.mxu0 0
        %2885 = vmatprep.subr.bf16.mxu0 0
        %2886 = vmatpush1.bf16.xpose.msra.mxu0 0
        %2887 = vmatprep.subr.bf16.mxu0 0
        %2888 = vmatpush1.bf16.xpose.msra.mxu0 0
        %2889 = vmatprep.subr.bf16.mxu0 0
        %2890 = vmatpush1.bf16.xpose.msra.mxu0 0
        %2891 = vmatprep.subr.bf16.mxu0 0
        %2892 = vmatpush1.bf16.xpose.msra.mxu0 0
        %2893 = vmatprep.subr.bf16.mxu0 0
        %2894 = vmatpush1.bf16.xpose.msra.mxu0 0
        %2895 = vmatprep.subr.bf16.mxu0 0
        %2896 = vmatpush1.bf16.xpose.msra.mxu0 0
        %2897 = vmatprep.subr.bf16.mxu0 0
        %2898 = vmatpush1.bf16.xpose.msra.mxu0 0
        %2899 = vmatprep.subr.bf16.mxu0 0
        %2900 = vmatpush1.bf16.xpose.msra.mxu0 0
        %2901 = vmatprep.mubr.bf16.mxu0 0
        %2902 = vmatmul.mubr.bf16.gmra.mrb[0].mxu0 %v2864
        %v2903 = vpop.f32.mrb[0].mxu0
        %v2904 = vadd.f32 0.0, %v2903
        %v2905 = vpop.f32.mrb[0].mxu0
        %v2906 = vpop.f32.mrb[0].mxu0
        %v2907 = vadd.f32 0.0, %v2906
        %v2908 = vpop.f32.mrb[0].mxu0
        %2909 = vdwg.mxu0
        %v2910 = vmul.f32 %v2757, 0.35355338
        %v2911 = vmul.f32 %v2760, 0.35355338
        %v2912 = vmul.f32 %v2806, 0.35355338
        %v2913 = vmul.f32 %v2809, 0.35355338
        %v2914 = vmul.f32 %v2855, 0.35355338
        %v2915 = vmul.f32 %v2858, 0.35355338
        %v2916 = vmul.f32 %v2904, 0.35355338
        %v2917 = vmul.f32 %v2907, 0.35355338
        %v2918 = vsel %vm1093, %v2910, -inf
        %2919 = vmax.xlane.f32.xlu0 %v2918
        %v2920 = vpop.xlane.xlu0 %2919
        %v2921 = vsel %vm1093, %v2911, -inf
        %2922 = vmax.xlane.f32.xlu0 %v2921
        %v2923 = vpop.xlane.xlu0 %2922
        %v2924 = vsel %vm1093, %v2912, -inf
        %2925 = vmax.xlane.f32.xlu0 %v2924
        %v2926 = vpop.xlane.xlu0 %2925
        %v2927 = vsel %vm1093, %v2913, -inf
        %2928 = vmax.xlane.f32.xlu0 %v2927
        %v2929 = vpop.xlane.xlu0 %2928
        %v2930 = vsel %vm1093, %v2914, -inf
        %2931 = vmax.xlane.f32.xlu0 %v2930
        %v2932 = vpop.xlane.xlu0 %2931
        %v2933 = vsel %vm1093, %v2915, -inf
        %2934 = vmax.xlane.f32.xlu0 %v2933
        %v2935 = vpop.xlane.xlu0 %2934
        %v2936 = vsel %vm1093, %v2916, -inf
        %2937 = vmax.xlane.f32.xlu0 %v2936
        %v2938 = vpop.xlane.xlu0 %2937
        %v2939 = vsel %vm1093, %v2917, -inf
        %2940 = vmax.xlane.f32.xlu0 %v2939
        %v2941 = vpop.xlane.xlu0 %2940
        %v2942 = vsub.f32 %v2910, %v2920
        %v2943 = vsub.f32 %v2911, %v2923
        %v2944 = vsub.f32 %v2912, %v2926
        %v2945 = vsub.f32 %v2913, %v2929
        %v2946 = vsub.f32 %v2914, %v2932
        %v2947 = vsub.f32 %v2915, %v2935
        %v2948 = vsub.f32 %v2916, %v2938
        %v2949 = vsub.f32 %v2917, %v2941
        %v2950 = vmul.f32 %v2942, 1.442695
        %v2951 = vpow.pop %v2950
        %v2952 = vmul.f32 %v2943, 1.442695
        %v2953 = vpow.pop %v2952
        %v2954 = vmul.f32 %v2944, 1.442695
        %v2955 = vpow.pop %v2954
        %v2956 = vmul.f32 %v2945, 1.442695
        %v2957 = vpow.pop %v2956
        %v2958 = vmul.f32 %v2946, 1.442695
        %v2959 = vpow.pop %v2958
        %v2960 = vmul.f32 %v2947, 1.442695
        %v2961 = vpow.pop %v2960
        %v2962 = vmul.f32 %v2948, 1.442695
        %v2963 = vpow.pop %v2962
        %v2964 = vmul.f32 %v2949, 1.442695
        %v2965 = vpow.pop %v2964
        %v2966 = vsel %vm1093, %v2951, 0.0
        %2967 = vadd.xlane.f32.xlu0 %v2966
        %v2968 = vpop.xlane.xlu0 %2967
        %v2969 = vsel %vm1093, %v2953, 0.0
        %2970 = vadd.xlane.f32.xlu0 %v2969
        %v2971 = vpop.xlane.xlu0 %2970
        %v2972 = vsel %vm1093, %v2955, 0.0
        %2973 = vadd.xlane.f32.xlu0 %v2972
        %v2974 = vpop.xlane.xlu0 %2973
        %v2975 = vsel %vm1093, %v2957, 0.0
        %2976 = vadd.xlane.f32.xlu0 %v2975
        %v2977 = vpop.xlane.xlu0 %2976
        %v2978 = vsel %vm1093, %v2959, 0.0
        %2979 = vadd.xlane.f32.xlu0 %v2978
        %v2980 = vpop.xlane.xlu0 %2979
        %v2981 = vsel %vm1093, %v2961, 0.0
        %2982 = vadd.xlane.f32.xlu0 %v2981
        %v2983 = vpop.xlane.xlu0 %2982
        %v2984 = vsel %vm1093, %v2963, 0.0
        %2985 = vadd.xlane.f32.xlu0 %v2984
        %v2986 = vpop.xlane.xlu0 %2985
        %v2987 = vsel %vm1093, %v2965, 0.0
        %2988 = vadd.xlane.f32.xlu0 %v2987
        %v2989 = vpop.xlane.xlu0 %2988
        %v2990 = vrcp.pop %v2968
        %v2991 = vmul.f32 %v2951, %v2990
        %v2992 = vrcp.pop %v2971
        %v2993 = vmul.f32 %v2953, %v2992
        %v2994 = vrcp.pop %v2974
        %v2995 = vmul.f32 %v2955, %v2994
        %v2996 = vrcp.pop %v2977
        %v2997 = vmul.f32 %v2957, %v2996
        %v2998 = vrcp.pop %v2980
        %v2999 = vmul.f32 %v2959, %v2998
        %v3000 = vrcp.pop %v2983
        %v3001 = vmul.f32 %v2961, %v3000
        %v3002 = vrcp.pop %v2986
        %v3003 = vmul.f32 %v2963, %v3002
        %v3004 = vrcp.pop %v2989
        %v3005 = vmul.f32 %v2965, %v3004
        %v3006 = vpack.c.bf16 %v2993, %v2991
        %v3007 = vpack.c.bf16 %v2997, %v2995
        %v3008 = vpack.c.bf16 %v3001, %v2999
        %v3009 = vpack.c.bf16 %v3005, %v3003
        %3010 = vrot.lane.b32.xlu0 %v2706, 64
        %v3011 = vpop.permute.xlu0 %3010
        %v3014 = vsel %vm1093, %v3006, 0
        %3016 = vmatprep.subr.bf16.mxu0 0
        %3017 = vmatpush1.bf16.msra.mxu0 %v3011
        %3018 = vmatprep.subr.bf16.mxu0 0
        %3019 = vmatpush1.bf16.msra.mxu0 0
        %3020 = vmatprep.subr.bf16.mxu0 0
        %3021 = vmatpush1.bf16.msra.mxu0 0
        %3022 = vmatprep.subr.bf16.mxu0 0
        %3023 = vmatpush1.bf16.msra.mxu0 0
        %3024 = vmatprep.subr.bf16.mxu0 0
        %3025 = vmatpush1.bf16.msra.mxu0 0
        %3026 = vmatprep.subr.bf16.mxu0 0
        %3027 = vmatpush1.bf16.msra.mxu0 0
        %3028 = vmatprep.subr.bf16.mxu0 0
        %3029 = vmatpush1.bf16.msra.mxu0 0
        %3030 = vmatprep.subr.bf16.mxu0 0
        %3031 = vmatpush1.bf16.msra.mxu0 0
        %3032 = vmatprep.subr.bf16.mxu0 0
        %3033 = vmatpush1.bf16.msra.mxu0 0
        %3034 = vmatprep.subr.bf16.mxu0 0
        %3035 = vmatpush1.bf16.msra.mxu0 0
        %3036 = vmatprep.subr.bf16.mxu0 0
        %3037 = vmatpush1.bf16.msra.mxu0 0
        %3038 = vmatprep.subr.bf16.mxu0 0
        %3039 = vmatpush1.bf16.msra.mxu0 0
        %3040 = vmatprep.subr.bf16.mxu0 0
        %3041 = vmatpush1.bf16.msra.mxu0 0
        %3042 = vmatprep.subr.bf16.mxu0 0
        %3043 = vmatpush1.bf16.msra.mxu0 0
        %3044 = vmatprep.subr.bf16.mxu0 0
        %3045 = vmatpush1.bf16.msra.mxu0 0
        %3046 = vmatprep.subr.bf16.mxu0 0
        %3047 = vmatpush1.bf16.msra.mxu0 0
        %3048 = vmatprep.mubr.bf16.mxu0 0
        %3049 = vmatmul.mubr.bf16.gmra.mrb[0].mxu0 %v3014
        %v3050 = vpop.f32.mrb[0].mxu0
        %v3051 = vadd.f32 0.0, %v3050
        %v3052 = vpop.f32.mrb[0].mxu0
        %v3053 = vpop.f32.mrb[0].mxu0
        %v3054 = vadd.f32 0.0, %v3053
        %v3055 = vpop.f32.mrb[0].mxu0
        %3056 = vdwg.mxu0
        %3057 = vrot.lane.b32.xlu0 %v2709, 64
        %v3058 = vpop.permute.xlu0 %3057
        %v3061 = vsel %vm1093, %v3007, 0
        %3063 = vmatprep.subr.bf16.mxu0 0
        %3064 = vmatpush1.bf16.msra.mxu0 %v3058
        %3065 = vmatprep.subr.bf16.mxu0 0
        %3066 = vmatpush1.bf16.msra.mxu0 0
        %3067 = vmatprep.subr.bf16.mxu0 0
        %3068 = vmatpush1.bf16.msra.mxu0 0
        %3069 = vmatprep.subr.bf16.mxu0 0
        %3070 = vmatpush1.bf16.msra.mxu0 0
        %3071 = vmatprep.subr.bf16.mxu0 0
        %3072 = vmatpush1.bf16.msra.mxu0 0
        %3073 = vmatprep.subr.bf16.mxu0 0
        %3074 = vmatpush1.bf16.msra.mxu0 0
        %3075 = vmatprep.subr.bf16.mxu0 0
        %3076 = vmatpush1.bf16.msra.mxu0 0
        %3077 = vmatprep.subr.bf16.mxu0 0
        %3078 = vmatpush1.bf16.msra.mxu0 0
        %3079 = vmatprep.subr.bf16.mxu0 0
        %3080 = vmatpush1.bf16.msra.mxu0 0
        %3081 = vmatprep.subr.bf16.mxu0 0
        %3082 = vmatpush1.bf16.msra.mxu0 0
        %3083 = vmatprep.subr.bf16.mxu0 0
        %3084 = vmatpush1.bf16.msra.mxu0 0
        %3085 = vmatprep.subr.bf16.mxu0 0
        %3086 = vmatpush1.bf16.msra.mxu0 0
        %3087 = vmatprep.subr.bf16.mxu0 0
        %3088 = vmatpush1.bf16.msra.mxu0 0
        %3089 = vmatprep.subr.bf16.mxu0 0
        %3090 = vmatpush1.bf16.msra.mxu0 0
        %3091 = vmatprep.subr.bf16.mxu0 0
        %3092 = vmatpush1.bf16.msra.mxu0 0
        %3093 = vmatprep.subr.bf16.mxu0 0
        %3094 = vmatpush1.bf16.msra.mxu0 0
        %3095 = vmatprep.mubr.bf16.mxu0 0
        %3096 = vmatmul.mubr.bf16.gmra.mrb[0].mxu0 %v3061
        %v3097 = vpop.f32.mrb[0].mxu0
        %v3098 = vadd.f32 0.0, %v3097
        %v3099 = vpop.f32.mrb[0].mxu0
        %v3100 = vpop.f32.mrb[0].mxu0
        %v3101 = vadd.f32 0.0, %v3100
        %v3102 = vpop.f32.mrb[0].mxu0
        %3103 = vdwg.mxu0
        %3104 = vrot.lane.b32.xlu0 %v2711, 64
        %v3105 = vpop.permute.xlu0 %3104
        %v3108 = vsel %vm1093, %v3008, 0
        %3110 = vmatprep.subr.bf16.mxu0 0
        %3111 = vmatpush1.bf16.msra.mxu0 %v3105
        %3112 = vmatprep.subr.bf16.mxu0 0
        %3113 = vmatpush1.bf16.msra.mxu0 0
        %3114 = vmatprep.subr.bf16.mxu0 0
        %3115 = vmatpush1.bf16.msra.mxu0 0
        %3116 = vmatprep.subr.bf16.mxu0 0
        %3117 = vmatpush1.bf16.msra.mxu0 0
        %3118 = vmatprep.subr.bf16.mxu0 0
        %3119 = vmatpush1.bf16.msra.mxu0 0
        %3120 = vmatprep.subr.bf16.mxu0 0
        %3121 = vmatpush1.bf16.msra.mxu0 0
        %3122 = vmatprep.subr.bf16.mxu0 0
        %3123 = vmatpush1.bf16.msra.mxu0 0
        %3124 = vmatprep.subr.bf16.mxu0 0
        %3125 = vmatpush1.bf16.msra.mxu0 0
        %3126 = vmatprep.subr.bf16.mxu0 0
        %3127 = vmatpush1.bf16.msra.mxu0 0
        %3128 = vmatprep.subr.bf16.mxu0 0
        %3129 = vmatpush1.bf16.msra.mxu0 0
        %3130 = vmatprep.subr.bf16.mxu0 0
        %3131 = vmatpush1.bf16.msra.mxu0 0
        %3132 = vmatprep.subr.bf16.mxu0 0
        %3133 = vmatpush1.bf16.msra.mxu0 0
        %3134 = vmatprep.subr.bf16.mxu0 0
        %3135 = vmatpush1.bf16.msra.mxu0 0
        %3136 = vmatprep.subr.bf16.mxu0 0
        %3137 = vmatpush1.bf16.msra.mxu0 0
        %3138 = vmatprep.subr.bf16.mxu0 0
        %3139 = vmatpush1.bf16.msra.mxu0 0
        %3140 = vmatprep.subr.bf16.mxu0 0
        %3141 = vmatpush1.bf16.msra.mxu0 0
        %3142 = vmatprep.mubr.bf16.mxu0 0
        %3143 = vmatmul.mubr.bf16.gmra.mrb[0].mxu0 %v3108
        %v3144 = vpop.f32.mrb[0].mxu0
        %v3145 = vadd.f32 0.0, %v3144
        %v3146 = vpop.f32.mrb[0].mxu0
        %v3147 = vpop.f32.mrb[0].mxu0
        %v3148 = vadd.f32 0.0, %v3147
        %v3149 = vpop.f32.mrb[0].mxu0
        %3150 = vdwg.mxu0
        %3151 = vrot.lane.b32.xlu0 %v2713, 64
        %v3152 = vpop.permute.xlu0 %3151
        %v3155 = vsel %vm1093, %v3009, 0
        %3157 = vmatprep.subr.bf16.mxu0 0
        %3158 = vmatpush1.bf16.msra.mxu0 %v3152
        %3159 = vmatprep.subr.bf16.mxu0 0
        %3160 = vmatpush1.bf16.msra.mxu0 0
        %3161 = vmatprep.subr.bf16.mxu0 0
        %3162 = vmatpush1.bf16.msra.mxu0 0
        %3163 = vmatprep.subr.bf16.mxu0 0
        %3164 = vmatpush1.bf16.msra.mxu0 0
        %3165 = vmatprep.subr.bf16.mxu0 0
        %3166 = vmatpush1.bf16.msra.mxu0 0
        %3167 = vmatprep.subr.bf16.mxu0 0
        %3168 = vmatpush1.bf16.msra.mxu0 0
        %3169 = vmatprep.subr.bf16.mxu0 0
        %3170 = vmatpush1.bf16.msra.mxu0 0
        %3171 = vmatprep.subr.bf16.mxu0 0
        %3172 = vmatpush1.bf16.msra.mxu0 0
        %3173 = vmatprep.subr.bf16.mxu0 0
        %3174 = vmatpush1.bf16.msra.mxu0 0
        %3175 = vmatprep.subr.bf16.mxu0 0
        %3176 = vmatpush1.bf16.msra.mxu0 0
        %3177 = vmatprep.subr.bf16.mxu0 0
        %3178 = vmatpush1.bf16.msra.mxu0 0
        %3179 = vmatprep.subr.bf16.mxu0 0
        %3180 = vmatpush1.bf16.msra.mxu0 0
        %3181 = vmatprep.subr.bf16.mxu0 0
        %3182 = vmatpush1.bf16.msra.mxu0 0
        %3183 = vmatprep.subr.bf16.mxu0 0
        %3184 = vmatpush1.bf16.msra.mxu0 0
        %3185 = vmatprep.subr.bf16.mxu0 0
        %3186 = vmatpush1.bf16.msra.mxu0 0
        %3187 = vmatprep.subr.bf16.mxu0 0
        %3188 = vmatpush1.bf16.msra.mxu0 0
        %3189 = vmatprep.mubr.bf16.mxu0 0
        %3190 = vmatmul.mubr.bf16.gmra.mrb[0].mxu0 %v3155
        %v3191 = vpop.f32.mrb[0].mxu0
        %v3192 = vadd.f32 0.0, %v3191
        %v3193 = vpop.f32.mrb[0].mxu0
        %v3194 = vpop.f32.mrb[0].mxu0
        %v3195 = vadd.f32 0.0, %v3194
        %v3196 = vpop.f32.mrb[0].mxu0
        %3197 = vdwg.mxu0
        %3200 = vrot.lane.b32.xlu0 %v3098, 8
        %v3201 = vpop.permute.xlu0 %3200
        %3202 = vrot.lane.b32.xlu0 %v3101, 8
        %v3203 = vpop.permute.xlu0 %3202
        %3208 = vrot.lane.b32.xlu0 %v3145, 16
        %v3209 = vpop.permute.xlu0 %3208
        %3210 = vrot.lane.b32.xlu0 %v3148, 16
        %v3211 = vpop.permute.xlu0 %3210
        %3216 = vrot.lane.b32.xlu0 %v3192, 24
        %v3217 = vpop.permute.xlu0 %3216
        %3218 = vrot.lane.b32.xlu0 %v3195, 24
        %v3219 = vpop.permute.xlu0 %3218
        %v3222 = vsel %vm890, %v3051, %v3201
        %v3223 = vsel %vm890, %v3054, %v3203
        %v3224 = vsel %vm1093, %v3222, %v3209
        %v3225 = vsel %vm1093, %v3223, %v3211
        %v3226 = vsel %vm1402, %v3224, %v3217
        %v3227 = vsel %vm1402, %v3225, %v3219
        %s3228 = scalar_lea.vmem %s6, 32
        %v3229 = vld [vmem:[%s3228] sm:$0xf]
        %v3230 = vld [vmem:[%s3228 + $0x4] sm:$0xf]
        %v3231 = vld [vmem:[%s3228 + $0x8] sm:$0xf]
        %v3232 = vld [vmem:[%s3228 + $0xc] sm:$0xf]
        %v3233 = vpack.c.bf16 %v3227, %v3226
        %s3234 = scalar_lea.vmem %s7, 2
        %v3235 = vld [vmem:[%s3234] sm:$0x1]
        %v3237 = vlaneseq
        %v3238 = vshrl.u32 %v3237, 7
        %v3239 = vsub.s32 0, %v3238
        %v3240 = vrot.slane %v3235, %v3239
        %v3246 = vunpack.c.l.b16 %v3229
        %v3247 = vunpack.c.l.b16 %v3230
        %v3248 = vunpack.c.l.b16 %v3231
        %v3249 = vunpack.c.l.b16 %v3232
        %v3250 = vpack.c.b16 %v3247, %v3246
        %v3251 = vpack.c.b16 %v3249, %v3248
        %v3255 = vsel %vm835, %v3233, 0
        %3257 = vmatprep.subr.bf16.mxu0 0
        %3258 = vmatpush1.bf16.msra.mxu0 %v3250
        %3259 = vmatprep.subr.bf16.mxu0 0
        %3260 = vmatpush1.bf16.msra.mxu0 %v3251
        %3261 = vmatprep.subr.bf16.mxu0 0
        %3262 = vmatpush1.bf16.msra.mxu0 0
        %3263 = vmatprep.subr.bf16.mxu0 0
        %3264 = vmatpush1.bf16.msra.mxu0 0
        %3265 = vmatprep.subr.bf16.mxu0 0
        %3266 = vmatpush1.bf16.msra.mxu0 0
        %3267 = vmatprep.subr.bf16.mxu0 0
        %3268 = vmatpush1.bf16.msra.mxu0 0
        %3269 = vmatprep.subr.bf16.mxu0 0
        %3270 = vmatpush1.bf16.msra.mxu0 0
        %3271 = vmatprep.subr.bf16.mxu0 0
        %3272 = vmatpush1.bf16.msra.mxu0 0
        %3273 = vmatprep.subr.bf16.mxu0 0
        %3274 = vmatpush1.bf16.msra.mxu0 0
        %3275 = vmatprep.subr.bf16.mxu0 0
        %3276 = vmatpush1.bf16.msra.mxu0 0
        %3277 = vmatprep.subr.bf16.mxu0 0
        %3278 = vmatpush1.bf16.msra.mxu0 0
        %3279 = vmatprep.subr.bf16.mxu0 0
        %3280 = vmatpush1.bf16.msra.mxu0 0
        %3281 = vmatprep.subr.bf16.mxu0 0
        %3282 = vmatpush1.bf16.msra.mxu0 0
        %3283 = vmatprep.subr.bf16.mxu0 0
        %3284 = vmatpush1.bf16.msra.mxu0 0
        %3285 = vmatprep.subr.bf16.mxu0 0
        %3286 = vmatpush1.bf16.msra.mxu0 0
        %3287 = vmatprep.subr.bf16.mxu0 0
        %3288 = vmatpush1.bf16.msra.mxu0 0
        %3289 = vmatprep.mubr.bf16.mxu0 0
        %3290 = vmatmul.mubr.bf16.gmra.mrb[0].mxu0 %v3255
        %v3291 = vpop.f32.mrb[0].mxu0
        %v3292 = vadd.f32 %v3240, %v3291
        %v3293 = vpop.f32.mrb[0].mxu0
        %v3294 = vpop.f32.mrb[0].mxu0
        %v3295 = vadd.f32 %v3240, %v3294
        %v3296 = vpop.f32.mrb[0].mxu0
        %3297 = vdwg.mxu0
        %v3298 = vadd.f32 %v2634, %v3292
        %v3299 = vadd.f32 %v2635, %v3295
        %s3300 = scalar_lea.vmem %s8, 2
        %v3301 = vld [vmem:[%s3300] sm:$0x1]
        %s3302 = scalar_lea.vmem %s9, 2
        %v3303 = vld [vmem:[%s3302] sm:$0x1]
        %v3304 = vsel %vm835, %v3298, 0.0
        %3305 = vadd.xlane.f32.xlu0 %v3304
        %v3306 = vpop.xlane.xlu0 %3305
        %v3307 = vsel %vm835, %v3299, 0.0
        %3308 = vadd.xlane.f32.xlu0 %v3307
        %v3309 = vpop.xlane.xlu0 %3308
        %v3310 = vmul.f32 %v3306, %v1483
        %v3311 = vmul.f32 %v3309, %v1483
        %v3312 = vsub.f32 %v3298, %v3310
        %v3313 = vsub.f32 %v3299, %v3311
        %v3314 = vmul.f32 %v3312, %v3312
        %v3315 = vmul.f32 %v3313, %v3313
        %v3316 = vsel %vm835, %v3314, 0.0
        %3317 = vadd.xlane.f32.xlu0 %v3316
        %v3318 = vpop.xlane.xlu0 %3317
        %v3319 = vsel %vm835, %v3315, 0.0
        %3320 = vadd.xlane.f32.xlu0 %v3319
        %v3321 = vpop.xlane.xlu0 %3320
        %v3322 = vmul.f32 %v3318, %v1483
        %v3323 = vmul.f32 %v3321, %v1483
        %v3324 = vadd.f32 %v3322, 1e-05
        %v3325 = vadd.f32 %v3323, 1e-05
        %v3326 = vrsqrt.pop %v3324
        %v3327 = vrsqrt.pop %v3325
        %v3328 = vmul.f32 %v3312, %v3326
        %v3329 = vmul.f32 %v3313, %v3327
        %v3331 = vlaneseq
        %v3332 = vshrl.u32 %v3331, 7
        %v3333 = vsub.s32 0, %v3332
        %v3334 = vrot.slane %v3301, %v3333
        %v3336 = vmul.f32 %v3328, %v3334
        %v3337 = vmul.f32 %v3329, %v3334
        %v3339 = vlaneseq
        %v3340 = vshrl.u32 %v3339, 7
        %v3341 = vsub.s32 0, %v3340
        %v3342 = vrot.slane %v3303, %v3341
        %v3344 = vadd.f32 %v3336, %v3342
        %v3345 = vadd.f32 %v3337, %v3342
        %s3346 = scalar_lea.vmem %s10, 32
        %v3347 = vld [vmem:[%s3346] sm:$0xf]
        %v3348 = vld [vmem:[%s3346 + $0x4] sm:$0xf]
        %v3349 = vld [vmem:[%s3346 + $0x8] sm:$0xf]
        %v3350 = vld [vmem:[%s3346 + $0xc] sm:$0xf]
        %v3351 = vpack.c.bf16 %v3345, %v3344
        %s3352 = scalar_lea.vmem %s11, 2
        %v3353 = vld [vmem:[%s3352] sm:$0x1]
        %v3355 = vlaneseq
        %v3356 = vshrl.u32 %v3355, 7
        %v3357 = vsub.s32 0, %v3356
        %v3358 = vrot.slane %v3353, %v3357
        %v3364 = vunpack.c.l.b16 %v3347
        %v3365 = vunpack.c.l.b16 %v3348
        %v3366 = vunpack.c.l.b16 %v3349
        %v3367 = vunpack.c.l.b16 %v3350
        %v3368 = vpack.c.b16 %v3365, %v3364
        %v3369 = vpack.c.b16 %v3367, %v3366
        %v3373 = vsel %vm835, %v3351, 0
        %3375 = vmatprep.subr.bf16.mxu0 0
        %3376 = vmatpush1.bf16.msra.mxu0 %v3368
        %3377 = vmatprep.subr.bf16.mxu0 0
        %3378 = vmatpush1.bf16.msra.mxu0 %v3369
        %3379 = vmatprep.subr.bf16.mxu0 0
        %3380 = vmatpush1.bf16.msra.mxu0 0
        %3381 = vmatprep.subr.bf16.mxu0 0
        %3382 = vmatpush1.bf16.msra.mxu0 0
        %3383 = vmatprep.subr.bf16.mxu0 0
        %3384 = vmatpush1.bf16.msra.mxu0 0
        %3385 = vmatprep.subr.bf16.mxu0 0
        %3386 = vmatpush1.bf16.msra.mxu0 0
        %3387 = vmatprep.subr.bf16.mxu0 0
        %3388 = vmatpush1.bf16.msra.mxu0 0
        %3389 = vmatprep.subr.bf16.mxu0 0
        %3390 = vmatpush1.bf16.msra.mxu0 0
        %3391 = vmatprep.subr.bf16.mxu0 0
        %3392 = vmatpush1.bf16.msra.mxu0 0
        %3393 = vmatprep.subr.bf16.mxu0 0
        %3394 = vmatpush1.bf16.msra.mxu0 0
        %3395 = vmatprep.subr.bf16.mxu0 0
        %3396 = vmatpush1.bf16.msra.mxu0 0
        %3397 = vmatprep.subr.bf16.mxu0 0
        %3398 = vmatpush1.bf16.msra.mxu0 0
        %3399 = vmatprep.subr.bf16.mxu0 0
        %3400 = vmatpush1.bf16.msra.mxu0 0
        %3401 = vmatprep.subr.bf16.mxu0 0
        %3402 = vmatpush1.bf16.msra.mxu0 0
        %3403 = vmatprep.subr.bf16.mxu0 0
        %3404 = vmatpush1.bf16.msra.mxu0 0
        %3405 = vmatprep.subr.bf16.mxu0 0
        %3406 = vmatpush1.bf16.msra.mxu0 0
        %3407 = vmatprep.mubr.bf16.mxu0 0
        %3408 = vmatmul.mubr.bf16.gmra.mrb[0].mxu0 %v3373
        %v3409 = vpop.f32.mrb[0].mxu0
        %v3410 = vadd.f32 %v3358, %v3409
        %v3411 = vpop.f32.mrb[0].mxu0
        %v3412 = vpop.f32.mrb[0].mxu0
        %v3413 = vadd.f32 %v3358, %v3412
        %v3414 = vpop.f32.mrb[0].mxu0
        %3415 = vdwg.mxu0
        %v3416 = vmax.f32 %v3410, 0.0
        %v3417 = vmax.f32 %v3413, 0.0
        %s3418 = scalar_lea.vmem %s12, 64
        %v3419 = vld [vmem:[%s3418] sm:$0xf]
        %v3420 = vld [vmem:[%s3418 + $0x4] sm:$0xf]
        %v3421 = vld [vmem:[%s3418 + $0x8] sm:$0xf]
        %v3422 = vld [vmem:[%s3418 + $0xc] sm:$0xf]
        %v3423 = vld [vmem:[%s3418 + $0x10] sm:$0xf]
        %v3424 = vld [vmem:[%s3418 + $0x14] sm:$0xf]
        %v3425 = vld [vmem:[%s3418 + $0x18] sm:$0xf]
        %v3426 = vld [vmem:[%s3418 + $0x1c] sm:$0xf]
        %v3427 = vpack.c.bf16 %v3417, %v3416
        %s3428 = scalar_lea.vmem %s13, 2
        %v3429 = vld [vmem:[%s3428] sm:$0x1]
        %v3431 = vlaneseq
        %v3432 = vshrl.u32 %v3431, 7
        %v3433 = vsub.s32 0, %v3432
        %v3434 = vrot.slane %v3429, %v3433
        %v3444 = vunpack.c.l.b16 %v3419
        %v3445 = vunpack.c.l.b16 %v3420
        %v3446 = vunpack.c.l.b16 %v3421
        %v3447 = vunpack.c.l.b16 %v3422
        %v3448 = vunpack.c.l.b16 %v3423
        %v3449 = vunpack.c.l.b16 %v3424
        %v3450 = vunpack.c.l.b16 %v3425
        %v3451 = vunpack.c.l.b16 %v3426
        %v3452 = vpack.c.b16 %v3445, %v3444
        %v3453 = vpack.c.b16 %v3447, %v3446
        %v3454 = vpack.c.b16 %v3449, %v3448
        %v3455 = vpack.c.b16 %v3451, %v3450
        %v3461 = vsel %vm762, %v3427, 0
        %3463 = vmatprep.subr.bf16.mxu0 0
        %3464 = vmatpush1.bf16.msra.mxu0 %v3452
        %3465 = vmatprep.subr.bf16.mxu0 0
        %3466 = vmatpush1.bf16.msra.mxu0 %v3453
        %3467 = vmatprep.subr.bf16.mxu0 0
        %3468 = vmatpush1.bf16.msra.mxu0 %v3454
        %3469 = vmatprep.subr.bf16.mxu0 0
        %3470 = vmatpush1.bf16.msra.mxu0 %v3455
        %3471 = vmatprep.subr.bf16.mxu0 0
        %3472 = vmatpush1.bf16.msra.mxu0 0
        %3473 = vmatprep.subr.bf16.mxu0 0
        %3474 = vmatpush1.bf16.msra.mxu0 0
        %3475 = vmatprep.subr.bf16.mxu0 0
        %3476 = vmatpush1.bf16.msra.mxu0 0
        %3477 = vmatprep.subr.bf16.mxu0 0
        %3478 = vmatpush1.bf16.msra.mxu0 0
        %3479 = vmatprep.subr.bf16.mxu0 0
        %3480 = vmatpush1.bf16.msra.mxu0 0
        %3481 = vmatprep.subr.bf16.mxu0 0
        %3482 = vmatpush1.bf16.msra.mxu0 0
        %3483 = vmatprep.subr.bf16.mxu0 0
        %3484 = vmatpush1.bf16.msra.mxu0 0
        %3485 = vmatprep.subr.bf16.mxu0 0
        %3486 = vmatpush1.bf16.msra.mxu0 0
        %3487 = vmatprep.subr.bf16.mxu0 0
        %3488 = vmatpush1.bf16.msra.mxu0 0
        %3489 = vmatprep.subr.bf16.mxu0 0
        %3490 = vmatpush1.bf16.msra.mxu0 0
        %3491 = vmatprep.subr.bf16.mxu0 0
        %3492 = vmatpush1.bf16.msra.mxu0 0
        %3493 = vmatprep.subr.bf16.mxu0 0
        %3494 = vmatpush1.bf16.msra.mxu0 0
        %3495 = vmatprep.mubr.bf16.mxu0 0
        %3496 = vmatmul.mubr.bf16.gmra.mrb[0].mxu0 %v3461
        %v3497 = vpop.f32.mrb[0].mxu0
        %v3498 = vadd.f32 %v3434, %v3497
        %v3499 = vpop.f32.mrb[0].mxu0
        %v3500 = vpop.f32.mrb[0].mxu0
        %v3501 = vadd.f32 %v3434, %v3500
        %v3502 = vpop.f32.mrb[0].mxu0
        %3503 = vdwg.mxu0
        %v3504 = vadd.f32 %v3344, %v3498
        %v3505 = vadd.f32 %v3345, %v3501
        %s3506 = scalar_lea.vmem %s14, 2
        %v3507 = vld [vmem:[%s3506] sm:$0x1]
        %s3508 = scalar_lea.vmem %s15, 2
        %v3509 = vld [vmem:[%s3508] sm:$0x1]
        %v3510 = vsel %vm835, %v3504, 0.0
        %3511 = vadd.xlane.f32.xlu0 %v3510
        %v3512 = vpop.xlane.xlu0 %3511
        %v3513 = vsel %vm835, %v3505, 0.0
        %3514 = vadd.xlane.f32.xlu0 %v3513
        %v3515 = vpop.xlane.xlu0 %3514
        %v3516 = vmul.f32 %v3512, %v1483
        %v3517 = vmul.f32 %v3515, %v1483
        %v3518 = vsub.f32 %v3504, %v3516
        %v3519 = vsub.f32 %v3505, %v3517
        %v3520 = vmul.f32 %v3518, %v3518
        %v3521 = vmul.f32 %v3519, %v3519
        %v3522 = vsel %vm835, %v3520, 0.0
        %3523 = vadd.xlane.f32.xlu0 %v3522
        %v3524 = vpop.xlane.xlu0 %3523
        %v3525 = vsel %vm835, %v3521, 0.0
        %3526 = vadd.xlane.f32.xlu0 %v3525
        %v3527 = vpop.xlane.xlu0 %3526
        %v3528 = vmul.f32 %v3524, %v1483
        %v3529 = vmul.f32 %v3527, %v1483
        %v3530 = vadd.f32 %v3528, 1e-05
        %v3531 = vadd.f32 %v3529, 1e-05
        %v3532 = vrsqrt.pop %v3530
        %v3533 = vrsqrt.pop %v3531
        %v3534 = vmul.f32 %v3518, %v3532
        %v3535 = vmul.f32 %v3519, %v3533
        %v3537 = vlaneseq
        %v3538 = vshrl.u32 %v3537, 7
        %v3539 = vsub.s32 0, %v3538
        %v3540 = vrot.slane %v3507, %v3539
        %v3542 = vmul.f32 %v3534, %v3540
        %v3543 = vmul.f32 %v3535, %v3540
        %v3545 = vlaneseq
        %v3546 = vshrl.u32 %v3545, 7
        %v3547 = vsub.s32 0, %v3546
        %v3548 = vrot.slane %v3509, %v3547
        %v3550 = vadd.f32 %v3542, %v3548
        %v3551 = vadd.f32 %v3543, %v3548
        %s3552 = scalar_lea.vmem %s4, 48
        %v3553 = vld [vmem:[%s3552] sm:$0xf]
        %v3554 = vld [vmem:[%s3552 + $0x4] sm:$0xf]
        %v3555 = vld [vmem:[%s3552 + $0x8] sm:$0xf]
        %v3556 = vld [vmem:[%s3552 + $0xc] sm:$0xf]
        %v3557 = vpack.c.bf16 %v3551, %v3550
        %s3558 = scalar_lea.vmem %s5, 3
        %v3559 = vld [vmem:[%s3558] sm:$0x1]
        %v3561 = vlaneseq
        %v3562 = vshrl.u32 %v3561, 7
        %v3563 = vsub.s32 0, %v3562
        %v3564 = vrot.slane %v3559, %v3563
        %v3570 = vunpack.c.l.b16 %v3553
        %v3571 = vunpack.c.l.b16 %v3554
        %v3572 = vunpack.c.l.b16 %v3555
        %v3573 = vunpack.c.l.b16 %v3556
        %v3574 = vpack.c.b16 %v3571, %v3570
        %v3575 = vpack.c.b16 %v3573, %v3572
        %v3579 = vsel %vm835, %v3557, 0
        %3581 = vmatprep.subr.bf16.mxu0 0
        %3582 = vmatpush1.bf16.msra.mxu0 %v3574
        %3583 = vmatprep.subr.bf16.mxu0 0
        %3584 = vmatpush1.bf16.msra.mxu0 %v3575
        %3585 = vmatprep.subr.bf16.mxu0 0
        %3586 = vmatpush1.bf16.msra.mxu0 0
        %3587 = vmatprep.subr.bf16.mxu0 0
        %3588 = vmatpush1.bf16.msra.mxu0 0
        %3589 = vmatprep.subr.bf16.mxu0 0
        %3590 = vmatpush1.bf16.msra.mxu0 0
        %3591 = vmatprep.subr.bf16.mxu0 0
        %3592 = vmatpush1.bf16.msra.mxu0 0
        %3593 = vmatprep.subr.bf16.mxu0 0
        %3594 = vmatpush1.bf16.msra.mxu0 0
        %3595 = vmatprep.subr.bf16.mxu0 0
        %3596 = vmatpush1.bf16.msra.mxu0 0
        %3597 = vmatprep.subr.bf16.mxu0 0
        %3598 = vmatpush1.bf16.msra.mxu0 0
        %3599 = vmatprep.subr.bf16.mxu0 0
        %3600 = vmatpush1.bf16.msra.mxu0 0
        %3601 = vmatprep.subr.bf16.mxu0 0
        %3602 = vmatpush1.bf16.msra.mxu0 0
        %3603 = vmatprep.subr.bf16.mxu0 0
        %3604 = vmatpush1.bf16.msra.mxu0 0
        %3605 = vmatprep.subr.bf16.mxu0 0
        %3606 = vmatpush1.bf16.msra.mxu0 0
        %3607 = vmatprep.subr.bf16.mxu0 0
        %3608 = vmatpush1.bf16.msra.mxu0 0
        %3609 = vmatprep.subr.bf16.mxu0 0
        %3610 = vmatpush1.bf16.msra.mxu0 0
        %3611 = vmatprep.subr.bf16.mxu0 0
        %3612 = vmatpush1.bf16.msra.mxu0 0
        %3613 = vmatprep.mubr.bf16.mxu0 0
        %3614 = vmatmul.mubr.bf16.gmra.mrb[0].mxu0 %v3579
        %v3615 = vpop.f32.mrb[0].mxu0
        %v3616 = vadd.f32 %v3564, %v3615
        %v3617 = vpop.f32.mrb[0].mxu0
        %v3618 = vpop.f32.mrb[0].mxu0
        %v3619 = vadd.f32 %v3564, %v3618
        %v3620 = vpop.f32.mrb[0].mxu0
        %3621 = vdwg.mxu0
        %v3622 = vpack.c.bf16 %v3619, %v3616
        %3624 = vrot.lane.b32.xlu0 %v3622, 120
        %v3625 = vpop.permute.xlu0 %3624
        %3626 = vrot.lane.b32.xlu0 %v3622, 112
        %v3627 = vpop.permute.xlu0 %3626
        %3628 = vrot.lane.b32.xlu0 %v3622, 104
        %v3629 = vpop.permute.xlu0 %3628
        %3630 = vrot.lane.b32.xlu0 %v3622, 96
        %v3631 = vpop.permute.xlu0 %3630
        %v3633 = vsel %vm890, %v3622, 0
        %v3636 = vsel %vm890, %v3631, 0
        %3638 = vmatprep.subr.bf16.mxu0 0
        %3639 = vmatpush1.bf16.xpose.msra.mxu0 %v3636
        %3640 = vmatprep.subr.bf16.mxu0 0
        %3641 = vmatpush1.bf16.xpose.msra.mxu0 0
        %3642 = vmatprep.subr.bf16.mxu0 0
        %3643 = vmatpush1.bf16.xpose.msra.mxu0 0
        %3644 = vmatprep.subr.bf16.mxu0 0
        %3645 = vmatpush1.bf16.xpose.msra.mxu0 0
        %3646 = vmatprep.subr.bf16.mxu0 0
        %3647 = vmatpush1.bf16.xpose.msra.mxu0 0
        %3648 = vmatprep.subr.bf16.mxu0 0
        %3649 = vmatpush1.bf16.xpose.msra.mxu0 0
        %3650 = vmatprep.subr.bf16.mxu0 0
        %3651 = vmatpush1.bf16.xpose.msra.mxu0 0
        %3652 = vmatprep.subr.bf16.mxu0 0
        %3653 = vmatpush1.bf16.xpose.msra.mxu0 0
        %3654 = vmatprep.subr.bf16.mxu0 0
        %3655 = vmatpush1.bf16.xpose.msra.mxu0 0
        %3656 = vmatprep.subr.bf16.mxu0 0
        %3657 = vmatpush1.bf16.xpose.msra.mxu0 0
        %3658 = vmatprep.subr.bf16.mxu0 0
        %3659 = vmatpush1.bf16.xpose.msra.mxu0 0
        %3660 = vmatprep.subr.bf16.mxu0 0
        %3661 = vmatpush1.bf16.xpose.msra.mxu0 0
        %3662 = vmatprep.subr.bf16.mxu0 0
        %3663 = vmatpush1.bf16.xpose.msra.mxu0 0
        %3664 = vmatprep.subr.bf16.mxu0 0
        %3665 = vmatpush1.bf16.xpose.msra.mxu0 0
        %3666 = vmatprep.subr.bf16.mxu0 0
        %3667 = vmatpush1.bf16.xpose.msra.mxu0 0
        %3668 = vmatprep.subr.bf16.mxu0 0
        %3669 = vmatpush1.bf16.xpose.msra.mxu0 0
        %3670 = vmatprep.mubr.bf16.mxu0 0
        %3671 = vmatmul.mubr.bf16.gmra.mrb[0].mxu0 %v3633
        %v3672 = vpop.f32.mrb[0].mxu0
        %v3673 = vadd.f32 0.0, %v3672
        %v3674 = vpop.f32.mrb[0].mxu0
        %v3675 = vpop.f32.mrb[0].mxu0
        %v3676 = vadd.f32 0.0, %v3675
        %v3677 = vpop.f32.mrb[0].mxu0
        %3678 = vdwg.mxu0
        %3679 = vrot.lane.b32.xlu0 %v3625, 96
        %v3680 = vpop.permute.xlu0 %3679
        %v3682 = vsel %vm890, %v3625, 0
        %v3685 = vsel %vm890, %v3680, 0
        %3687 = vmatprep.subr.bf16.mxu0 0
        %3688 = vmatpush1.bf16.xpose.msra.mxu0 %v3685
        %3689 = vmatprep.subr.bf16.mxu0 0
        %3690 = vmatpush1.bf16.xpose.msra.mxu0 0
        %3691 = vmatprep.subr.bf16.mxu0 0
        %3692 = vmatpush1.bf16.xpose.msra.mxu0 0
        %3693 = vmatprep.subr.bf16.mxu0 0
        %3694 = vmatpush1.bf16.xpose.msra.mxu0 0
        %3695 = vmatprep.subr.bf16.mxu0 0
        %3696 = vmatpush1.bf16.xpose.msra.mxu0 0
        %3697 = vmatprep.subr.bf16.mxu0 0
        %3698 = vmatpush1.bf16.xpose.msra.mxu0 0
        %3699 = vmatprep.subr.bf16.mxu0 0
        %3700 = vmatpush1.bf16.xpose.msra.mxu0 0
        %3701 = vmatprep.subr.bf16.mxu0 0
        %3702 = vmatpush1.bf16.xpose.msra.mxu0 0
        %3703 = vmatprep.subr.bf16.mxu0 0
        %3704 = vmatpush1.bf16.xpose.msra.mxu0 0
        %3705 = vmatprep.subr.bf16.mxu0 0
        %3706 = vmatpush1.bf16.xpose.msra.mxu0 0
        %3707 = vmatprep.subr.bf16.mxu0 0
        %3708 = vmatpush1.bf16.xpose.msra.mxu0 0
        %3709 = vmatprep.subr.bf16.mxu0 0
        %3710 = vmatpush1.bf16.xpose.msra.mxu0 0
        %3711 = vmatprep.subr.bf16.mxu0 0
        %3712 = vmatpush1.bf16.xpose.msra.mxu0 0
        %3713 = vmatprep.subr.bf16.mxu0 0
        %3714 = vmatpush1.bf16.xpose.msra.mxu0 0
        %3715 = vmatprep.subr.bf16.mxu0 0
        %3716 = vmatpush1.bf16.xpose.msra.mxu0 0
        %3717 = vmatprep.subr.bf16.mxu0 0
        %3718 = vmatpush1.bf16.xpose.msra.mxu0 0
        %3719 = vmatprep.mubr.bf16.mxu0 0
        %3720 = vmatmul.mubr.bf16.gmra.mrb[0].mxu0 %v3682
        %v3721 = vpop.f32.mrb[0].mxu0
        %v3722 = vadd.f32 0.0, %v3721
        %v3723 = vpop.f32.mrb[0].mxu0
        %v3724 = vpop.f32.mrb[0].mxu0
        %v3725 = vadd.f32 0.0, %v3724
        %v3726 = vpop.f32.mrb[0].mxu0
        %3727 = vdwg.mxu0
        %3728 = vrot.lane.b32.xlu0 %v3627, 96
        %v3729 = vpop.permute.xlu0 %3728
        %v3731 = vsel %vm890, %v3627, 0
        %v3734 = vsel %vm890, %v3729, 0
        %3736 = vmatprep.subr.bf16.mxu0 0
        %3737 = vmatpush1.bf16.xpose.msra.mxu0 %v3734
        %3738 = vmatprep.subr.bf16.mxu0 0
        %3739 = vmatpush1.bf16.xpose.msra.mxu0 0
        %3740 = vmatprep.subr.bf16.mxu0 0
        %3741 = vmatpush1.bf16.xpose.msra.mxu0 0
        %3742 = vmatprep.subr.bf16.mxu0 0
        %3743 = vmatpush1.bf16.xpose.msra.mxu0 0
        %3744 = vmatprep.subr.bf16.mxu0 0
        %3745 = vmatpush1.bf16.xpose.msra.mxu0 0
        %3746 = vmatprep.subr.bf16.mxu0 0
        %3747 = vmatpush1.bf16.xpose.msra.mxu0 0
        %3748 = vmatprep.subr.bf16.mxu0 0
        %3749 = vmatpush1.bf16.xpose.msra.mxu0 0
        %3750 = vmatprep.subr.bf16.mxu0 0
        %3751 = vmatpush1.bf16.xpose.msra.mxu0 0
        %3752 = vmatprep.subr.bf16.mxu0 0
        %3753 = vmatpush1.bf16.xpose.msra.mxu0 0
        %3754 = vmatprep.subr.bf16.mxu0 0
        %3755 = vmatpush1.bf16.xpose.msra.mxu0 0
        %3756 = vmatprep.subr.bf16.mxu0 0
        %3757 = vmatpush1.bf16.xpose.msra.mxu0 0
        %3758 = vmatprep.subr.bf16.mxu0 0
        %3759 = vmatpush1.bf16.xpose.msra.mxu0 0
        %3760 = vmatprep.subr.bf16.mxu0 0
        %3761 = vmatpush1.bf16.xpose.msra.mxu0 0
        %3762 = vmatprep.subr.bf16.mxu0 0
        %3763 = vmatpush1.bf16.xpose.msra.mxu0 0
        %3764 = vmatprep.subr.bf16.mxu0 0
        %3765 = vmatpush1.bf16.xpose.msra.mxu0 0
        %3766 = vmatprep.subr.bf16.mxu0 0
        %3767 = vmatpush1.bf16.xpose.msra.mxu0 0
        %3768 = vmatprep.mubr.bf16.mxu0 0
        %3769 = vmatmul.mubr.bf16.gmra.mrb[0].mxu0 %v3731
        %v3770 = vpop.f32.mrb[0].mxu0
        %v3771 = vadd.f32 0.0, %v3770
        %v3772 = vpop.f32.mrb[0].mxu0
        %v3773 = vpop.f32.mrb[0].mxu0
        %v3774 = vadd.f32 0.0, %v3773
        %v3775 = vpop.f32.mrb[0].mxu0
        %3776 = vdwg.mxu0
        %3777 = vrot.lane.b32.xlu0 %v3629, 96
        %v3778 = vpop.permute.xlu0 %3777
        %v3780 = vsel %vm890, %v3629, 0
        %v3783 = vsel %vm890, %v3778, 0
        %3785 = vmatprep.subr.bf16.mxu0 0
        %3786 = vmatpush1.bf16.xpose.msra.mxu0 %v3783
        %3787 = vmatprep.subr.bf16.mxu0 0
        %3788 = vmatpush1.bf16.xpose.msra.mxu0 0
        %3789 = vmatprep.subr.bf16.mxu0 0
        %3790 = vmatpush1.bf16.xpose.msra.mxu0 0
        %3791 = vmatprep.subr.bf16.mxu0 0
        %3792 = vmatpush1.bf16.xpose.msra.mxu0 0
        %3793 = vmatprep.subr.bf16.mxu0 0
        %3794 = vmatpush1.bf16.xpose.msra.mxu0 0
        %3795 = vmatprep.subr.bf16.mxu0 0
        %3796 = vmatpush1.bf16.xpose.msra.mxu0 0
        %3797 = vmatprep.subr.bf16.mxu0 0
        %3798 = vmatpush1.bf16.xpose.msra.mxu0 0
        %3799 = vmatprep.subr.bf16.mxu0 0
        %3800 = vmatpush1.bf16.xpose.msra.mxu0 0
        %3801 = vmatprep.subr.bf16.mxu0 0
        %3802 = vmatpush1.bf16.xpose.msra.mxu0 0
        %3803 = vmatprep.subr.bf16.mxu0 0
        %3804 = vmatpush1.bf16.xpose.msra.mxu0 0
        %3805 = vmatprep.subr.bf16.mxu0 0
        %3806 = vmatpush1.bf16.xpose.msra.mxu0 0
        %3807 = vmatprep.subr.bf16.mxu0 0
        %3808 = vmatpush1.bf16.xpose.msra.mxu0 0
        %3809 = vmatprep.subr.bf16.mxu0 0
        %3810 = vmatpush1.bf16.xpose.msra.mxu0 0
        %3811 = vmatprep.subr.bf16.mxu0 0
        %3812 = vmatpush1.bf16.xpose.msra.mxu0 0
        %3813 = vmatprep.subr.bf16.mxu0 0
        %3814 = vmatpush1.bf16.xpose.msra.mxu0 0
        %3815 = vmatprep.subr.bf16.mxu0 0
        %3816 = vmatpush1.bf16.xpose.msra.mxu0 0
        %3817 = vmatprep.mubr.bf16.mxu0 0
        %3818 = vmatmul.mubr.bf16.gmra.mrb[0].mxu0 %v3780
        %v3819 = vpop.f32.mrb[0].mxu0
        %v3820 = vadd.f32 0.0, %v3819
        %v3821 = vpop.f32.mrb[0].mxu0
        %v3822 = vpop.f32.mrb[0].mxu0
        %v3823 = vadd.f32 0.0, %v3822
        %v3824 = vpop.f32.mrb[0].mxu0
        %3825 = vdwg.mxu0
        %v3826 = vmul.f32 %v3673, 0.35355338
        %v3827 = vmul.f32 %v3676, 0.35355338
        %v3828 = vmul.f32 %v3722, 0.35355338
        %v3829 = vmul.f32 %v3725, 0.35355338
        %v3830 = vmul.f32 %v3771, 0.35355338
        %v3831 = vmul.f32 %v3774, 0.35355338
        %v3832 = vmul.f32 %v3820, 0.35355338
        %v3833 = vmul.f32 %v3823, 0.35355338
        %v3834 = vsel %vm1093, %v3826, -inf
        %3835 = vmax.xlane.f32.xlu0 %v3834
        %v3836 = vpop.xlane.xlu0 %3835
        %v3837 = vsel %vm1093, %v3827, -inf
        %3838 = vmax.xlane.f32.xlu0 %v3837
        %v3839 = vpop.xlane.xlu0 %3838
        %v3840 = vsel %vm1093, %v3828, -inf
        %3841 = vmax.xlane.f32.xlu0 %v3840
        %v3842 = vpop.xlane.xlu0 %3841
        %v3843 = vsel %vm1093, %v3829, -inf
        %3844 = vmax.xlane.f32.xlu0 %v3843
        %v3845 = vpop.xlane.xlu0 %3844
        %v3846 = vsel %vm1093, %v3830, -inf
        %3847 = vmax.xlane.f32.xlu0 %v3846
        %v3848 = vpop.xlane.xlu0 %3847
        %v3849 = vsel %vm1093, %v3831, -inf
        %3850 = vmax.xlane.f32.xlu0 %v3849
        %v3851 = vpop.xlane.xlu0 %3850
        %v3852 = vsel %vm1093, %v3832, -inf
        %3853 = vmax.xlane.f32.xlu0 %v3852
        %v3854 = vpop.xlane.xlu0 %3853
        %v3855 = vsel %vm1093, %v3833, -inf
        %3856 = vmax.xlane.f32.xlu0 %v3855
        %v3857 = vpop.xlane.xlu0 %3856
        %v3858 = vsub.f32 %v3826, %v3836
        %v3859 = vsub.f32 %v3827, %v3839
        %v3860 = vsub.f32 %v3828, %v3842
        %v3861 = vsub.f32 %v3829, %v3845
        %v3862 = vsub.f32 %v3830, %v3848
        %v3863 = vsub.f32 %v3831, %v3851
        %v3864 = vsub.f32 %v3832, %v3854
        %v3865 = vsub.f32 %v3833, %v3857
        %v3866 = vmul.f32 %v3858, 1.442695
        %v3867 = vpow.pop %v3866
        %v3868 = vmul.f32 %v3859, 1.442695
        %v3869 = vpow.pop %v3868
        %v3870 = vmul.f32 %v3860, 1.442695
        %v3871 = vpow.pop %v3870
        %v3872 = vmul.f32 %v3861, 1.442695
        %v3873 = vpow.pop %v3872
        %v3874 = vmul.f32 %v3862, 1.442695
        %v3875 = vpow.pop %v3874
        %v3876 = vmul.f32 %v3863, 1.442695
        %v3877 = vpow.pop %v3876
        %v3878 = vmul.f32 %v3864, 1.442695
        %v3879 = vpow.pop %v3878
        %v3880 = vmul.f32 %v3865, 1.442695
        %v3881 = vpow.pop %v3880
        %v3882 = vsel %vm1093, %v3867, 0.0
        %3883 = vadd.xlane.f32.xlu0 %v3882
        %v3884 = vpop.xlane.xlu0 %3883
        %v3885 = vsel %vm1093, %v3869, 0.0
        %3886 = vadd.xlane.f32.xlu0 %v3885
        %v3887 = vpop.xlane.xlu0 %3886
        %v3888 = vsel %vm1093, %v3871, 0.0
        %3889 = vadd.xlane.f32.xlu0 %v3888
        %v3890 = vpop.xlane.xlu0 %3889
        %v3891 = vsel %vm1093, %v3873, 0.0
        %3892 = vadd.xlane.f32.xlu0 %v3891
        %v3893 = vpop.xlane.xlu0 %3892
        %v3894 = vsel %vm1093, %v3875, 0.0
        %3895 = vadd.xlane.f32.xlu0 %v3894
        %v3896 = vpop.xlane.xlu0 %3895
        %v3897 = vsel %vm1093, %v3877, 0.0
        %3898 = vadd.xlane.f32.xlu0 %v3897
        %v3899 = vpop.xlane.xlu0 %3898
        %v3900 = vsel %vm1093, %v3879, 0.0
        %3901 = vadd.xlane.f32.xlu0 %v3900
        %v3902 = vpop.xlane.xlu0 %3901
        %v3903 = vsel %vm1093, %v3881, 0.0
        %3904 = vadd.xlane.f32.xlu0 %v3903
        %v3905 = vpop.xlane.xlu0 %3904
        %v3906 = vrcp.pop %v3884
        %v3907 = vmul.f32 %v3867, %v3906
        %v3908 = vrcp.pop %v3887
        %v3909 = vmul.f32 %v3869, %v3908
        %v3910 = vrcp.pop %v3890
        %v3911 = vmul.f32 %v3871, %v3910
        %v3912 = vrcp.pop %v3893
        %v3913 = vmul.f32 %v3873, %v3912
        %v3914 = vrcp.pop %v3896
        %v3915 = vmul.f32 %v3875, %v3914
        %v3916 = vrcp.pop %v3899
        %v3917 = vmul.f32 %v3877, %v3916
        %v3918 = vrcp.pop %v3902
        %v3919 = vmul.f32 %v3879, %v3918
        %v3920 = vrcp.pop %v3905
        %v3921 = vmul.f32 %v3881, %v3920
        %v3922 = vpack.c.bf16 %v3909, %v3907
        %v3923 = vpack.c.bf16 %v3913, %v3911
        %v3924 = vpack.c.bf16 %v3917, %v3915
        %v3925 = vpack.c.bf16 %v3921, %v3919
        %3926 = vrot.lane.b32.xlu0 %v3622, 64
        %v3927 = vpop.permute.xlu0 %3926
        %v3930 = vsel %vm1093, %v3922, 0
        %3932 = vmatprep.subr.bf16.mxu0 0
        %3933 = vmatpush1.bf16.msra.mxu0 %v3927
        %3934 = vmatprep.subr.bf16.mxu0 0
        %3935 = vmatpush1.bf16.msra.mxu0 0
        %3936 = vmatprep.subr.bf16.mxu0 0
        %3937 = vmatpush1.bf16.msra.mxu0 0
        %3938 = vmatprep.subr.bf16.mxu0 0
        %3939 = vmatpush1.bf16.msra.mxu0 0
        %3940 = vmatprep.subr.bf16.mxu0 0
        %3941 = vmatpush1.bf16.msra.mxu0 0
        %3942 = vmatprep.subr.bf16.mxu0 0
        %3943 = vmatpush1.bf16.msra.mxu0 0
        %3944 = vmatprep.subr.bf16.mxu0 0
        %3945 = vmatpush1.bf16.msra.mxu0 0
        %3946 = vmatprep.subr.bf16.mxu0 0
        %3947 = vmatpush1.bf16.msra.mxu0 0
        %3948 = vmatprep.subr.bf16.mxu0 0
        %3949 = vmatpush1.bf16.msra.mxu0 0
        %3950 = vmatprep.subr.bf16.mxu0 0
        %3951 = vmatpush1.bf16.msra.mxu0 0
        %3952 = vmatprep.subr.bf16.mxu0 0
        %3953 = vmatpush1.bf16.msra.mxu0 0
        %3954 = vmatprep.subr.bf16.mxu0 0
        %3955 = vmatpush1.bf16.msra.mxu0 0
        %3956 = vmatprep.subr.bf16.mxu0 0
        %3957 = vmatpush1.bf16.msra.mxu0 0
        %3958 = vmatprep.subr.bf16.mxu0 0
        %3959 = vmatpush1.bf16.msra.mxu0 0
        %3960 = vmatprep.subr.bf16.mxu0 0
        %3961 = vmatpush1.bf16.msra.mxu0 0
        %3962 = vmatprep.subr.bf16.mxu0 0
        %3963 = vmatpush1.bf16.msra.mxu0 0
        %3964 = vmatprep.mubr.bf16.mxu0 0
        %3965 = vmatmul.mubr.bf16.gmra.mrb[0].mxu0 %v3930
        %v3966 = vpop.f32.mrb[0].mxu0
        %v3967 = vadd.f32 0.0, %v3966
        %v3968 = vpop.f32.mrb[0].mxu0
        %v3969 = vpop.f32.mrb[0].mxu0
        %v3970 = vadd.f32 0.0, %v3969
        %v3971 = vpop.f32.mrb[0].mxu0
        %3972 = vdwg.mxu0
        %3973 = vrot.lane.b32.xlu0 %v3625, 64
        %v3974 = vpop.permute.xlu0 %3973
        %v3977 = vsel %vm1093, %v3923, 0
        %3979 = vmatprep.subr.bf16.mxu0 0
        %3980 = vmatpush1.bf16.msra.mxu0 %v3974
        %3981 = vmatprep.subr.bf16.mxu0 0
        %3982 = vmatpush1.bf16.msra.mxu0 0
        %3983 = vmatprep.subr.bf16.mxu0 0
        %3984 = vmatpush1.bf16.msra.mxu0 0
        %3985 = vmatprep.subr.bf16.mxu0 0
        %3986 = vmatpush1.bf16.msra.mxu0 0
        %3987 = vmatprep.subr.bf16.mxu0 0
        %3988 = vmatpush1.bf16.msra.mxu0 0
        %3989 = vmatprep.subr.bf16.mxu0 0
        %3990 = vmatpush1.bf16.msra.mxu0 0
        %3991 = vmatprep.subr.bf16.mxu0 0
        %3992 = vmatpush1.bf16.msra.mxu0 0
        %3993 = vmatprep.subr.bf16.mxu0 0
        %3994 = vmatpush1.bf16.msra.mxu0 0
        %3995 = vmatprep.subr.bf16.mxu0 0
        %3996 = vmatpush1.bf16.msra.mxu0 0
        %3997 = vmatprep.subr.bf16.mxu0 0
        %3998 = vmatpush1.bf16.msra.mxu0 0
        %3999 = vmatprep.subr.bf16.mxu0 0
        %4000 = vmatpush1.bf16.msra.mxu0 0
        %4001 = vmatprep.subr.bf16.mxu0 0
        %4002 = vmatpush1.bf16.msra.mxu0 0
        %4003 = vmatprep.subr.bf16.mxu0 0
        %4004 = vmatpush1.bf16.msra.mxu0 0
        %4005 = vmatprep.subr.bf16.mxu0 0
        %4006 = vmatpush1.bf16.msra.mxu0 0
        %4007 = vmatprep.subr.bf16.mxu0 0
        %4008 = vmatpush1.bf16.msra.mxu0 0
        %4009 = vmatprep.subr.bf16.mxu0 0
        %4010 = vmatpush1.bf16.msra.mxu0 0
        %4011 = vmatprep.mubr.bf16.mxu0 0
        %4012 = vmatmul.mubr.bf16.gmra.mrb[0].mxu0 %v3977
        %v4013 = vpop.f32.mrb[0].mxu0
        %v4014 = vadd.f32 0.0, %v4013
        %v4015 = vpop.f32.mrb[0].mxu0
        %v4016 = vpop.f32.mrb[0].mxu0
        %v4017 = vadd.f32 0.0, %v4016
        %v4018 = vpop.f32.mrb[0].mxu0
        %4019 = vdwg.mxu0
        %4020 = vrot.lane.b32.xlu0 %v3627, 64
        %v4021 = vpop.permute.xlu0 %4020
        %v4024 = vsel %vm1093, %v3924, 0
        %4026 = vmatprep.subr.bf16.mxu0 0
        %4027 = vmatpush1.bf16.msra.mxu0 %v4021
        %4028 = vmatprep.subr.bf16.mxu0 0
        %4029 = vmatpush1.bf16.msra.mxu0 0
        %4030 = vmatprep.subr.bf16.mxu0 0
        %4031 = vmatpush1.bf16.msra.mxu0 0
        %4032 = vmatprep.subr.bf16.mxu0 0
        %4033 = vmatpush1.bf16.msra.mxu0 0
        %4034 = vmatprep.subr.bf16.mxu0 0
        %4035 = vmatpush1.bf16.msra.mxu0 0
        %4036 = vmatprep.subr.bf16.mxu0 0
        %4037 = vmatpush1.bf16.msra.mxu0 0
        %4038 = vmatprep.subr.bf16.mxu0 0
        %4039 = vmatpush1.bf16.msra.mxu0 0
        %4040 = vmatprep.subr.bf16.mxu0 0
        %4041 = vmatpush1.bf16.msra.mxu0 0
        %4042 = vmatprep.subr.bf16.mxu0 0
        %4043 = vmatpush1.bf16.msra.mxu0 0
        %4044 = vmatprep.subr.bf16.mxu0 0
        %4045 = vmatpush1.bf16.msra.mxu0 0
        %4046 = vmatprep.subr.bf16.mxu0 0
        %4047 = vmatpush1.bf16.msra.mxu0 0
        %4048 = vmatprep.subr.bf16.mxu0 0
        %4049 = vmatpush1.bf16.msra.mxu0 0
        %4050 = vmatprep.subr.bf16.mxu0 0
        %4051 = vmatpush1.bf16.msra.mxu0 0
        %4052 = vmatprep.subr.bf16.mxu0 0
        %4053 = vmatpush1.bf16.msra.mxu0 0
        %4054 = vmatprep.subr.bf16.mxu0 0
        %4055 = vmatpush1.bf16.msra.mxu0 0
        %4056 = vmatprep.subr.bf16.mxu0 0
        %4057 = vmatpush1.bf16.msra.mxu0 0
        %4058 = vmatprep.mubr.bf16.mxu0 0
        %4059 = vmatmul.mubr.bf16.gmra.mrb[0].mxu0 %v4024
        %v4060 = vpop.f32.mrb[0].mxu0
        %v4061 = vadd.f32 0.0, %v4060
        %v4062 = vpop.f32.mrb[0].mxu0
        %v4063 = vpop.f32.mrb[0].mxu0
        %v4064 = vadd.f32 0.0, %v4063
        %v4065 = vpop.f32.mrb[0].mxu0
        %4066 = vdwg.mxu0
        %4067 = vrot.lane.b32.xlu0 %v3629, 64
        %v4068 = vpop.permute.xlu0 %4067
        %v4071 = vsel %vm1093, %v3925, 0
        %4073 = vmatprep.subr.bf16.mxu0 0
        %4074 = vmatpush1.bf16.msra.mxu0 %v4068
        %4075 = vmatprep.subr.bf16.mxu0 0
        %4076 = vmatpush1.bf16.msra.mxu0 0
        %4077 = vmatprep.subr.bf16.mxu0 0
        %4078 = vmatpush1.bf16.msra.mxu0 0
        %4079 = vmatprep.subr.bf16.mxu0 0
        %4080 = vmatpush1.bf16.msra.mxu0 0
        %4081 = vmatprep.subr.bf16.mxu0 0
        %4082 = vmatpush1.bf16.msra.mxu0 0
        %4083 = vmatprep.subr.bf16.mxu0 0
        %4084 = vmatpush1.bf16.msra.mxu0 0
        %4085 = vmatprep.subr.bf16.mxu0 0
        %4086 = vmatpush1.bf16.msra.mxu0 0
        %4087 = vmatprep.subr.bf16.mxu0 0
        %4088 = vmatpush1.bf16.msra.mxu0 0
        %4089 = vmatprep.subr.bf16.mxu0 0
        %4090 = vmatpush1.bf16.msra.mxu0 0
        %4091 = vmatprep.subr.bf16.mxu0 0
        %4092 = vmatpush1.bf16.msra.mxu0 0
        %4093 = vmatprep.subr.bf16.mxu0 0
        %4094 = vmatpush1.bf16.msra.mxu0 0
        %4095 = vmatprep.subr.bf16.mxu0 0
        %4096 = vmatpush1.bf16.msra.mxu0 0
        %4097 = vmatprep.subr.bf16.mxu0 0
        %4098 = vmatpush1.bf16.msra.mxu0 0
        %4099 = vmatprep.subr.bf16.mxu0 0
        %4100 = vmatpush1.bf16.msra.mxu0 0
        %4101 = vmatprep.subr.bf16.mxu0 0
        %4102 = vmatpush1.bf16.msra.mxu0 0
        %4103 = vmatprep.subr.bf16.mxu0 0
        %4104 = vmatpush1.bf16.msra.mxu0 0
        %4105 = vmatprep.mubr.bf16.mxu0 0
        %4106 = vmatmul.mubr.bf16.gmra.mrb[0].mxu0 %v4071
        %v4107 = vpop.f32.mrb[0].mxu0
        %v4108 = vadd.f32 0.0, %v4107
        %v4109 = vpop.f32.mrb[0].mxu0
        %v4110 = vpop.f32.mrb[0].mxu0
        %v4111 = vadd.f32 0.0, %v4110
        %v4112 = vpop.f32.mrb[0].mxu0
        %4113 = vdwg.mxu0
        %4116 = vrot.lane.b32.xlu0 %v4014, 8
        %v4117 = vpop.permute.xlu0 %4116
        %4118 = vrot.lane.b32.xlu0 %v4017, 8
        %v4119 = vpop.permute.xlu0 %4118
        %4124 = vrot.lane.b32.xlu0 %v4061, 16
        %v4125 = vpop.permute.xlu0 %4124
        %4126 = vrot.lane.b32.xlu0 %v4064, 16
        %v4127 = vpop.permute.xlu0 %4126
        %4132 = vrot.lane.b32.xlu0 %v4108, 24
        %v4133 = vpop.permute.xlu0 %4132
        %4134 = vrot.lane.b32.xlu0 %v4111, 24
        %v4135 = vpop.permute.xlu0 %4134
        %v4138 = vsel %vm890, %v3967, %v4117
        %v4139 = vsel %vm890, %v3970, %v4119
        %v4140 = vsel %vm1093, %v4138, %v4125
        %v4141 = vsel %vm1093, %v4139, %v4127
        %v4142 = vsel %vm1402, %v4140, %v4133
        %v4143 = vsel %vm1402, %v4141, %v4135
        %s4144 = scalar_lea.vmem %s6, 48
        %v4145 = vld [vmem:[%s4144] sm:$0xf]
        %v4146 = vld [vmem:[%s4144 + $0x4] sm:$0xf]
        %v4147 = vld [vmem:[%s4144 + $0x8] sm:$0xf]
        %v4148 = vld [vmem:[%s4144 + $0xc] sm:$0xf]
        %v4149 = vpack.c.bf16 %v4143, %v4142
        %s4150 = scalar_lea.vmem %s7, 3
        %v4151 = vld [vmem:[%s4150] sm:$0x1]
        %v4153 = vlaneseq
        %v4154 = vshrl.u32 %v4153, 7
        %v4155 = vsub.s32 0, %v4154
        %v4156 = vrot.slane %v4151, %v4155
        %v4162 = vunpack.c.l.b16 %v4145
        %v4163 = vunpack.c.l.b16 %v4146
        %v4164 = vunpack.c.l.b16 %v4147
        %v4165 = vunpack.c.l.b16 %v4148
        %v4166 = vpack.c.b16 %v4163, %v4162
        %v4167 = vpack.c.b16 %v4165, %v4164
        %v4171 = vsel %vm835, %v4149, 0
        %4173 = vmatprep.subr.bf16.mxu0 0
        %4174 = vmatpush1.bf16.msra.mxu0 %v4166
        %4175 = vmatprep.subr.bf16.mxu0 0
        %4176 = vmatpush1.bf16.msra.mxu0 %v4167
        %4177 = vmatprep.subr.bf16.mxu0 0
        %4178 = vmatpush1.bf16.msra.mxu0 0
        %4179 = vmatprep.subr.bf16.mxu0 0
        %4180 = vmatpush1.bf16.msra.mxu0 0
        %4181 = vmatprep.subr.bf16.mxu0 0
        %4182 = vmatpush1.bf16.msra.mxu0 0
        %4183 = vmatprep.subr.bf16.mxu0 0
        %4184 = vmatpush1.bf16.msra.mxu0 0
        %4185 = vmatprep.subr.bf16.mxu0 0
        %4186 = vmatpush1.bf16.msra.mxu0 0
        %4187 = vmatprep.subr.bf16.mxu0 0
        %4188 = vmatpush1.bf16.msra.mxu0 0
        %4189 = vmatprep.subr.bf16.mxu0 0
        %4190 = vmatpush1.bf16.msra.mxu0 0
        %4191 = vmatprep.subr.bf16.mxu0 0
        %4192 = vmatpush1.bf16.msra.mxu0 0
        %4193 = vmatprep.subr.bf16.mxu0 0
        %4194 = vmatpush1.bf16.msra.mxu0 0
        %4195 = vmatprep.subr.bf16.mxu0 0
        %4196 = vmatpush1.bf16.msra.mxu0 0
        %4197 = vmatprep.subr.bf16.mxu0 0
        %4198 = vmatpush1.bf16.msra.mxu0 0
        %4199 = vmatprep.subr.bf16.mxu0 0
        %4200 = vmatpush1.bf16.msra.mxu0 0
        %4201 = vmatprep.subr.bf16.mxu0 0
        %4202 = vmatpush1.bf16.msra.mxu0 0
        %4203 = vmatprep.subr.bf16.mxu0 0
        %4204 = vmatpush1.bf16.msra.mxu0 0
        %4205 = vmatprep.mubr.bf16.mxu0 0
        %4206 = vmatmul.mubr.bf16.gmra.mrb[0].mxu0 %v4171
        %v4207 = vpop.f32.mrb[0].mxu0
        %v4208 = vadd.f32 %v4156, %v4207
        %v4209 = vpop.f32.mrb[0].mxu0
        %v4210 = vpop.f32.mrb[0].mxu0
        %v4211 = vadd.f32 %v4156, %v4210
        %v4212 = vpop.f32.mrb[0].mxu0
        %4213 = vdwg.mxu0
        %v4214 = vadd.f32 %v3550, %v4208
        %v4215 = vadd.f32 %v3551, %v4211
        %s4216 = scalar_lea.vmem %s8, 3
        %v4217 = vld [vmem:[%s4216] sm:$0x1]
        %s4218 = scalar_lea.vmem %s9, 3
        %v4219 = vld [vmem:[%s4218] sm:$0x1]
        %v4220 = vsel %vm835, %v4214, 0.0
        %4221 = vadd.xlane.f32.xlu0 %v4220
        %v4222 = vpop.xlane.xlu0 %4221
        %v4223 = vsel %vm835, %v4215, 0.0
        %4224 = vadd.xlane.f32.xlu0 %v4223
        %v4225 = vpop.xlane.xlu0 %4224
        %v4226 = vmul.f32 %v4222, %v1483
        %v4227 = vmul.f32 %v4225, %v1483
        %v4228 = vsub.f32 %v4214, %v4226
        %v4229 = vsub.f32 %v4215, %v4227
        %v4230 = vmul.f32 %v4228, %v4228
        %v4231 = vmul.f32 %v4229, %v4229
        %v4232 = vsel %vm835, %v4230, 0.0
        %4233 = vadd.xlane.f32.xlu0 %v4232
        %v4234 = vpop.xlane.xlu0 %4233
        %v4235 = vsel %vm835, %v4231, 0.0
        %4236 = vadd.xlane.f32.xlu0 %v4235
        %v4237 = vpop.xlane.xlu0 %4236
        %v4238 = vmul.f32 %v4234, %v1483
        %v4239 = vmul.f32 %v4237, %v1483
        %v4240 = vadd.f32 %v4238, 1e-05
        %v4241 = vadd.f32 %v4239, 1e-05
        %v4242 = vrsqrt.pop %v4240
        %v4243 = vrsqrt.pop %v4241
        %v4244 = vmul.f32 %v4228, %v4242
        %v4245 = vmul.f32 %v4229, %v4243
        %v4247 = vlaneseq
        %v4248 = vshrl.u32 %v4247, 7
        %v4249 = vsub.s32 0, %v4248
        %v4250 = vrot.slane %v4217, %v4249
        %v4252 = vmul.f32 %v4244, %v4250
        %v4253 = vmul.f32 %v4245, %v4250
        %v4255 = vlaneseq
        %v4256 = vshrl.u32 %v4255, 7
        %v4257 = vsub.s32 0, %v4256
        %v4258 = vrot.slane %v4219, %v4257
        %v4260 = vadd.f32 %v4252, %v4258
        %v4261 = vadd.f32 %v4253, %v4258
        %s4262 = scalar_lea.vmem %s10, 48
        %v4263 = vld [vmem:[%s4262] sm:$0xf]
        %v4264 = vld [vmem:[%s4262 + $0x4] sm:$0xf]
        %v4265 = vld [vmem:[%s4262 + $0x8] sm:$0xf]
        %v4266 = vld [vmem:[%s4262 + $0xc] sm:$0xf]
        %v4267 = vpack.c.bf16 %v4261, %v4260
        %s4268 = scalar_lea.vmem %s11, 3
        %v4269 = vld [vmem:[%s4268] sm:$0x1]
        %v4271 = vlaneseq
        %v4272 = vshrl.u32 %v4271, 7
        %v4273 = vsub.s32 0, %v4272
        %v4274 = vrot.slane %v4269, %v4273
        %v4280 = vunpack.c.l.b16 %v4263
        %v4281 = vunpack.c.l.b16 %v4264
        %v4282 = vunpack.c.l.b16 %v4265
        %v4283 = vunpack.c.l.b16 %v4266
        %v4284 = vpack.c.b16 %v4281, %v4280
        %v4285 = vpack.c.b16 %v4283, %v4282
        %v4289 = vsel %vm835, %v4267, 0
        %4291 = vmatprep.subr.bf16.mxu0 0
        %4292 = vmatpush1.bf16.msra.mxu0 %v4284
        %4293 = vmatprep.subr.bf16.mxu0 0
        %4294 = vmatpush1.bf16.msra.mxu0 %v4285
        %4295 = vmatprep.subr.bf16.mxu0 0
        %4296 = vmatpush1.bf16.msra.mxu0 0
        %4297 = vmatprep.subr.bf16.mxu0 0
        %4298 = vmatpush1.bf16.msra.mxu0 0
        %4299 = vmatprep.subr.bf16.mxu0 0
        %4300 = vmatpush1.bf16.msra.mxu0 0
        %4301 = vmatprep.subr.bf16.mxu0 0
        %4302 = vmatpush1.bf16.msra.mxu0 0
        %4303 = vmatprep.subr.bf16.mxu0 0
        %4304 = vmatpush1.bf16.msra.mxu0 0
        %4305 = vmatprep.subr.bf16.mxu0 0
        %4306 = vmatpush1.bf16.msra.mxu0 0
        %4307 = vmatprep.subr.bf16.mxu0 0
        %4308 = vmatpush1.bf16.msra.mxu0 0
        %4309 = vmatprep.subr.bf16.mxu0 0
        %4310 = vmatpush1.bf16.msra.mxu0 0
        %4311 = vmatprep.subr.bf16.mxu0 0
        %4312 = vmatpush1.bf16.msra.mxu0 0
        %4313 = vmatprep.subr.bf16.mxu0 0
        %4314 = vmatpush1.bf16.msra.mxu0 0
        %4315 = vmatprep.subr.bf16.mxu0 0
        %4316 = vmatpush1.bf16.msra.mxu0 0
        %4317 = vmatprep.subr.bf16.mxu0 0
        %4318 = vmatpush1.bf16.msra.mxu0 0
        %4319 = vmatprep.subr.bf16.mxu0 0
        %4320 = vmatpush1.bf16.msra.mxu0 0
        %4321 = vmatprep.subr.bf16.mxu0 0
        %4322 = vmatpush1.bf16.msra.mxu0 0
        %4323 = vmatprep.mubr.bf16.mxu0 0
        %4324 = vmatmul.mubr.bf16.gmra.mrb[0].mxu0 %v4289
        %v4325 = vpop.f32.mrb[0].mxu0
        %v4326 = vadd.f32 %v4274, %v4325
        %v4327 = vpop.f32.mrb[0].mxu0
        %v4328 = vpop.f32.mrb[0].mxu0
        %v4329 = vadd.f32 %v4274, %v4328
        %v4330 = vpop.f32.mrb[0].mxu0
        %4331 = vdwg.mxu0
        %v4332 = vmax.f32 %v4326, 0.0
        %v4333 = vmax.f32 %v4329, 0.0
        %s4334 = scalar_lea.vmem %s12, 96
        %v4335 = vld [vmem:[%s4334] sm:$0xf]
        %v4336 = vld [vmem:[%s4334 + $0x4] sm:$0xf]
        %v4337 = vld [vmem:[%s4334 + $0x8] sm:$0xf]
        %v4338 = vld [vmem:[%s4334 + $0xc] sm:$0xf]
        %v4339 = vld [vmem:[%s4334 + $0x10] sm:$0xf]
        %v4340 = vld [vmem:[%s4334 + $0x14] sm:$0xf]
        %v4341 = vld [vmem:[%s4334 + $0x18] sm:$0xf]
        %v4342 = vld [vmem:[%s4334 + $0x1c] sm:$0xf]
        %v4343 = vpack.c.bf16 %v4333, %v4332
        %s4344 = scalar_lea.vmem %s13, 3
        %v4345 = vld [vmem:[%s4344] sm:$0x1]
        %v4347 = vlaneseq
        %v4348 = vshrl.u32 %v4347, 7
        %v4349 = vsub.s32 0, %v4348
        %v4350 = vrot.slane %v4345, %v4349
        %v4360 = vunpack.c.l.b16 %v4335
        %v4361 = vunpack.c.l.b16 %v4336
        %v4362 = vunpack.c.l.b16 %v4337
        %v4363 = vunpack.c.l.b16 %v4338
        %v4364 = vunpack.c.l.b16 %v4339
        %v4365 = vunpack.c.l.b16 %v4340
        %v4366 = vunpack.c.l.b16 %v4341
        %v4367 = vunpack.c.l.b16 %v4342
        %v4368 = vpack.c.b16 %v4361, %v4360
        %v4369 = vpack.c.b16 %v4363, %v4362
        %v4370 = vpack.c.b16 %v4365, %v4364
        %v4371 = vpack.c.b16 %v4367, %v4366
        %v4377 = vsel %vm762, %v4343, 0
        %4379 = vmatprep.subr.bf16.mxu0 0
        %4380 = vmatpush1.bf16.msra.mxu0 %v4368
        %4381 = vmatprep.subr.bf16.mxu0 0
        %4382 = vmatpush1.bf16.msra.mxu0 %v4369
        %4383 = vmatprep.subr.bf16.mxu0 0
        %4384 = vmatpush1.bf16.msra.mxu0 %v4370
        %4385 = vmatprep.subr.bf16.mxu0 0
        %4386 = vmatpush1.bf16.msra.mxu0 %v4371
        %4387 = vmatprep.subr.bf16.mxu0 0
        %4388 = vmatpush1.bf16.msra.mxu0 0
        %4389 = vmatprep.subr.bf16.mxu0 0
        %4390 = vmatpush1.bf16.msra.mxu0 0
        %4391 = vmatprep.subr.bf16.mxu0 0
        %4392 = vmatpush1.bf16.msra.mxu0 0
        %4393 = vmatprep.subr.bf16.mxu0 0
        %4394 = vmatpush1.bf16.msra.mxu0 0
        %4395 = vmatprep.subr.bf16.mxu0 0
        %4396 = vmatpush1.bf16.msra.mxu0 0
        %4397 = vmatprep.subr.bf16.mxu0 0
        %4398 = vmatpush1.bf16.msra.mxu0 0
        %4399 = vmatprep.subr.bf16.mxu0 0
        %4400 = vmatpush1.bf16.msra.mxu0 0
        %4401 = vmatprep.subr.bf16.mxu0 0
        %4402 = vmatpush1.bf16.msra.mxu0 0
        %4403 = vmatprep.subr.bf16.mxu0 0
        %4404 = vmatpush1.bf16.msra.mxu0 0
        %4405 = vmatprep.subr.bf16.mxu0 0
        %4406 = vmatpush1.bf16.msra.mxu0 0
        %4407 = vmatprep.subr.bf16.mxu0 0
        %4408 = vmatpush1.bf16.msra.mxu0 0
        %4409 = vmatprep.subr.bf16.mxu0 0
        %4410 = vmatpush1.bf16.msra.mxu0 0
        %4411 = vmatprep.mubr.bf16.mxu0 0
        %4412 = vmatmul.mubr.bf16.gmra.mrb[0].mxu0 %v4377
        %v4413 = vpop.f32.mrb[0].mxu0
        %v4414 = vadd.f32 %v4350, %v4413
        %v4415 = vpop.f32.mrb[0].mxu0
        %v4416 = vpop.f32.mrb[0].mxu0
        %v4417 = vadd.f32 %v4350, %v4416
        %v4418 = vpop.f32.mrb[0].mxu0
        %4419 = vdwg.mxu0
        %v4420 = vadd.f32 %v4260, %v4414
        %v4421 = vadd.f32 %v4261, %v4417
        %s4422 = scalar_lea.vmem %s14, 3
        %v4423 = vld [vmem:[%s4422] sm:$0x1]
        %s4424 = scalar_lea.vmem %s15, 3
        %v4425 = vld [vmem:[%s4424] sm:$0x1]
        %v4426 = vsel %vm835, %v4420, 0.0
        %4427 = vadd.xlane.f32.xlu0 %v4426
        %v4428 = vpop.xlane.xlu0 %4427
        %v4429 = vsel %vm835, %v4421, 0.0
        %4430 = vadd.xlane.f32.xlu0 %v4429
        %v4431 = vpop.xlane.xlu0 %4430
        %v4432 = vmul.f32 %v4428, %v1483
        %v4433 = vmul.f32 %v4431, %v1483
        %v4434 = vsub.f32 %v4420, %v4432
        %v4435 = vsub.f32 %v4421, %v4433
        %v4436 = vmul.f32 %v4434, %v4434
        %v4437 = vmul.f32 %v4435, %v4435
        %v4438 = vsel %vm835, %v4436, 0.0
        %4439 = vadd.xlane.f32.xlu0 %v4438
        %v4440 = vpop.xlane.xlu0 %4439
        %v4441 = vsel %vm835, %v4437, 0.0
        %4442 = vadd.xlane.f32.xlu0 %v4441
        %v4443 = vpop.xlane.xlu0 %4442
        %v4444 = vmul.f32 %v4440, %v1483
        %v4445 = vmul.f32 %v4443, %v1483
        %v4446 = vadd.f32 %v4444, 1e-05
        %v4447 = vadd.f32 %v4445, 1e-05
        %v4448 = vrsqrt.pop %v4446
        %v4449 = vrsqrt.pop %v4447
        %v4450 = vmul.f32 %v4434, %v4448
        %v4451 = vmul.f32 %v4435, %v4449
        %v4453 = vlaneseq
        %v4454 = vshrl.u32 %v4453, 7
        %v4455 = vsub.s32 0, %v4454
        %v4456 = vrot.slane %v4423, %v4455
        %v4458 = vmul.f32 %v4450, %v4456
        %v4459 = vmul.f32 %v4451, %v4456
        %v4461 = vlaneseq
        %v4462 = vshrl.u32 %v4461, 7
        %v4463 = vsub.s32 0, %v4462
        %v4464 = vrot.slane %v4425, %v4463
        %v4466 = vadd.f32 %v4458, %v4464
        %v4467 = vadd.f32 %v4459, %v4464
        %vm4468 = vcmask 261121
        %4469 = vst.msk [vmem:[%s718 - $0x1] sm:$0xfe] %vm4468, %v4466
        %vm4470 = vcmask 253952
        %4471 = vst.msk [vmem:[%s718 + $0x7] sm:$0x1] %vm4470, %v4467
        %v4472 = vld [vmem:[%s16] sm:$0xff]
        %v4473 = vld [vmem:[%s16 + $0x8] sm:$0xff]
        %v4474 = vld [vmem:[%s16 + $0x10] sm:$0xff]
        %v4475 = vld [vmem:[%s16 + $0x18] sm:$0xff]
        %v4476 = vpack.c.bf16 %v4466, %v4466
        %v4477 = vld [vmem:[%s17] sm:$0x3]
        %v4482 = vunpack.c.l.b16 %v4472
        %v4483 = vunpack.c.h.b16 %v4472
        %v4484 = vunpack.c.l.b16 %v4473
        %v4485 = vunpack.c.h.b16 %v4473
        %v4486 = vunpack.c.l.b16 %v4474
        %v4487 = vunpack.c.h.b16 %v4474
        %v4488 = vunpack.c.l.b16 %v4475
        %v4489 = vunpack.c.h.b16 %v4475
        %v4490 = vpack.c.b16 %v4484, %v4482
        %v4491 = vpack.c.b16 %v4485, %v4483
        %v4492 = vpack.c.b16 %v4488, %v4486
        %v4493 = vpack.c.b16 %v4489, %v4487
        %v4499 = vlaneseq
        %v4500 = vshrl.u32 %v4499, 7
        %v4501 = vsub.s32 0, %v4500
        %v4502 = vrot.slane %v4477, %v4501
        %v4503 = vlaneseq
        %v4504 = vshrl.u32 %v4503, 7
        %v4505 = vsub.s32 1, %v4504
        %v4506 = vrot.slane %v4477, %v4505
        %v4510 = vsel %vm835, %v4476, 0
        %4512 = vmatprep.subr.bf16.mxu0 %v4491
        %4513 = vmatpush1.bf16.msra.mxu0 %v4490
        %4514 = vmatprep.subr.bf16.mxu0 %v4493
        %4515 = vmatpush1.bf16.msra.mxu0 %v4492
        %4516 = vmatprep.subr.bf16.mxu0 0
        %4517 = vmatpush1.bf16.msra.mxu0 0
        %4518 = vmatprep.subr.bf16.mxu0 0
        %4519 = vmatpush1.bf16.msra.mxu0 0
        %4520 = vmatprep.subr.bf16.mxu0 0
        %4521 = vmatpush1.bf16.msra.mxu0 0
        %4522 = vmatprep.subr.bf16.mxu0 0
        %4523 = vmatpush1.bf16.msra.mxu0 0
        %4524 = vmatprep.subr.bf16.mxu0 0
        %4525 = vmatpush1.bf16.msra.mxu0 0
        %4526 = vmatprep.subr.bf16.mxu0 0
        %4527 = vmatpush1.bf16.msra.mxu0 0
        %4528 = vmatprep.subr.bf16.mxu0 0
        %4529 = vmatpush1.bf16.msra.mxu0 0
        %4530 = vmatprep.subr.bf16.mxu0 0
        %4531 = vmatpush1.bf16.msra.mxu0 0
        %4532 = vmatprep.subr.bf16.mxu0 0
        %4533 = vmatpush1.bf16.msra.mxu0 0
        %4534 = vmatprep.subr.bf16.mxu0 0
        %4535 = vmatpush1.bf16.msra.mxu0 0
        %4536 = vmatprep.subr.bf16.mxu0 0
        %4537 = vmatpush1.bf16.msra.mxu0 0
        %4538 = vmatprep.subr.bf16.mxu0 0
        %4539 = vmatpush1.bf16.msra.mxu0 0
        %4540 = vmatprep.subr.bf16.mxu0 0
        %4541 = vmatpush1.bf16.msra.mxu0 0
        %4542 = vmatprep.subr.bf16.mxu0 0
        %4543 = vmatpush1.bf16.msra.mxu0 0
        %4544 = vmatprep.mubr.bf16.mxu0 0
        %4545 = vmatmul.mubr.bf16.gmra.mrb[0].mxu0 %v4510
        %v4546 = vpop.f32.mrb[0].mxu0
        %v4547 = vadd.f32 %v4502, %v4546
        %v4548 = vpop.f32.mrb[0].mxu0
        %v4549 = vadd.f32 %v4506, %v4548
        %v4550 = vpop.f32.mrb[0].mxu0
        %v4551 = vpop.f32.mrb[0].mxu0
        %4552 = vdwg.mxu0
        %vm4553 = vcmp.ge.f32.partialorder %v4547, 0.0
        %vm4554 = vcmp.ge.f32.partialorder %v4549, 0.0
        %v4555 = vmul.f32 %v4547, 0.01
        %v4556 = vmul.f32 %v4549, 0.01
        %v4557 = vsel %vm4553, %v4547, %v4555
        %v4558 = vsel %vm4554, %v4549, %v4556
        %v4559 = vld [vmem:[%s18] sm:$0xff]
        %v4560 = vld [vmem:[%s18 + $0x8] sm:$0xff]
        %v4561 = vld [vmem:[%s18 + $0x10] sm:$0xff]
        %v4562 = vld [vmem:[%s18 + $0x18] sm:$0xff]
        %v4563 = vld [vmem:[%s18 + $0x20] sm:$0xff]
        %v4564 = vld [vmem:[%s18 + $0x28] sm:$0xff]
        %v4565 = vld [vmem:[%s18 + $0x30] sm:$0xff]
        %v4566 = vld [vmem:[%s18 + $0x38] sm:$0xff]
        %v4567 = vld [vmem:[%s18 + $0x40] sm:$0xff]
        %v4568 = vld [vmem:[%s18 + $0x48] sm:$0xff]
        %v4569 = vld [vmem:[%s18 + $0x50] sm:$0xff]
        %v4570 = vld [vmem:[%s18 + $0x58] sm:$0xff]
        %v4571 = vld [vmem:[%s18 + $0x60] sm:$0xff]
        %v4572 = vld [vmem:[%s18 + $0x68] sm:$0xff]
        %v4573 = vld [vmem:[%s18 + $0x70] sm:$0xff]
        %v4574 = vld [vmem:[%s18 + $0x78] sm:$0xff]
        %v4575 = vld [vmem:[%s18 + $0x80] sm:$0xff]
        %v4576 = vld [vmem:[%s18 + $0x88] sm:$0xff]
        %v4577 = vld [vmem:[%s18 + $0x90] sm:$0xff]
        %v4578 = vld [vmem:[%s18 + $0x98] sm:$0xff]
        %v4579 = vld [vmem:[%s18 + $0xa0] sm:$0xff]
        %v4580 = vld [vmem:[%s18 + $0xa8] sm:$0xff]
        %v4581 = vld [vmem:[%s18 + $0xb0] sm:$0xff]
        %v4582 = vld [vmem:[%s18 + $0xb8] sm:$0xff]
        %v4583 = vld [vmem:[%s18 + $0xc0] sm:$0xff]
        %v4584 = vld [vmem:[%s18 + $0xc8] sm:$0xff]
        %v4585 = vld [vmem:[%s18 + $0xd0] sm:$0xff]
        %v4586 = vld [vmem:[%s18 + $0xd8] sm:$0xff]
        %v4587 = vld [vmem:[%s18 + $0xe0] sm:$0xff]
        %v4588 = vld [vmem:[%s18 + $0xe8] sm:$0xff]
        %v4589 = vld [vmem:[%s18 + $0xf0] sm:$0xff]
        %v4590 = vld [vmem:[%s18 + $0xf8] sm:$0xff]
        %v4591 = vpack.c.bf16 %v4557, %v4557
        %v4592 = vpack.c.bf16 %v4558, %v4558
        %v4593 = vld [vmem:[%s19] sm:$0x3]
        %v4626 = vunpack.c.l.b16 %v4559
        %v4627 = vunpack.c.h.b16 %v4559
        %v4628 = vunpack.c.l.b16 %v4560
        %v4629 = vunpack.c.h.b16 %v4560
        %v4630 = vunpack.c.l.b16 %v4561
        %v4631 = vunpack.c.h.b16 %v4561
        %v4632 = vunpack.c.l.b16 %v4562
        %v4633 = vunpack.c.h.b16 %v4562
        %v4634 = vunpack.c.l.b16 %v4563
        %v4635 = vunpack.c.h.b16 %v4563
        %v4636 = vunpack.c.l.b16 %v4564
        %v4637 = vunpack.c.h.b16 %v4564
        %v4638 = vunpack.c.l.b16 %v4565
        %v4639 = vunpack.c.h.b16 %v4565
        %v4640 = vunpack.c.l.b16 %v4566
        %v4641 = vunpack.c.h.b16 %v4566
        %v4642 = vunpack.c.l.b16 %v4567
        %v4643 = vunpack.c.h.b16 %v4567
        %v4644 = vunpack.c.l.b16 %v4568
        %v4645 = vunpack.c.h.b16 %v4568
        %v4646 = vunpack.c.l.b16 %v4569
        %v4647 = vunpack.c.h.b16 %v4569
        %v4648 = vunpack.c.l.b16 %v4570
        %v4649 = vunpack.c.h.b16 %v4570
        %v4650 = vunpack.c.l.b16 %v4571
        %v4651 = vunpack.c.h.b16 %v4571
        %v4652 = vunpack.c.l.b16 %v4572
        %v4653 = vunpack.c.h.b16 %v4572
        %v4654 = vunpack.c.l.b16 %v4573
        %v4655 = vunpack.c.h.b16 %v4573
        %v4656 = vunpack.c.l.b16 %v4574
        %v4657 = vunpack.c.h.b16 %v4574
        %v4658 = vunpack.c.l.b16 %v4575
        %v4659 = vunpack.c.h.b16 %v4575
        %v4660 = vunpack.c.l.b16 %v4576
        %v4661 = vunpack.c.h.b16 %v4576
        %v4662 = vunpack.c.l.b16 %v4577
        %v4663 = vunpack.c.h.b16 %v4577
        %v4664 = vunpack.c.l.b16 %v4578
        %v4665 = vunpack.c.h.b16 %v4578
        %v4666 = vunpack.c.l.b16 %v4579
        %v4667 = vunpack.c.h.b16 %v4579
        %v4668 = vunpack.c.l.b16 %v4580
        %v4669 = vunpack.c.h.b16 %v4580
        %v4670 = vunpack.c.l.b16 %v4581
        %v4671 = vunpack.c.h.b16 %v4581
        %v4672 = vunpack.c.l.b16 %v4582
        %v4673 = vunpack.c.h.b16 %v4582
        %v4674 = vunpack.c.l.b16 %v4583
        %v4675 = vunpack.c.h.b16 %v4583
        %v4676 = vunpack.c.l.b16 %v4584
        %v4677 = vunpack.c.h.b16 %v4584
        %v4678 = vunpack.c.l.b16 %v4585
        %v4679 = vunpack.c.h.b16 %v4585
        %v4680 = vunpack.c.l.b16 %v4586
        %v4681 = vunpack.c.h.b16 %v4586
        %v4682 = vunpack.c.l.b16 %v4587
        %v4683 = vunpack.c.h.b16 %v4587
        %v4684 = vunpack.c.l.b16 %v4588
        %v4685 = vunpack.c.h.b16 %v4588
        %v4686 = vunpack.c.l.b16 %v4589
        %v4687 = vunpack.c.h.b16 %v4589
        %v4688 = vunpack.c.l.b16 %v4590
        %v4689 = vunpack.c.h.b16 %v4590
        %v4690 = vpack.c.b16 %v4628, %v4626
        %v4691 = vpack.c.b16 %v4629, %v4627
        %v4692 = vpack.c.b16 %v4632, %v4630
        %v4693 = vpack.c.b16 %v4633, %v4631
        %v4694 = vpack.c.b16 %v4636, %v4634
        %v4695 = vpack.c.b16 %v4637, %v4635
        %v4696 = vpack.c.b16 %v4640, %v4638
        %v4697 = vpack.c.b16 %v4641, %v4639
        %v4698 = vpack.c.b16 %v4644, %v4642
        %v4699 = vpack.c.b16 %v4645, %v4643
        %v4700 = vpack.c.b16 %v4648, %v4646
        %v4701 = vpack.c.b16 %v4649, %v4647
        %v4702 = vpack.c.b16 %v4652, %v4650
        %v4703 = vpack.c.b16 %v4653, %v4651
        %v4704 = vpack.c.b16 %v4656, %v4654
        %v4705 = vpack.c.b16 %v4657, %v4655
        %v4706 = vpack.c.b16 %v4660, %v4658
        %v4707 = vpack.c.b16 %v4661, %v4659
        %v4708 = vpack.c.b16 %v4664, %v4662
        %v4709 = vpack.c.b16 %v4665, %v4663
        %v4710 = vpack.c.b16 %v4668, %v4666
        %v4711 = vpack.c.b16 %v4669, %v4667
        %v4712 = vpack.c.b16 %v4672, %v4670
        %v4713 = vpack.c.b16 %v4673, %v4671
        %v4714 = vpack.c.b16 %v4676, %v4674
        %v4715 = vpack.c.b16 %v4677, %v4675
        %v4716 = vpack.c.b16 %v4680, %v4678
        %v4717 = vpack.c.b16 %v4681, %v4679
        %v4718 = vpack.c.b16 %v4684, %v4682
        %v4719 = vpack.c.b16 %v4685, %v4683
        %v4720 = vpack.c.b16 %v4688, %v4686
        %v4721 = vpack.c.b16 %v4689, %v4687
        %v4755 = vlaneseq
        %v4756 = vshrl.u32 %v4755, 7
        %v4757 = vsub.s32 0, %v4756
        %v4758 = vrot.slane %v4593, %v4757
        %v4759 = vlaneseq
        %v4760 = vshrl.u32 %v4759, 7
        %v4761 = vsub.s32 1, %v4760
        %v4762 = vrot.slane %v4593, %v4761
        %4765 = vmatprep.subr.bf16.mxu0 %v4691
        %4766 = vmatpush1.bf16.msra.mxu0 %v4690
        %4767 = vmatprep.subr.bf16.mxu0 %v4693
        %4768 = vmatpush1.bf16.msra.mxu0 %v4692
        %4769 = vmatprep.subr.bf16.mxu0 %v4695
        %4770 = vmatpush1.bf16.msra.mxu0 %v4694
        %4771 = vmatprep.subr.bf16.mxu0 %v4697
        %4772 = vmatpush1.bf16.msra.mxu0 %v4696
        %4773 = vmatprep.subr.bf16.mxu0 %v4699
        %4774 = vmatpush1.bf16.msra.mxu0 %v4698
        %4775 = vmatprep.subr.bf16.mxu0 %v4701
        %4776 = vmatpush1.bf16.msra.mxu0 %v4700
        %4777 = vmatprep.subr.bf16.mxu0 %v4703
        %4778 = vmatpush1.bf16.msra.mxu0 %v4702
        %4779 = vmatprep.subr.bf16.mxu0 %v4705
        %4780 = vmatpush1.bf16.msra.mxu0 %v4704
        %4781 = vmatprep.subr.bf16.mxu0 %v4707
        %4782 = vmatpush1.bf16.msra.mxu0 %v4706
        %4783 = vmatprep.subr.bf16.mxu0 %v4709
        %4784 = vmatpush1.bf16.msra.mxu0 %v4708
        %4785 = vmatprep.subr.bf16.mxu0 %v4711
        %4786 = vmatpush1.bf16.msra.mxu0 %v4710
        %4787 = vmatprep.subr.bf16.mxu0 %v4713
        %4788 = vmatpush1.bf16.msra.mxu0 %v4712
        %4789 = vmatprep.subr.bf16.mxu0 %v4715
        %4790 = vmatpush1.bf16.msra.mxu0 %v4714
        %4791 = vmatprep.subr.bf16.mxu0 %v4717
        %4792 = vmatpush1.bf16.msra.mxu0 %v4716
        %4793 = vmatprep.subr.bf16.mxu0 %v4719
        %4794 = vmatpush1.bf16.msra.mxu0 %v4718
        %4795 = vmatprep.subr.bf16.mxu0 %v4721
        %4796 = vmatpush1.bf16.msra.mxu0 %v4720
        %4797 = vmatprep.mubr.bf16.mxu0 %v4592
        %4798 = vmatmul.mubr.bf16.gmra.mrb[0].mxu0 %v4591
        %v4799 = vpop.f32.mrb[0].mxu0
        %v4800 = vadd.f32 %v4758, %v4799
        %v4801 = vpop.f32.mrb[0].mxu0
        %v4802 = vadd.f32 %v4762, %v4801
        %v4803 = vpop.f32.mrb[0].mxu0
        %v4804 = vpop.f32.mrb[0].mxu0
        %4805 = vdwg.mxu0
        %vm4806 = vcmp.ge.f32.partialorder %v4800, 0.0
        %vm4807 = vcmp.ge.f32.partialorder %v4802, 0.0
        %v4808 = vmul.f32 %v4800, 0.01
        %v4809 = vmul.f32 %v4802, 0.01
        %v4810 = vsel %vm4806, %v4800, %v4808
        %v4811 = vsel %vm4807, %v4802, %v4809
        %v4812 = vld [vmem:[%s20] sm:$0xf]
        %v4813 = vld [vmem:[%s20 + $0x4] sm:$0xf]
        %v4814 = vld [vmem:[%s20 + $0x8] sm:$0xf]
        %v4815 = vld [vmem:[%s20 + $0xc] sm:$0xf]
        %v4816 = vld [vmem:[%s20 + $0x10] sm:$0xf]
        %v4817 = vld [vmem:[%s20 + $0x14] sm:$0xf]
        %v4818 = vld [vmem:[%s20 + $0x18] sm:$0xf]
        %v4819 = vld [vmem:[%s20 + $0x1c] sm:$0xf]
        %v4820 = vld [vmem:[%s20 + $0x20] sm:$0xf]
        %v4821 = vld [vmem:[%s20 + $0x24] sm:$0xf]
        %v4822 = vld [vmem:[%s20 + $0x28] sm:$0xf]
        %v4823 = vld [vmem:[%s20 + $0x2c] sm:$0xf]
        %v4824 = vld [vmem:[%s20 + $0x30] sm:$0xf]
        %v4825 = vld [vmem:[%s20 + $0x34] sm:$0xf]
        %v4826 = vld [vmem:[%s20 + $0x38] sm:$0xf]
        %v4827 = vld [vmem:[%s20 + $0x3c] sm:$0xf]
        %v4828 = vld [vmem:[%s20 + $0x40] sm:$0xf]
        %v4829 = vld [vmem:[%s20 + $0x44] sm:$0xf]
        %v4830 = vld [vmem:[%s20 + $0x48] sm:$0xf]
        %v4831 = vld [vmem:[%s20 + $0x4c] sm:$0xf]
        %v4832 = vld [vmem:[%s20 + $0x50] sm:$0xf]
        %v4833 = vld [vmem:[%s20 + $0x54] sm:$0xf]
        %v4834 = vld [vmem:[%s20 + $0x58] sm:$0xf]
        %v4835 = vld [vmem:[%s20 + $0x5c] sm:$0xf]
        %v4836 = vld [vmem:[%s20 + $0x60] sm:$0xf]
        %v4837 = vld [vmem:[%s20 + $0x64] sm:$0xf]
        %v4838 = vld [vmem:[%s20 + $0x68] sm:$0xf]
        %v4839 = vld [vmem:[%s20 + $0x6c] sm:$0xf]
        %v4840 = vld [vmem:[%s20 + $0x70] sm:$0xf]
        %v4841 = vld [vmem:[%s20 + $0x74] sm:$0xf]
        %v4842 = vld [vmem:[%s20 + $0x78] sm:$0xf]
        %v4843 = vld [vmem:[%s20 + $0x7c] sm:$0xf]
        %v4844 = vpack.c.bf16 %v4810, %v4810
        %v4845 = vpack.c.bf16 %v4811, %v4811
        %v4846 = vld [vmem:[%s21] sm:$0x1]
        %v4879 = vunpack.c.l.b16 %v4812
        %v4880 = vunpack.c.l.b16 %v4813
        %v4881 = vunpack.c.l.b16 %v4814
        %v4882 = vunpack.c.l.b16 %v4815
        %v4883 = vunpack.c.l.b16 %v4816
        %v4884 = vunpack.c.l.b16 %v4817
        %v4885 = vunpack.c.l.b16 %v4818
        %v4886 = vunpack.c.l.b16 %v4819
        %v4887 = vunpack.c.l.b16 %v4820
        %v4888 = vunpack.c.l.b16 %v4821
        %v4889 = vunpack.c.l.b16 %v4822
        %v4890 = vunpack.c.l.b16 %v4823
        %v4891 = vunpack.c.l.b16 %v4824
        %v4892 = vunpack.c.l.b16 %v4825
        %v4893 = vunpack.c.l.b16 %v4826
        %v4894 = vunpack.c.l.b16 %v4827
        %v4895 = vunpack.c.l.b16 %v4828
        %v4896 = vunpack.c.l.b16 %v4829
        %v4897 = vunpack.c.l.b16 %v4830
        %v4898 = vunpack.c.l.b16 %v4831
        %v4899 = vunpack.c.l.b16 %v4832
        %v4900 = vunpack.c.l.b16 %v4833
        %v4901 = vunpack.c.l.b16 %v4834
        %v4902 = vunpack.c.l.b16 %v4835
        %v4903 = vunpack.c.l.b16 %v4836
        %v4904 = vunpack.c.l.b16 %v4837
        %v4905 = vunpack.c.l.b16 %v4838
        %v4906 = vunpack.c.l.b16 %v4839
        %v4907 = vunpack.c.l.b16 %v4840
        %v4908 = vunpack.c.l.b16 %v4841
        %v4909 = vunpack.c.l.b16 %v4842
        %v4910 = vunpack.c.l.b16 %v4843
        %v4911 = vpack.c.b16 %v4880, %v4879
        %v4912 = vpack.c.b16 %v4882, %v4881
        %v4913 = vpack.c.b16 %v4884, %v4883
        %v4914 = vpack.c.b16 %v4886, %v4885
        %v4915 = vpack.c.b16 %v4888, %v4887
        %v4916 = vpack.c.b16 %v4890, %v4889
        %v4917 = vpack.c.b16 %v4892, %v4891
        %v4918 = vpack.c.b16 %v4894, %v4893
        %v4919 = vpack.c.b16 %v4896, %v4895
        %v4920 = vpack.c.b16 %v4898, %v4897
        %v4921 = vpack.c.b16 %v4900, %v4899
        %v4922 = vpack.c.b16 %v4902, %v4901
        %v4923 = vpack.c.b16 %v4904, %v4903
        %v4924 = vpack.c.b16 %v4906, %v4905
        %v4925 = vpack.c.b16 %v4908, %v4907
        %v4926 = vpack.c.b16 %v4910, %v4909
        %4943 = vmatprep.subr.bf16.mxu0 0
        %4944 = vmatpush1.bf16.msra.mxu0 %v4911
        %4945 = vmatprep.subr.bf16.mxu0 0
        %4946 = vmatpush1.bf16.msra.mxu0 %v4912
        %4947 = vmatprep.subr.bf16.mxu0 0
        %4948 = vmatpush1.bf16.msra.mxu0 %v4913
        %4949 = vmatprep.subr.bf16.mxu0 0
        %4950 = vmatpush1.bf16.msra.mxu0 %v4914
        %4951 = vmatprep.subr.bf16.mxu0 0
        %4952 = vmatpush1.bf16.msra.mxu0 %v4915
        %4953 = vmatprep.subr.bf16.mxu0 0
        %4954 = vmatpush1.bf16.msra.mxu0 %v4916
        %4955 = vmatprep.subr.bf16.mxu0 0
        %4956 = vmatpush1.bf16.msra.mxu0 %v4917
        %4957 = vmatprep.subr.bf16.mxu0 0
        %4958 = vmatpush1.bf16.msra.mxu0 %v4918
        %4959 = vmatprep.subr.bf16.mxu0 0
        %4960 = vmatpush1.bf16.msra.mxu0 %v4919
        %4961 = vmatprep.subr.bf16.mxu0 0
        %4962 = vmatpush1.bf16.msra.mxu0 %v4920
        %4963 = vmatprep.subr.bf16.mxu0 0
        %4964 = vmatpush1.bf16.msra.mxu0 %v4921
        %4965 = vmatprep.subr.bf16.mxu0 0
        %4966 = vmatpush1.bf16.msra.mxu0 %v4922
        %4967 = vmatprep.subr.bf16.mxu0 0
        %4968 = vmatpush1.bf16.msra.mxu0 %v4923
        %4969 = vmatprep.subr.bf16.mxu0 0
        %4970 = vmatpush1.bf16.msra.mxu0 %v4924
        %4971 = vmatprep.subr.bf16.mxu0 0
        %4972 = vmatpush1.bf16.msra.mxu0 %v4925
        %4973 = vmatprep.subr.bf16.mxu0 0
        %4974 = vmatpush1.bf16.msra.mxu0 %v4926
        %4975 = vmatprep.mubr.bf16.mxu0 %v4845
        %4976 = vmatmul.mubr.bf16.gmra.mrb[0].mxu0 %v4844
        %v4977 = vpop.f32.mrb[0].mxu0
        %v4978 = vadd.f32 %v4846, %v4977
        %v4979 = vpop.f32.mrb[0].mxu0
        %v4980 = vpop.f32.mrb[0].mxu0
        %v4981 = vpop.f32.mrb[0].mxu0
        %4982 = vdwg.mxu0
        %v4983 = vmax.f32 %v4978, 0.0
        %v4984 = vadd.f32 %v4983, 0.1
        %vm4985 = vcmask 122880
        %v4986 = vsel %vm4985, %v4984, 0.0
        %4987 = vadd.xlane.f32.xlu0 %v4986
        %v4988 = vpop.xlane.xlu0 %4987
        %v4989 = vrcp.pop %v4988
        %v4990 = vmul.f32 %v4984, %v4989
        %4991 = vst.msk [vmem:[%s703] sm:$0x1] %vm4985, %v4990
        %s4992 = sand.u32 %s513, 1
        %s4993 = scalar_lea.sflag [#allocation3], %s4992
        %s4994 = sand.u32 %s513, 1
        %s4995 = scalar_lea.vmem [#allocation2], %s4994
        %p4996 = scmp.lt.s32.totalorder %s38, 1
        %s4997 = scalar_select %p4996, %s38, 1
        %s4998 = smul.addr %s4997, 8
        %s4999 = scalar_lea.vmem %s23, %s4998
        // Predicated region
        $region109: #{mvit_forward.2} parent=107 // pred_check
          %p5000 = pneg %p523
        $region110: #{mvit_forward.2} parent=107 // pred_check_branch
          %5002 = sbr.rel (%p5000) target = $region112
        $region111: #{mvit_forward.2} parent=107 // pred_region
          %s5004 = ssub.s32 16, 16
          %5005 = vsyncadd %s4993, %s5004
          %s5006 = smul.addr %s38, 16
          %s5007 = scalar_lea.hbm %s22, %s5006
          %s5009 = sshll.u32 %s4995, 4
          %s5010 = int_to_ptr.vmem [resolvable:$true] %s5009
          %5012 = dma.vmem_to_hbm [thread:$0]  %s5010, 16, %s5007, %s4993
        $region112: #{mvit_forward.2} parent=107 // pred_fallthru
          _
        // Predicated region
        $region113: #{mvit_forward.2} parent=107 // pred_check
          %p5013 = pneg %p549
        $region114: #{mvit_forward.2} parent=107 // pred_check_branch
          %5015 = sbr.rel (%p5013) target = $region116
        $region115: #{mvit_forward.2} parent=107 // pred_region
          _
        $region116: #{mvit_forward.2} parent=107 // pred_fallthru
          _
      $region108: #{mvit_forward.2} parent=5 // pred_fallthru
        _
      %p5016 = scmp.le.s32.totalorder 2, %s33
      // Predicated region
      $region117: #{mvit_forward.2} parent=5 // pred_check
        %p5017 = pneg %p5016
      $region118: #{mvit_forward.2} parent=5 // pred_check_branch
        %5019 = sbr.rel (%p5017) target = $region120
      $region119: #{mvit_forward.2} parent=5 // pred_region
        %s5020 = ssub.s32 %s33, 2
        // Predicated region
        $region121: #{mvit_forward.2} parent=119 // pred_check
          %p5021 = pneg %p529
        $region122: #{mvit_forward.2} parent=119 // pred_check_branch
          %5023 = sbr.rel (%p5021) target = $region124
        $region123: #{mvit_forward.2} parent=119 // pred_region
          %s5024 = sand.u32 %s514, 1
          %s5025 = scalar_lea.sflag [#allocation3], %s5024
          %s5026 = sand.u32 %s514, 1
          %s5027 = scalar_lea.vmem [#allocation2], %s5026
          %5028 = dma.done %s5025, 16
        $region124: #{mvit_forward.2} parent=119 // pred_fallthru
          _
        // Predicated region
        $region125: #{mvit_forward.2} parent=119 // pred_check
          %p5029 = pneg %p555
        $region126: #{mvit_forward.2} parent=119 // pred_check_branch
          %5031 = sbr.rel (%p5029) target = $region128
        $region127: #{mvit_forward.2} parent=119 // pred_region
          %p5032 = scmp.lt.s32.totalorder %s39, 1
          %s5033 = scalar_select %p5032, %s39, 1
          %s5034 = smul.addr %s5033, 8
          %s5035 = scalar_lea.vmem %s23, %s5034
        $region128: #{mvit_forward.2} parent=119 // pred_fallthru
          _
      $region120: #{mvit_forward.2} parent=5 // pred_fallthru
        _
    $region6: #{mvit_forward.2} parent=1 // loop_footer
      %s37 = sadd.s32 1, %s33
    $region7: #{mvit_forward.2} parent=1 // loop_footer_branch
      %32 = sbr.rel target = $region3
    $region8: #{mvit_forward.2} parent=1 // loop_exit
      _
    %5036 = vsyncpa [#allocation3], 1
    %s5037 = scalar_lea.sflag [#allocation3], 1
    %5038 = vsyncpa %s5037, 1

</llo_original>
